<compile_context>
chip_gen: v7x
topology: tpu7x:2x2x1
jax: 0.10.0
libtpu: 0.0.40
codegen_flags: <defaults>
</compile_context>

<pallas_src>
import jax
import jax.numpy as jnp
from jax import lax
from jax.experimental import pallas as pl

# ------------------------- configuration (small) -----------------------------
BS = 2
N_NODES = 8
N_DIMS = 3
INCLUDE_CHARGES = 1
NUM_CLASSES = 5
IN_NODE_NF = NUM_CLASSES + INCLUDE_CHARGES      # 6 invariant node features
CONTEXT_NF = 0                                  # context=None path
OUT_NODE_NF = 2
HIDDEN_NF = 32
N_LAYERS = 2
INV_SUBLAYERS = 2
NORM_CONSTANT = 0.0
NORMALIZATION_FACTOR = 100.0

DIMS = N_DIMS + IN_NODE_NF                      # xh feature dim (9)
E = N_NODES * N_NODES                           # edges per graph (64)
OUT2 = 2 * OUT_NODE_NF + 1                      # final_mlp output dim (5)
L_GCL = N_LAYERS * INV_SUBLAYERS                # total GCL sublayers (4)
OUT_W = N_DIMS + 1 + 2 * OUT_NODE_NF            # packed output width (8)

# ----------------------- packed-weight static offsets ------------------------
# (H, H) weight stack
EW1S = 0
EW1T = EW1S + L_GCL
EW2 = EW1T + L_GCL
NW1H = EW2 + L_GCL
NW1A = NW1H + L_GCL
NW2 = NW1A + L_GCL
CW1S = NW2 + L_GCL
CW1T = CW1S + N_LAYERS
CW2 = CW1T + N_LAYERS
EO_W = CW2 + N_LAYERS
F1_W = EO_W + 1
N_HH = F1_W + 1                                 # 32

# (1, H) bias stack
EB1 = 0
EB2 = EB1 + L_GCL
NB1 = EB2 + L_GCL
NB2 = NB1 + L_GCL
CB1 = NB2 + L_GCL
CB2 = CB1 + N_LAYERS
EMB_B = CB2 + N_LAYERS
EO_B = EMB_B + 1
F1_B = EO_B + 1
N_B = F1_B + 1                                  # 23

# (2, H) edge-attr weight stack
EW1E = 0
CW1E = L_GCL


def _silu(x):
    return x * jax.nn.sigmoid(x)


def _edge_pair(v):
    """Per-edge (src, dst) features for the fully-connected block-diagonal
    graph.  v: (BS*N, F) -> (src, dst), each (BS*E, F), edge order
    e = b*N*N + i*N + j with src = node b*N+i, dst = node b*N+j."""
    f = v.shape[-1]
    src = jnp.broadcast_to(
        v.reshape(BS * N_NODES, 1, f),
        (BS * N_NODES, N_NODES, f)).reshape(BS * E, f)
    dst = jnp.broadcast_to(
        v.reshape(BS, 1, N_NODES, f),
        (BS, N_NODES, N_NODES, f)).reshape(BS * E, f)
    return src, dst


def _seg_sum(e):
    """Segment-sum edge features onto their source node: (BS*E, F)->(BS*N, F)."""
    f = e.shape[-1]
    return jnp.sum(e.reshape(BS * N_NODES, N_NODES, f), axis=1)


# --------------------------------- kernel ------------------------------------
def egnn_encoder_kernel(
    xh_ref, nmask_ref, emask_ref,
    whh_ref, bias_ref, we2_ref, emb_w_ref, cw3_ref, f2_w_ref, f2_b_ref,
    out_ref,
):
    f32 = jnp.float32
    xh = xh_ref[...].astype(f32)       # (BS*N, DIMS)
    nm = nmask_ref[...].astype(f32)    # (BS*N, 1)
    em = emask_ref[...].astype(f32)    # (BS*E, 1)

    def mm(a, b):
        return jnp.dot(a, b, preferred_element_type=jnp.float32)

    # xh = xh * node_mask ; split coords / invariant features
    xh = xh * nm
    x = xh[:, :N_DIMS]                 # (BS*N, 3)
    h = xh[:, N_DIMS:]                 # (BS*N, IN_NODE_NF)

    # EGNN-level distances from the initial (masked) coordinates
    xs0, xd0 = _edge_pair(x)
    diff0 = xs0 - xd0
    dist0 = jnp.sum(diff0 * diff0, axis=1, keepdims=True)     # (BS*E, 1)

    # h = embedding(h)
    h = mm(h, emb_w_ref[...]) + bias_ref[EMB_B]

    for layer in range(N_LAYERS):
        # ----- EquivariantBlock: coord2diff with current coordinates -----
        xs, xd = _edge_pair(x)
        diff = xs - xd
        radial = jnp.sum(diff * diff, axis=1, keepdims=True)  # (BS*E, 1)
        # norm_constant == 0  ->  diff / sqrt(radial + 1e-8) == diff*rsqrt(.)
        coord_diff = diff * lax.rsqrt(radial + 1e-8)
        edge_attr = jnp.concatenate([radial, dist0], axis=1)  # (BS*E, 2)

        # ----- inv_sublayers x GCL -----
        for sub in range(INV_SUBLAYERS):
            l = layer * INV_SUBLAYERS + sub
            hs, ht = _edge_pair(h)
            pre = (mm(hs, whh_ref[EW1S + l]) + mm(ht, whh_ref[EW1T + l])
                   + mm(edge_attr, we2_ref[EW1E + l]) + bias_ref[EB1 + l])
            m = _silu(pre)
            m = _silu(mm(m, whh_ref[EW2 + l]) + bias_ref[EB2 + l])   # (BS*E,H)
            m = m * em
            agg = _seg_sum(m)          # 1/normalization_factor folded in nw1a
            node_pre = (mm(h, whh_ref[NW1H + l]) + mm(agg, whh_ref[NW1A + l])
                        + bias_ref[NB1 + l])
            h = h + mm(_silu(node_pre), whh_ref[NW2 + l]) + bias_ref[NB2 + l]
            h = h * nm                                            # node mask

        # ----- EquivariantUpdate (coord model), tanh=False -----
        hs, ht = _edge_pair(h)
        t = _silu(mm(hs, whh_ref[CW1S + layer]) + mm(ht, whh_ref[CW1T + layer])
                  + mm(edge_attr, we2_ref[CW1E + layer]) + bias_ref[CB1 + layer])
        t = _silu(mm(t, whh_ref[CW2 + layer]) + bias_ref[CB2 + layer])
        phi = mm(t, cw3_ref[layer])    # (BS*E,1), no bias, 1/norm folded in
        trans = coord_diff * phi * em
        x = x + _seg_sum(trans)
        x = x * nm
        h = h * nm

    # h = embedding_out(h) * node_mask
    h_final = (mm(h, whh_ref[EO_W]) + bias_ref[EO_B]) * nm

    # vel = x_final * node_mask, then remove_mean_with_mask (per graph)
    vel = x * nm
    vel3 = vel.reshape(BS, N_NODES, N_DIMS)
    nm3 = nm.reshape(BS, N_NODES, 1)
    n_act = jnp.sum(nm3, axis=1, keepdims=True)               # (BS,1,1)
    mean = jnp.sum(vel3, axis=1, keepdims=True) / n_act       # (BS,1,3)
    vel = (vel3 - mean * nm3).reshape(BS * N_NODES, N_DIMS)

    # final_mlp: Linear -> SiLU -> Linear, then node mask
    hf = mm(_silu(mm(h_final, whh_ref[F1_W]) + bias_ref[F1_B]),
            f2_w_ref[...]) + f2_b_ref[...]                    # (BS*N, 2*out+1)
    hf = hf * nm

    # vel_std = exp(0.5 * sum_over_nodes(hf[:, 0])) per graph, broadcast to all
    # nodes; the reference does NOT re-mask vel_std / h_std after the exp.
    s0 = jnp.sum(hf[:, 0:1].reshape(BS, N_NODES, 1), axis=1, keepdims=True)
    vel_std = jnp.broadcast_to(jnp.exp(0.5 * s0),
                               (BS, N_NODES, 1)).reshape(BS * N_NODES, 1)
    h_mean = hf[:, 1:1 + OUT_NODE_NF]
    h_std = jnp.exp(0.5 * hf[:, 1 + OUT_NODE_NF:1 + 2 * OUT_NODE_NF])

    # single lane-contiguous store: [vel(3) | vel_std(1) | h_mean(2) | h_std(2)]
    out_ref[...] = jnp.concatenate([vel, vel_std, h_mean, h_std], axis=1)


# ------------------------------ wrapper --------------------------------------
def pack_params(p):
    """Stack weights/biases into a few tensors and fold 1/normalization_factor
    into the aggregate-path weights (nw1a, cw3)."""
    inv_nf = 1.0 / NORMALIZATION_FACTOR
    w_hh = jnp.concatenate([
        p["ew1s"], p["ew1t"], p["ew2"],
        p["nw1h"], p["nw1a"] * inv_nf, p["nw2"],
        p["cw1s"], p["cw1t"], p["cw2"],
        p["eo_w"][None], p["f1_w"][None],
    ], axis=0)                                                # (N_HH, H, H)
    b_all = jnp.concatenate([
        p["eb1"], p["eb2"], p["nb1"], p["nb2"],
        p["cb1"], p["cb2"],
        p["emb_b"][None], p["eo_b"][None], p["f1_b"][None],
    ], axis=0)                                                # (N_B, 1, H)
    w_e2 = jnp.concatenate([p["ew1e"], p["cw1e"]], axis=0)    # (6, 2, H)
    cw3 = p["cw3"] * inv_nf                                   # (N_LAYERS, H, 1)
    return w_hh, b_all, w_e2, p["emb_w"], cw3, p["f2_w"], p["f2_b"]


def egnn_encoder_forward(xh, node_mask, edge_mask, packed):
    w_hh, b_all, w_e2, emb_w, cw3, f2_w, f2_b = packed
    xh2 = xh.reshape(BS * N_NODES, DIMS)
    nm2 = node_mask.reshape(BS * N_NODES, 1)
    em2 = edge_mask.reshape(BS * E, 1)

    out = pl.pallas_call(
        egnn_encoder_kernel,
        out_shape=jax.ShapeDtypeStruct((BS * N_NODES, OUT_W), jnp.float32),
    )(xh2, nm2, em2, w_hh, b_all, w_e2, emb_w, cw3, f2_w, f2_b)

    out = out.reshape(BS, N_NODES, OUT_W)
    vel_mean = out[:, :, :N_DIMS]
    vel_std = out[:, :, N_DIMS:N_DIMS + 1]
    h_mean = out[:, :, N_DIMS + 1:N_DIMS + 1 + OUT_NODE_NF]
    h_std = out[:, :, N_DIMS + 1 + OUT_NODE_NF:]
    return vel_mean, vel_std, h_mean, h_std


egnn_encoder_forward_jit = jax.jit(egnn_encoder_forward)


# ------------------------ deterministic params / inputs ----------------------
def make_params(key):
    ks = iter(jax.random.split(key, 64))
    H = HIDDEN_NF

    def w(shape, scale=0.1):
        return (scale * jax.random.normal(next(ks), shape)).astype(jnp.float32)

    def b(shape, scale=0.02):
        return (scale * jax.random.normal(next(ks), shape)).astype(jnp.float32)

    p = {
        "emb_w": w((IN_NODE_NF + CONTEXT_NF, H)), "emb_b": b((1, H)),
        # GCL edge_mlp (Linear(2H+2,H) split src/tgt/edge), L_GCL stacked
        "ew1s": w((L_GCL, H, H)), "ew1t": w((L_GCL, H, H)),
        "ew1e": w((L_GCL, 2, H)), "eb1": b((L_GCL, 1, H)),
        "ew2": w((L_GCL, H, H)), "eb2": b((L_GCL, 1, H)),
        # GCL node_mlp (Linear(2H,H) split h/agg)
        "nw1h": w((L_GCL, H, H)), "nw1a": w((L_GCL, H, H)),
        "nb1": b((L_GCL, 1, H)),
        "nw2": w((L_GCL, H, H)), "nb2": b((L_GCL, 1, H)),
        # EquivariantUpdate coord_mlp per block
        "cw1s": w((N_LAYERS, H, H)), "cw1t": w((N_LAYERS, H, H)),
        "cw1e": w((N_LAYERS, 2, H)), "cb1": b((N_LAYERS, 1, H)),
        "cw2": w((N_LAYERS, H, H)), "cb2": b((N_LAYERS, 1, H)),
        "cw3": w((N_LAYERS, H, 1), scale=0.001),   # xavier gain=0.001, no bias
        # embedding_out, final_mlp
        "eo_w": w((H, H)), "eo_b": b((1, H)),
        "f1_w": w((H, H)), "f1_b": b((1, H)),
        "f2_w": w((H, OUT2), scale=0.05), "f2_b": jnp.zeros((1, OUT2), jnp.float32),
    }
    return p


if __name__ == "__main__":
    key = jax.random.PRNGKey(0)
    k_par, k_xh = jax.random.split(key)

    params = make_params(k_par)
    packed = pack_params(params)

    # inputs: xh (bs, n_nodes, n_dims + in_node_nf), node_mask, edge_mask
    xh = jax.random.normal(k_xh, (BS, N_NODES, DIMS), dtype=jnp.float32)
    node_mask = jnp.ones((BS, N_NODES, 1), dtype=jnp.float32)
    node_mask = node_mask.at[1, N_NODES - 1, 0].set(0.0)   # mask one node
    pair_mask = node_mask * jnp.transpose(node_mask, (0, 2, 1))        # (bs,n,n)
    pair_mask = pair_mask * (1.0 - jnp.eye(N_NODES, dtype=jnp.float32))
    edge_mask = pair_mask.reshape(BS, E, 1)

    outs = egnn_encoder_forward_jit(xh, node_mask, edge_mask, packed)
    outs = jax.block_until_ready(outs)
    vel_mean, vel_std, h_mean, h_std = outs
    assert vel_mean.shape == (BS, N_NODES, N_DIMS)
    assert vel_std.shape == (BS, N_NODES, 1)
    assert h_mean.shape == (BS, N_NODES, OUT_NODE_NF)
    assert h_std.shape == (BS, N_NODES, OUT_NODE_NF)
    assert bool(jnp.all(jnp.isfinite(vel_mean))) and bool(jnp.all(jnp.isfinite(h_std)))
    print("KERNEL_OK")
</pallas_src>

<mosaic_0001>
module attributes {stable_mosaic.version = 11 : i64} {
  func.func @egnn_encoder_kernel(%arg0: memref<16x9xf32, #tpu.memory_space<vmem>>, %arg1: memref<16x1xf32, #tpu.memory_space<vmem>>, %arg2: memref<128x1xf32, #tpu.memory_space<vmem>>, %arg3: memref<32x32x32xf32, #tpu.memory_space<vmem>>, %arg4: memref<23x1x32xf32, #tpu.memory_space<vmem>>, %arg5: memref<6x2x32xf32, #tpu.memory_space<vmem>>, %arg6: memref<6x32xf32, #tpu.memory_space<vmem>>, %arg7: memref<2x32x1xf32, #tpu.memory_space<vmem>>, %arg8: memref<32x5xf32, #tpu.memory_space<vmem>>, %arg9: memref<1x5xf32, #tpu.memory_space<vmem>>, %arg10: memref<16x8xf32, #tpu.memory_space<vmem>>) attributes {dimension_semantics = [], scalar_prefetch = 0 : i64, scratch_operands = 0 : i64, tpu.core_type = #tpu.core_type<tc>} {
    %c0 = arith.constant 0 : index
    %c0_0 = arith.constant 0 : index
    %0 = vector.load %arg0[%c0, %c0_0] : memref<16x9xf32, #tpu.memory_space<vmem>>, vector<16x9xf32>
    %c0_1 = arith.constant 0 : index
    %c0_2 = arith.constant 0 : index
    %1 = vector.load %arg1[%c0_1, %c0_2] : memref<16x1xf32, #tpu.memory_space<vmem>>, vector<16x1xf32>
    %c0_3 = arith.constant 0 : index
    %c0_4 = arith.constant 0 : index
    %2 = vector.load %arg2[%c0_3, %c0_4] : memref<128x1xf32, #tpu.memory_space<vmem>>, vector<128x1xf32>
    %3 = vector.broadcast %1 : vector<16x1xf32> to vector<16x9xf32>
    %4 = arith.mulf %0, %3 : vector<16x9xf32>
    %5 = vector.extract_strided_slice %4 {offsets = [0, 0], sizes = [16, 3], strides = [1, 1]} : vector<16x9xf32> to vector<16x3xf32>
    %6 = vector.extract_strided_slice %4 {offsets = [0, 3], sizes = [16, 6], strides = [1, 1]} : vector<16x9xf32> to vector<16x6xf32>
    %7 = vector.shape_cast %5 : vector<16x3xf32> to vector<16x1x3xf32>
    %8 = vector.shape_cast %7 : vector<16x1x3xf32> to vector<16x1x3xf32>
    %9 = vector.broadcast %8 : vector<16x1x3xf32> to vector<16x8x3xf32>
    %10 = vector.shape_cast %9 : vector<16x8x3xf32> to vector<128x3xf32>
    %11 = vector.shape_cast %5 : vector<16x3xf32> to vector<2x1x8x3xf32>
    %12 = vector.shape_cast %11 : vector<2x1x8x3xf32> to vector<2x1x8x3xf32>
    %13 = vector.broadcast %12 : vector<2x1x8x3xf32> to vector<2x8x8x3xf32>
    %14 = vector.shape_cast %13 : vector<2x8x8x3xf32> to vector<128x3xf32>
    %15 = arith.subf %10, %14 : vector<128x3xf32>
    %16 = arith.mulf %15, %15 : vector<128x3xf32>
    %cst = arith.constant dense<0.000000e+00> : vector<128xf32>
    %17 = vector.multi_reduction <add>, %16, %cst [1] : vector<128x3xf32> to vector<128xf32>
    %18 = vector.shape_cast %17 : vector<128xf32> to vector<128x1xf32>
    %c0_5 = arith.constant 0 : index
    %c0_6 = arith.constant 0 : index
    %19 = vector.load %arg6[%c0_5, %c0_6] : memref<6x32xf32, #tpu.memory_space<vmem>>, vector<6x32xf32>
    %cst_7 = arith.constant dense<0.000000e+00> : vector<16x32xf32>
    %20 = tpu.matmul %6, %19, %cst_7 {dimension_numbers = #tpu.dot_dimension_numbers<[1], [0], [0], [1], [0, 0, 1, 1], [], []>} : vector<16x6xf32>, vector<6x32xf32>, vector<16x32xf32> -> vector<16x32xf32>
    %c20 = arith.constant 20 : index
    %c0_8 = arith.constant 0 : index
    %c0_9 = arith.constant 0 : index
    %21 = vector.load %arg4[%c20, %c0_8, %c0_9] : memref<23x1x32xf32, #tpu.memory_space<vmem>>, vector<1x1x32xf32>
    %22 = vector.shape_cast %21 : vector<1x1x32xf32> to vector<1x32xf32>
    %23 = vector.broadcast %22 : vector<1x32xf32> to vector<16x32xf32>
    %24 = arith.addf %20, %23 : vector<16x32xf32>
    %25 = vector.shape_cast %5 : vector<16x3xf32> to vector<16x1x3xf32>
    %26 = vector.shape_cast %25 : vector<16x1x3xf32> to vector<16x1x3xf32>
    %27 = vector.broadcast %26 : vector<16x1x3xf32> to vector<16x8x3xf32>
    %28 = vector.shape_cast %27 : vector<16x8x3xf32> to vector<128x3xf32>
    %29 = vector.shape_cast %5 : vector<16x3xf32> to vector<2x1x8x3xf32>
    %30 = vector.shape_cast %29 : vector<2x1x8x3xf32> to vector<2x1x8x3xf32>
    %31 = vector.broadcast %30 : vector<2x1x8x3xf32> to vector<2x8x8x3xf32>
    %32 = vector.shape_cast %31 : vector<2x8x8x3xf32> to vector<128x3xf32>
    %33 = arith.subf %28, %32 : vector<128x3xf32>
    %34 = arith.mulf %33, %33 : vector<128x3xf32>
    %cst_10 = arith.constant dense<0.000000e+00> : vector<128xf32>
    %35 = vector.multi_reduction <add>, %34, %cst_10 [1] : vector<128x3xf32> to vector<128xf32>
    %36 = vector.shape_cast %35 : vector<128xf32> to vector<128x1xf32>
    %cst_11 = arith.constant 9.99999993E-9 : f32
    %37 = vector.broadcast %cst_11 : f32 to vector<128x1xf32>
    %38 = arith.addf %36, %37 : vector<128x1xf32>
    %39 = math.rsqrt %38 : vector<128x1xf32>
    %40 = vector.broadcast %39 : vector<128x1xf32> to vector<128x3xf32>
    %41 = arith.mulf %33, %40 : vector<128x3xf32>
    %42 = tpu.concatenate %36, %18 in 1 : vector<128x1xf32>, vector<128x1xf32> -> vector<128x2xf32>
    %43 = vector.shape_cast %24 : vector<16x32xf32> to vector<16x1x32xf32>
    %44 = vector.shape_cast %43 : vector<16x1x32xf32> to vector<16x1x32xf32>
    %45 = vector.broadcast %44 : vector<16x1x32xf32> to vector<16x8x32xf32>
    %46 = vector.shape_cast %45 : vector<16x8x32xf32> to vector<128x32xf32>
    %47 = vector.shape_cast %24 : vector<16x32xf32> to vector<2x1x8x32xf32>
    %48 = vector.shape_cast %47 : vector<2x1x8x32xf32> to vector<2x1x8x32xf32>
    %49 = vector.broadcast %48 : vector<2x1x8x32xf32> to vector<2x8x8x32xf32>
    %50 = vector.shape_cast %49 : vector<2x8x8x32xf32> to vector<128x32xf32>
    %c0_12 = arith.constant 0 : index
    %c0_13 = arith.constant 0 : index
    %c0_14 = arith.constant 0 : index
    %51 = vector.load %arg3[%c0_12, %c0_13, %c0_14] : memref<32x32x32xf32, #tpu.memory_space<vmem>>, vector<1x32x32xf32>
    %52 = vector.shape_cast %51 : vector<1x32x32xf32> to vector<32x32xf32>
    %cst_15 = arith.constant dense<0.000000e+00> : vector<128x32xf32>
    %53 = tpu.matmul %46, %52, %cst_15 {dimension_numbers = #tpu.dot_dimension_numbers<[1], [0], [0], [1], [0, 0, 1, 1], [], []>} : vector<128x32xf32>, vector<32x32xf32>, vector<128x32xf32> -> vector<128x32xf32>
    %c4 = arith.constant 4 : index
    %c0_16 = arith.constant 0 : index
    %c0_17 = arith.constant 0 : index
    %54 = vector.load %arg3[%c4, %c0_16, %c0_17] : memref<32x32x32xf32, #tpu.memory_space<vmem>>, vector<1x32x32xf32>
    %55 = vector.shape_cast %54 : vector<1x32x32xf32> to vector<32x32xf32>
    %cst_18 = arith.constant dense<0.000000e+00> : vector<128x32xf32>
    %56 = tpu.matmul %50, %55, %cst_18 {dimension_numbers = #tpu.dot_dimension_numbers<[1], [0], [0], [1], [0, 0, 1, 1], [], []>} : vector<128x32xf32>, vector<32x32xf32>, vector<128x32xf32> -> vector<128x32xf32>
    %57 = arith.addf %53, %56 : vector<128x32xf32>
    %c0_19 = arith.constant 0 : index
    %c0_20 = arith.constant 0 : index
    %c0_21 = arith.constant 0 : index
    %58 = vector.load %arg5[%c0_19, %c0_20, %c0_21] : memref<6x2x32xf32, #tpu.memory_space<vmem>>, vector<1x2x32xf32>
    %59 = vector.shape_cast %58 : vector<1x2x32xf32> to vector<2x32xf32>
    %cst_22 = arith.constant dense<0.000000e+00> : vector<128x32xf32>
    %60 = tpu.matmul %42, %59, %cst_22 {dimension_numbers = #tpu.dot_dimension_numbers<[1], [0], [0], [1], [0, 0, 1, 1], [], []>} : vector<128x2xf32>, vector<2x32xf32>, vector<128x32xf32> -> vector<128x32xf32>
    %61 = arith.addf %57, %60 : vector<128x32xf32>
    %c0_23 = arith.constant 0 : index
    %c0_24 = arith.constant 0 : index
    %c0_25 = arith.constant 0 : index
    %62 = vector.load %arg4[%c0_23, %c0_24, %c0_25] : memref<23x1x32xf32, #tpu.memory_space<vmem>>, vector<1x1x32xf32>
    %63 = vector.shape_cast %62 : vector<1x1x32xf32> to vector<1x32xf32>
    %64 = vector.broadcast %63 : vector<1x32xf32> to vector<128x32xf32>
    %65 = arith.addf %61, %64 : vector<128x32xf32>
    %66 = arith.negf %65 : vector<128x32xf32>
    %67 = math.exp %66 : vector<128x32xf32>
    %cst_26 = arith.constant 1.000000e+00 : f32
    %68 = vector.broadcast %cst_26 : f32 to vector<128x32xf32>
    %69 = arith.addf %68, %67 : vector<128x32xf32>
    %70 = arith.divf %68, %69 : vector<128x32xf32>
    %71 = arith.mulf %65, %70 : vector<128x32xf32>
    %c8 = arith.constant 8 : index
    %c0_27 = arith.constant 0 : index
    %c0_28 = arith.constant 0 : index
    %72 = vector.load %arg3[%c8, %c0_27, %c0_28] : memref<32x32x32xf32, #tpu.memory_space<vmem>>, vector<1x32x32xf32>
    %73 = vector.shape_cast %72 : vector<1x32x32xf32> to vector<32x32xf32>
    %cst_29 = arith.constant dense<0.000000e+00> : vector<128x32xf32>
    %74 = tpu.matmul %71, %73, %cst_29 {dimension_numbers = #tpu.dot_dimension_numbers<[1], [0], [0], [1], [0, 0, 1, 1], [], []>} : vector<128x32xf32>, vector<32x32xf32>, vector<128x32xf32> -> vector<128x32xf32>
    %c4_30 = arith.constant 4 : index
    %c0_31 = arith.constant 0 : index
    %c0_32 = arith.constant 0 : index
    %75 = vector.load %arg4[%c4_30, %c0_31, %c0_32] : memref<23x1x32xf32, #tpu.memory_space<vmem>>, vector<1x1x32xf32>
    %76 = vector.shape_cast %75 : vector<1x1x32xf32> to vector<1x32xf32>
    %77 = vector.broadcast %76 : vector<1x32xf32> to vector<128x32xf32>
    %78 = arith.addf %74, %77 : vector<128x32xf32>
    %79 = arith.negf %78 : vector<128x32xf32>
    %80 = math.exp %79 : vector<128x32xf32>
    %cst_33 = arith.constant 1.000000e+00 : f32
    %81 = vector.broadcast %cst_33 : f32 to vector<128x32xf32>
    %82 = arith.addf %81, %80 : vector<128x32xf32>
    %83 = arith.divf %81, %82 : vector<128x32xf32>
    %84 = arith.mulf %78, %83 : vector<128x32xf32>
    %85 = vector.broadcast %2 : vector<128x1xf32> to vector<128x32xf32>
    %86 = arith.mulf %84, %85 : vector<128x32xf32>
    %87 = vector.shape_cast %86 : vector<128x32xf32> to vector<16x8x32xf32>
    %cst_34 = arith.constant dense<0.000000e+00> : vector<16x32xf32>
    %88 = vector.multi_reduction <add>, %87, %cst_34 [1] : vector<16x8x32xf32> to vector<16x32xf32>
    %c12 = arith.constant 12 : index
    %c0_35 = arith.constant 0 : index
    %c0_36 = arith.constant 0 : index
    %89 = vector.load %arg3[%c12, %c0_35, %c0_36] : memref<32x32x32xf32, #tpu.memory_space<vmem>>, vector<1x32x32xf32>
    %90 = vector.shape_cast %89 : vector<1x32x32xf32> to vector<32x32xf32>
    %cst_37 = arith.constant dense<0.000000e+00> : vector<16x32xf32>
    %91 = tpu.matmul %24, %90, %cst_37 {dimension_numbers = #tpu.dot_dimension_numbers<[1], [0], [0], [1], [0, 0, 1, 1], [], []>} : vector<16x32xf32>, vector<32x32xf32>, vector<16x32xf32> -> vector<16x32xf32>
    %c16 = arith.constant 16 : index
    %c0_38 = arith.constant 0 : index
    %c0_39 = arith.constant 0 : index
    %92 = vector.load %arg3[%c16, %c0_38, %c0_39] : memref<32x32x32xf32, #tpu.memory_space<vmem>>, vector<1x32x32xf32>
    %93 = vector.shape_cast %92 : vector<1x32x32xf32> to vector<32x32xf32>
    %cst_40 = arith.constant dense<0.000000e+00> : vector<16x32xf32>
    %94 = tpu.matmul %88, %93, %cst_40 {dimension_numbers = #tpu.dot_dimension_numbers<[1], [0], [0], [1], [0, 0, 1, 1], [], []>} : vector<16x32xf32>, vector<32x32xf32>, vector<16x32xf32> -> vector<16x32xf32>
    %95 = arith.addf %91, %94 : vector<16x32xf32>
    %c8_41 = arith.constant 8 : index
    %c0_42 = arith.constant 0 : index
    %c0_43 = arith.constant 0 : index
    %96 = vector.load %arg4[%c8_41, %c0_42, %c0_43] : memref<23x1x32xf32, #tpu.memory_space<vmem>>, vector<1x1x32xf32>
    %97 = vector.shape_cast %96 : vector<1x1x32xf32> to vector<1x32xf32>
    %98 = vector.broadcast %97 : vector<1x32xf32> to vector<16x32xf32>
    %99 = arith.addf %95, %98 : vector<16x32xf32>
    %100 = arith.negf %99 : vector<16x32xf32>
    %101 = math.exp %100 : vector<16x32xf32>
    %cst_44 = arith.constant 1.000000e+00 : f32
    %102 = vector.broadcast %cst_44 : f32 to vector<16x32xf32>
    %103 = arith.addf %102, %101 : vector<16x32xf32>
    %104 = arith.divf %102, %103 : vector<16x32xf32>
    %105 = arith.mulf %99, %104 : vector<16x32xf32>
    %c20_45 = arith.constant 20 : index
    %c0_46 = arith.constant 0 : index
    %c0_47 = arith.constant 0 : index
    %106 = vector.load %arg3[%c20_45, %c0_46, %c0_47] : memref<32x32x32xf32, #tpu.memory_space<vmem>>, vector<1x32x32xf32>
    %107 = vector.shape_cast %106 : vector<1x32x32xf32> to vector<32x32xf32>
    %cst_48 = arith.constant dense<0.000000e+00> : vector<16x32xf32>
    %108 = tpu.matmul %105, %107, %cst_48 {dimension_numbers = #tpu.dot_dimension_numbers<[1], [0], [0], [1], [0, 0, 1, 1], [], []>} : vector<16x32xf32>, vector<32x32xf32>, vector<16x32xf32> -> vector<16x32xf32>
    %109 = arith.addf %24, %108 : vector<16x32xf32>
    %c12_49 = arith.constant 12 : index
    %c0_50 = arith.constant 0 : index
    %c0_51 = arith.constant 0 : index
    %110 = vector.load %arg4[%c12_49, %c0_50, %c0_51] : memref<23x1x32xf32, #tpu.memory_space<vmem>>, vector<1x1x32xf32>
    %111 = vector.shape_cast %110 : vector<1x1x32xf32> to vector<1x32xf32>
    %112 = vector.broadcast %111 : vector<1x32xf32> to vector<16x32xf32>
    %113 = arith.addf %109, %112 : vector<16x32xf32>
    %114 = vector.broadcast %1 : vector<16x1xf32> to vector<16x32xf32>
    %115 = arith.mulf %113, %114 : vector<16x32xf32>
    %116 = vector.shape_cast %115 : vector<16x32xf32> to vector<16x1x32xf32>
    %117 = vector.shape_cast %116 : vector<16x1x32xf32> to vector<16x1x32xf32>
    %118 = vector.broadcast %117 : vector<16x1x32xf32> to vector<16x8x32xf32>
    %119 = vector.shape_cast %118 : vector<16x8x32xf32> to vector<128x32xf32>
    %120 = vector.shape_cast %115 : vector<16x32xf32> to vector<2x1x8x32xf32>
    %121 = vector.shape_cast %120 : vector<2x1x8x32xf32> to vector<2x1x8x32xf32>
    %122 = vector.broadcast %121 : vector<2x1x8x32xf32> to vector<2x8x8x32xf32>
    %123 = vector.shape_cast %122 : vector<2x8x8x32xf32> to vector<128x32xf32>
    %c1 = arith.constant 1 : index
    %c0_52 = arith.constant 0 : index
    %c0_53 = arith.constant 0 : index
    %124 = vector.load %arg3[%c1, %c0_52, %c0_53] : memref<32x32x32xf32, #tpu.memory_space<vmem>>, vector<1x32x32xf32>
    %125 = vector.shape_cast %124 : vector<1x32x32xf32> to vector<32x32xf32>
    %cst_54 = arith.constant dense<0.000000e+00> : vector<128x32xf32>
    %126 = tpu.matmul %119, %125, %cst_54 {dimension_numbers = #tpu.dot_dimension_numbers<[1], [0], [0], [1], [0, 0, 1, 1], [], []>} : vector<128x32xf32>, vector<32x32xf32>, vector<128x32xf32> -> vector<128x32xf32>
    %c5 = arith.constant 5 : index
    %c0_55 = arith.constant 0 : index
    %c0_56 = arith.constant 0 : index
    %127 = vector.load %arg3[%c5, %c0_55, %c0_56] : memref<32x32x32xf32, #tpu.memory_space<vmem>>, vector<1x32x32xf32>
    %128 = vector.shape_cast %127 : vector<1x32x32xf32> to vector<32x32xf32>
    %cst_57 = arith.constant dense<0.000000e+00> : vector<128x32xf32>
    %129 = tpu.matmul %123, %128, %cst_57 {dimension_numbers = #tpu.dot_dimension_numbers<[1], [0], [0], [1], [0, 0, 1, 1], [], []>} : vector<128x32xf32>, vector<32x32xf32>, vector<128x32xf32> -> vector<128x32xf32>
    %130 = arith.addf %126, %129 : vector<128x32xf32>
    %c1_58 = arith.constant 1 : index
    %c0_59 = arith.constant 0 : index
    %c0_60 = arith.constant 0 : index
    %131 = vector.load %arg5[%c1_58, %c0_59, %c0_60] : memref<6x2x32xf32, #tpu.memory_space<vmem>>, vector<1x2x32xf32>
    %132 = vector.shape_cast %131 : vector<1x2x32xf32> to vector<2x32xf32>
    %cst_61 = arith.constant dense<0.000000e+00> : vector<128x32xf32>
    %133 = tpu.matmul %42, %132, %cst_61 {dimension_numbers = #tpu.dot_dimension_numbers<[1], [0], [0], [1], [0, 0, 1, 1], [], []>} : vector<128x2xf32>, vector<2x32xf32>, vector<128x32xf32> -> vector<128x32xf32>
    %134 = arith.addf %130, %133 : vector<128x32xf32>
    %c1_62 = arith.constant 1 : index
    %c0_63 = arith.constant 0 : index
    %c0_64 = arith.constant 0 : index
    %135 = vector.load %arg4[%c1_62, %c0_63, %c0_64] : memref<23x1x32xf32, #tpu.memory_space<vmem>>, vector<1x1x32xf32>
    %136 = vector.shape_cast %135 : vector<1x1x32xf32> to vector<1x32xf32>
    %137 = vector.broadcast %136 : vector<1x32xf32> to vector<128x32xf32>
    %138 = arith.addf %134, %137 : vector<128x32xf32>
    %139 = arith.negf %138 : vector<128x32xf32>
    %140 = math.exp %139 : vector<128x32xf32>
    %cst_65 = arith.constant 1.000000e+00 : f32
    %141 = vector.broadcast %cst_65 : f32 to vector<128x32xf32>
    %142 = arith.addf %141, %140 : vector<128x32xf32>
    %143 = arith.divf %141, %142 : vector<128x32xf32>
    %144 = arith.mulf %138, %143 : vector<128x32xf32>
    %c9 = arith.constant 9 : index
    %c0_66 = arith.constant 0 : index
    %c0_67 = arith.constant 0 : index
    %145 = vector.load %arg3[%c9, %c0_66, %c0_67] : memref<32x32x32xf32, #tpu.memory_space<vmem>>, vector<1x32x32xf32>
    %146 = vector.shape_cast %145 : vector<1x32x32xf32> to vector<32x32xf32>
    %cst_68 = arith.constant dense<0.000000e+00> : vector<128x32xf32>
    %147 = tpu.matmul %144, %146, %cst_68 {dimension_numbers = #tpu.dot_dimension_numbers<[1], [0], [0], [1], [0, 0, 1, 1], [], []>} : vector<128x32xf32>, vector<32x32xf32>, vector<128x32xf32> -> vector<128x32xf32>
    %c5_69 = arith.constant 5 : index
    %c0_70 = arith.constant 0 : index
    %c0_71 = arith.constant 0 : index
    %148 = vector.load %arg4[%c5_69, %c0_70, %c0_71] : memref<23x1x32xf32, #tpu.memory_space<vmem>>, vector<1x1x32xf32>
    %149 = vector.shape_cast %148 : vector<1x1x32xf32> to vector<1x32xf32>
    %150 = vector.broadcast %149 : vector<1x32xf32> to vector<128x32xf32>
    %151 = arith.addf %147, %150 : vector<128x32xf32>
    %152 = arith.negf %151 : vector<128x32xf32>
    %153 = math.exp %152 : vector<128x32xf32>
    %cst_72 = arith.constant 1.000000e+00 : f32
    %154 = vector.broadcast %cst_72 : f32 to vector<128x32xf32>
    %155 = arith.addf %154, %153 : vector<128x32xf32>
    %156 = arith.divf %154, %155 : vector<128x32xf32>
    %157 = arith.mulf %151, %156 : vector<128x32xf32>
    %158 = vector.broadcast %2 : vector<128x1xf32> to vector<128x32xf32>
    %159 = arith.mulf %157, %158 : vector<128x32xf32>
    %160 = vector.shape_cast %159 : vector<128x32xf32> to vector<16x8x32xf32>
    %cst_73 = arith.constant dense<0.000000e+00> : vector<16x32xf32>
    %161 = vector.multi_reduction <add>, %160, %cst_73 [1] : vector<16x8x32xf32> to vector<16x32xf32>
    %c13 = arith.constant 13 : index
    %c0_74 = arith.constant 0 : index
    %c0_75 = arith.constant 0 : index
    %162 = vector.load %arg3[%c13, %c0_74, %c0_75] : memref<32x32x32xf32, #tpu.memory_space<vmem>>, vector<1x32x32xf32>
    %163 = vector.shape_cast %162 : vector<1x32x32xf32> to vector<32x32xf32>
    %cst_76 = arith.constant dense<0.000000e+00> : vector<16x32xf32>
    %164 = tpu.matmul %115, %163, %cst_76 {dimension_numbers = #tpu.dot_dimension_numbers<[1], [0], [0], [1], [0, 0, 1, 1], [], []>} : vector<16x32xf32>, vector<32x32xf32>, vector<16x32xf32> -> vector<16x32xf32>
    %c17 = arith.constant 17 : index
    %c0_77 = arith.constant 0 : index
    %c0_78 = arith.constant 0 : index
    %165 = vector.load %arg3[%c17, %c0_77, %c0_78] : memref<32x32x32xf32, #tpu.memory_space<vmem>>, vector<1x32x32xf32>
    %166 = vector.shape_cast %165 : vector<1x32x32xf32> to vector<32x32xf32>
    %cst_79 = arith.constant dense<0.000000e+00> : vector<16x32xf32>
    %167 = tpu.matmul %161, %166, %cst_79 {dimension_numbers = #tpu.dot_dimension_numbers<[1], [0], [0], [1], [0, 0, 1, 1], [], []>} : vector<16x32xf32>, vector<32x32xf32>, vector<16x32xf32> -> vector<16x32xf32>
    %168 = arith.addf %164, %167 : vector<16x32xf32>
    %c9_80 = arith.constant 9 : index
    %c0_81 = arith.constant 0 : index
    %c0_82 = arith.constant 0 : index
    %169 = vector.load %arg4[%c9_80, %c0_81, %c0_82] : memref<23x1x32xf32, #tpu.memory_space<vmem>>, vector<1x1x32xf32>
    %170 = vector.shape_cast %169 : vector<1x1x32xf32> to vector<1x32xf32>
    %171 = vector.broadcast %170 : vector<1x32xf32> to vector<16x32xf32>
    %172 = arith.addf %168, %171 : vector<16x32xf32>
    %173 = arith.negf %172 : vector<16x32xf32>
    %174 = math.exp %173 : vector<16x32xf32>
    %cst_83 = arith.constant 1.000000e+00 : f32
    %175 = vector.broadcast %cst_83 : f32 to vector<16x32xf32>
    %176 = arith.addf %175, %174 : vector<16x32xf32>
    %177 = arith.divf %175, %176 : vector<16x32xf32>
    %178 = arith.mulf %172, %177 : vector<16x32xf32>
    %c21 = arith.constant 21 : index
    %c0_84 = arith.constant 0 : index
    %c0_85 = arith.constant 0 : index
    %179 = vector.load %arg3[%c21, %c0_84, %c0_85] : memref<32x32x32xf32, #tpu.memory_space<vmem>>, vector<1x32x32xf32>
    %180 = vector.shape_cast %179 : vector<1x32x32xf32> to vector<32x32xf32>
    %cst_86 = arith.constant dense<0.000000e+00> : vector<16x32xf32>
    %181 = tpu.matmul %178, %180, %cst_86 {dimension_numbers = #tpu.dot_dimension_numbers<[1], [0], [0], [1], [0, 0, 1, 1], [], []>} : vector<16x32xf32>, vector<32x32xf32>, vector<16x32xf32> -> vector<16x32xf32>
    %182 = arith.addf %115, %181 : vector<16x32xf32>
    %c13_87 = arith.constant 13 : index
    %c0_88 = arith.constant 0 : index
    %c0_89 = arith.constant 0 : index
    %183 = vector.load %arg4[%c13_87, %c0_88, %c0_89] : memref<23x1x32xf32, #tpu.memory_space<vmem>>, vector<1x1x32xf32>
    %184 = vector.shape_cast %183 : vector<1x1x32xf32> to vector<1x32xf32>
    %185 = vector.broadcast %184 : vector<1x32xf32> to vector<16x32xf32>
    %186 = arith.addf %182, %185 : vector<16x32xf32>
    %187 = vector.broadcast %1 : vector<16x1xf32> to vector<16x32xf32>
    %188 = arith.mulf %186, %187 : vector<16x32xf32>
    %189 = vector.shape_cast %188 : vector<16x32xf32> to vector<16x1x32xf32>
    %190 = vector.shape_cast %189 : vector<16x1x32xf32> to vector<16x1x32xf32>
    %191 = vector.broadcast %190 : vector<16x1x32xf32> to vector<16x8x32xf32>
    %192 = vector.shape_cast %191 : vector<16x8x32xf32> to vector<128x32xf32>
    %193 = vector.shape_cast %188 : vector<16x32xf32> to vector<2x1x8x32xf32>
    %194 = vector.shape_cast %193 : vector<2x1x8x32xf32> to vector<2x1x8x32xf32>
    %195 = vector.broadcast %194 : vector<2x1x8x32xf32> to vector<2x8x8x32xf32>
    %196 = vector.shape_cast %195 : vector<2x8x8x32xf32> to vector<128x32xf32>
    %c24 = arith.constant 24 : index
    %c0_90 = arith.constant 0 : index
    %c0_91 = arith.constant 0 : index
    %197 = vector.load %arg3[%c24, %c0_90, %c0_91] : memref<32x32x32xf32, #tpu.memory_space<vmem>>, vector<1x32x32xf32>
    %198 = vector.shape_cast %197 : vector<1x32x32xf32> to vector<32x32xf32>
    %cst_92 = arith.constant dense<0.000000e+00> : vector<128x32xf32>
    %199 = tpu.matmul %192, %198, %cst_92 {dimension_numbers = #tpu.dot_dimension_numbers<[1], [0], [0], [1], [0, 0, 1, 1], [], []>} : vector<128x32xf32>, vector<32x32xf32>, vector<128x32xf32> -> vector<128x32xf32>
    %c26 = arith.constant 26 : index
    %c0_93 = arith.constant 0 : index
    %c0_94 = arith.constant 0 : index
    %200 = vector.load %arg3[%c26, %c0_93, %c0_94] : memref<32x32x32xf32, #tpu.memory_space<vmem>>, vector<1x32x32xf32>
    %201 = vector.shape_cast %200 : vector<1x32x32xf32> to vector<32x32xf32>
    %cst_95 = arith.constant dense<0.000000e+00> : vector<128x32xf32>
    %202 = tpu.matmul %196, %201, %cst_95 {dimension_numbers = #tpu.dot_dimension_numbers<[1], [0], [0], [1], [0, 0, 1, 1], [], []>} : vector<128x32xf32>, vector<32x32xf32>, vector<128x32xf32> -> vector<128x32xf32>
    %203 = arith.addf %199, %202 : vector<128x32xf32>
    %c4_96 = arith.constant 4 : index
    %c0_97 = arith.constant 0 : index
    %c0_98 = arith.constant 0 : index
    %204 = vector.load %arg5[%c4_96, %c0_97, %c0_98] : memref<6x2x32xf32, #tpu.memory_space<vmem>>, vector<1x2x32xf32>
    %205 = vector.shape_cast %204 : vector<1x2x32xf32> to vector<2x32xf32>
    %cst_99 = arith.constant dense<0.000000e+00> : vector<128x32xf32>
    %206 = tpu.matmul %42, %205, %cst_99 {dimension_numbers = #tpu.dot_dimension_numbers<[1], [0], [0], [1], [0, 0, 1, 1], [], []>} : vector<128x2xf32>, vector<2x32xf32>, vector<128x32xf32> -> vector<128x32xf32>
    %207 = arith.addf %203, %206 : vector<128x32xf32>
    %c16_100 = arith.constant 16 : index
    %c0_101 = arith.constant 0 : index
    %c0_102 = arith.constant 0 : index
    %208 = vector.load %arg4[%c16_100, %c0_101, %c0_102] : memref<23x1x32xf32, #tpu.memory_space<vmem>>, vector<1x1x32xf32>
    %209 = vector.shape_cast %208 : vector<1x1x32xf32> to vector<1x32xf32>
    %210 = vector.broadcast %209 : vector<1x32xf32> to vector<128x32xf32>
    %211 = arith.addf %207, %210 : vector<128x32xf32>
    %212 = arith.negf %211 : vector<128x32xf32>
    %213 = math.exp %212 : vector<128x32xf32>
    %cst_103 = arith.constant 1.000000e+00 : f32
    %214 = vector.broadcast %cst_103 : f32 to vector<128x32xf32>
    %215 = arith.addf %214, %213 : vector<128x32xf32>
    %216 = arith.divf %214, %215 : vector<128x32xf32>
    %217 = arith.mulf %211, %216 : vector<128x32xf32>
    %c28 = arith.constant 28 : index
    %c0_104 = arith.constant 0 : index
    %c0_105 = arith.constant 0 : index
    %218 = vector.load %arg3[%c28, %c0_104, %c0_105] : memref<32x32x32xf32, #tpu.memory_space<vmem>>, vector<1x32x32xf32>
    %219 = vector.shape_cast %218 : vector<1x32x32xf32> to vector<32x32xf32>
    %cst_106 = arith.constant dense<0.000000e+00> : vector<128x32xf32>
    %220 = tpu.matmul %217, %219, %cst_106 {dimension_numbers = #tpu.dot_dimension_numbers<[1], [0], [0], [1], [0, 0, 1, 1], [], []>} : vector<128x32xf32>, vector<32x32xf32>, vector<128x32xf32> -> vector<128x32xf32>
    %c18 = arith.constant 18 : index
    %c0_107 = arith.constant 0 : index
    %c0_108 = arith.constant 0 : index
    %221 = vector.load %arg4[%c18, %c0_107, %c0_108] : memref<23x1x32xf32, #tpu.memory_space<vmem>>, vector<1x1x32xf32>
    %222 = vector.shape_cast %221 : vector<1x1x32xf32> to vector<1x32xf32>
    %223 = vector.broadcast %222 : vector<1x32xf32> to vector<128x32xf32>
    %224 = arith.addf %220, %223 : vector<128x32xf32>
    %225 = arith.negf %224 : vector<128x32xf32>
    %226 = math.exp %225 : vector<128x32xf32>
    %cst_109 = arith.constant 1.000000e+00 : f32
    %227 = vector.broadcast %cst_109 : f32 to vector<128x32xf32>
    %228 = arith.addf %227, %226 : vector<128x32xf32>
    %229 = arith.divf %227, %228 : vector<128x32xf32>
    %230 = arith.mulf %224, %229 : vector<128x32xf32>
    %c0_110 = arith.constant 0 : index
    %c0_111 = arith.constant 0 : index
    %c0_112 = arith.constant 0 : index
    %231 = vector.load %arg7[%c0_110, %c0_111, %c0_112] : memref<2x32x1xf32, #tpu.memory_space<vmem>>, vector<1x32x1xf32>
    %232 = vector.shape_cast %231 : vector<1x32x1xf32> to vector<32x1xf32>
    %cst_113 = arith.constant dense<0.000000e+00> : vector<128x1xf32>
    %233 = tpu.matmul %230, %232, %cst_113 {dimension_numbers = #tpu.dot_dimension_numbers<[1], [0], [0], [1], [0, 0, 1, 1], [], []>} : vector<128x32xf32>, vector<32x1xf32>, vector<128x1xf32> -> vector<128x1xf32>
    %234 = vector.broadcast %233 : vector<128x1xf32> to vector<128x3xf32>
    %235 = arith.mulf %41, %234 : vector<128x3xf32>
    %236 = vector.broadcast %2 : vector<128x1xf32> to vector<128x3xf32>
    %237 = arith.mulf %235, %236 : vector<128x3xf32>
    %238 = vector.shape_cast %237 : vector<128x3xf32> to vector<16x8x3xf32>
    %cst_114 = arith.constant dense<0.000000e+00> : vector<16x3xf32>
    %239 = vector.multi_reduction <add>, %238, %cst_114 [1] : vector<16x8x3xf32> to vector<16x3xf32>
    %240 = arith.addf %5, %239 : vector<16x3xf32>
    %241 = vector.broadcast %1 : vector<16x1xf32> to vector<16x3xf32>
    %242 = arith.mulf %240, %241 : vector<16x3xf32>
    %243 = vector.broadcast %1 : vector<16x1xf32> to vector<16x32xf32>
    %244 = arith.mulf %188, %243 : vector<16x32xf32>
    %245 = vector.shape_cast %242 : vector<16x3xf32> to vector<16x1x3xf32>
    %246 = vector.shape_cast %245 : vector<16x1x3xf32> to vector<16x1x3xf32>
    %247 = vector.broadcast %246 : vector<16x1x3xf32> to vector<16x8x3xf32>
    %248 = vector.shape_cast %247 : vector<16x8x3xf32> to vector<128x3xf32>
    %249 = vector.shape_cast %242 : vector<16x3xf32> to vector<2x1x8x3xf32>
    %250 = vector.shape_cast %249 : vector<2x1x8x3xf32> to vector<2x1x8x3xf32>
    %251 = vector.broadcast %250 : vector<2x1x8x3xf32> to vector<2x8x8x3xf32>
    %252 = vector.shape_cast %251 : vector<2x8x8x3xf32> to vector<128x3xf32>
    %253 = arith.subf %248, %252 : vector<128x3xf32>
    %254 = arith.mulf %253, %253 : vector<128x3xf32>
    %cst_115 = arith.constant dense<0.000000e+00> : vector<128xf32>
    %255 = vector.multi_reduction <add>, %254, %cst_115 [1] : vector<128x3xf32> to vector<128xf32>
    %256 = vector.shape_cast %255 : vector<128xf32> to vector<128x1xf32>
    %cst_116 = arith.constant 9.99999993E-9 : f32
    %257 = vector.broadcast %cst_116 : f32 to vector<128x1xf32>
    %258 = arith.addf %256, %257 : vector<128x1xf32>
    %259 = math.rsqrt %258 : vector<128x1xf32>
    %260 = vector.broadcast %259 : vector<128x1xf32> to vector<128x3xf32>
    %261 = arith.mulf %253, %260 : vector<128x3xf32>
    %262 = tpu.concatenate %256, %18 in 1 : vector<128x1xf32>, vector<128x1xf32> -> vector<128x2xf32>
    %263 = vector.shape_cast %244 : vector<16x32xf32> to vector<16x1x32xf32>
    %264 = vector.shape_cast %263 : vector<16x1x32xf32> to vector<16x1x32xf32>
    %265 = vector.broadcast %264 : vector<16x1x32xf32> to vector<16x8x32xf32>
    %266 = vector.shape_cast %265 : vector<16x8x32xf32> to vector<128x32xf32>
    %267 = vector.shape_cast %244 : vector<16x32xf32> to vector<2x1x8x32xf32>
    %268 = vector.shape_cast %267 : vector<2x1x8x32xf32> to vector<2x1x8x32xf32>
    %269 = vector.broadcast %268 : vector<2x1x8x32xf32> to vector<2x8x8x32xf32>
    %270 = vector.shape_cast %269 : vector<2x8x8x32xf32> to vector<128x32xf32>
    %c2 = arith.constant 2 : index
    %c0_117 = arith.constant 0 : index
    %c0_118 = arith.constant 0 : index
    %271 = vector.load %arg3[%c2, %c0_117, %c0_118] : memref<32x32x32xf32, #tpu.memory_space<vmem>>, vector<1x32x32xf32>
    %272 = vector.shape_cast %271 : vector<1x32x32xf32> to vector<32x32xf32>
    %cst_119 = arith.constant dense<0.000000e+00> : vector<128x32xf32>
    %273 = tpu.matmul %266, %272, %cst_119 {dimension_numbers = #tpu.dot_dimension_numbers<[1], [0], [0], [1], [0, 0, 1, 1], [], []>} : vector<128x32xf32>, vector<32x32xf32>, vector<128x32xf32> -> vector<128x32xf32>
    %c6 = arith.constant 6 : index
    %c0_120 = arith.constant 0 : index
    %c0_121 = arith.constant 0 : index
    %274 = vector.load %arg3[%c6, %c0_120, %c0_121] : memref<32x32x32xf32, #tpu.memory_space<vmem>>, vector<1x32x32xf32>
    %275 = vector.shape_cast %274 : vector<1x32x32xf32> to vector<32x32xf32>
    %cst_122 = arith.constant dense<0.000000e+00> : vector<128x32xf32>
    %276 = tpu.matmul %270, %275, %cst_122 {dimension_numbers = #tpu.dot_dimension_numbers<[1], [0], [0], [1], [0, 0, 1, 1], [], []>} : vector<128x32xf32>, vector<32x32xf32>, vector<128x32xf32> -> vector<128x32xf32>
    %277 = arith.addf %273, %276 : vector<128x32xf32>
    %c2_123 = arith.constant 2 : index
    %c0_124 = arith.constant 0 : index
    %c0_125 = arith.constant 0 : index
    %278 = vector.load %arg5[%c2_123, %c0_124, %c0_125] : memref<6x2x32xf32, #tpu.memory_space<vmem>>, vector<1x2x32xf32>
    %279 = vector.shape_cast %278 : vector<1x2x32xf32> to vector<2x32xf32>
    %cst_126 = arith.constant dense<0.000000e+00> : vector<128x32xf32>
    %280 = tpu.matmul %262, %279, %cst_126 {dimension_numbers = #tpu.dot_dimension_numbers<[1], [0], [0], [1], [0, 0, 1, 1], [], []>} : vector<128x2xf32>, vector<2x32xf32>, vector<128x32xf32> -> vector<128x32xf32>
    %281 = arith.addf %277, %280 : vector<128x32xf32>
    %c2_127 = arith.constant 2 : index
    %c0_128 = arith.constant 0 : index
    %c0_129 = arith.constant 0 : index
    %282 = vector.load %arg4[%c2_127, %c0_128, %c0_129] : memref<23x1x32xf32, #tpu.memory_space<vmem>>, vector<1x1x32xf32>
    %283 = vector.shape_cast %282 : vector<1x1x32xf32> to vector<1x32xf32>
    %284 = vector.broadcast %283 : vector<1x32xf32> to vector<128x32xf32>
    %285 = arith.addf %281, %284 : vector<128x32xf32>
    %286 = arith.negf %285 : vector<128x32xf32>
    %287 = math.exp %286 : vector<128x32xf32>
    %cst_130 = arith.constant 1.000000e+00 : f32
    %288 = vector.broadcast %cst_130 : f32 to vector<128x32xf32>
    %289 = arith.addf %288, %287 : vector<128x32xf32>
    %290 = arith.divf %288, %289 : vector<128x32xf32>
    %291 = arith.mulf %285, %290 : vector<128x32xf32>
    %c10 = arith.constant 10 : index
    %c0_131 = arith.constant 0 : index
    %c0_132 = arith.constant 0 : index
    %292 = vector.load %arg3[%c10, %c0_131, %c0_132] : memref<32x32x32xf32, #tpu.memory_space<vmem>>, vector<1x32x32xf32>
    %293 = vector.shape_cast %292 : vector<1x32x32xf32> to vector<32x32xf32>
    %cst_133 = arith.constant dense<0.000000e+00> : vector<128x32xf32>
    %294 = tpu.matmul %291, %293, %cst_133 {dimension_numbers = #tpu.dot_dimension_numbers<[1], [0], [0], [1], [0, 0, 1, 1], [], []>} : vector<128x32xf32>, vector<32x32xf32>, vector<128x32xf32> -> vector<128x32xf32>
    %c6_134 = arith.constant 6 : index
    %c0_135 = arith.constant 0 : index
    %c0_136 = arith.constant 0 : index
    %295 = vector.load %arg4[%c6_134, %c0_135, %c0_136] : memref<23x1x32xf32, #tpu.memory_space<vmem>>, vector<1x1x32xf32>
    %296 = vector.shape_cast %295 : vector<1x1x32xf32> to vector<1x32xf32>
    %297 = vector.broadcast %296 : vector<1x32xf32> to vector<128x32xf32>
    %298 = arith.addf %294, %297 : vector<128x32xf32>
    %299 = arith.negf %298 : vector<128x32xf32>
    %300 = math.exp %299 : vector<128x32xf32>
    %cst_137 = arith.constant 1.000000e+00 : f32
    %301 = vector.broadcast %cst_137 : f32 to vector<128x32xf32>
    %302 = arith.addf %301, %300 : vector<128x32xf32>
    %303 = arith.divf %301, %302 : vector<128x32xf32>
    %304 = arith.mulf %298, %303 : vector<128x32xf32>
    %305 = vector.broadcast %2 : vector<128x1xf32> to vector<128x32xf32>
    %306 = arith.mulf %304, %305 : vector<128x32xf32>
    %307 = vector.shape_cast %306 : vector<128x32xf32> to vector<16x8x32xf32>
    %cst_138 = arith.constant dense<0.000000e+00> : vector<16x32xf32>
    %308 = vector.multi_reduction <add>, %307, %cst_138 [1] : vector<16x8x32xf32> to vector<16x32xf32>
    %c14 = arith.constant 14 : index
    %c0_139 = arith.constant 0 : index
    %c0_140 = arith.constant 0 : index
    %309 = vector.load %arg3[%c14, %c0_139, %c0_140] : memref<32x32x32xf32, #tpu.memory_space<vmem>>, vector<1x32x32xf32>
    %310 = vector.shape_cast %309 : vector<1x32x32xf32> to vector<32x32xf32>
    %cst_141 = arith.constant dense<0.000000e+00> : vector<16x32xf32>
    %311 = tpu.matmul %244, %310, %cst_141 {dimension_numbers = #tpu.dot_dimension_numbers<[1], [0], [0], [1], [0, 0, 1, 1], [], []>} : vector<16x32xf32>, vector<32x32xf32>, vector<16x32xf32> -> vector<16x32xf32>
    %c18_142 = arith.constant 18 : index
    %c0_143 = arith.constant 0 : index
    %c0_144 = arith.constant 0 : index
    %312 = vector.load %arg3[%c18_142, %c0_143, %c0_144] : memref<32x32x32xf32, #tpu.memory_space<vmem>>, vector<1x32x32xf32>
    %313 = vector.shape_cast %312 : vector<1x32x32xf32> to vector<32x32xf32>
    %cst_145 = arith.constant dense<0.000000e+00> : vector<16x32xf32>
    %314 = tpu.matmul %308, %313, %cst_145 {dimension_numbers = #tpu.dot_dimension_numbers<[1], [0], [0], [1], [0, 0, 1, 1], [], []>} : vector<16x32xf32>, vector<32x32xf32>, vector<16x32xf32> -> vector<16x32xf32>
    %315 = arith.addf %311, %314 : vector<16x32xf32>
    %c10_146 = arith.constant 10 : index
    %c0_147 = arith.constant 0 : index
    %c0_148 = arith.constant 0 : index
    %316 = vector.load %arg4[%c10_146, %c0_147, %c0_148] : memref<23x1x32xf32, #tpu.memory_space<vmem>>, vector<1x1x32xf32>
    %317 = vector.shape_cast %316 : vector<1x1x32xf32> to vector<1x32xf32>
    %318 = vector.broadcast %317 : vector<1x32xf32> to vector<16x32xf32>
    %319 = arith.addf %315, %318 : vector<16x32xf32>
    %320 = arith.negf %319 : vector<16x32xf32>
    %321 = math.exp %320 : vector<16x32xf32>
    %cst_149 = arith.constant 1.000000e+00 : f32
    %322 = vector.broadcast %cst_149 : f32 to vector<16x32xf32>
    %323 = arith.addf %322, %321 : vector<16x32xf32>
    %324 = arith.divf %322, %323 : vector<16x32xf32>
    %325 = arith.mulf %319, %324 : vector<16x32xf32>
    %c22 = arith.constant 22 : index
    %c0_150 = arith.constant 0 : index
    %c0_151 = arith.constant 0 : index
    %326 = vector.load %arg3[%c22, %c0_150, %c0_151] : memref<32x32x32xf32, #tpu.memory_space<vmem>>, vector<1x32x32xf32>
    %327 = vector.shape_cast %326 : vector<1x32x32xf32> to vector<32x32xf32>
    %cst_152 = arith.constant dense<0.000000e+00> : vector<16x32xf32>
    %328 = tpu.matmul %325, %327, %cst_152 {dimension_numbers = #tpu.dot_dimension_numbers<[1], [0], [0], [1], [0, 0, 1, 1], [], []>} : vector<16x32xf32>, vector<32x32xf32>, vector<16x32xf32> -> vector<16x32xf32>
    %329 = arith.addf %244, %328 : vector<16x32xf32>
    %c14_153 = arith.constant 14 : index
    %c0_154 = arith.constant 0 : index
    %c0_155 = arith.constant 0 : index
    %330 = vector.load %arg4[%c14_153, %c0_154, %c0_155] : memref<23x1x32xf32, #tpu.memory_space<vmem>>, vector<1x1x32xf32>
    %331 = vector.shape_cast %330 : vector<1x1x32xf32> to vector<1x32xf32>
    %332 = vector.broadcast %331 : vector<1x32xf32> to vector<16x32xf32>
    %333 = arith.addf %329, %332 : vector<16x32xf32>
    %334 = vector.broadcast %1 : vector<16x1xf32> to vector<16x32xf32>
    %335 = arith.mulf %333, %334 : vector<16x32xf32>
    %336 = vector.shape_cast %335 : vector<16x32xf32> to vector<16x1x32xf32>
    %337 = vector.shape_cast %336 : vector<16x1x32xf32> to vector<16x1x32xf32>
    %338 = vector.broadcast %337 : vector<16x1x32xf32> to vector<16x8x32xf32>
    %339 = vector.shape_cast %338 : vector<16x8x32xf32> to vector<128x32xf32>
    %340 = vector.shape_cast %335 : vector<16x32xf32> to vector<2x1x8x32xf32>
    %341 = vector.shape_cast %340 : vector<2x1x8x32xf32> to vector<2x1x8x32xf32>
    %342 = vector.broadcast %341 : vector<2x1x8x32xf32> to vector<2x8x8x32xf32>
    %343 = vector.shape_cast %342 : vector<2x8x8x32xf32> to vector<128x32xf32>
    %c3 = arith.constant 3 : index
    %c0_156 = arith.constant 0 : index
    %c0_157 = arith.constant 0 : index
    %344 = vector.load %arg3[%c3, %c0_156, %c0_157] : memref<32x32x32xf32, #tpu.memory_space<vmem>>, vector<1x32x32xf32>
    %345 = vector.shape_cast %344 : vector<1x32x32xf32> to vector<32x32xf32>
    %cst_158 = arith.constant dense<0.000000e+00> : vector<128x32xf32>
    %346 = tpu.matmul %339, %345, %cst_158 {dimension_numbers = #tpu.dot_dimension_numbers<[1], [0], [0], [1], [0, 0, 1, 1], [], []>} : vector<128x32xf32>, vector<32x32xf32>, vector<128x32xf32> -> vector<128x32xf32>
    %c7 = arith.constant 7 : index
    %c0_159 = arith.constant 0 : index
    %c0_160 = arith.constant 0 : index
    %347 = vector.load %arg3[%c7, %c0_159, %c0_160] : memref<32x32x32xf32, #tpu.memory_space<vmem>>, vector<1x32x32xf32>
    %348 = vector.shape_cast %347 : vector<1x32x32xf32> to vector<32x32xf32>
    %cst_161 = arith.constant dense<0.000000e+00> : vector<128x32xf32>
    %349 = tpu.matmul %343, %348, %cst_161 {dimension_numbers = #tpu.dot_dimension_numbers<[1], [0], [0], [1], [0, 0, 1, 1], [], []>} : vector<128x32xf32>, vector<32x32xf32>, vector<128x32xf32> -> vector<128x32xf32>
    %350 = arith.addf %346, %349 : vector<128x32xf32>
    %c3_162 = arith.constant 3 : index
    %c0_163 = arith.constant 0 : index
    %c0_164 = arith.constant 0 : index
    %351 = vector.load %arg5[%c3_162, %c0_163, %c0_164] : memref<6x2x32xf32, #tpu.memory_space<vmem>>, vector<1x2x32xf32>
    %352 = vector.shape_cast %351 : vector<1x2x32xf32> to vector<2x32xf32>
    %cst_165 = arith.constant dense<0.000000e+00> : vector<128x32xf32>
    %353 = tpu.matmul %262, %352, %cst_165 {dimension_numbers = #tpu.dot_dimension_numbers<[1], [0], [0], [1], [0, 0, 1, 1], [], []>} : vector<128x2xf32>, vector<2x32xf32>, vector<128x32xf32> -> vector<128x32xf32>
    %354 = arith.addf %350, %353 : vector<128x32xf32>
    %c3_166 = arith.constant 3 : index
    %c0_167 = arith.constant 0 : index
    %c0_168 = arith.constant 0 : index
    %355 = vector.load %arg4[%c3_166, %c0_167, %c0_168] : memref<23x1x32xf32, #tpu.memory_space<vmem>>, vector<1x1x32xf32>
    %356 = vector.shape_cast %355 : vector<1x1x32xf32> to vector<1x32xf32>
    %357 = vector.broadcast %356 : vector<1x32xf32> to vector<128x32xf32>
    %358 = arith.addf %354, %357 : vector<128x32xf32>
    %359 = arith.negf %358 : vector<128x32xf32>
    %360 = math.exp %359 : vector<128x32xf32>
    %cst_169 = arith.constant 1.000000e+00 : f32
    %361 = vector.broadcast %cst_169 : f32 to vector<128x32xf32>
    %362 = arith.addf %361, %360 : vector<128x32xf32>
    %363 = arith.divf %361, %362 : vector<128x32xf32>
    %364 = arith.mulf %358, %363 : vector<128x32xf32>
    %c11 = arith.constant 11 : index
    %c0_170 = arith.constant 0 : index
    %c0_171 = arith.constant 0 : index
    %365 = vector.load %arg3[%c11, %c0_170, %c0_171] : memref<32x32x32xf32, #tpu.memory_space<vmem>>, vector<1x32x32xf32>
    %366 = vector.shape_cast %365 : vector<1x32x32xf32> to vector<32x32xf32>
    %cst_172 = arith.constant dense<0.000000e+00> : vector<128x32xf32>
    %367 = tpu.matmul %364, %366, %cst_172 {dimension_numbers = #tpu.dot_dimension_numbers<[1], [0], [0], [1], [0, 0, 1, 1], [], []>} : vector<128x32xf32>, vector<32x32xf32>, vector<128x32xf32> -> vector<128x32xf32>
    %c7_173 = arith.constant 7 : index
    %c0_174 = arith.constant 0 : index
    %c0_175 = arith.constant 0 : index
    %368 = vector.load %arg4[%c7_173, %c0_174, %c0_175] : memref<23x1x32xf32, #tpu.memory_space<vmem>>, vector<1x1x32xf32>
    %369 = vector.shape_cast %368 : vector<1x1x32xf32> to vector<1x32xf32>
    %370 = vector.broadcast %369 : vector<1x32xf32> to vector<128x32xf32>
    %371 = arith.addf %367, %370 : vector<128x32xf32>
    %372 = arith.negf %371 : vector<128x32xf32>
    %373 = math.exp %372 : vector<128x32xf32>
    %cst_176 = arith.constant 1.000000e+00 : f32
    %374 = vector.broadcast %cst_176 : f32 to vector<128x32xf32>
    %375 = arith.addf %374, %373 : vector<128x32xf32>
    %376 = arith.divf %374, %375 : vector<128x32xf32>
    %377 = arith.mulf %371, %376 : vector<128x32xf32>
    %378 = vector.broadcast %2 : vector<128x1xf32> to vector<128x32xf32>
    %379 = arith.mulf %377, %378 : vector<128x32xf32>
    %380 = vector.shape_cast %379 : vector<128x32xf32> to vector<16x8x32xf32>
    %cst_177 = arith.constant dense<0.000000e+00> : vector<16x32xf32>
    %381 = vector.multi_reduction <add>, %380, %cst_177 [1] : vector<16x8x32xf32> to vector<16x32xf32>
    %c15 = arith.constant 15 : index
    %c0_178 = arith.constant 0 : index
    %c0_179 = arith.constant 0 : index
    %382 = vector.load %arg3[%c15, %c0_178, %c0_179] : memref<32x32x32xf32, #tpu.memory_space<vmem>>, vector<1x32x32xf32>
    %383 = vector.shape_cast %382 : vector<1x32x32xf32> to vector<32x32xf32>
    %cst_180 = arith.constant dense<0.000000e+00> : vector<16x32xf32>
    %384 = tpu.matmul %335, %383, %cst_180 {dimension_numbers = #tpu.dot_dimension_numbers<[1], [0], [0], [1], [0, 0, 1, 1], [], []>} : vector<16x32xf32>, vector<32x32xf32>, vector<16x32xf32> -> vector<16x32xf32>
    %c19 = arith.constant 19 : index
    %c0_181 = arith.constant 0 : index
    %c0_182 = arith.constant 0 : index
    %385 = vector.load %arg3[%c19, %c0_181, %c0_182] : memref<32x32x32xf32, #tpu.memory_space<vmem>>, vector<1x32x32xf32>
    %386 = vector.shape_cast %385 : vector<1x32x32xf32> to vector<32x32xf32>
    %cst_183 = arith.constant dense<0.000000e+00> : vector<16x32xf32>
    %387 = tpu.matmul %381, %386, %cst_183 {dimension_numbers = #tpu.dot_dimension_numbers<[1], [0], [0], [1], [0, 0, 1, 1], [], []>} : vector<16x32xf32>, vector<32x32xf32>, vector<16x32xf32> -> vector<16x32xf32>
    %388 = arith.addf %384, %387 : vector<16x32xf32>
    %c11_184 = arith.constant 11 : index
    %c0_185 = arith.constant 0 : index
    %c0_186 = arith.constant 0 : index
    %389 = vector.load %arg4[%c11_184, %c0_185, %c0_186] : memref<23x1x32xf32, #tpu.memory_space<vmem>>, vector<1x1x32xf32>
    %390 = vector.shape_cast %389 : vector<1x1x32xf32> to vector<1x32xf32>
    %391 = vector.broadcast %390 : vector<1x32xf32> to vector<16x32xf32>
    %392 = arith.addf %388, %391 : vector<16x32xf32>
    %393 = arith.negf %392 : vector<16x32xf32>
    %394 = math.exp %393 : vector<16x32xf32>
    %cst_187 = arith.constant 1.000000e+00 : f32
    %395 = vector.broadcast %cst_187 : f32 to vector<16x32xf32>
    %396 = arith.addf %395, %394 : vector<16x32xf32>
    %397 = arith.divf %395, %396 : vector<16x32xf32>
    %398 = arith.mulf %392, %397 : vector<16x32xf32>
    %c23 = arith.constant 23 : index
    %c0_188 = arith.constant 0 : index
    %c0_189 = arith.constant 0 : index
    %399 = vector.load %arg3[%c23, %c0_188, %c0_189] : memref<32x32x32xf32, #tpu.memory_space<vmem>>, vector<1x32x32xf32>
    %400 = vector.shape_cast %399 : vector<1x32x32xf32> to vector<32x32xf32>
    %cst_190 = arith.constant dense<0.000000e+00> : vector<16x32xf32>
    %401 = tpu.matmul %398, %400, %cst_190 {dimension_numbers = #tpu.dot_dimension_numbers<[1], [0], [0], [1], [0, 0, 1, 1], [], []>} : vector<16x32xf32>, vector<32x32xf32>, vector<16x32xf32> -> vector<16x32xf32>
    %402 = arith.addf %335, %401 : vector<16x32xf32>
    %c15_191 = arith.constant 15 : index
    %c0_192 = arith.constant 0 : index
    %c0_193 = arith.constant 0 : index
    %403 = vector.load %arg4[%c15_191, %c0_192, %c0_193] : memref<23x1x32xf32, #tpu.memory_space<vmem>>, vector<1x1x32xf32>
    %404 = vector.shape_cast %403 : vector<1x1x32xf32> to vector<1x32xf32>
    %405 = vector.broadcast %404 : vector<1x32xf32> to vector<16x32xf32>
    %406 = arith.addf %402, %405 : vector<16x32xf32>
    %407 = vector.broadcast %1 : vector<16x1xf32> to vector<16x32xf32>
    %408 = arith.mulf %406, %407 : vector<16x32xf32>
    %409 = vector.shape_cast %408 : vector<16x32xf32> to vector<16x1x32xf32>
    %410 = vector.shape_cast %409 : vector<16x1x32xf32> to vector<16x1x32xf32>
    %411 = vector.broadcast %410 : vector<16x1x32xf32> to vector<16x8x32xf32>
    %412 = vector.shape_cast %411 : vector<16x8x32xf32> to vector<128x32xf32>
    %413 = vector.shape_cast %408 : vector<16x32xf32> to vector<2x1x8x32xf32>
    %414 = vector.shape_cast %413 : vector<2x1x8x32xf32> to vector<2x1x8x32xf32>
    %415 = vector.broadcast %414 : vector<2x1x8x32xf32> to vector<2x8x8x32xf32>
    %416 = vector.shape_cast %415 : vector<2x8x8x32xf32> to vector<128x32xf32>
    %c25 = arith.constant 25 : index
    %c0_194 = arith.constant 0 : index
    %c0_195 = arith.constant 0 : index
    %417 = vector.load %arg3[%c25, %c0_194, %c0_195] : memref<32x32x32xf32, #tpu.memory_space<vmem>>, vector<1x32x32xf32>
    %418 = vector.shape_cast %417 : vector<1x32x32xf32> to vector<32x32xf32>
    %cst_196 = arith.constant dense<0.000000e+00> : vector<128x32xf32>
    %419 = tpu.matmul %412, %418, %cst_196 {dimension_numbers = #tpu.dot_dimension_numbers<[1], [0], [0], [1], [0, 0, 1, 1], [], []>} : vector<128x32xf32>, vector<32x32xf32>, vector<128x32xf32> -> vector<128x32xf32>
    %c27 = arith.constant 27 : index
    %c0_197 = arith.constant 0 : index
    %c0_198 = arith.constant 0 : index
    %420 = vector.load %arg3[%c27, %c0_197, %c0_198] : memref<32x32x32xf32, #tpu.memory_space<vmem>>, vector<1x32x32xf32>
    %421 = vector.shape_cast %420 : vector<1x32x32xf32> to vector<32x32xf32>
    %cst_199 = arith.constant dense<0.000000e+00> : vector<128x32xf32>
    %422 = tpu.matmul %416, %421, %cst_199 {dimension_numbers = #tpu.dot_dimension_numbers<[1], [0], [0], [1], [0, 0, 1, 1], [], []>} : vector<128x32xf32>, vector<32x32xf32>, vector<128x32xf32> -> vector<128x32xf32>
    %423 = arith.addf %419, %422 : vector<128x32xf32>
    %c5_200 = arith.constant 5 : index
    %c0_201 = arith.constant 0 : index
    %c0_202 = arith.constant 0 : index
    %424 = vector.load %arg5[%c5_200, %c0_201, %c0_202] : memref<6x2x32xf32, #tpu.memory_space<vmem>>, vector<1x2x32xf32>
    %425 = vector.shape_cast %424 : vector<1x2x32xf32> to vector<2x32xf32>
    %cst_203 = arith.constant dense<0.000000e+00> : vector<128x32xf32>
    %426 = tpu.matmul %262, %425, %cst_203 {dimension_numbers = #tpu.dot_dimension_numbers<[1], [0], [0], [1], [0, 0, 1, 1], [], []>} : vector<128x2xf32>, vector<2x32xf32>, vector<128x32xf32> -> vector<128x32xf32>
    %427 = arith.addf %423, %426 : vector<128x32xf32>
    %c17_204 = arith.constant 17 : index
    %c0_205 = arith.constant 0 : index
    %c0_206 = arith.constant 0 : index
    %428 = vector.load %arg4[%c17_204, %c0_205, %c0_206] : memref<23x1x32xf32, #tpu.memory_space<vmem>>, vector<1x1x32xf32>
    %429 = vector.shape_cast %428 : vector<1x1x32xf32> to vector<1x32xf32>
    %430 = vector.broadcast %429 : vector<1x32xf32> to vector<128x32xf32>
    %431 = arith.addf %427, %430 : vector<128x32xf32>
    %432 = arith.negf %431 : vector<128x32xf32>
    %433 = math.exp %432 : vector<128x32xf32>
    %cst_207 = arith.constant 1.000000e+00 : f32
    %434 = vector.broadcast %cst_207 : f32 to vector<128x32xf32>
    %435 = arith.addf %434, %433 : vector<128x32xf32>
    %436 = arith.divf %434, %435 : vector<128x32xf32>
    %437 = arith.mulf %431, %436 : vector<128x32xf32>
    %c29 = arith.constant 29 : index
    %c0_208 = arith.constant 0 : index
    %c0_209 = arith.constant 0 : index
    %438 = vector.load %arg3[%c29, %c0_208, %c0_209] : memref<32x32x32xf32, #tpu.memory_space<vmem>>, vector<1x32x32xf32>
    %439 = vector.shape_cast %438 : vector<1x32x32xf32> to vector<32x32xf32>
    %cst_210 = arith.constant dense<0.000000e+00> : vector<128x32xf32>
    %440 = tpu.matmul %437, %439, %cst_210 {dimension_numbers = #tpu.dot_dimension_numbers<[1], [0], [0], [1], [0, 0, 1, 1], [], []>} : vector<128x32xf32>, vector<32x32xf32>, vector<128x32xf32> -> vector<128x32xf32>
    %c19_211 = arith.constant 19 : index
    %c0_212 = arith.constant 0 : index
    %c0_213 = arith.constant 0 : index
    %441 = vector.load %arg4[%c19_211, %c0_212, %c0_213] : memref<23x1x32xf32, #tpu.memory_space<vmem>>, vector<1x1x32xf32>
    %442 = vector.shape_cast %441 : vector<1x1x32xf32> to vector<1x32xf32>
    %443 = vector.broadcast %442 : vector<1x32xf32> to vector<128x32xf32>
    %444 = arith.addf %440, %443 : vector<128x32xf32>
    %445 = arith.negf %444 : vector<128x32xf32>
    %446 = math.exp %445 : vector<128x32xf32>
    %cst_214 = arith.constant 1.000000e+00 : f32
    %447 = vector.broadcast %cst_214 : f32 to vector<128x32xf32>
    %448 = arith.addf %447, %446 : vector<128x32xf32>
    %449 = arith.divf %447, %448 : vector<128x32xf32>
    %450 = arith.mulf %444, %449 : vector<128x32xf32>
    %c1_215 = arith.constant 1 : index
    %c0_216 = arith.constant 0 : index
    %c0_217 = arith.constant 0 : index
    %451 = vector.load %arg7[%c1_215, %c0_216, %c0_217] : memref<2x32x1xf32, #tpu.memory_space<vmem>>, vector<1x32x1xf32>
    %452 = vector.shape_cast %451 : vector<1x32x1xf32> to vector<32x1xf32>
    %cst_218 = arith.constant dense<0.000000e+00> : vector<128x1xf32>
    %453 = tpu.matmul %450, %452, %cst_218 {dimension_numbers = #tpu.dot_dimension_numbers<[1], [0], [0], [1], [0, 0, 1, 1], [], []>} : vector<128x32xf32>, vector<32x1xf32>, vector<128x1xf32> -> vector<128x1xf32>
    %454 = vector.broadcast %453 : vector<128x1xf32> to vector<128x3xf32>
    %455 = arith.mulf %261, %454 : vector<128x3xf32>
    %456 = vector.broadcast %2 : vector<128x1xf32> to vector<128x3xf32>
    %457 = arith.mulf %455, %456 : vector<128x3xf32>
    %458 = vector.shape_cast %457 : vector<128x3xf32> to vector<16x8x3xf32>
    %cst_219 = arith.constant dense<0.000000e+00> : vector<16x3xf32>
    %459 = vector.multi_reduction <add>, %458, %cst_219 [1] : vector<16x8x3xf32> to vector<16x3xf32>
    %460 = arith.addf %242, %459 : vector<16x3xf32>
    %461 = vector.broadcast %1 : vector<16x1xf32> to vector<16x3xf32>
    %462 = arith.mulf %460, %461 : vector<16x3xf32>
    %463 = vector.broadcast %1 : vector<16x1xf32> to vector<16x32xf32>
    %464 = arith.mulf %408, %463 : vector<16x32xf32>
    %c30 = arith.constant 30 : index
    %c0_220 = arith.constant 0 : index
    %c0_221 = arith.constant 0 : index
    %465 = vector.load %arg3[%c30, %c0_220, %c0_221] : memref<32x32x32xf32, #tpu.memory_space<vmem>>, vector<1x32x32xf32>
    %466 = vector.shape_cast %465 : vector<1x32x32xf32> to vector<32x32xf32>
    %cst_222 = arith.constant dense<0.000000e+00> : vector<16x32xf32>
    %467 = tpu.matmul %464, %466, %cst_222 {dimension_numbers = #tpu.dot_dimension_numbers<[1], [0], [0], [1], [0, 0, 1, 1], [], []>} : vector<16x32xf32>, vector<32x32xf32>, vector<16x32xf32> -> vector<16x32xf32>
    %c21_223 = arith.constant 21 : index
    %c0_224 = arith.constant 0 : index
    %c0_225 = arith.constant 0 : index
    %468 = vector.load %arg4[%c21_223, %c0_224, %c0_225] : memref<23x1x32xf32, #tpu.memory_space<vmem>>, vector<1x1x32xf32>
    %469 = vector.shape_cast %468 : vector<1x1x32xf32> to vector<1x32xf32>
    %470 = vector.broadcast %469 : vector<1x32xf32> to vector<16x32xf32>
    %471 = arith.addf %467, %470 : vector<16x32xf32>
    %472 = vector.broadcast %1 : vector<16x1xf32> to vector<16x32xf32>
    %473 = arith.mulf %471, %472 : vector<16x32xf32>
    %474 = vector.broadcast %1 : vector<16x1xf32> to vector<16x3xf32>
    %475 = arith.mulf %462, %474 : vector<16x3xf32>
    %476 = vector.shape_cast %475 : vector<16x3xf32> to vector<2x8x3xf32>
    %477 = vector.shape_cast %1 : vector<16x1xf32> to vector<2x8x1xf32>
    %cst_226 = arith.constant dense<0.000000e+00> : vector<2x1xf32>
    %478 = vector.multi_reduction <add>, %477, %cst_226 [1] : vector<2x8x1xf32> to vector<2x1xf32>
    %479 = vector.shape_cast %478 : vector<2x1xf32> to vector<2x1x1xf32>
    %cst_227 = arith.constant dense<0.000000e+00> : vector<2x3xf32>
    %480 = vector.multi_reduction <add>, %476, %cst_227 [1] : vector<2x8x3xf32> to vector<2x3xf32>
    %481 = vector.shape_cast %480 : vector<2x3xf32> to vector<2x1x3xf32>
    %482 = vector.broadcast %479 : vector<2x1x1xf32> to vector<2x1x3xf32>
    %483 = arith.divf %481, %482 : vector<2x1x3xf32>
    %484 = vector.broadcast %483 : vector<2x1x3xf32> to vector<2x8x3xf32>
    %485 = vector.broadcast %477 : vector<2x8x1xf32> to vector<2x8x3xf32>
    %486 = arith.mulf %484, %485 : vector<2x8x3xf32>
    %487 = arith.subf %476, %486 : vector<2x8x3xf32>
    %488 = vector.shape_cast %487 : vector<2x8x3xf32> to vector<16x3xf32>
    %c31 = arith.constant 31 : index
    %c0_228 = arith.constant 0 : index
    %c0_229 = arith.constant 0 : index
    %489 = vector.load %arg3[%c31, %c0_228, %c0_229] : memref<32x32x32xf32, #tpu.memory_space<vmem>>, vector<1x32x32xf32>
    %490 = vector.shape_cast %489 : vector<1x32x32xf32> to vector<32x32xf32>
    %cst_230 = arith.constant dense<0.000000e+00> : vector<16x32xf32>
    %491 = tpu.matmul %473, %490, %cst_230 {dimension_numbers = #tpu.dot_dimension_numbers<[1], [0], [0], [1], [0, 0, 1, 1], [], []>} : vector<16x32xf32>, vector<32x32xf32>, vector<16x32xf32> -> vector<16x32xf32>
    %c22_231 = arith.constant 22 : index
    %c0_232 = arith.constant 0 : index
    %c0_233 = arith.constant 0 : index
    %492 = vector.load %arg4[%c22_231, %c0_232, %c0_233] : memref<23x1x32xf32, #tpu.memory_space<vmem>>, vector<1x1x32xf32>
    %493 = vector.shape_cast %492 : vector<1x1x32xf32> to vector<1x32xf32>
    %494 = vector.broadcast %493 : vector<1x32xf32> to vector<16x32xf32>
    %495 = arith.addf %491, %494 : vector<16x32xf32>
    %496 = arith.negf %495 : vector<16x32xf32>
    %497 = math.exp %496 : vector<16x32xf32>
    %cst_234 = arith.constant 1.000000e+00 : f32
    %498 = vector.broadcast %cst_234 : f32 to vector<16x32xf32>
    %499 = arith.addf %498, %497 : vector<16x32xf32>
    %500 = arith.divf %498, %499 : vector<16x32xf32>
    %501 = arith.mulf %495, %500 : vector<16x32xf32>
    %c0_235 = arith.constant 0 : index
    %c0_236 = arith.constant 0 : index
    %502 = vector.load %arg8[%c0_235, %c0_236] : memref<32x5xf32, #tpu.memory_space<vmem>>, vector<32x5xf32>
    %cst_237 = arith.constant dense<0.000000e+00> : vector<16x5xf32>
    %503 = tpu.matmul %501, %502, %cst_237 {dimension_numbers = #tpu.dot_dimension_numbers<[1], [0], [0], [1], [0, 0, 1, 1], [], []>} : vector<16x32xf32>, vector<32x5xf32>, vector<16x5xf32> -> vector<16x5xf32>
    %c0_238 = arith.constant 0 : index
    %c0_239 = arith.constant 0 : index
    %504 = vector.load %arg9[%c0_238, %c0_239] : memref<1x5xf32, #tpu.memory_space<vmem>>, vector<1x5xf32>
    %505 = vector.broadcast %504 : vector<1x5xf32> to vector<16x5xf32>
    %506 = arith.addf %503, %505 : vector<16x5xf32>
    %507 = vector.broadcast %1 : vector<16x1xf32> to vector<16x5xf32>
    %508 = arith.mulf %506, %507 : vector<16x5xf32>
    %509 = vector.extract_strided_slice %508 {offsets = [0, 0], sizes = [16, 1], strides = [1, 1]} : vector<16x5xf32> to vector<16x1xf32>
    %510 = vector.shape_cast %509 : vector<16x1xf32> to vector<2x8x1xf32>
    %cst_240 = arith.constant dense<0.000000e+00> : vector<2x1xf32>
    %511 = vector.multi_reduction <add>, %510, %cst_240 [1] : vector<2x8x1xf32> to vector<2x1xf32>
    %512 = vector.shape_cast %511 : vector<2x1xf32> to vector<2x1x1xf32>
    %cst_241 = arith.constant 5.000000e-01 : f32
    %513 = vector.broadcast %cst_241 : f32 to vector<2x1x1xf32>
    %514 = arith.mulf %513, %512 : vector<2x1x1xf32>
    %515 = math.exp %514 : vector<2x1x1xf32>
    %516 = vector.shape_cast %515 : vector<2x1x1xf32> to vector<2x1x1xf32>
    %517 = vector.broadcast %516 : vector<2x1x1xf32> to vector<2x8x1xf32>
    %518 = vector.shape_cast %517 : vector<2x8x1xf32> to vector<16x1xf32>
    %519 = vector.extract_strided_slice %508 {offsets = [0, 1], sizes = [16, 2], strides = [1, 1]} : vector<16x5xf32> to vector<16x2xf32>
    %520 = vector.extract_strided_slice %508 {offsets = [0, 3], sizes = [16, 2], strides = [1, 1]} : vector<16x5xf32> to vector<16x2xf32>
    %cst_242 = arith.constant 5.000000e-01 : f32
    %521 = vector.broadcast %cst_242 : f32 to vector<16x2xf32>
    %522 = arith.mulf %521, %520 : vector<16x2xf32>
    %523 = math.exp %522 : vector<16x2xf32>
    %524 = tpu.concatenate %488, %518, %519, %523 in 1 : vector<16x3xf32>, vector<16x1xf32>, vector<16x2xf32>, vector<16x2xf32> -> vector<16x8xf32>
    %c0_243 = arith.constant 0 : index
    %c0_244 = arith.constant 0 : index
    %525 = vector.load %arg10[%c0_243, %c0_244] : memref<16x8xf32, #tpu.memory_space<vmem>>, vector<16x8xf32>
    tpu.vector_store %arg10[%c0_243, %c0_244], %524 {strides = array<i32>} : memref<16x8xf32, #tpu.memory_space<vmem>>, vector<16x8xf32>,
    return
  }
}

</mosaic_0001>

<llo_original>
// kernel: egnn_encoder_forward.1
$region0: #{egnn_encoder_forward.1}
  #allocation0 [shape = 'u32[]', space=smem, size = 0x4, offset = 0x4, fixed_abs, tag = 'smem constant byte address 0x4 - core index']
  #allocation1 [shape = 'u32[144,128]{1,0:T(1,128)}', space=vmem, size = 0x12000, scoped, tag = 'internal scratch']
  %s0 = inlined_call_operand.vmem [shape: f32[16,9], index: 0, kind: input, shape index: {}]
  %s1 = inlined_call_operand.vmem [shape: f32[16,1], index: 1, kind: input, shape index: {}]
  %s2 = inlined_call_operand.vmem [shape: f32[128,1], index: 2, kind: input, shape index: {}]
  %s3 = inlined_call_operand.hbm [shape: f32[32,32,32], index: 3, kind: input, shape index: {}]
  %s4 = inlined_call_operand.vmem [shape: f32[23,1,32], index: 4, kind: input, shape index: {}]
  %s5 = inlined_call_operand.vmem [shape: f32[6,2,32], index: 5, kind: input, shape index: {}]
  %s6 = inlined_call_operand.vmem [shape: f32[6,32], index: 6, kind: input, shape index: {}]
  %s7 = inlined_call_operand.vmem [shape: f32[2,32,1], index: 7, kind: input, shape index: {}]
  %s8 = inlined_call_operand.vmem [shape: f32[32,5], index: 8, kind: input, shape index: {}]
  %s9 = inlined_call_operand.vmem [shape: f32[1,5], index: 9, kind: input, shape index: {}]
  %s10 = inlined_call_operand.vmem [shape: f32[16,8], index: 10, kind: output, shape index: {}]
  %s11 = sld [smem:[#allocation0]]
  $region54: #{egnn_encoder_forward.1} parent=0
    _
  %s13 = ssub.s32 1, %s11
  %s14 = scalar_select 0, %s13, %s11
  $region1: #{egnn_encoder_forward.1} parent=0
    #allocation2 [shape = 'u8[524288]{0}', space=vmem, size = 0x80000, scoped, tag = 'input window, operand 3, single buffered']
    #allocation3 [shape = 's32[1]{0}', space=sflag, size = 0x4, scoped, tag = 'scoped memory for egnn_encoder_forward.1']
    %15 = vsyncpa [#allocation3], 0
    // Predicated region
    $region2: #{egnn_encoder_forward.1} parent=1 // pred_check
      _
    $region3: #{egnn_encoder_forward.1} parent=1 // pred_check_branch
      %17 = sbr.rel (0) target = $region5
    $region4: #{egnn_encoder_forward.1} parent=1 // pred_region
      _
    $region5: #{egnn_encoder_forward.1} parent=1 // pred_fallthru
      _
    // Predicated region
    $region6: #{egnn_encoder_forward.1} parent=1 // pred_check
      _
    $region7: #{egnn_encoder_forward.1} parent=1 // pred_check_branch
      %19 = sbr.rel (0) target = $region9
    $region8: #{egnn_encoder_forward.1} parent=1 // pred_region
      _
    $region9: #{egnn_encoder_forward.1} parent=1 // pred_fallthru
      _
    // Predicated region
    $region10: #{egnn_encoder_forward.1} parent=1 // pred_check
      _
    $region11: #{egnn_encoder_forward.1} parent=1 // pred_check_branch
      %21 = sbr.rel (0) target = $region13
    $region12: #{egnn_encoder_forward.1} parent=1 // pred_region
      _
    $region13: #{egnn_encoder_forward.1} parent=1 // pred_fallthru
      _
    // Predicated region
    $region14: #{egnn_encoder_forward.1} parent=1 // pred_check
      _
    $region15: #{egnn_encoder_forward.1} parent=1 // pred_check_branch
      %23 = sbr.rel (0) target = $region17
    $region16: #{egnn_encoder_forward.1} parent=1 // pred_region
      %s25 = ssub.s32 16384, 16384
      %26 = vsyncadd [#allocation3], %s25
      %s27 = sshll.u32 [#allocation2], 4
      %s28 = int_to_ptr.vmem [resolvable:$true] %s27
      %33 = dma.hbm_to_vmem [thread:$0]  %s3, 16384, %s28, [#allocation3], 128, 128, 8
    $region17: #{egnn_encoder_forward.1} parent=1 // pred_fallthru
      _
    // Predicated region
    $region18: #{egnn_encoder_forward.1} parent=1 // pred_check
      _
    $region19: #{egnn_encoder_forward.1} parent=1 // pred_check_branch
      %35 = sbr.rel (0) target = $region21
    $region20: #{egnn_encoder_forward.1} parent=1 // pred_region
      _
    $region21: #{egnn_encoder_forward.1} parent=1 // pred_fallthru
      _
    // Predicated region
    $region22: #{egnn_encoder_forward.1} parent=1 // pred_check
      _
    $region23: #{egnn_encoder_forward.1} parent=1 // pred_check_branch
      %37 = sbr.rel (0) target = $region25
    $region24: #{egnn_encoder_forward.1} parent=1 // pred_region
      _
    $region25: #{egnn_encoder_forward.1} parent=1 // pred_fallthru
      _
    // Predicated region
    $region26: #{egnn_encoder_forward.1} parent=1 // pred_check
      _
    $region27: #{egnn_encoder_forward.1} parent=1 // pred_check_branch
      %39 = sbr.rel (0) target = $region29
    $region28: #{egnn_encoder_forward.1} parent=1 // pred_region
      _
    $region29: #{egnn_encoder_forward.1} parent=1 // pred_fallthru
      _
    // Predicated region
    $region30: #{egnn_encoder_forward.1} parent=1 // pred_check
      _
    $region31: #{egnn_encoder_forward.1} parent=1 // pred_check_branch
      %41 = sbr.rel (0) target = $region33
    $region32: #{egnn_encoder_forward.1} parent=1 // pred_region
      _
    $region33: #{egnn_encoder_forward.1} parent=1 // pred_fallthru
      _
    // Predicated region
    $region34: #{egnn_encoder_forward.1} parent=1 // pred_check
      _
    $region35: #{egnn_encoder_forward.1} parent=1 // pred_check_branch
      %43 = sbr.rel (0) target = $region37
    $region36: #{egnn_encoder_forward.1} parent=1 // pred_region
      _
    $region37: #{egnn_encoder_forward.1} parent=1 // pred_fallthru
      _
    // Predicated region
    $region38: #{egnn_encoder_forward.1} parent=1 // pred_check
      _
    $region39: #{egnn_encoder_forward.1} parent=1 // pred_check_branch
      %45 = sbr.rel (0) target = $region41
    $region40: #{egnn_encoder_forward.1} parent=1 // pred_region
      _
    $region41: #{egnn_encoder_forward.1} parent=1 // pred_fallthru
      _
    // Predicated region
    $region42: #{egnn_encoder_forward.1} parent=1 // pred_check
      _
    $region43: #{egnn_encoder_forward.1} parent=1 // pred_check_branch
      %47 = sbr.rel (0) target = $region45
    $region44: #{egnn_encoder_forward.1} parent=1 // pred_region
      %48 = dma.done [#allocation3], 16384
    $region45: #{egnn_encoder_forward.1} parent=1 // pred_fallthru
      _
    %v49 = vld [vmem:[%s0] sm:$0xff]
    %v50 = vld [vmem:[%s0 + $0x8] sm:$0xff]
    %v51 = vld [vmem:[%s1] sm:$0xff]
    %v52 = vld [vmem:[%s1 + $0x8] sm:$0xff]
    %v53 = vld [vmem:[%s2] sm:$0xff]
    %v54 = vld [vmem:[%s2 + $0x8] sm:$0xff]
    %v55 = vld [vmem:[%s2 + $0x10] sm:$0xff]
    %v56 = vld [vmem:[%s2 + $0x18] sm:$0xff]
    %v57 = vld [vmem:[%s2 + $0x20] sm:$0xff]
    %v58 = vld [vmem:[%s2 + $0x28] sm:$0xff]
    %v59 = vld [vmem:[%s2 + $0x30] sm:$0xff]
    %v60 = vld [vmem:[%s2 + $0x38] sm:$0xff]
    %v61 = vld [vmem:[%s2 + $0x40] sm:$0xff]
    %v62 = vld [vmem:[%s2 + $0x48] sm:$0xff]
    %v63 = vld [vmem:[%s2 + $0x50] sm:$0xff]
    %v64 = vld [vmem:[%s2 + $0x58] sm:$0xff]
    %v65 = vld [vmem:[%s2 + $0x60] sm:$0xff]
    %v66 = vld [vmem:[%s2 + $0x68] sm:$0xff]
    %v67 = vld [vmem:[%s2 + $0x70] sm:$0xff]
    %v68 = vld [vmem:[%s2 + $0x78] sm:$0xff]
    %70 = vset.pattern.permute.xlu0 0
    %71 = vperm.xlu0 %70, %v51
    %v72 = vpop.permute.xlu0 %71
    %75 = vset.pattern.permute.xlu0 0
    %76 = vperm.xlu0 %75, %v52
    %v77 = vpop.permute.xlu0 %76
    %v79 = vmul.f32 %v49, %v72
    %v80 = vmul.f32 %v50, %v77
    %v83 = vcombine.high %v79, %v79
    %v85 = vunpack.c.l.s4 1966171168
    %v86 = vunpack.c.0.s8 %v85
    %v87 = vlaneseq
    %v88 = vshrl.u32 %v87, 7
    %v89 = vsub.s32 %v86, %v88
    %v90 = vrot.slane %v79, %v89
    %v92 = vunpack.c.l.s4 1966171168
    %v93 = vunpack.c.0.s8 %v92
    %v94 = vlaneseq
    %v95 = vshrl.u32 %v94, 7
    %v96 = vsub.s32 %v93, %v95
    %v97 = vrot.slane %v83, %v96
    %v98 = vcombine.high %v90, %v90
    %v99 = vcombine.high %v97, %v97
    %v101 = vunpack.c.l.s4 1966171168
    %v102 = vunpack.c.0.s8 %v101
    %v103 = vlaneseq
    %v104 = vshrl.u32 %v103, 7
    %v105 = vsub.s32 %v102, %v104
    %v106 = vrot.slane %v90, %v105
    %v108 = vunpack.c.l.s4 1966171168
    %v109 = vunpack.c.0.s8 %v108
    %v110 = vlaneseq
    %v111 = vshrl.u32 %v110, 7
    %v112 = vsub.s32 %v109, %v111
    %v113 = vrot.slane %v97, %v112
    %v115 = vunpack.c.l.s4 1966171168
    %v116 = vunpack.c.0.s8 %v115
    %v117 = vlaneseq
    %v118 = vshrl.u32 %v117, 7
    %v119 = vsub.s32 %v116, %v118
    %v120 = vrot.slane %v98, %v119
    %v122 = vunpack.c.l.s4 1966171168
    %v123 = vunpack.c.0.s8 %v122
    %v124 = vlaneseq
    %v125 = vshrl.u32 %v124, 7
    %v126 = vsub.s32 %v123, %v125
    %v127 = vrot.slane %v99, %v126
    %v128 = vcombine.high %v106, %v106
    %v129 = vcombine.high %v113, %v113
    %v130 = vcombine.high %v120, %v120
    %v131 = vcombine.high %v127, %v127
    %v132 = vcombine.high %v80, %v80
    %v134 = vunpack.c.l.s4 1966171168
    %v135 = vunpack.c.0.s8 %v134
    %v136 = vlaneseq
    %v137 = vshrl.u32 %v136, 7
    %v138 = vsub.s32 %v135, %v137
    %v139 = vrot.slane %v80, %v138
    %v141 = vunpack.c.l.s4 1966171168
    %v142 = vunpack.c.0.s8 %v141
    %v143 = vlaneseq
    %v144 = vshrl.u32 %v143, 7
    %v145 = vsub.s32 %v142, %v144
    %v146 = vrot.slane %v132, %v145
    %v147 = vcombine.high %v139, %v139
    %v148 = vcombine.high %v146, %v146
    %v150 = vunpack.c.l.s4 1966171168
    %v151 = vunpack.c.0.s8 %v150
    %v152 = vlaneseq
    %v153 = vshrl.u32 %v152, 7
    %v154 = vsub.s32 %v151, %v153
    %v155 = vrot.slane %v139, %v154
    %v157 = vunpack.c.l.s4 1966171168
    %v158 = vunpack.c.0.s8 %v157
    %v159 = vlaneseq
    %v160 = vshrl.u32 %v159, 7
    %v161 = vsub.s32 %v158, %v160
    %v162 = vrot.slane %v146, %v161
    %v164 = vunpack.c.l.s4 1966171168
    %v165 = vunpack.c.0.s8 %v164
    %v166 = vlaneseq
    %v167 = vshrl.u32 %v166, 7
    %v168 = vsub.s32 %v165, %v167
    %v169 = vrot.slane %v147, %v168
    %v171 = vunpack.c.l.s4 1966171168
    %v172 = vunpack.c.0.s8 %v171
    %v173 = vlaneseq
    %v174 = vshrl.u32 %v173, 7
    %v175 = vsub.s32 %v172, %v174
    %v176 = vrot.slane %v148, %v175
    %v177 = vcombine.high %v155, %v155
    %v178 = vcombine.high %v162, %v162
    %v179 = vcombine.high %v169, %v169
    %v180 = vcombine.high %v176, %v176
    %v181 = vlaneseq
    %v182 = vshrl.u32 %v181, 7
    %v183 = vsub.s32 0, %v182
    %v184 = vrot.slane %v106, %v183
    %v185 = vlaneseq
    %v186 = vshrl.u32 %v185, 7
    %v187 = vsub.s32 0, %v186
    %v188 = vrot.slane %v120, %v187
    %v189 = vlaneseq
    %v190 = vshrl.u32 %v189, 7
    %v191 = vsub.s32 0, %v190
    %v192 = vrot.slane %v128, %v191
    %v193 = vlaneseq
    %v194 = vshrl.u32 %v193, 7
    %v195 = vsub.s32 0, %v194
    %v196 = vrot.slane %v130, %v195
    %v197 = vlaneseq
    %v198 = vshrl.u32 %v197, 7
    %v199 = vsub.s32 0, %v198
    %v200 = vrot.slane %v113, %v199
    %v201 = vlaneseq
    %v202 = vshrl.u32 %v201, 7
    %v203 = vsub.s32 0, %v202
    %v204 = vrot.slane %v127, %v203
    %v205 = vlaneseq
    %v206 = vshrl.u32 %v205, 7
    %v207 = vsub.s32 0, %v206
    %v208 = vrot.slane %v129, %v207
    %v209 = vlaneseq
    %v210 = vshrl.u32 %v209, 7
    %v211 = vsub.s32 0, %v210
    %v212 = vrot.slane %v131, %v211
    %v213 = vlaneseq
    %v214 = vshrl.u32 %v213, 7
    %v215 = vsub.s32 0, %v214
    %v216 = vrot.slane %v155, %v215
    %v217 = vlaneseq
    %v218 = vshrl.u32 %v217, 7
    %v219 = vsub.s32 0, %v218
    %v220 = vrot.slane %v169, %v219
    %v221 = vlaneseq
    %v222 = vshrl.u32 %v221, 7
    %v223 = vsub.s32 0, %v222
    %v224 = vrot.slane %v177, %v223
    %v225 = vlaneseq
    %v226 = vshrl.u32 %v225, 7
    %v227 = vsub.s32 0, %v226
    %v228 = vrot.slane %v179, %v227
    %v229 = vlaneseq
    %v230 = vshrl.u32 %v229, 7
    %v231 = vsub.s32 0, %v230
    %v232 = vrot.slane %v162, %v231
    %v233 = vlaneseq
    %v234 = vshrl.u32 %v233, 7
    %v235 = vsub.s32 0, %v234
    %v236 = vrot.slane %v176, %v235
    %v237 = vlaneseq
    %v238 = vshrl.u32 %v237, 7
    %v239 = vsub.s32 0, %v238
    %v240 = vrot.slane %v178, %v239
    %v241 = vlaneseq
    %v242 = vshrl.u32 %v241, 7
    %v243 = vsub.s32 0, %v242
    %v244 = vrot.slane %v180, %v243
    %v261 = vsub.f32 %v184, %v79
    %v262 = vsub.f32 %v188, %v79
    %v263 = vsub.f32 %v192, %v79
    %v264 = vsub.f32 %v196, %v79
    %v265 = vsub.f32 %v200, %v79
    %v266 = vsub.f32 %v204, %v79
    %v267 = vsub.f32 %v208, %v79
    %v268 = vsub.f32 %v212, %v79
    %v269 = vsub.f32 %v216, %v80
    %v270 = vsub.f32 %v220, %v80
    %v271 = vsub.f32 %v224, %v80
    %v272 = vsub.f32 %v228, %v80
    %v273 = vsub.f32 %v232, %v80
    %v274 = vsub.f32 %v236, %v80
    %v275 = vsub.f32 %v240, %v80
    %v276 = vsub.f32 %v244, %v80
    %v277 = vmul.f32 %v261, %v261
    %v278 = vmul.f32 %v262, %v262
    %v279 = vmul.f32 %v263, %v263
    %v280 = vmul.f32 %v264, %v264
    %v281 = vmul.f32 %v265, %v265
    %v282 = vmul.f32 %v266, %v266
    %v283 = vmul.f32 %v267, %v267
    %v284 = vmul.f32 %v268, %v268
    %v285 = vmul.f32 %v269, %v269
    %v286 = vmul.f32 %v270, %v270
    %v287 = vmul.f32 %v271, %v271
    %v288 = vmul.f32 %v272, %v272
    %v289 = vmul.f32 %v273, %v273
    %v290 = vmul.f32 %v274, %v274
    %v291 = vmul.f32 %v275, %v275
    %v292 = vmul.f32 %v276, %v276
    %vm293 = vcmask 23552
    %v294 = vsel %vm293, %v277, 0.0
    %295 = vadd.xlane.f32.xlu0 %v294
    %v296 = vpop.xlane.xlu0 %295
    %v297 = vsel %vm293, %v278, 0.0
    %298 = vadd.xlane.f32.xlu0 %v297
    %v299 = vpop.xlane.xlu0 %298
    %v300 = vsel %vm293, %v279, 0.0
    %301 = vadd.xlane.f32.xlu0 %v300
    %v302 = vpop.xlane.xlu0 %301
    %v303 = vsel %vm293, %v280, 0.0
    %304 = vadd.xlane.f32.xlu0 %v303
    %v305 = vpop.xlane.xlu0 %304
    %v306 = vsel %vm293, %v281, 0.0
    %307 = vadd.xlane.f32.xlu0 %v306
    %v308 = vpop.xlane.xlu0 %307
    %v309 = vsel %vm293, %v282, 0.0
    %310 = vadd.xlane.f32.xlu0 %v309
    %v311 = vpop.xlane.xlu0 %310
    %v312 = vsel %vm293, %v283, 0.0
    %313 = vadd.xlane.f32.xlu0 %v312
    %v314 = vpop.xlane.xlu0 %313
    %v315 = vsel %vm293, %v284, 0.0
    %316 = vadd.xlane.f32.xlu0 %v315
    %v317 = vpop.xlane.xlu0 %316
    %v318 = vsel %vm293, %v285, 0.0
    %319 = vadd.xlane.f32.xlu0 %v318
    %v320 = vpop.xlane.xlu0 %319
    %v321 = vsel %vm293, %v286, 0.0
    %322 = vadd.xlane.f32.xlu0 %v321
    %v323 = vpop.xlane.xlu0 %322
    %v324 = vsel %vm293, %v287, 0.0
    %325 = vadd.xlane.f32.xlu0 %v324
    %v326 = vpop.xlane.xlu0 %325
    %v327 = vsel %vm293, %v288, 0.0
    %328 = vadd.xlane.f32.xlu0 %v327
    %v329 = vpop.xlane.xlu0 %328
    %v330 = vsel %vm293, %v289, 0.0
    %331 = vadd.xlane.f32.xlu0 %v330
    %v332 = vpop.xlane.xlu0 %331
    %v333 = vsel %vm293, %v290, 0.0
    %334 = vadd.xlane.f32.xlu0 %v333
    %v335 = vpop.xlane.xlu0 %334
    %v336 = vsel %vm293, %v291, 0.0
    %337 = vadd.xlane.f32.xlu0 %v336
    %v338 = vpop.xlane.xlu0 %337
    %v339 = vsel %vm293, %v292, 0.0
    %340 = vadd.xlane.f32.xlu0 %v339
    %v341 = vpop.xlane.xlu0 %340
    %v342 = vld [vmem:[%s6] sm:$0x3f]
    %s343 = scalar_lea.vmem %s4, 20
    %v344 = vld [vmem:[%s343] sm:$0x1]
    %v346 = vlaneseq
    %v347 = vshrl.u32 %v346, 7
    %v348 = vsub.s32 0, %v347
    %v349 = vrot.slane %v344, %v348
    %351 = vrot.lane.b32.xlu0 %v79, 125
    %v352 = vpop.permute.xlu0 %351
    %353 = vrot.lane.b32.xlu0 %v80, 125
    %v354 = vpop.permute.xlu0 %353
    %vm355 = vcmask 48128
    %v356 = vsel %vm355, %v352, 0
    %v358 = vsel %vm355, %v354, 0
    %vm360 = vcmask 1045504
    %v362 = vsel %vm360, %v342, 0
    %364 = vmatprep.subr.mxu0 0.0
    %365 = vmatpush1.msra.mxu0 %v362
    %366 = vmatprep.subr.mxu0 0.0
    %367 = vmatpush1.msra.mxu0 0.0
    %368 = vmatprep.subr.mxu0 0.0
    %369 = vmatpush1.msra.mxu0 0.0
    %370 = vmatprep.subr.mxu0 0.0
    %371 = vmatpush1.msra.mxu0 0.0
    %372 = vmatprep.subr.mxu0 0.0
    %373 = vmatpush1.msra.mxu0 0.0
    %374 = vmatprep.subr.mxu0 0.0
    %375 = vmatpush1.msra.mxu0 0.0
    %376 = vmatprep.subr.mxu0 0.0
    %377 = vmatpush1.msra.mxu0 0.0
    %378 = vmatprep.subr.mxu0 0.0
    %379 = vmatpush1.msra.mxu0 0.0
    %380 = vmatprep.subr.mxu0 0.0
    %381 = vmatpush1.msra.mxu0 0.0
    %382 = vmatprep.subr.mxu0 0.0
    %383 = vmatpush1.msra.mxu0 0.0
    %384 = vmatprep.subr.mxu0 0.0
    %385 = vmatpush1.msra.mxu0 0.0
    %386 = vmatprep.subr.mxu0 0.0
    %387 = vmatpush1.msra.mxu0 0.0
    %388 = vmatprep.subr.mxu0 0.0
    %389 = vmatpush1.msra.mxu0 0.0
    %390 = vmatprep.subr.mxu0 0.0
    %391 = vmatpush1.msra.mxu0 0.0
    %392 = vmatprep.subr.mxu0 0.0
    %393 = vmatpush1.msra.mxu0 0.0
    %394 = vmatprep.subr.mxu0 0.0
    %395 = vmatpush1.msra.mxu0 0.0
    %396 = vmatprep.subr.mxu0 0.0
    %397 = vmatpush1.msra.mxu0 0.0
    %398 = vmatprep.subr.mxu0 0.0
    %399 = vmatpush1.msra.mxu0 0.0
    %400 = vmatprep.subr.mxu0 0.0
    %401 = vmatpush1.msra.mxu0 0.0
    %402 = vmatprep.subr.mxu0 0.0
    %403 = vmatpush1.msra.mxu0 0.0
    %404 = vmatprep.subr.mxu0 0.0
    %405 = vmatpush1.msra.mxu0 0.0
    %406 = vmatprep.subr.mxu0 0.0
    %407 = vmatpush1.msra.mxu0 0.0
    %408 = vmatprep.subr.mxu0 0.0
    %409 = vmatpush1.msra.mxu0 0.0
    %410 = vmatprep.subr.mxu0 0.0
    %411 = vmatpush1.msra.mxu0 0.0
    %412 = vmatprep.subr.mxu0 0.0
    %413 = vmatpush1.msra.mxu0 0.0
    %414 = vmatprep.subr.mxu0 0.0
    %415 = vmatpush1.msra.mxu0 0.0
    %416 = vmatprep.subr.mxu0 0.0
    %417 = vmatpush1.msra.mxu0 0.0
    %418 = vmatprep.subr.mxu0 0.0
    %419 = vmatpush1.msra.mxu0 0.0
    %420 = vmatprep.subr.mxu0 0.0
    %421 = vmatpush1.msra.mxu0 0.0
    %422 = vmatprep.subr.mxu0 0.0
    %423 = vmatpush1.msra.mxu0 0.0
    %424 = vmatprep.subr.mxu0 0.0
    %425 = vmatpush1.msra.mxu0 0.0
    %426 = vmatprep.subr.mxu0 0.0
    %427 = vmatpush1.msra.mxu0 0.0
    %428 = vmatprep.mubr.f32.mxu0 0.0
    %429 = vmatmul.mubr.f32.gmra.mrb[0].mxu0 %v356
    %v430 = vpop.f32.mrb[0].mxu0
    %v431 = vadd.f32 %v349, %v430
    %v432 = vpop.f32.mrb[0].mxu0
    %433 = vmatprep.mubr.f32.mxu0 0.0
    %434 = vmatmul.mubr.f32.gmra.mrb[0].mxu0 %v358
    %v435 = vpop.f32.mrb[0].mxu0
    %v436 = vadd.f32 %v349, %v435
    %v437 = vpop.f32.mrb[0].mxu0
    %438 = vdwg.mxu0
    %v439 = vadd.f32 %v296, 1e-08
    %v440 = vadd.f32 %v299, 1e-08
    %v441 = vadd.f32 %v302, 1e-08
    %v442 = vadd.f32 %v305, 1e-08
    %v443 = vadd.f32 %v308, 1e-08
    %v444 = vadd.f32 %v311, 1e-08
    %v445 = vadd.f32 %v314, 1e-08
    %v446 = vadd.f32 %v317, 1e-08
    %v447 = vadd.f32 %v320, 1e-08
    %v448 = vadd.f32 %v323, 1e-08
    %v449 = vadd.f32 %v326, 1e-08
    %v450 = vadd.f32 %v329, 1e-08
    %v451 = vadd.f32 %v332, 1e-08
    %v452 = vadd.f32 %v335, 1e-08
    %v453 = vadd.f32 %v338, 1e-08
    %v454 = vadd.f32 %v341, 1e-08
    %v455 = vrsqrt.pop %v439
    %v456 = vrsqrt.pop %v440
    %v457 = vrsqrt.pop %v441
    %v458 = vrsqrt.pop %v442
    %v459 = vrsqrt.pop %v443
    %v460 = vrsqrt.pop %v444
    %v461 = vrsqrt.pop %v445
    %v462 = vrsqrt.pop %v446
    %v463 = vrsqrt.pop %v447
    %v464 = vrsqrt.pop %v448
    %v465 = vrsqrt.pop %v449
    %v466 = vrsqrt.pop %v450
    %v467 = vrsqrt.pop %v451
    %v468 = vrsqrt.pop %v452
    %v469 = vrsqrt.pop %v453
    %v470 = vrsqrt.pop %v454
    %v471 = vmul.f32 %v261, %v455
    %v472 = vmul.f32 %v262, %v456
    %v473 = vmul.f32 %v263, %v457
    %v474 = vmul.f32 %v264, %v458
    %v475 = vmul.f32 %v265, %v459
    %v476 = vmul.f32 %v266, %v460
    %v477 = vmul.f32 %v267, %v461
    %v478 = vmul.f32 %v268, %v462
    %v479 = vmul.f32 %v269, %v463
    %v480 = vmul.f32 %v270, %v464
    %v481 = vmul.f32 %v271, %v465
    %v482 = vmul.f32 %v272, %v466
    %v483 = vmul.f32 %v273, %v467
    %v484 = vmul.f32 %v274, %v468
    %v485 = vmul.f32 %v275, %v469
    %v486 = vmul.f32 %v276, %v470
    %v489 = vcombine.high %v431, %v431
    %v491 = vunpack.c.l.s4 1966171168
    %v492 = vunpack.c.0.s8 %v491
    %v493 = vlaneseq
    %v494 = vshrl.u32 %v493, 7
    %v495 = vsub.s32 %v492, %v494
    %v496 = vrot.slane %v431, %v495
    %v498 = vunpack.c.l.s4 1966171168
    %v499 = vunpack.c.0.s8 %v498
    %v500 = vlaneseq
    %v501 = vshrl.u32 %v500, 7
    %v502 = vsub.s32 %v499, %v501
    %v503 = vrot.slane %v489, %v502
    %v504 = vcombine.high %v496, %v496
    %v505 = vcombine.high %v503, %v503
    %v507 = vunpack.c.l.s4 1966171168
    %v508 = vunpack.c.0.s8 %v507
    %v509 = vlaneseq
    %v510 = vshrl.u32 %v509, 7
    %v511 = vsub.s32 %v508, %v510
    %v512 = vrot.slane %v496, %v511
    %v514 = vunpack.c.l.s4 1966171168
    %v515 = vunpack.c.0.s8 %v514
    %v516 = vlaneseq
    %v517 = vshrl.u32 %v516, 7
    %v518 = vsub.s32 %v515, %v517
    %v519 = vrot.slane %v503, %v518
    %v521 = vunpack.c.l.s4 1966171168
    %v522 = vunpack.c.0.s8 %v521
    %v523 = vlaneseq
    %v524 = vshrl.u32 %v523, 7
    %v525 = vsub.s32 %v522, %v524
    %v526 = vrot.slane %v504, %v525
    %v528 = vunpack.c.l.s4 1966171168
    %v529 = vunpack.c.0.s8 %v528
    %v530 = vlaneseq
    %v531 = vshrl.u32 %v530, 7
    %v532 = vsub.s32 %v529, %v531
    %v533 = vrot.slane %v505, %v532
    %v534 = vcombine.high %v512, %v512
    %v535 = vcombine.high %v519, %v519
    %v536 = vcombine.high %v526, %v526
    %v537 = vcombine.high %v533, %v533
    %v538 = vcombine.high %v436, %v436
    %v540 = vunpack.c.l.s4 1966171168
    %v541 = vunpack.c.0.s8 %v540
    %v542 = vlaneseq
    %v543 = vshrl.u32 %v542, 7
    %v544 = vsub.s32 %v541, %v543
    %v545 = vrot.slane %v436, %v544
    %v547 = vunpack.c.l.s4 1966171168
    %v548 = vunpack.c.0.s8 %v547
    %v549 = vlaneseq
    %v550 = vshrl.u32 %v549, 7
    %v551 = vsub.s32 %v548, %v550
    %v552 = vrot.slane %v538, %v551
    %v553 = vcombine.high %v545, %v545
    %v554 = vcombine.high %v552, %v552
    %v556 = vunpack.c.l.s4 1966171168
    %v557 = vunpack.c.0.s8 %v556
    %v558 = vlaneseq
    %v559 = vshrl.u32 %v558, 7
    %v560 = vsub.s32 %v557, %v559
    %v561 = vrot.slane %v545, %v560
    %v563 = vunpack.c.l.s4 1966171168
    %v564 = vunpack.c.0.s8 %v563
    %v565 = vlaneseq
    %v566 = vshrl.u32 %v565, 7
    %v567 = vsub.s32 %v564, %v566
    %v568 = vrot.slane %v552, %v567
    %v570 = vunpack.c.l.s4 1966171168
    %v571 = vunpack.c.0.s8 %v570
    %v572 = vlaneseq
    %v573 = vshrl.u32 %v572, 7
    %v574 = vsub.s32 %v571, %v573
    %v575 = vrot.slane %v553, %v574
    %v577 = vunpack.c.l.s4 1966171168
    %v578 = vunpack.c.0.s8 %v577
    %v579 = vlaneseq
    %v580 = vshrl.u32 %v579, 7
    %v581 = vsub.s32 %v578, %v580
    %v582 = vrot.slane %v554, %v581
    %v583 = vcombine.high %v561, %v561
    %v584 = vcombine.high %v568, %v568
    %v585 = vcombine.high %v575, %v575
    %v586 = vcombine.high %v582, %v582
    %v587 = vlaneseq
    %v588 = vshrl.u32 %v587, 7
    %v589 = vsub.s32 0, %v588
    %v590 = vrot.slane %v512, %v589
    %v591 = vlaneseq
    %v592 = vshrl.u32 %v591, 7
    %v593 = vsub.s32 0, %v592
    %v594 = vrot.slane %v526, %v593
    %v595 = vlaneseq
    %v596 = vshrl.u32 %v595, 7
    %v597 = vsub.s32 0, %v596
    %v598 = vrot.slane %v534, %v597
    %v599 = vlaneseq
    %v600 = vshrl.u32 %v599, 7
    %v601 = vsub.s32 0, %v600
    %v602 = vrot.slane %v536, %v601
    %v603 = vlaneseq
    %v604 = vshrl.u32 %v603, 7
    %v605 = vsub.s32 0, %v604
    %v606 = vrot.slane %v519, %v605
    %v607 = vlaneseq
    %v608 = vshrl.u32 %v607, 7
    %v609 = vsub.s32 0, %v608
    %v610 = vrot.slane %v533, %v609
    %v611 = vlaneseq
    %v612 = vshrl.u32 %v611, 7
    %v613 = vsub.s32 0, %v612
    %v614 = vrot.slane %v535, %v613
    %v615 = vlaneseq
    %v616 = vshrl.u32 %v615, 7
    %v617 = vsub.s32 0, %v616
    %v618 = vrot.slane %v537, %v617
    %v619 = vlaneseq
    %v620 = vshrl.u32 %v619, 7
    %v621 = vsub.s32 0, %v620
    %v622 = vrot.slane %v561, %v621
    %v623 = vlaneseq
    %v624 = vshrl.u32 %v623, 7
    %v625 = vsub.s32 0, %v624
    %v626 = vrot.slane %v575, %v625
    %v627 = vlaneseq
    %v628 = vshrl.u32 %v627, 7
    %v629 = vsub.s32 0, %v628
    %v630 = vrot.slane %v583, %v629
    %v631 = vlaneseq
    %v632 = vshrl.u32 %v631, 7
    %v633 = vsub.s32 0, %v632
    %v634 = vrot.slane %v585, %v633
    %v635 = vlaneseq
    %v636 = vshrl.u32 %v635, 7
    %v637 = vsub.s32 0, %v636
    %v638 = vrot.slane %v568, %v637
    %v639 = vlaneseq
    %v640 = vshrl.u32 %v639, 7
    %v641 = vsub.s32 0, %v640
    %v642 = vrot.slane %v582, %v641
    %v643 = vlaneseq
    %v644 = vshrl.u32 %v643, 7
    %v645 = vsub.s32 0, %v644
    %v646 = vrot.slane %v584, %v645
    %v647 = vlaneseq
    %v648 = vshrl.u32 %v647, 7
    %v649 = vsub.s32 0, %v648
    %v650 = vrot.slane %v586, %v649
    %v651 = vld [vmem:[#allocation2] sm:$0xff]
    %v652 = vld [vmem:[#allocation2 + $0x8] sm:$0xff]
    %v653 = vld [vmem:[#allocation2 + $0x10] sm:$0xff]
    %v654 = vld [vmem:[#allocation2 + $0x18] sm:$0xff]
    %s655 = scalar_lea.vmem [#allocation2], 128
    %v656 = vld [vmem:[%s655] sm:$0xff]
    %v657 = vld [vmem:[%s655 + $0x8] sm:$0xff]
    %v658 = vld [vmem:[%s655 + $0x10] sm:$0xff]
    %v659 = vld [vmem:[%s655 + $0x18] sm:$0xff]
    %vm660 = vcmask 261120
    %v661 = vsel %vm660, %v431, 0
    %v663 = vsel %vm660, %v436, 0
    %665 = vmatprep.subr.mxu0 0.0
    %666 = vmatpush1.msra.mxu0 %v656
    %667 = vmatprep.subr.mxu0 0.0
    %668 = vmatpush1.msra.mxu0 %v657
    %669 = vmatprep.subr.mxu0 0.0
    %670 = vmatpush1.msra.mxu0 %v658
    %671 = vmatprep.subr.mxu0 0.0
    %672 = vmatpush1.msra.mxu0 %v659
    %673 = vmatprep.subr.mxu0 0.0
    %674 = vmatpush1.msra.mxu0 0.0
    %675 = vmatprep.subr.mxu0 0.0
    %676 = vmatpush1.msra.mxu0 0.0
    %677 = vmatprep.subr.mxu0 0.0
    %678 = vmatpush1.msra.mxu0 0.0
    %679 = vmatprep.subr.mxu0 0.0
    %680 = vmatpush1.msra.mxu0 0.0
    %681 = vmatprep.subr.mxu0 0.0
    %682 = vmatpush1.msra.mxu0 0.0
    %683 = vmatprep.subr.mxu0 0.0
    %684 = vmatpush1.msra.mxu0 0.0
    %685 = vmatprep.subr.mxu0 0.0
    %686 = vmatpush1.msra.mxu0 0.0
    %687 = vmatprep.subr.mxu0 0.0
    %688 = vmatpush1.msra.mxu0 0.0
    %689 = vmatprep.subr.mxu0 0.0
    %690 = vmatpush1.msra.mxu0 0.0
    %691 = vmatprep.subr.mxu0 0.0
    %692 = vmatpush1.msra.mxu0 0.0
    %693 = vmatprep.subr.mxu0 0.0
    %694 = vmatpush1.msra.mxu0 0.0
    %695 = vmatprep.subr.mxu0 0.0
    %696 = vmatpush1.msra.mxu0 0.0
    %697 = vmatprep.subr.mxu0 0.0
    %698 = vmatpush1.msra.mxu0 0.0
    %699 = vmatprep.subr.mxu0 0.0
    %700 = vmatpush1.msra.mxu0 0.0
    %701 = vmatprep.subr.mxu0 0.0
    %702 = vmatpush1.msra.mxu0 0.0
    %703 = vmatprep.subr.mxu0 0.0
    %704 = vmatpush1.msra.mxu0 0.0
    %705 = vmatprep.subr.mxu0 0.0
    %706 = vmatpush1.msra.mxu0 0.0
    %707 = vmatprep.subr.mxu0 0.0
    %708 = vmatpush1.msra.mxu0 0.0
    %709 = vmatprep.subr.mxu0 0.0
    %710 = vmatpush1.msra.mxu0 0.0
    %711 = vmatprep.subr.mxu0 0.0
    %712 = vmatpush1.msra.mxu0 0.0
    %713 = vmatprep.subr.mxu0 0.0
    %714 = vmatpush1.msra.mxu0 0.0
    %715 = vmatprep.subr.mxu0 0.0
    %716 = vmatpush1.msra.mxu0 0.0
    %717 = vmatprep.subr.mxu0 0.0
    %718 = vmatpush1.msra.mxu0 0.0
    %719 = vmatprep.subr.mxu0 0.0
    %720 = vmatpush1.msra.mxu0 0.0
    %721 = vmatprep.subr.mxu0 0.0
    %722 = vmatpush1.msra.mxu0 0.0
    %723 = vmatprep.subr.mxu0 0.0
    %724 = vmatpush1.msra.mxu0 0.0
    %725 = vmatprep.subr.mxu0 0.0
    %726 = vmatpush1.msra.mxu0 0.0
    %727 = vmatprep.subr.mxu0 0.0
    %728 = vmatpush1.msra.mxu0 0.0
    %729 = vmatprep.mubr.f32.mxu0 0.0
    %730 = vmatmul.mubr.f32.gmra.mrb[0].mxu0 %v661
    %v731 = vpop.f32.mrb[0].mxu0
    %v732 = vadd.f32 0.0, %v731
    %v733 = vpop.f32.mrb[0].mxu0
    %734 = vmatprep.mubr.f32.mxu0 0.0
    %735 = vmatmul.mubr.f32.gmra.mrb[0].mxu0 %v661
    %v736 = vpop.f32.mrb[0].mxu0
    %v737 = vadd.f32 0.0, %v736
    %v738 = vpop.f32.mrb[0].mxu0
    %739 = vmatprep.mubr.f32.mxu0 0.0
    %740 = vmatmul.mubr.f32.gmra.mrb[0].mxu0 %v661
    %v741 = vpop.f32.mrb[0].mxu0
    %v742 = vadd.f32 0.0, %v741
    %v743 = vpop.f32.mrb[0].mxu0
    %744 = vmatprep.mubr.f32.mxu0 0.0
    %745 = vmatmul.mubr.f32.gmra.mrb[0].mxu0 %v661
    %v746 = vpop.f32.mrb[0].mxu0
    %v747 = vadd.f32 0.0, %v746
    %v748 = vpop.f32.mrb[0].mxu0
    %749 = vmatprep.mubr.f32.mxu0 0.0
    %750 = vmatmul.mubr.f32.gmra.mrb[0].mxu0 %v661
    %v751 = vpop.f32.mrb[0].mxu0
    %v752 = vadd.f32 0.0, %v751
    %v753 = vpop.f32.mrb[0].mxu0
    %754 = vmatprep.mubr.f32.mxu0 0.0
    %755 = vmatmul.mubr.f32.gmra.mrb[0].mxu0 %v661
    %v756 = vpop.f32.mrb[0].mxu0
    %v757 = vadd.f32 0.0, %v756
    %v758 = vpop.f32.mrb[0].mxu0
    %759 = vmatprep.mubr.f32.mxu0 0.0
    %760 = vmatmul.mubr.f32.gmra.mrb[0].mxu0 %v661
    %v761 = vpop.f32.mrb[0].mxu0
    %v762 = vadd.f32 0.0, %v761
    %v763 = vpop.f32.mrb[0].mxu0
    %764 = vmatprep.mubr.f32.mxu0 0.0
    %765 = vmatmul.mubr.f32.gmra.mrb[0].mxu0 %v661
    %v766 = vpop.f32.mrb[0].mxu0
    %v767 = vadd.f32 0.0, %v766
    %v768 = vpop.f32.mrb[0].mxu0
    %769 = vmatprep.mubr.f32.mxu0 0.0
    %770 = vmatmul.mubr.f32.gmra.mrb[0].mxu0 %v663
    %v771 = vpop.f32.mrb[0].mxu0
    %v772 = vadd.f32 0.0, %v771
    %v773 = vpop.f32.mrb[0].mxu0
    %774 = vmatprep.mubr.f32.mxu0 0.0
    %775 = vmatmul.mubr.f32.gmra.mrb[0].mxu0 %v663
    %v776 = vpop.f32.mrb[0].mxu0
    %v777 = vadd.f32 0.0, %v776
    %v778 = vpop.f32.mrb[0].mxu0
    %779 = vmatprep.mubr.f32.mxu0 0.0
    %780 = vmatmul.mubr.f32.gmra.mrb[0].mxu0 %v663
    %v781 = vpop.f32.mrb[0].mxu0
    %v782 = vadd.f32 0.0, %v781
    %v783 = vpop.f32.mrb[0].mxu0
    %784 = vmatprep.mubr.f32.mxu0 0.0
    %785 = vmatmul.mubr.f32.gmra.mrb[0].mxu0 %v663
    %v786 = vpop.f32.mrb[0].mxu0
    %v787 = vadd.f32 0.0, %v786
    %v788 = vpop.f32.mrb[0].mxu0
    %789 = vmatprep.mubr.f32.mxu0 0.0
    %790 = vmatmul.mubr.f32.gmra.mrb[0].mxu0 %v663
    %v791 = vpop.f32.mrb[0].mxu0
    %v792 = vadd.f32 0.0, %v791
    %v793 = vpop.f32.mrb[0].mxu0
    %794 = vmatprep.mubr.f32.mxu0 0.0
    %795 = vmatmul.mubr.f32.gmra.mrb[0].mxu0 %v663
    %v796 = vpop.f32.mrb[0].mxu0
    %v797 = vadd.f32 0.0, %v796
    %v798 = vpop.f32.mrb[0].mxu0
    %799 = vmatprep.mubr.f32.mxu0 0.0
    %800 = vmatmul.mubr.f32.gmra.mrb[0].mxu0 %v663
    %v801 = vpop.f32.mrb[0].mxu0
    %v802 = vadd.f32 0.0, %v801
    %v803 = vpop.f32.mrb[0].mxu0
    %804 = vmatprep.mubr.f32.mxu0 0.0
    %805 = vmatmul.mubr.f32.gmra.mrb[0].mxu0 %v663
    %v806 = vpop.f32.mrb[0].mxu0
    %v807 = vadd.f32 0.0, %v806
    %v808 = vpop.f32.mrb[0].mxu0
    %809 = vdwg.mxu0
    %v810 = vsel %vm660, %v590, 0
    %v812 = vsel %vm660, %v594, 0
    %v814 = vsel %vm660, %v598, 0
    %v816 = vsel %vm660, %v602, 0
    %v818 = vsel %vm660, %v606, 0
    %v820 = vsel %vm660, %v610, 0
    %v822 = vsel %vm660, %v614, 0
    %v824 = vsel %vm660, %v618, 0
    %v826 = vsel %vm660, %v622, 0
    %v828 = vsel %vm660, %v626, 0
    %v830 = vsel %vm660, %v630, 0
    %v832 = vsel %vm660, %v634, 0
    %v834 = vsel %vm660, %v638, 0
    %v836 = vsel %vm660, %v642, 0
    %v838 = vsel %vm660, %v646, 0
    %v840 = vsel %vm660, %v650, 0
    %842 = vmatprep.subr.mxu0 0.0
    %843 = vmatpush1.msra.mxu0 %v651
    %844 = vmatprep.subr.mxu0 0.0
    %845 = vmatpush1.msra.mxu0 %v652
    %846 = vmatprep.subr.mxu0 0.0
    %847 = vmatpush1.msra.mxu0 %v653
    %848 = vmatprep.subr.mxu0 0.0
    %849 = vmatpush1.msra.mxu0 %v654
    %850 = vmatprep.subr.mxu0 0.0
    %851 = vmatpush1.msra.mxu0 0.0
    %852 = vmatprep.subr.mxu0 0.0
    %853 = vmatpush1.msra.mxu0 0.0
    %854 = vmatprep.subr.mxu0 0.0
    %855 = vmatpush1.msra.mxu0 0.0
    %856 = vmatprep.subr.mxu0 0.0
    %857 = vmatpush1.msra.mxu0 0.0
    %858 = vmatprep.subr.mxu0 0.0
    %859 = vmatpush1.msra.mxu0 0.0
    %860 = vmatprep.subr.mxu0 0.0
    %861 = vmatpush1.msra.mxu0 0.0
    %862 = vmatprep.subr.mxu0 0.0
    %863 = vmatpush1.msra.mxu0 0.0
    %864 = vmatprep.subr.mxu0 0.0
    %865 = vmatpush1.msra.mxu0 0.0
    %866 = vmatprep.subr.mxu0 0.0
    %867 = vmatpush1.msra.mxu0 0.0
    %868 = vmatprep.subr.mxu0 0.0
    %869 = vmatpush1.msra.mxu0 0.0
    %870 = vmatprep.subr.mxu0 0.0
    %871 = vmatpush1.msra.mxu0 0.0
    %872 = vmatprep.subr.mxu0 0.0
    %873 = vmatpush1.msra.mxu0 0.0
    %874 = vmatprep.subr.mxu0 0.0
    %875 = vmatpush1.msra.mxu0 0.0
    %876 = vmatprep.subr.mxu0 0.0
    %877 = vmatpush1.msra.mxu0 0.0
    %878 = vmatprep.subr.mxu0 0.0
    %879 = vmatpush1.msra.mxu0 0.0
    %880 = vmatprep.subr.mxu0 0.0
    %881 = vmatpush1.msra.mxu0 0.0
    %882 = vmatprep.subr.mxu0 0.0
    %883 = vmatpush1.msra.mxu0 0.0
    %884 = vmatprep.subr.mxu0 0.0
    %885 = vmatpush1.msra.mxu0 0.0
    %886 = vmatprep.subr.mxu0 0.0
    %887 = vmatpush1.msra.mxu0 0.0
    %888 = vmatprep.subr.mxu0 0.0
    %889 = vmatpush1.msra.mxu0 0.0
    %890 = vmatprep.subr.mxu0 0.0
    %891 = vmatpush1.msra.mxu0 0.0
    %892 = vmatprep.subr.mxu0 0.0
    %893 = vmatpush1.msra.mxu0 0.0
    %894 = vmatprep.subr.mxu0 0.0
    %895 = vmatpush1.msra.mxu0 0.0
    %896 = vmatprep.subr.mxu0 0.0
    %897 = vmatpush1.msra.mxu0 0.0
    %898 = vmatprep.subr.mxu0 0.0
    %899 = vmatpush1.msra.mxu0 0.0
    %900 = vmatprep.subr.mxu0 0.0
    %901 = vmatpush1.msra.mxu0 0.0
    %902 = vmatprep.subr.mxu0 0.0
    %903 = vmatpush1.msra.mxu0 0.0
    %904 = vmatprep.subr.mxu0 0.0
    %905 = vmatpush1.msra.mxu0 0.0
    %906 = vmatprep.mubr.f32.mxu0 0.0
    %907 = vmatmul.mubr.f32.gmra.mrb[0].mxu0 %v810
    %v908 = vpop.f32.mrb[0].mxu0
    %v909 = vadd.f32 %v732, %v908
    %v910 = vpop.f32.mrb[0].mxu0
    %911 = vmatprep.mubr.f32.mxu0 0.0
    %912 = vmatmul.mubr.f32.gmra.mrb[0].mxu0 %v812
    %v913 = vpop.f32.mrb[0].mxu0
    %v914 = vadd.f32 %v737, %v913
    %v915 = vpop.f32.mrb[0].mxu0
    %916 = vmatprep.mubr.f32.mxu0 0.0
    %917 = vmatmul.mubr.f32.gmra.mrb[0].mxu0 %v814
    %v918 = vpop.f32.mrb[0].mxu0
    %v919 = vadd.f32 %v742, %v918
    %v920 = vpop.f32.mrb[0].mxu0
    %921 = vmatprep.mubr.f32.mxu0 0.0
    %922 = vmatmul.mubr.f32.gmra.mrb[0].mxu0 %v816
    %v923 = vpop.f32.mrb[0].mxu0
    %v924 = vadd.f32 %v747, %v923
    %v925 = vpop.f32.mrb[0].mxu0
    %926 = vmatprep.mubr.f32.mxu0 0.0
    %927 = vmatmul.mubr.f32.gmra.mrb[0].mxu0 %v818
    %v928 = vpop.f32.mrb[0].mxu0
    %v929 = vadd.f32 %v752, %v928
    %v930 = vpop.f32.mrb[0].mxu0
    %931 = vmatprep.mubr.f32.mxu0 0.0
    %932 = vmatmul.mubr.f32.gmra.mrb[0].mxu0 %v820
    %v933 = vpop.f32.mrb[0].mxu0
    %v934 = vadd.f32 %v757, %v933
    %v935 = vpop.f32.mrb[0].mxu0
    %936 = vmatprep.mubr.f32.mxu0 0.0
    %937 = vmatmul.mubr.f32.gmra.mrb[0].mxu0 %v822
    %v938 = vpop.f32.mrb[0].mxu0
    %v939 = vadd.f32 %v762, %v938
    %v940 = vpop.f32.mrb[0].mxu0
    %941 = vmatprep.mubr.f32.mxu0 0.0
    %942 = vmatmul.mubr.f32.gmra.mrb[0].mxu0 %v824
    %v943 = vpop.f32.mrb[0].mxu0
    %v944 = vadd.f32 %v767, %v943
    %v945 = vpop.f32.mrb[0].mxu0
    %946 = vmatprep.mubr.f32.mxu0 0.0
    %947 = vmatmul.mubr.f32.gmra.mrb[0].mxu0 %v826
    %v948 = vpop.f32.mrb[0].mxu0
    %v949 = vadd.f32 %v772, %v948
    %v950 = vpop.f32.mrb[0].mxu0
    %951 = vmatprep.mubr.f32.mxu0 0.0
    %952 = vmatmul.mubr.f32.gmra.mrb[0].mxu0 %v828
    %v953 = vpop.f32.mrb[0].mxu0
    %v954 = vadd.f32 %v777, %v953
    %v955 = vpop.f32.mrb[0].mxu0
    %956 = vmatprep.mubr.f32.mxu0 0.0
    %957 = vmatmul.mubr.f32.gmra.mrb[0].mxu0 %v830
    %v958 = vpop.f32.mrb[0].mxu0
    %v959 = vadd.f32 %v782, %v958
    %v960 = vpop.f32.mrb[0].mxu0
    %961 = vmatprep.mubr.f32.mxu0 0.0
    %962 = vmatmul.mubr.f32.gmra.mrb[0].mxu0 %v832
    %v963 = vpop.f32.mrb[0].mxu0
    %v964 = vadd.f32 %v787, %v963
    %v965 = vpop.f32.mrb[0].mxu0
    %966 = vmatprep.mubr.f32.mxu0 0.0
    %967 = vmatmul.mubr.f32.gmra.mrb[0].mxu0 %v834
    %v968 = vpop.f32.mrb[0].mxu0
    %v969 = vadd.f32 %v792, %v968
    %v970 = vpop.f32.mrb[0].mxu0
    %971 = vmatprep.mubr.f32.mxu0 0.0
    %972 = vmatmul.mubr.f32.gmra.mrb[0].mxu0 %v836
    %v973 = vpop.f32.mrb[0].mxu0
    %v974 = vadd.f32 %v797, %v973
    %v975 = vpop.f32.mrb[0].mxu0
    %976 = vmatprep.mubr.f32.mxu0 0.0
    %977 = vmatmul.mubr.f32.gmra.mrb[0].mxu0 %v838
    %v978 = vpop.f32.mrb[0].mxu0
    %v979 = vadd.f32 %v802, %v978
    %v980 = vpop.f32.mrb[0].mxu0
    %981 = vmatprep.mubr.f32.mxu0 0.0
    %982 = vmatmul.mubr.f32.gmra.mrb[0].mxu0 %v840
    %v983 = vpop.f32.mrb[0].mxu0
    %v984 = vadd.f32 %v807, %v983
    %v985 = vpop.f32.mrb[0].mxu0
    %986 = vdwg.mxu0
    %v987 = vld [vmem:[%s5] sm:$0x3]
    %vm988 = vcmask 15360
    %v990 = vsel %vm988, %v296, 0
    %v993 = vsel %vm988, %v299, 0
    %v996 = vsel %vm988, %v302, 0
    %v999 = vsel %vm988, %v305, 0
    %v1002 = vsel %vm988, %v308, 0
    %v1005 = vsel %vm988, %v311, 0
    %v1008 = vsel %vm988, %v314, 0
    %v1011 = vsel %vm988, %v317, 0
    %v1014 = vsel %vm988, %v320, 0
    %v1017 = vsel %vm988, %v323, 0
    %v1020 = vsel %vm988, %v326, 0
    %v1023 = vsel %vm988, %v329, 0
    %v1026 = vsel %vm988, %v332, 0
    %v1029 = vsel %vm988, %v335, 0
    %v1032 = vsel %vm988, %v338, 0
    %v1035 = vsel %vm988, %v341, 0
    %vm1037 = vcmask 1041408
    %v1039 = vsel %vm1037, %v987, 0
    %1041 = vmatprep.subr.mxu0 0.0
    %1042 = vmatpush1.msra.mxu0 %v1039
    %1043 = vmatprep.subr.mxu0 0.0
    %1044 = vmatpush1.msra.mxu0 0.0
    %1045 = vmatprep.subr.mxu0 0.0
    %1046 = vmatpush1.msra.mxu0 0.0
    %1047 = vmatprep.subr.mxu0 0.0
    %1048 = vmatpush1.msra.mxu0 0.0
    %1049 = vmatprep.subr.mxu0 0.0
    %1050 = vmatpush1.msra.mxu0 0.0
    %1051 = vmatprep.subr.mxu0 0.0
    %1052 = vmatpush1.msra.mxu0 0.0
    %1053 = vmatprep.subr.mxu0 0.0
    %1054 = vmatpush1.msra.mxu0 0.0
    %1055 = vmatprep.subr.mxu0 0.0
    %1056 = vmatpush1.msra.mxu0 0.0
    %1057 = vmatprep.subr.mxu0 0.0
    %1058 = vmatpush1.msra.mxu0 0.0
    %1059 = vmatprep.subr.mxu0 0.0
    %1060 = vmatpush1.msra.mxu0 0.0
    %1061 = vmatprep.subr.mxu0 0.0
    %1062 = vmatpush1.msra.mxu0 0.0
    %1063 = vmatprep.subr.mxu0 0.0
    %1064 = vmatpush1.msra.mxu0 0.0
    %1065 = vmatprep.subr.mxu0 0.0
    %1066 = vmatpush1.msra.mxu0 0.0
    %1067 = vmatprep.subr.mxu0 0.0
    %1068 = vmatpush1.msra.mxu0 0.0
    %1069 = vmatprep.subr.mxu0 0.0
    %1070 = vmatpush1.msra.mxu0 0.0
    %1071 = vmatprep.subr.mxu0 0.0
    %1072 = vmatpush1.msra.mxu0 0.0
    %1073 = vmatprep.subr.mxu0 0.0
    %1074 = vmatpush1.msra.mxu0 0.0
    %1075 = vmatprep.subr.mxu0 0.0
    %1076 = vmatpush1.msra.mxu0 0.0
    %1077 = vmatprep.subr.mxu0 0.0
    %1078 = vmatpush1.msra.mxu0 0.0
    %1079 = vmatprep.subr.mxu0 0.0
    %1080 = vmatpush1.msra.mxu0 0.0
    %1081 = vmatprep.subr.mxu0 0.0
    %1082 = vmatpush1.msra.mxu0 0.0
    %1083 = vmatprep.subr.mxu0 0.0
    %1084 = vmatpush1.msra.mxu0 0.0
    %1085 = vmatprep.subr.mxu0 0.0
    %1086 = vmatpush1.msra.mxu0 0.0
    %1087 = vmatprep.subr.mxu0 0.0
    %1088 = vmatpush1.msra.mxu0 0.0
    %1089 = vmatprep.subr.mxu0 0.0
    %1090 = vmatpush1.msra.mxu0 0.0
    %1091 = vmatprep.subr.mxu0 0.0
    %1092 = vmatpush1.msra.mxu0 0.0
    %1093 = vmatprep.subr.mxu0 0.0
    %1094 = vmatpush1.msra.mxu0 0.0
    %1095 = vmatprep.subr.mxu0 0.0
    %1096 = vmatpush1.msra.mxu0 0.0
    %1097 = vmatprep.subr.mxu0 0.0
    %1098 = vmatpush1.msra.mxu0 0.0
    %1099 = vmatprep.subr.mxu0 0.0
    %1100 = vmatpush1.msra.mxu0 0.0
    %1101 = vmatprep.subr.mxu0 0.0
    %1102 = vmatpush1.msra.mxu0 0.0
    %1103 = vmatprep.subr.mxu0 0.0
    %1104 = vmatpush1.msra.mxu0 0.0
    %1105 = vmatprep.mubr.f32.mxu0 0.0
    %1106 = vmatmul.mubr.f32.gmra.mrb[0].mxu0 %v990
    %v1107 = vpop.f32.mrb[0].mxu0
    %v1108 = vadd.f32 0.0, %v1107
    %v1109 = vpop.f32.mrb[0].mxu0
    %1110 = vmatprep.mubr.f32.mxu0 0.0
    %1111 = vmatmul.mubr.f32.gmra.mrb[0].mxu0 %v993
    %v1112 = vpop.f32.mrb[0].mxu0
    %v1113 = vadd.f32 0.0, %v1112
    %v1114 = vpop.f32.mrb[0].mxu0
    %1115 = vmatprep.mubr.f32.mxu0 0.0
    %1116 = vmatmul.mubr.f32.gmra.mrb[0].mxu0 %v996
    %v1117 = vpop.f32.mrb[0].mxu0
    %v1118 = vadd.f32 0.0, %v1117
    %v1119 = vpop.f32.mrb[0].mxu0
    %1120 = vmatprep.mubr.f32.mxu0 0.0
    %1121 = vmatmul.mubr.f32.gmra.mrb[0].mxu0 %v999
    %v1122 = vpop.f32.mrb[0].mxu0
    %v1123 = vadd.f32 0.0, %v1122
    %v1124 = vpop.f32.mrb[0].mxu0
    %1125 = vmatprep.mubr.f32.mxu0 0.0
    %1126 = vmatmul.mubr.f32.gmra.mrb[0].mxu0 %v1002
    %v1127 = vpop.f32.mrb[0].mxu0
    %v1128 = vadd.f32 0.0, %v1127
    %v1129 = vpop.f32.mrb[0].mxu0
    %1130 = vmatprep.mubr.f32.mxu0 0.0
    %1131 = vmatmul.mubr.f32.gmra.mrb[0].mxu0 %v1005
    %v1132 = vpop.f32.mrb[0].mxu0
    %v1133 = vadd.f32 0.0, %v1132
    %v1134 = vpop.f32.mrb[0].mxu0
    %1135 = vmatprep.mubr.f32.mxu0 0.0
    %1136 = vmatmul.mubr.f32.gmra.mrb[0].mxu0 %v1008
    %v1137 = vpop.f32.mrb[0].mxu0
    %v1138 = vadd.f32 0.0, %v1137
    %v1139 = vpop.f32.mrb[0].mxu0
    %1140 = vmatprep.mubr.f32.mxu0 0.0
    %1141 = vmatmul.mubr.f32.gmra.mrb[0].mxu0 %v1011
    %v1142 = vpop.f32.mrb[0].mxu0
    %v1143 = vadd.f32 0.0, %v1142
    %v1144 = vpop.f32.mrb[0].mxu0
    %1145 = vmatprep.mubr.f32.mxu0 0.0
    %1146 = vmatmul.mubr.f32.gmra.mrb[0].mxu0 %v1014
    %v1147 = vpop.f32.mrb[0].mxu0
    %v1148 = vadd.f32 0.0, %v1147
    %v1149 = vpop.f32.mrb[0].mxu0
    %1150 = vmatprep.mubr.f32.mxu0 0.0
    %1151 = vmatmul.mubr.f32.gmra.mrb[0].mxu0 %v1017
    %v1152 = vpop.f32.mrb[0].mxu0
    %v1153 = vadd.f32 0.0, %v1152
    %v1154 = vpop.f32.mrb[0].mxu0
    %1155 = vmatprep.mubr.f32.mxu0 0.0
    %1156 = vmatmul.mubr.f32.gmra.mrb[0].mxu0 %v1020
    %v1157 = vpop.f32.mrb[0].mxu0
    %v1158 = vadd.f32 0.0, %v1157
    %v1159 = vpop.f32.mrb[0].mxu0
    %1160 = vmatprep.mubr.f32.mxu0 0.0
    %1161 = vmatmul.mubr.f32.gmra.mrb[0].mxu0 %v1023
    %v1162 = vpop.f32.mrb[0].mxu0
    %v1163 = vadd.f32 0.0, %v1162
    %v1164 = vpop.f32.mrb[0].mxu0
    %1165 = vmatprep.mubr.f32.mxu0 0.0
    %1166 = vmatmul.mubr.f32.gmra.mrb[0].mxu0 %v1026
    %v1167 = vpop.f32.mrb[0].mxu0
    %v1168 = vadd.f32 0.0, %v1167
    %v1169 = vpop.f32.mrb[0].mxu0
    %1170 = vmatprep.mubr.f32.mxu0 0.0
    %1171 = vmatmul.mubr.f32.gmra.mrb[0].mxu0 %v1029
    %v1172 = vpop.f32.mrb[0].mxu0
    %v1173 = vadd.f32 0.0, %v1172
    %v1174 = vpop.f32.mrb[0].mxu0
    %1175 = vmatprep.mubr.f32.mxu0 0.0
    %1176 = vmatmul.mubr.f32.gmra.mrb[0].mxu0 %v1032
    %v1177 = vpop.f32.mrb[0].mxu0
    %v1178 = vadd.f32 0.0, %v1177
    %v1179 = vpop.f32.mrb[0].mxu0
    %1180 = vmatprep.mubr.f32.mxu0 0.0
    %1181 = vmatmul.mubr.f32.gmra.mrb[0].mxu0 %v1035
    %v1182 = vpop.f32.mrb[0].mxu0
    %v1183 = vadd.f32 0.0, %v1182
    %v1184 = vpop.f32.mrb[0].mxu0
    %1185 = vdwg.mxu0
    %v1186 = vadd.f32 %v909, %v1108
    %v1187 = vadd.f32 %v914, %v1113
    %v1188 = vadd.f32 %v919, %v1118
    %v1189 = vadd.f32 %v924, %v1123
    %v1190 = vadd.f32 %v929, %v1128
    %v1191 = vadd.f32 %v934, %v1133
    %v1192 = vadd.f32 %v939, %v1138
    %v1193 = vadd.f32 %v944, %v1143
    %v1194 = vadd.f32 %v949, %v1148
    %v1195 = vadd.f32 %v954, %v1153
    %v1196 = vadd.f32 %v959, %v1158
    %v1197 = vadd.f32 %v964, %v1163
    %v1198 = vadd.f32 %v969, %v1168
    %v1199 = vadd.f32 %v974, %v1173
    %v1200 = vadd.f32 %v979, %v1178
    %v1201 = vadd.f32 %v984, %v1183
    %v1202 = vld [vmem:[%s4] sm:$0x1]
    %v1204 = vlaneseq
    %v1205 = vshrl.u32 %v1204, 7
    %v1206 = vsub.s32 0, %v1205
    %v1207 = vrot.slane %v1202, %v1206
    %v1209 = vadd.f32 %v1186, %v1207
    %v1210 = vadd.f32 %v1187, %v1207
    %v1211 = vadd.f32 %v1188, %v1207
    %v1212 = vadd.f32 %v1189, %v1207
    %v1213 = vadd.f32 %v1190, %v1207
    %v1214 = vadd.f32 %v1191, %v1207
    %v1215 = vadd.f32 %v1192, %v1207
    %v1216 = vadd.f32 %v1193, %v1207
    %v1217 = vadd.f32 %v1194, %v1207
    %v1218 = vadd.f32 %v1195, %v1207
    %v1219 = vadd.f32 %v1196, %v1207
    %v1220 = vadd.f32 %v1197, %v1207
    %v1221 = vadd.f32 %v1198, %v1207
    %v1222 = vadd.f32 %v1199, %v1207
    %v1223 = vadd.f32 %v1200, %v1207
    %v1224 = vadd.f32 %v1201, %v1207
    %v1225 = vxor.u32 %v1209, 2147483648
    %v1226 = vxor.u32 %v1210, 2147483648
    %v1227 = vxor.u32 %v1211, 2147483648
    %v1228 = vxor.u32 %v1212, 2147483648
    %v1229 = vxor.u32 %v1213, 2147483648
    %v1230 = vxor.u32 %v1214, 2147483648
    %v1231 = vxor.u32 %v1215, 2147483648
    %v1232 = vxor.u32 %v1216, 2147483648
    %v1233 = vxor.u32 %v1217, 2147483648
    %v1234 = vxor.u32 %v1218, 2147483648
    %v1235 = vxor.u32 %v1219, 2147483648
    %v1236 = vxor.u32 %v1220, 2147483648
    %v1237 = vxor.u32 %v1221, 2147483648
    %v1238 = vxor.u32 %v1222, 2147483648
    %v1239 = vxor.u32 %v1223, 2147483648
    %v1240 = vxor.u32 %v1224, 2147483648
    %v1241 = vmul.f32 %v1225, 1.442695
    %v1242 = vpow.pop %v1241
    %v1243 = vmul.f32 %v1226, 1.442695
    %v1244 = vpow.pop %v1243
    %v1245 = vmul.f32 %v1227, 1.442695
    %v1246 = vpow.pop %v1245
    %v1247 = vmul.f32 %v1228, 1.442695
    %v1248 = vpow.pop %v1247
    %v1249 = vmul.f32 %v1229, 1.442695
    %v1250 = vpow.pop %v1249
    %v1251 = vmul.f32 %v1230, 1.442695
    %v1252 = vpow.pop %v1251
    %v1253 = vmul.f32 %v1231, 1.442695
    %v1254 = vpow.pop %v1253
    %v1255 = vmul.f32 %v1232, 1.442695
    %v1256 = vpow.pop %v1255
    %v1257 = vmul.f32 %v1233, 1.442695
    %v1258 = vpow.pop %v1257
    %v1259 = vmul.f32 %v1234, 1.442695
    %v1260 = vpow.pop %v1259
    %v1261 = vmul.f32 %v1235, 1.442695
    %v1262 = vpow.pop %v1261
    %v1263 = vmul.f32 %v1236, 1.442695
    %v1264 = vpow.pop %v1263
    %v1265 = vmul.f32 %v1237, 1.442695
    %v1266 = vpow.pop %v1265
    %v1267 = vmul.f32 %v1238, 1.442695
    %v1268 = vpow.pop %v1267
    %v1269 = vmul.f32 %v1239, 1.442695
    %v1270 = vpow.pop %v1269
    %v1271 = vmul.f32 %v1240, 1.442695
    %v1272 = vpow.pop %v1271
    %v1273 = vadd.f32 %v1242, 1.0
    %v1274 = vadd.f32 %v1244, 1.0
    %v1275 = vadd.f32 %v1246, 1.0
    %v1276 = vadd.f32 %v1248, 1.0
    %v1277 = vadd.f32 %v1250, 1.0
    %v1278 = vadd.f32 %v1252, 1.0
    %v1279 = vadd.f32 %v1254, 1.0
    %v1280 = vadd.f32 %v1256, 1.0
    %v1281 = vadd.f32 %v1258, 1.0
    %v1282 = vadd.f32 %v1260, 1.0
    %v1283 = vadd.f32 %v1262, 1.0
    %v1284 = vadd.f32 %v1264, 1.0
    %v1285 = vadd.f32 %v1266, 1.0
    %v1286 = vadd.f32 %v1268, 1.0
    %v1287 = vadd.f32 %v1270, 1.0
    %v1288 = vadd.f32 %v1272, 1.0
    %v1289 = vrcp.pop %v1273
    %v1290 = vmul.f32 1.0, %v1289
    %v1291 = vrcp.pop %v1274
    %v1292 = vmul.f32 1.0, %v1291
    %v1293 = vrcp.pop %v1275
    %v1294 = vmul.f32 1.0, %v1293
    %v1295 = vrcp.pop %v1276
    %v1296 = vmul.f32 1.0, %v1295
    %v1297 = vrcp.pop %v1277
    %v1298 = vmul.f32 1.0, %v1297
    %v1299 = vrcp.pop %v1278
    %v1300 = vmul.f32 1.0, %v1299
    %v1301 = vrcp.pop %v1279
    %v1302 = vmul.f32 1.0, %v1301
    %v1303 = vrcp.pop %v1280
    %v1304 = vmul.f32 1.0, %v1303
    %v1305 = vrcp.pop %v1281
    %v1306 = vmul.f32 1.0, %v1305
    %v1307 = vrcp.pop %v1282
    %v1308 = vmul.f32 1.0, %v1307
    %v1309 = vrcp.pop %v1283
    %v1310 = vmul.f32 1.0, %v1309
    %v1311 = vrcp.pop %v1284
    %v1312 = vmul.f32 1.0, %v1311
    %v1313 = vrcp.pop %v1285
    %v1314 = vmul.f32 1.0, %v1313
    %v1315 = vrcp.pop %v1286
    %v1316 = vmul.f32 1.0, %v1315
    %v1317 = vrcp.pop %v1287
    %v1318 = vmul.f32 1.0, %v1317
    %v1319 = vrcp.pop %v1288
    %v1320 = vmul.f32 1.0, %v1319
    %v1321 = vmul.f32 %v1209, %v1290
    %v1322 = vmul.f32 %v1210, %v1292
    %v1323 = vmul.f32 %v1211, %v1294
    %v1324 = vmul.f32 %v1212, %v1296
    %v1325 = vmul.f32 %v1213, %v1298
    %v1326 = vmul.f32 %v1214, %v1300
    %v1327 = vmul.f32 %v1215, %v1302
    %v1328 = vmul.f32 %v1216, %v1304
    %v1329 = vmul.f32 %v1217, %v1306
    %v1330 = vmul.f32 %v1218, %v1308
    %v1331 = vmul.f32 %v1219, %v1310
    %v1332 = vmul.f32 %v1220, %v1312
    %v1333 = vmul.f32 %v1221, %v1314
    %v1334 = vmul.f32 %v1222, %v1316
    %v1335 = vmul.f32 %v1223, %v1318
    %v1336 = vmul.f32 %v1224, %v1320
    %s1337 = scalar_lea.vmem [#allocation2], 256
    %v1338 = vld [vmem:[%s1337] sm:$0xff]
    %v1339 = vld [vmem:[%s1337 + $0x8] sm:$0xff]
    %v1340 = vld [vmem:[%s1337 + $0x10] sm:$0xff]
    %v1341 = vld [vmem:[%s1337 + $0x18] sm:$0xff]
    %s1342 = scalar_lea.vmem %s4, 4
    %v1343 = vld [vmem:[%s1342] sm:$0x1]
    %v1345 = vlaneseq
    %v1346 = vshrl.u32 %v1345, 7
    %v1347 = vsub.s32 0, %v1346
    %v1348 = vrot.slane %v1343, %v1347
    %v1351 = vsel %vm660, %v1321, 0
    %v1354 = vsel %vm660, %v1322, 0
    %v1357 = vsel %vm660, %v1323, 0
    %v1360 = vsel %vm660, %v1324, 0
    %v1363 = vsel %vm660, %v1325, 0
    %v1366 = vsel %vm660, %v1326, 0
    %v1369 = vsel %vm660, %v1327, 0
    %v1372 = vsel %vm660, %v1328, 0
    %v1375 = vsel %vm660, %v1329, 0
    %v1378 = vsel %vm660, %v1330, 0
    %v1381 = vsel %vm660, %v1331, 0
    %v1384 = vsel %vm660, %v1332, 0
    %v1387 = vsel %vm660, %v1333, 0
    %v1390 = vsel %vm660, %v1334, 0
    %v1393 = vsel %vm660, %v1335, 0
    %v1396 = vsel %vm660, %v1336, 0
    %1398 = vmatprep.subr.mxu0 0.0
    %1399 = vmatpush1.msra.mxu0 %v1338
    %1400 = vmatprep.subr.mxu0 0.0
    %1401 = vmatpush1.msra.mxu0 %v1339
    %1402 = vmatprep.subr.mxu0 0.0
    %1403 = vmatpush1.msra.mxu0 %v1340
    %1404 = vmatprep.subr.mxu0 0.0
    %1405 = vmatpush1.msra.mxu0 %v1341
    %1406 = vmatprep.subr.mxu0 0.0
    %1407 = vmatpush1.msra.mxu0 0.0
    %1408 = vmatprep.subr.mxu0 0.0
    %1409 = vmatpush1.msra.mxu0 0.0
    %1410 = vmatprep.subr.mxu0 0.0
    %1411 = vmatpush1.msra.mxu0 0.0
    %1412 = vmatprep.subr.mxu0 0.0
    %1413 = vmatpush1.msra.mxu0 0.0
    %1414 = vmatprep.subr.mxu0 0.0
    %1415 = vmatpush1.msra.mxu0 0.0
    %1416 = vmatprep.subr.mxu0 0.0
    %1417 = vmatpush1.msra.mxu0 0.0
    %1418 = vmatprep.subr.mxu0 0.0
    %1419 = vmatpush1.msra.mxu0 0.0
    %1420 = vmatprep.subr.mxu0 0.0
    %1421 = vmatpush1.msra.mxu0 0.0
    %1422 = vmatprep.subr.mxu0 0.0
    %1423 = vmatpush1.msra.mxu0 0.0
    %1424 = vmatprep.subr.mxu0 0.0
    %1425 = vmatpush1.msra.mxu0 0.0
    %1426 = vmatprep.subr.mxu0 0.0
    %1427 = vmatpush1.msra.mxu0 0.0
    %1428 = vmatprep.subr.mxu0 0.0
    %1429 = vmatpush1.msra.mxu0 0.0
    %1430 = vmatprep.subr.mxu0 0.0
    %1431 = vmatpush1.msra.mxu0 0.0
    %1432 = vmatprep.subr.mxu0 0.0
    %1433 = vmatpush1.msra.mxu0 0.0
    %1434 = vmatprep.subr.mxu0 0.0
    %1435 = vmatpush1.msra.mxu0 0.0
    %1436 = vmatprep.subr.mxu0 0.0
    %1437 = vmatpush1.msra.mxu0 0.0
    %1438 = vmatprep.subr.mxu0 0.0
    %1439 = vmatpush1.msra.mxu0 0.0
    %1440 = vmatprep.subr.mxu0 0.0
    %1441 = vmatpush1.msra.mxu0 0.0
    %1442 = vmatprep.subr.mxu0 0.0
    %1443 = vmatpush1.msra.mxu0 0.0
    %1444 = vmatprep.subr.mxu0 0.0
    %1445 = vmatpush1.msra.mxu0 0.0
    %1446 = vmatprep.subr.mxu0 0.0
    %1447 = vmatpush1.msra.mxu0 0.0
    %1448 = vmatprep.subr.mxu0 0.0
    %1449 = vmatpush1.msra.mxu0 0.0
    %1450 = vmatprep.subr.mxu0 0.0
    %1451 = vmatpush1.msra.mxu0 0.0
    %1452 = vmatprep.subr.mxu0 0.0
    %1453 = vmatpush1.msra.mxu0 0.0
    %1454 = vmatprep.subr.mxu0 0.0
    %1455 = vmatpush1.msra.mxu0 0.0
    %1456 = vmatprep.subr.mxu0 0.0
    %1457 = vmatpush1.msra.mxu0 0.0
    %1458 = vmatprep.subr.mxu0 0.0
    %1459 = vmatpush1.msra.mxu0 0.0
    %1460 = vmatprep.subr.mxu0 0.0
    %1461 = vmatpush1.msra.mxu0 0.0
    %1462 = vmatprep.mubr.f32.mxu0 0.0
    %1463 = vmatmul.mubr.f32.gmra.mrb[0].mxu0 %v1351
    %v1464 = vpop.f32.mrb[0].mxu0
    %v1465 = vadd.f32 %v1348, %v1464
    %v1466 = vpop.f32.mrb[0].mxu0
    %1467 = vmatprep.mubr.f32.mxu0 0.0
    %1468 = vmatmul.mubr.f32.gmra.mrb[0].mxu0 %v1354
    %v1469 = vpop.f32.mrb[0].mxu0
    %v1470 = vadd.f32 %v1348, %v1469
    %v1471 = vpop.f32.mrb[0].mxu0
    %1472 = vmatprep.mubr.f32.mxu0 0.0
    %1473 = vmatmul.mubr.f32.gmra.mrb[0].mxu0 %v1357
    %v1474 = vpop.f32.mrb[0].mxu0
    %v1475 = vadd.f32 %v1348, %v1474
    %v1476 = vpop.f32.mrb[0].mxu0
    %1477 = vmatprep.mubr.f32.mxu0 0.0
    %1478 = vmatmul.mubr.f32.gmra.mrb[0].mxu0 %v1360
    %v1479 = vpop.f32.mrb[0].mxu0
    %v1480 = vadd.f32 %v1348, %v1479
    %v1481 = vpop.f32.mrb[0].mxu0
    %1482 = vmatprep.mubr.f32.mxu0 0.0
    %1483 = vmatmul.mubr.f32.gmra.mrb[0].mxu0 %v1363
    %v1484 = vpop.f32.mrb[0].mxu0
    %v1485 = vadd.f32 %v1348, %v1484
    %v1486 = vpop.f32.mrb[0].mxu0
    %1487 = vmatprep.mubr.f32.mxu0 0.0
    %1488 = vmatmul.mubr.f32.gmra.mrb[0].mxu0 %v1366
    %v1489 = vpop.f32.mrb[0].mxu0
    %v1490 = vadd.f32 %v1348, %v1489
    %v1491 = vpop.f32.mrb[0].mxu0
    %1492 = vmatprep.mubr.f32.mxu0 0.0
    %1493 = vmatmul.mubr.f32.gmra.mrb[0].mxu0 %v1369
    %v1494 = vpop.f32.mrb[0].mxu0
    %v1495 = vadd.f32 %v1348, %v1494
    %v1496 = vpop.f32.mrb[0].mxu0
    %1497 = vmatprep.mubr.f32.mxu0 0.0
    %1498 = vmatmul.mubr.f32.gmra.mrb[0].mxu0 %v1372
    %v1499 = vpop.f32.mrb[0].mxu0
    %v1500 = vadd.f32 %v1348, %v1499
    %v1501 = vpop.f32.mrb[0].mxu0
    %1502 = vmatprep.mubr.f32.mxu0 0.0
    %1503 = vmatmul.mubr.f32.gmra.mrb[0].mxu0 %v1375
    %v1504 = vpop.f32.mrb[0].mxu0
    %v1505 = vadd.f32 %v1348, %v1504
    %v1506 = vpop.f32.mrb[0].mxu0
    %1507 = vmatprep.mubr.f32.mxu0 0.0
    %1508 = vmatmul.mubr.f32.gmra.mrb[0].mxu0 %v1378
    %v1509 = vpop.f32.mrb[0].mxu0
    %v1510 = vadd.f32 %v1348, %v1509
    %v1511 = vpop.f32.mrb[0].mxu0
    %1512 = vmatprep.mubr.f32.mxu0 0.0
    %1513 = vmatmul.mubr.f32.gmra.mrb[0].mxu0 %v1381
    %v1514 = vpop.f32.mrb[0].mxu0
    %v1515 = vadd.f32 %v1348, %v1514
    %v1516 = vpop.f32.mrb[0].mxu0
    %1517 = vmatprep.mubr.f32.mxu0 0.0
    %1518 = vmatmul.mubr.f32.gmra.mrb[0].mxu0 %v1384
    %v1519 = vpop.f32.mrb[0].mxu0
    %v1520 = vadd.f32 %v1348, %v1519
    %v1521 = vpop.f32.mrb[0].mxu0
    %1522 = vmatprep.mubr.f32.mxu0 0.0
    %1523 = vmatmul.mubr.f32.gmra.mrb[0].mxu0 %v1387
    %v1524 = vpop.f32.mrb[0].mxu0
    %v1525 = vadd.f32 %v1348, %v1524
    %v1526 = vpop.f32.mrb[0].mxu0
    %1527 = vmatprep.mubr.f32.mxu0 0.0
    %1528 = vmatmul.mubr.f32.gmra.mrb[0].mxu0 %v1390
    %v1529 = vpop.f32.mrb[0].mxu0
    %v1530 = vadd.f32 %v1348, %v1529
    %v1531 = vpop.f32.mrb[0].mxu0
    %1532 = vmatprep.mubr.f32.mxu0 0.0
    %1533 = vmatmul.mubr.f32.gmra.mrb[0].mxu0 %v1393
    %v1534 = vpop.f32.mrb[0].mxu0
    %v1535 = vadd.f32 %v1348, %v1534
    %v1536 = vpop.f32.mrb[0].mxu0
    %1537 = vmatprep.mubr.f32.mxu0 0.0
    %1538 = vmatmul.mubr.f32.gmra.mrb[0].mxu0 %v1396
    %v1539 = vpop.f32.mrb[0].mxu0
    %v1540 = vadd.f32 %v1348, %v1539
    %v1541 = vpop.f32.mrb[0].mxu0
    %1542 = vdwg.mxu0
    %v1543 = vxor.u32 %v1465, 2147483648
    %v1544 = vxor.u32 %v1470, 2147483648
    %v1545 = vxor.u32 %v1475, 2147483648
    %v1546 = vxor.u32 %v1480, 2147483648
    %v1547 = vxor.u32 %v1485, 2147483648
    %v1548 = vxor.u32 %v1490, 2147483648
    %v1549 = vxor.u32 %v1495, 2147483648
    %v1550 = vxor.u32 %v1500, 2147483648
    %v1551 = vxor.u32 %v1505, 2147483648
    %v1552 = vxor.u32 %v1510, 2147483648
    %v1553 = vxor.u32 %v1515, 2147483648
    %v1554 = vxor.u32 %v1520, 2147483648
    %v1555 = vxor.u32 %v1525, 2147483648
    %v1556 = vxor.u32 %v1530, 2147483648
    %v1557 = vxor.u32 %v1535, 2147483648
    %v1558 = vxor.u32 %v1540, 2147483648
    %v1559 = vmul.f32 %v1543, 1.442695
    %v1560 = vpow.pop %v1559
    %v1561 = vmul.f32 %v1544, 1.442695
    %v1562 = vpow.pop %v1561
    %v1563 = vmul.f32 %v1545, 1.442695
    %v1564 = vpow.pop %v1563
    %v1565 = vmul.f32 %v1546, 1.442695
    %v1566 = vpow.pop %v1565
    %v1567 = vmul.f32 %v1547, 1.442695
    %v1568 = vpow.pop %v1567
    %v1569 = vmul.f32 %v1548, 1.442695
    %v1570 = vpow.pop %v1569
    %v1571 = vmul.f32 %v1549, 1.442695
    %v1572 = vpow.pop %v1571
    %v1573 = vmul.f32 %v1550, 1.442695
    %v1574 = vpow.pop %v1573
    %v1575 = vmul.f32 %v1551, 1.442695
    %v1576 = vpow.pop %v1575
    %v1577 = vmul.f32 %v1552, 1.442695
    %v1578 = vpow.pop %v1577
    %v1579 = vmul.f32 %v1553, 1.442695
    %v1580 = vpow.pop %v1579
    %v1581 = vmul.f32 %v1554, 1.442695
    %v1582 = vpow.pop %v1581
    %v1583 = vmul.f32 %v1555, 1.442695
    %v1584 = vpow.pop %v1583
    %v1585 = vmul.f32 %v1556, 1.442695
    %v1586 = vpow.pop %v1585
    %v1587 = vmul.f32 %v1557, 1.442695
    %v1588 = vpow.pop %v1587
    %v1589 = vmul.f32 %v1558, 1.442695
    %v1590 = vpow.pop %v1589
    %v1591 = vadd.f32 %v1560, 1.0
    %v1592 = vadd.f32 %v1562, 1.0
    %v1593 = vadd.f32 %v1564, 1.0
    %v1594 = vadd.f32 %v1566, 1.0
    %v1595 = vadd.f32 %v1568, 1.0
    %v1596 = vadd.f32 %v1570, 1.0
    %v1597 = vadd.f32 %v1572, 1.0
    %v1598 = vadd.f32 %v1574, 1.0
    %v1599 = vadd.f32 %v1576, 1.0
    %v1600 = vadd.f32 %v1578, 1.0
    %v1601 = vadd.f32 %v1580, 1.0
    %v1602 = vadd.f32 %v1582, 1.0
    %v1603 = vadd.f32 %v1584, 1.0
    %v1604 = vadd.f32 %v1586, 1.0
    %v1605 = vadd.f32 %v1588, 1.0
    %v1606 = vadd.f32 %v1590, 1.0
    %v1607 = vrcp.pop %v1591
    %v1608 = vmul.f32 1.0, %v1607
    %v1609 = vrcp.pop %v1592
    %v1610 = vmul.f32 1.0, %v1609
    %v1611 = vrcp.pop %v1593
    %v1612 = vmul.f32 1.0, %v1611
    %v1613 = vrcp.pop %v1594
    %v1614 = vmul.f32 1.0, %v1613
    %v1615 = vrcp.pop %v1595
    %v1616 = vmul.f32 1.0, %v1615
    %v1617 = vrcp.pop %v1596
    %v1618 = vmul.f32 1.0, %v1617
    %v1619 = vrcp.pop %v1597
    %v1620 = vmul.f32 1.0, %v1619
    %v1621 = vrcp.pop %v1598
    %v1622 = vmul.f32 1.0, %v1621
    %v1623 = vrcp.pop %v1599
    %v1624 = vmul.f32 1.0, %v1623
    %v1625 = vrcp.pop %v1600
    %v1626 = vmul.f32 1.0, %v1625
    %v1627 = vrcp.pop %v1601
    %v1628 = vmul.f32 1.0, %v1627
    %v1629 = vrcp.pop %v1602
    %v1630 = vmul.f32 1.0, %v1629
    %v1631 = vrcp.pop %v1603
    %v1632 = vmul.f32 1.0, %v1631
    %v1633 = vrcp.pop %v1604
    %v1634 = vmul.f32 1.0, %v1633
    %v1635 = vrcp.pop %v1605
    %v1636 = vmul.f32 1.0, %v1635
    %v1637 = vrcp.pop %v1606
    %v1638 = vmul.f32 1.0, %v1637
    %v1639 = vmul.f32 %v1465, %v1608
    %v1640 = vmul.f32 %v1470, %v1610
    %v1641 = vmul.f32 %v1475, %v1612
    %v1642 = vmul.f32 %v1480, %v1614
    %v1643 = vmul.f32 %v1485, %v1616
    %v1644 = vmul.f32 %v1490, %v1618
    %v1645 = vmul.f32 %v1495, %v1620
    %v1646 = vmul.f32 %v1500, %v1622
    %v1647 = vmul.f32 %v1505, %v1624
    %v1648 = vmul.f32 %v1510, %v1626
    %v1649 = vmul.f32 %v1515, %v1628
    %v1650 = vmul.f32 %v1520, %v1630
    %v1651 = vmul.f32 %v1525, %v1632
    %v1652 = vmul.f32 %v1530, %v1634
    %v1653 = vmul.f32 %v1535, %v1636
    %v1654 = vmul.f32 %v1540, %v1638
    %1656 = vset.pattern.permute.xlu0 0
    %1657 = vperm.xlu0 %1656, %v53
    %v1658 = vpop.permute.xlu0 %1657
    %1661 = vset.pattern.permute.xlu0 0
    %1662 = vperm.xlu0 %1661, %v54
    %v1663 = vpop.permute.xlu0 %1662
    %1666 = vset.pattern.permute.xlu0 0
    %1667 = vperm.xlu0 %1666, %v55
    %v1668 = vpop.permute.xlu0 %1667
    %1671 = vset.pattern.permute.xlu0 0
    %1672 = vperm.xlu0 %1671, %v56
    %v1673 = vpop.permute.xlu0 %1672
    %1676 = vset.pattern.permute.xlu0 0
    %1677 = vperm.xlu0 %1676, %v57
    %v1678 = vpop.permute.xlu0 %1677
    %1681 = vset.pattern.permute.xlu0 0
    %1682 = vperm.xlu0 %1681, %v58
    %v1683 = vpop.permute.xlu0 %1682
    %1686 = vset.pattern.permute.xlu0 0
    %1687 = vperm.xlu0 %1686, %v59
    %v1688 = vpop.permute.xlu0 %1687
    %1691 = vset.pattern.permute.xlu0 0
    %1692 = vperm.xlu0 %1691, %v60
    %v1693 = vpop.permute.xlu0 %1692
    %1696 = vset.pattern.permute.xlu0 0
    %1697 = vperm.xlu0 %1696, %v61
    %v1698 = vpop.permute.xlu0 %1697
    %1701 = vset.pattern.permute.xlu0 0
    %1702 = vperm.xlu0 %1701, %v62
    %v1703 = vpop.permute.xlu0 %1702
    %1706 = vset.pattern.permute.xlu0 0
    %1707 = vperm.xlu0 %1706, %v63
    %v1708 = vpop.permute.xlu0 %1707
    %1711 = vset.pattern.permute.xlu0 0
    %1712 = vperm.xlu0 %1711, %v64
    %v1713 = vpop.permute.xlu0 %1712
    %1716 = vset.pattern.permute.xlu0 0
    %1717 = vperm.xlu0 %1716, %v65
    %v1718 = vpop.permute.xlu0 %1717
    %1721 = vset.pattern.permute.xlu0 0
    %1722 = vperm.xlu0 %1721, %v66
    %v1723 = vpop.permute.xlu0 %1722
    %1726 = vset.pattern.permute.xlu0 0
    %1727 = vperm.xlu0 %1726, %v67
    %v1728 = vpop.permute.xlu0 %1727
    %1731 = vset.pattern.permute.xlu0 0
    %1732 = vperm.xlu0 %1731, %v68
    %v1733 = vpop.permute.xlu0 %1732
    %v1735 = vmul.f32 %v1639, %v1658
    %v1736 = vmul.f32 %v1640, %v1663
    %v1737 = vmul.f32 %v1641, %v1668
    %v1738 = vmul.f32 %v1642, %v1673
    %v1739 = vmul.f32 %v1643, %v1678
    %v1740 = vmul.f32 %v1644, %v1683
    %v1741 = vmul.f32 %v1645, %v1688
    %v1742 = vmul.f32 %v1646, %v1693
    %v1743 = vmul.f32 %v1647, %v1698
    %v1744 = vmul.f32 %v1648, %v1703
    %v1745 = vmul.f32 %v1649, %v1708
    %v1746 = vmul.f32 %v1650, %v1713
    %v1747 = vmul.f32 %v1651, %v1718
    %v1748 = vmul.f32 %v1652, %v1723
    %v1749 = vmul.f32 %v1653, %v1728
    %v1750 = vmul.f32 %v1654, %v1733
    %v1751 = vsel %vm660, %v1735, 0.0
    %v1752 = vrot.slane %v1751, 4
    %v1753 = vadd.f32 %v1751, %v1752
    %v1754 = vrot.slane %v1753, 2
    %v1755 = vadd.f32 %v1753, %v1754
    %v1756 = vrot.slane %v1755, 1
    %v1757 = vadd.f32 %v1755, %v1756
    %v1758 = vsel %vm660, %v1736, 0.0
    %v1759 = vrot.slane %v1758, 4
    %v1760 = vadd.f32 %v1758, %v1759
    %v1761 = vrot.slane %v1760, 2
    %v1762 = vadd.f32 %v1760, %v1761
    %v1763 = vrot.slane %v1762, 1
    %v1764 = vadd.f32 %v1762, %v1763
    %v1765 = vsel %vm660, %v1737, 0.0
    %v1766 = vrot.slane %v1765, 4
    %v1767 = vadd.f32 %v1765, %v1766
    %v1768 = vrot.slane %v1767, 2
    %v1769 = vadd.f32 %v1767, %v1768
    %v1770 = vrot.slane %v1769, 1
    %v1771 = vadd.f32 %v1769, %v1770
    %v1772 = vsel %vm660, %v1738, 0.0
    %v1773 = vrot.slane %v1772, 4
    %v1774 = vadd.f32 %v1772, %v1773
    %v1775 = vrot.slane %v1774, 2
    %v1776 = vadd.f32 %v1774, %v1775
    %v1777 = vrot.slane %v1776, 1
    %v1778 = vadd.f32 %v1776, %v1777
    %v1779 = vsel %vm660, %v1739, 0.0
    %v1780 = vrot.slane %v1779, 4
    %v1781 = vadd.f32 %v1779, %v1780
    %v1782 = vrot.slane %v1781, 2
    %v1783 = vadd.f32 %v1781, %v1782
    %v1784 = vrot.slane %v1783, 1
    %v1785 = vadd.f32 %v1783, %v1784
    %v1786 = vsel %vm660, %v1740, 0.0
    %v1787 = vrot.slane %v1786, 4
    %v1788 = vadd.f32 %v1786, %v1787
    %v1789 = vrot.slane %v1788, 2
    %v1790 = vadd.f32 %v1788, %v1789
    %v1791 = vrot.slane %v1790, 1
    %v1792 = vadd.f32 %v1790, %v1791
    %v1793 = vsel %vm660, %v1741, 0.0
    %v1794 = vrot.slane %v1793, 4
    %v1795 = vadd.f32 %v1793, %v1794
    %v1796 = vrot.slane %v1795, 2
    %v1797 = vadd.f32 %v1795, %v1796
    %v1798 = vrot.slane %v1797, 1
    %v1799 = vadd.f32 %v1797, %v1798
    %v1800 = vsel %vm660, %v1742, 0.0
    %v1801 = vrot.slane %v1800, 4
    %v1802 = vadd.f32 %v1800, %v1801
    %v1803 = vrot.slane %v1802, 2
    %v1804 = vadd.f32 %v1802, %v1803
    %v1805 = vrot.slane %v1804, 1
    %v1806 = vadd.f32 %v1804, %v1805
    %v1807 = vsel %vm660, %v1743, 0.0
    %v1808 = vrot.slane %v1807, 4
    %v1809 = vadd.f32 %v1807, %v1808
    %v1810 = vrot.slane %v1809, 2
    %v1811 = vadd.f32 %v1809, %v1810
    %v1812 = vrot.slane %v1811, 1
    %v1813 = vadd.f32 %v1811, %v1812
    %v1814 = vsel %vm660, %v1744, 0.0
    %v1815 = vrot.slane %v1814, 4
    %v1816 = vadd.f32 %v1814, %v1815
    %v1817 = vrot.slane %v1816, 2
    %v1818 = vadd.f32 %v1816, %v1817
    %v1819 = vrot.slane %v1818, 1
    %v1820 = vadd.f32 %v1818, %v1819
    %v1821 = vsel %vm660, %v1745, 0.0
    %v1822 = vrot.slane %v1821, 4
    %v1823 = vadd.f32 %v1821, %v1822
    %v1824 = vrot.slane %v1823, 2
    %v1825 = vadd.f32 %v1823, %v1824
    %v1826 = vrot.slane %v1825, 1
    %v1827 = vadd.f32 %v1825, %v1826
    %v1828 = vsel %vm660, %v1746, 0.0
    %v1829 = vrot.slane %v1828, 4
    %v1830 = vadd.f32 %v1828, %v1829
    %v1831 = vrot.slane %v1830, 2
    %v1832 = vadd.f32 %v1830, %v1831
    %v1833 = vrot.slane %v1832, 1
    %v1834 = vadd.f32 %v1832, %v1833
    %v1835 = vsel %vm660, %v1747, 0.0
    %v1836 = vrot.slane %v1835, 4
    %v1837 = vadd.f32 %v1835, %v1836
    %v1838 = vrot.slane %v1837, 2
    %v1839 = vadd.f32 %v1837, %v1838
    %v1840 = vrot.slane %v1839, 1
    %v1841 = vadd.f32 %v1839, %v1840
    %v1842 = vsel %vm660, %v1748, 0.0
    %v1843 = vrot.slane %v1842, 4
    %v1844 = vadd.f32 %v1842, %v1843
    %v1845 = vrot.slane %v1844, 2
    %v1846 = vadd.f32 %v1844, %v1845
    %v1847 = vrot.slane %v1846, 1
    %v1848 = vadd.f32 %v1846, %v1847
    %v1849 = vsel %vm660, %v1749, 0.0
    %v1850 = vrot.slane %v1849, 4
    %v1851 = vadd.f32 %v1849, %v1850
    %v1852 = vrot.slane %v1851, 2
    %v1853 = vadd.f32 %v1851, %v1852
    %v1854 = vrot.slane %v1853, 1
    %v1855 = vadd.f32 %v1853, %v1854
    %v1856 = vsel %vm660, %v1750, 0.0
    %v1857 = vrot.slane %v1856, 4
    %v1858 = vadd.f32 %v1856, %v1857
    %v1859 = vrot.slane %v1858, 2
    %v1860 = vadd.f32 %v1858, %v1859
    %v1861 = vrot.slane %v1860, 1
    %v1862 = vadd.f32 %v1860, %v1861
    %s1863 = scalar_lea.vmem [#allocation2], 384
    %v1864 = vld [vmem:[%s1863] sm:$0xff]
    %v1865 = vld [vmem:[%s1863 + $0x8] sm:$0xff]
    %v1866 = vld [vmem:[%s1863 + $0x10] sm:$0xff]
    %v1867 = vld [vmem:[%s1863 + $0x18] sm:$0xff]
    %s1868 = scalar_lea.vmem [#allocation2], 512
    %v1869 = vld [vmem:[%s1868] sm:$0xff]
    %v1870 = vld [vmem:[%s1868 + $0x8] sm:$0xff]
    %v1871 = vld [vmem:[%s1868 + $0x10] sm:$0xff]
    %v1872 = vld [vmem:[%s1868 + $0x18] sm:$0xff]
    %vm1889 = vcmask 1041409
    %v1890 = vsel %vm1889, %v1764, %v1757
    %vm1891 = vcmask 1042434
    %v1892 = vsel %vm1891, %v1771, %v1890
    %vm1893 = vcmask 1043459
    %v1894 = vsel %vm1893, %v1778, %v1892
    %vm1895 = vcmask 1044484
    %v1896 = vsel %vm1895, %v1785, %v1894
    %vm1897 = vcmask 1045509
    %v1898 = vsel %vm1897, %v1792, %v1896
    %vm1899 = vcmask 1046534
    %v1900 = vsel %vm1899, %v1799, %v1898
    %vm1901 = vcmask 1047559
    %v1902 = vsel %vm1901, %v1806, %v1900
    %v1903 = vsel %vm1889, %v1820, %v1813
    %v1904 = vsel %vm1891, %v1827, %v1903
    %v1905 = vsel %vm1893, %v1834, %v1904
    %v1906 = vsel %vm1895, %v1841, %v1905
    %v1907 = vsel %vm1897, %v1848, %v1906
    %v1908 = vsel %vm1899, %v1855, %v1907
    %v1909 = vsel %vm1901, %v1862, %v1908
    %v1910 = vsel %vm660, %v1902, 0
    %v1912 = vsel %vm660, %v1909, 0
    %1914 = vmatprep.subr.mxu0 0.0
    %1915 = vmatpush1.msra.mxu0 %v1869
    %1916 = vmatprep.subr.mxu0 0.0
    %1917 = vmatpush1.msra.mxu0 %v1870
    %1918 = vmatprep.subr.mxu0 0.0
    %1919 = vmatpush1.msra.mxu0 %v1871
    %1920 = vmatprep.subr.mxu0 0.0
    %1921 = vmatpush1.msra.mxu0 %v1872
    %1922 = vmatprep.subr.mxu0 0.0
    %1923 = vmatpush1.msra.mxu0 0.0
    %1924 = vmatprep.subr.mxu0 0.0
    %1925 = vmatpush1.msra.mxu0 0.0
    %1926 = vmatprep.subr.mxu0 0.0
    %1927 = vmatpush1.msra.mxu0 0.0
    %1928 = vmatprep.subr.mxu0 0.0
    %1929 = vmatpush1.msra.mxu0 0.0
    %1930 = vmatprep.subr.mxu0 0.0
    %1931 = vmatpush1.msra.mxu0 0.0
    %1932 = vmatprep.subr.mxu0 0.0
    %1933 = vmatpush1.msra.mxu0 0.0
    %1934 = vmatprep.subr.mxu0 0.0
    %1935 = vmatpush1.msra.mxu0 0.0
    %1936 = vmatprep.subr.mxu0 0.0
    %1937 = vmatpush1.msra.mxu0 0.0
    %1938 = vmatprep.subr.mxu0 0.0
    %1939 = vmatpush1.msra.mxu0 0.0
    %1940 = vmatprep.subr.mxu0 0.0
    %1941 = vmatpush1.msra.mxu0 0.0
    %1942 = vmatprep.subr.mxu0 0.0
    %1943 = vmatpush1.msra.mxu0 0.0
    %1944 = vmatprep.subr.mxu0 0.0
    %1945 = vmatpush1.msra.mxu0 0.0
    %1946 = vmatprep.subr.mxu0 0.0
    %1947 = vmatpush1.msra.mxu0 0.0
    %1948 = vmatprep.subr.mxu0 0.0
    %1949 = vmatpush1.msra.mxu0 0.0
    %1950 = vmatprep.subr.mxu0 0.0
    %1951 = vmatpush1.msra.mxu0 0.0
    %1952 = vmatprep.subr.mxu0 0.0
    %1953 = vmatpush1.msra.mxu0 0.0
    %1954 = vmatprep.subr.mxu0 0.0
    %1955 = vmatpush1.msra.mxu0 0.0
    %1956 = vmatprep.subr.mxu0 0.0
    %1957 = vmatpush1.msra.mxu0 0.0
    %1958 = vmatprep.subr.mxu0 0.0
    %1959 = vmatpush1.msra.mxu0 0.0
    %1960 = vmatprep.subr.mxu0 0.0
    %1961 = vmatpush1.msra.mxu0 0.0
    %1962 = vmatprep.subr.mxu0 0.0
    %1963 = vmatpush1.msra.mxu0 0.0
    %1964 = vmatprep.subr.mxu0 0.0
    %1965 = vmatpush1.msra.mxu0 0.0
    %1966 = vmatprep.subr.mxu0 0.0
    %1967 = vmatpush1.msra.mxu0 0.0
    %1968 = vmatprep.subr.mxu0 0.0
    %1969 = vmatpush1.msra.mxu0 0.0
    %1970 = vmatprep.subr.mxu0 0.0
    %1971 = vmatpush1.msra.mxu0 0.0
    %1972 = vmatprep.subr.mxu0 0.0
    %1973 = vmatpush1.msra.mxu0 0.0
    %1974 = vmatprep.subr.mxu0 0.0
    %1975 = vmatpush1.msra.mxu0 0.0
    %1976 = vmatprep.subr.mxu0 0.0
    %1977 = vmatpush1.msra.mxu0 0.0
    %1978 = vmatprep.mubr.f32.mxu0 0.0
    %1979 = vmatmul.mubr.f32.gmra.mrb[0].mxu0 %v1910
    %v1980 = vpop.f32.mrb[0].mxu0
    %v1981 = vadd.f32 0.0, %v1980
    %v1982 = vpop.f32.mrb[0].mxu0
    %1983 = vmatprep.mubr.f32.mxu0 0.0
    %1984 = vmatmul.mubr.f32.gmra.mrb[0].mxu0 %v1912
    %v1985 = vpop.f32.mrb[0].mxu0
    %v1986 = vadd.f32 0.0, %v1985
    %v1987 = vpop.f32.mrb[0].mxu0
    %1988 = vdwg.mxu0
    %1989 = vmatprep.subr.mxu0 0.0
    %1990 = vmatpush1.msra.mxu0 %v1864
    %1991 = vmatprep.subr.mxu0 0.0
    %1992 = vmatpush1.msra.mxu0 %v1865
    %1993 = vmatprep.subr.mxu0 0.0
    %1994 = vmatpush1.msra.mxu0 %v1866
    %1995 = vmatprep.subr.mxu0 0.0
    %1996 = vmatpush1.msra.mxu0 %v1867
    %1997 = vmatprep.subr.mxu0 0.0
    %1998 = vmatpush1.msra.mxu0 0.0
    %1999 = vmatprep.subr.mxu0 0.0
    %2000 = vmatpush1.msra.mxu0 0.0
    %2001 = vmatprep.subr.mxu0 0.0
    %2002 = vmatpush1.msra.mxu0 0.0
    %2003 = vmatprep.subr.mxu0 0.0
    %2004 = vmatpush1.msra.mxu0 0.0
    %2005 = vmatprep.subr.mxu0 0.0
    %2006 = vmatpush1.msra.mxu0 0.0
    %2007 = vmatprep.subr.mxu0 0.0
    %2008 = vmatpush1.msra.mxu0 0.0
    %2009 = vmatprep.subr.mxu0 0.0
    %2010 = vmatpush1.msra.mxu0 0.0
    %2011 = vmatprep.subr.mxu0 0.0
    %2012 = vmatpush1.msra.mxu0 0.0
    %2013 = vmatprep.subr.mxu0 0.0
    %2014 = vmatpush1.msra.mxu0 0.0
    %2015 = vmatprep.subr.mxu0 0.0
    %2016 = vmatpush1.msra.mxu0 0.0
    %2017 = vmatprep.subr.mxu0 0.0
    %2018 = vmatpush1.msra.mxu0 0.0
    %2019 = vmatprep.subr.mxu0 0.0
    %2020 = vmatpush1.msra.mxu0 0.0
    %2021 = vmatprep.subr.mxu0 0.0
    %2022 = vmatpush1.msra.mxu0 0.0
    %2023 = vmatprep.subr.mxu0 0.0
    %2024 = vmatpush1.msra.mxu0 0.0
    %2025 = vmatprep.subr.mxu0 0.0
    %2026 = vmatpush1.msra.mxu0 0.0
    %2027 = vmatprep.subr.mxu0 0.0
    %2028 = vmatpush1.msra.mxu0 0.0
    %2029 = vmatprep.subr.mxu0 0.0
    %2030 = vmatpush1.msra.mxu0 0.0
    %2031 = vmatprep.subr.mxu0 0.0
    %2032 = vmatpush1.msra.mxu0 0.0
    %2033 = vmatprep.subr.mxu0 0.0
    %2034 = vmatpush1.msra.mxu0 0.0
    %2035 = vmatprep.subr.mxu0 0.0
    %2036 = vmatpush1.msra.mxu0 0.0
    %2037 = vmatprep.subr.mxu0 0.0
    %2038 = vmatpush1.msra.mxu0 0.0
    %2039 = vmatprep.subr.mxu0 0.0
    %2040 = vmatpush1.msra.mxu0 0.0
    %2041 = vmatprep.subr.mxu0 0.0
    %2042 = vmatpush1.msra.mxu0 0.0
    %2043 = vmatprep.subr.mxu0 0.0
    %2044 = vmatpush1.msra.mxu0 0.0
    %2045 = vmatprep.subr.mxu0 0.0
    %2046 = vmatpush1.msra.mxu0 0.0
    %2047 = vmatprep.subr.mxu0 0.0
    %2048 = vmatpush1.msra.mxu0 0.0
    %2049 = vmatprep.subr.mxu0 0.0
    %2050 = vmatpush1.msra.mxu0 0.0
    %2051 = vmatprep.subr.mxu0 0.0
    %2052 = vmatpush1.msra.mxu0 0.0
    %2053 = vmatprep.mubr.f32.mxu0 0.0
    %2054 = vmatmul.mubr.f32.gmra.mrb[0].mxu0 %v661
    %v2055 = vpop.f32.mrb[0].mxu0
    %v2056 = vadd.f32 %v1981, %v2055
    %v2057 = vpop.f32.mrb[0].mxu0
    %2058 = vmatprep.mubr.f32.mxu0 0.0
    %2059 = vmatmul.mubr.f32.gmra.mrb[0].mxu0 %v663
    %v2060 = vpop.f32.mrb[0].mxu0
    %v2061 = vadd.f32 %v1986, %v2060
    %v2062 = vpop.f32.mrb[0].mxu0
    %2063 = vdwg.mxu0
    %s2064 = scalar_lea.vmem %s4, 8
    %v2065 = vld [vmem:[%s2064] sm:$0x1]
    %v2067 = vlaneseq
    %v2068 = vshrl.u32 %v2067, 7
    %v2069 = vsub.s32 0, %v2068
    %v2070 = vrot.slane %v2065, %v2069
    %v2072 = vadd.f32 %v2056, %v2070
    %v2073 = vadd.f32 %v2061, %v2070
    %v2074 = vxor.u32 %v2072, 2147483648
    %v2075 = vxor.u32 %v2073, 2147483648
    %v2076 = vmul.f32 %v2074, 1.442695
    %v2077 = vpow.pop %v2076
    %v2078 = vmul.f32 %v2075, 1.442695
    %v2079 = vpow.pop %v2078
    %v2080 = vadd.f32 %v2077, 1.0
    %v2081 = vadd.f32 %v2079, 1.0
    %v2082 = vrcp.pop %v2080
    %v2083 = vmul.f32 1.0, %v2082
    %v2084 = vrcp.pop %v2081
    %v2085 = vmul.f32 1.0, %v2084
    %v2086 = vmul.f32 %v2072, %v2083
    %v2087 = vmul.f32 %v2073, %v2085
    %s2088 = scalar_lea.vmem [#allocation2], 640
    %v2089 = vld [vmem:[%s2088] sm:$0xff]
    %v2090 = vld [vmem:[%s2088 + $0x8] sm:$0xff]
    %v2091 = vld [vmem:[%s2088 + $0x10] sm:$0xff]
    %v2092 = vld [vmem:[%s2088 + $0x18] sm:$0xff]
    %v2094 = vsel %vm660, %v2086, 0
    %v2097 = vsel %vm660, %v2087, 0
    %2099 = vmatprep.subr.mxu0 0.0
    %2100 = vmatpush1.msra.mxu0 %v2089
    %2101 = vmatprep.subr.mxu0 0.0
    %2102 = vmatpush1.msra.mxu0 %v2090
    %2103 = vmatprep.subr.mxu0 0.0
    %2104 = vmatpush1.msra.mxu0 %v2091
    %2105 = vmatprep.subr.mxu0 0.0
    %2106 = vmatpush1.msra.mxu0 %v2092
    %2107 = vmatprep.subr.mxu0 0.0
    %2108 = vmatpush1.msra.mxu0 0.0
    %2109 = vmatprep.subr.mxu0 0.0
    %2110 = vmatpush1.msra.mxu0 0.0
    %2111 = vmatprep.subr.mxu0 0.0
    %2112 = vmatpush1.msra.mxu0 0.0
    %2113 = vmatprep.subr.mxu0 0.0
    %2114 = vmatpush1.msra.mxu0 0.0
    %2115 = vmatprep.subr.mxu0 0.0
    %2116 = vmatpush1.msra.mxu0 0.0
    %2117 = vmatprep.subr.mxu0 0.0
    %2118 = vmatpush1.msra.mxu0 0.0
    %2119 = vmatprep.subr.mxu0 0.0
    %2120 = vmatpush1.msra.mxu0 0.0
    %2121 = vmatprep.subr.mxu0 0.0
    %2122 = vmatpush1.msra.mxu0 0.0
    %2123 = vmatprep.subr.mxu0 0.0
    %2124 = vmatpush1.msra.mxu0 0.0
    %2125 = vmatprep.subr.mxu0 0.0
    %2126 = vmatpush1.msra.mxu0 0.0
    %2127 = vmatprep.subr.mxu0 0.0
    %2128 = vmatpush1.msra.mxu0 0.0
    %2129 = vmatprep.subr.mxu0 0.0
    %2130 = vmatpush1.msra.mxu0 0.0
    %2131 = vmatprep.subr.mxu0 0.0
    %2132 = vmatpush1.msra.mxu0 0.0
    %2133 = vmatprep.subr.mxu0 0.0
    %2134 = vmatpush1.msra.mxu0 0.0
    %2135 = vmatprep.subr.mxu0 0.0
    %2136 = vmatpush1.msra.mxu0 0.0
    %2137 = vmatprep.subr.mxu0 0.0
    %2138 = vmatpush1.msra.mxu0 0.0
    %2139 = vmatprep.subr.mxu0 0.0
    %2140 = vmatpush1.msra.mxu0 0.0
    %2141 = vmatprep.subr.mxu0 0.0
    %2142 = vmatpush1.msra.mxu0 0.0
    %2143 = vmatprep.subr.mxu0 0.0
    %2144 = vmatpush1.msra.mxu0 0.0
    %2145 = vmatprep.subr.mxu0 0.0
    %2146 = vmatpush1.msra.mxu0 0.0
    %2147 = vmatprep.subr.mxu0 0.0
    %2148 = vmatpush1.msra.mxu0 0.0
    %2149 = vmatprep.subr.mxu0 0.0
    %2150 = vmatpush1.msra.mxu0 0.0
    %2151 = vmatprep.subr.mxu0 0.0
    %2152 = vmatpush1.msra.mxu0 0.0
    %2153 = vmatprep.subr.mxu0 0.0
    %2154 = vmatpush1.msra.mxu0 0.0
    %2155 = vmatprep.subr.mxu0 0.0
    %2156 = vmatpush1.msra.mxu0 0.0
    %2157 = vmatprep.subr.mxu0 0.0
    %2158 = vmatpush1.msra.mxu0 0.0
    %2159 = vmatprep.subr.mxu0 0.0
    %2160 = vmatpush1.msra.mxu0 0.0
    %2161 = vmatprep.subr.mxu0 0.0
    %2162 = vmatpush1.msra.mxu0 0.0
    %2163 = vmatprep.mubr.f32.mxu0 0.0
    %2164 = vmatmul.mubr.f32.gmra.mrb[0].mxu0 %v2094
    %v2165 = vpop.f32.mrb[0].mxu0
    %v2166 = vadd.f32 0.0, %v2165
    %v2167 = vpop.f32.mrb[0].mxu0
    %2168 = vmatprep.mubr.f32.mxu0 0.0
    %2169 = vmatmul.mubr.f32.gmra.mrb[0].mxu0 %v2097
    %v2170 = vpop.f32.mrb[0].mxu0
    %v2171 = vadd.f32 0.0, %v2170
    %v2172 = vpop.f32.mrb[0].mxu0
    %2173 = vdwg.mxu0
    %v2174 = vadd.f32 %v431, %v2166
    %v2175 = vadd.f32 %v436, %v2171
    %s2176 = scalar_lea.vmem %s4, 12
    %v2177 = vld [vmem:[%s2176] sm:$0x1]
    %v2179 = vlaneseq
    %v2180 = vshrl.u32 %v2179, 7
    %v2181 = vsub.s32 0, %v2180
    %v2182 = vrot.slane %v2177, %v2181
    %v2184 = vadd.f32 %v2174, %v2182
    %v2185 = vadd.f32 %v2175, %v2182
    %v2186 = vmul.f32 %v2184, %v72
    %v2187 = vmul.f32 %v2185, %v77
    %v2190 = vcombine.high %v2186, %v2186
    %v2192 = vunpack.c.l.s4 1966171168
    %v2193 = vunpack.c.0.s8 %v2192
    %v2194 = vlaneseq
    %v2195 = vshrl.u32 %v2194, 7
    %v2196 = vsub.s32 %v2193, %v2195
    %v2197 = vrot.slane %v2186, %v2196
    %v2199 = vunpack.c.l.s4 1966171168
    %v2200 = vunpack.c.0.s8 %v2199
    %v2201 = vlaneseq
    %v2202 = vshrl.u32 %v2201, 7
    %v2203 = vsub.s32 %v2200, %v2202
    %v2204 = vrot.slane %v2190, %v2203
    %v2205 = vcombine.high %v2197, %v2197
    %v2206 = vcombine.high %v2204, %v2204
    %v2208 = vunpack.c.l.s4 1966171168
    %v2209 = vunpack.c.0.s8 %v2208
    %v2210 = vlaneseq
    %v2211 = vshrl.u32 %v2210, 7
    %v2212 = vsub.s32 %v2209, %v2211
    %v2213 = vrot.slane %v2197, %v2212
    %v2215 = vunpack.c.l.s4 1966171168
    %v2216 = vunpack.c.0.s8 %v2215
    %v2217 = vlaneseq
    %v2218 = vshrl.u32 %v2217, 7
    %v2219 = vsub.s32 %v2216, %v2218
    %v2220 = vrot.slane %v2204, %v2219
    %v2222 = vunpack.c.l.s4 1966171168
    %v2223 = vunpack.c.0.s8 %v2222
    %v2224 = vlaneseq
    %v2225 = vshrl.u32 %v2224, 7
    %v2226 = vsub.s32 %v2223, %v2225
    %v2227 = vrot.slane %v2205, %v2226
    %v2229 = vunpack.c.l.s4 1966171168
    %v2230 = vunpack.c.0.s8 %v2229
    %v2231 = vlaneseq
    %v2232 = vshrl.u32 %v2231, 7
    %v2233 = vsub.s32 %v2230, %v2232
    %v2234 = vrot.slane %v2206, %v2233
    %v2235 = vcombine.high %v2213, %v2213
    %v2236 = vcombine.high %v2220, %v2220
    %v2237 = vcombine.high %v2227, %v2227
    %v2238 = vcombine.high %v2234, %v2234
    %v2239 = vcombine.high %v2187, %v2187
    %v2241 = vunpack.c.l.s4 1966171168
    %v2242 = vunpack.c.0.s8 %v2241
    %v2243 = vlaneseq
    %v2244 = vshrl.u32 %v2243, 7
    %v2245 = vsub.s32 %v2242, %v2244
    %v2246 = vrot.slane %v2187, %v2245
    %v2248 = vunpack.c.l.s4 1966171168
    %v2249 = vunpack.c.0.s8 %v2248
    %v2250 = vlaneseq
    %v2251 = vshrl.u32 %v2250, 7
    %v2252 = vsub.s32 %v2249, %v2251
    %v2253 = vrot.slane %v2239, %v2252
    %v2254 = vcombine.high %v2246, %v2246
    %v2255 = vcombine.high %v2253, %v2253
    %v2257 = vunpack.c.l.s4 1966171168
    %v2258 = vunpack.c.0.s8 %v2257
    %v2259 = vlaneseq
    %v2260 = vshrl.u32 %v2259, 7
    %v2261 = vsub.s32 %v2258, %v2260
    %v2262 = vrot.slane %v2246, %v2261
    %v2264 = vunpack.c.l.s4 1966171168
    %v2265 = vunpack.c.0.s8 %v2264
    %v2266 = vlaneseq
    %v2267 = vshrl.u32 %v2266, 7
    %v2268 = vsub.s32 %v2265, %v2267
    %v2269 = vrot.slane %v2253, %v2268
    %v2271 = vunpack.c.l.s4 1966171168
    %v2272 = vunpack.c.0.s8 %v2271
    %v2273 = vlaneseq
    %v2274 = vshrl.u32 %v2273, 7
    %v2275 = vsub.s32 %v2272, %v2274
    %v2276 = vrot.slane %v2254, %v2275
    %v2278 = vunpack.c.l.s4 1966171168
    %v2279 = vunpack.c.0.s8 %v2278
    %v2280 = vlaneseq
    %v2281 = vshrl.u32 %v2280, 7
    %v2282 = vsub.s32 %v2279, %v2281
    %v2283 = vrot.slane %v2255, %v2282
    %v2284 = vcombine.high %v2262, %v2262
    %v2285 = vcombine.high %v2269, %v2269
    %v2286 = vcombine.high %v2276, %v2276
    %v2287 = vcombine.high %v2283, %v2283
    %v2288 = vlaneseq
    %v2289 = vshrl.u32 %v2288, 7
    %v2290 = vsub.s32 0, %v2289
    %v2291 = vrot.slane %v2213, %v2290
    %v2292 = vlaneseq
    %v2293 = vshrl.u32 %v2292, 7
    %v2294 = vsub.s32 0, %v2293
    %v2295 = vrot.slane %v2227, %v2294
    %v2296 = vlaneseq
    %v2297 = vshrl.u32 %v2296, 7
    %v2298 = vsub.s32 0, %v2297
    %v2299 = vrot.slane %v2235, %v2298
    %v2300 = vlaneseq
    %v2301 = vshrl.u32 %v2300, 7
    %v2302 = vsub.s32 0, %v2301
    %v2303 = vrot.slane %v2237, %v2302
    %v2304 = vlaneseq
    %v2305 = vshrl.u32 %v2304, 7
    %v2306 = vsub.s32 0, %v2305
    %v2307 = vrot.slane %v2220, %v2306
    %v2308 = vlaneseq
    %v2309 = vshrl.u32 %v2308, 7
    %v2310 = vsub.s32 0, %v2309
    %v2311 = vrot.slane %v2234, %v2310
    %v2312 = vlaneseq
    %v2313 = vshrl.u32 %v2312, 7
    %v2314 = vsub.s32 0, %v2313
    %v2315 = vrot.slane %v2236, %v2314
    %v2316 = vlaneseq
    %v2317 = vshrl.u32 %v2316, 7
    %v2318 = vsub.s32 0, %v2317
    %v2319 = vrot.slane %v2238, %v2318
    %v2320 = vlaneseq
    %v2321 = vshrl.u32 %v2320, 7
    %v2322 = vsub.s32 0, %v2321
    %v2323 = vrot.slane %v2262, %v2322
    %v2324 = vlaneseq
    %v2325 = vshrl.u32 %v2324, 7
    %v2326 = vsub.s32 0, %v2325
    %v2327 = vrot.slane %v2276, %v2326
    %v2328 = vlaneseq
    %v2329 = vshrl.u32 %v2328, 7
    %v2330 = vsub.s32 0, %v2329
    %v2331 = vrot.slane %v2284, %v2330
    %v2332 = vlaneseq
    %v2333 = vshrl.u32 %v2332, 7
    %v2334 = vsub.s32 0, %v2333
    %v2335 = vrot.slane %v2286, %v2334
    %v2336 = vlaneseq
    %v2337 = vshrl.u32 %v2336, 7
    %v2338 = vsub.s32 0, %v2337
    %v2339 = vrot.slane %v2269, %v2338
    %v2340 = vlaneseq
    %v2341 = vshrl.u32 %v2340, 7
    %v2342 = vsub.s32 0, %v2341
    %v2343 = vrot.slane %v2283, %v2342
    %v2344 = vlaneseq
    %v2345 = vshrl.u32 %v2344, 7
    %v2346 = vsub.s32 0, %v2345
    %v2347 = vrot.slane %v2285, %v2346
    %v2348 = vlaneseq
    %v2349 = vshrl.u32 %v2348, 7
    %v2350 = vsub.s32 0, %v2349
    %v2351 = vrot.slane %v2287, %v2350
    %s2352 = scalar_lea.vmem [#allocation2], 32
    %v2353 = vld [vmem:[%s2352] sm:$0xff]
    %v2354 = vld [vmem:[%s2352 + $0x8] sm:$0xff]
    %v2355 = vld [vmem:[%s2352 + $0x10] sm:$0xff]
    %v2356 = vld [vmem:[%s2352 + $0x18] sm:$0xff]
    %s2357 = scalar_lea.vmem [#allocation2], 160
    %v2358 = vld [vmem:[%s2357] sm:$0xff]
    %v2359 = vld [vmem:[%s2357 + $0x8] sm:$0xff]
    %v2360 = vld [vmem:[%s2357 + $0x10] sm:$0xff]
    %v2361 = vld [vmem:[%s2357 + $0x18] sm:$0xff]
    %v2362 = vsel %vm660, %v2186, 0
    %v2364 = vsel %vm660, %v2187, 0
    %2366 = vmatprep.subr.mxu0 0.0
    %2367 = vmatpush1.msra.mxu0 %v2358
    %2368 = vmatprep.subr.mxu0 0.0
    %2369 = vmatpush1.msra.mxu0 %v2359
    %2370 = vmatprep.subr.mxu0 0.0
    %2371 = vmatpush1.msra.mxu0 %v2360
    %2372 = vmatprep.subr.mxu0 0.0
    %2373 = vmatpush1.msra.mxu0 %v2361
    %2374 = vmatprep.subr.mxu0 0.0
    %2375 = vmatpush1.msra.mxu0 0.0
    %2376 = vmatprep.subr.mxu0 0.0
    %2377 = vmatpush1.msra.mxu0 0.0
    %2378 = vmatprep.subr.mxu0 0.0
    %2379 = vmatpush1.msra.mxu0 0.0
    %2380 = vmatprep.subr.mxu0 0.0
    %2381 = vmatpush1.msra.mxu0 0.0
    %2382 = vmatprep.subr.mxu0 0.0
    %2383 = vmatpush1.msra.mxu0 0.0
    %2384 = vmatprep.subr.mxu0 0.0
    %2385 = vmatpush1.msra.mxu0 0.0
    %2386 = vmatprep.subr.mxu0 0.0
    %2387 = vmatpush1.msra.mxu0 0.0
    %2388 = vmatprep.subr.mxu0 0.0
    %2389 = vmatpush1.msra.mxu0 0.0
    %2390 = vmatprep.subr.mxu0 0.0
    %2391 = vmatpush1.msra.mxu0 0.0
    %2392 = vmatprep.subr.mxu0 0.0
    %2393 = vmatpush1.msra.mxu0 0.0
    %2394 = vmatprep.subr.mxu0 0.0
    %2395 = vmatpush1.msra.mxu0 0.0
    %2396 = vmatprep.subr.mxu0 0.0
    %2397 = vmatpush1.msra.mxu0 0.0
    %2398 = vmatprep.subr.mxu0 0.0
    %2399 = vmatpush1.msra.mxu0 0.0
    %2400 = vmatprep.subr.mxu0 0.0
    %2401 = vmatpush1.msra.mxu0 0.0
    %2402 = vmatprep.subr.mxu0 0.0
    %2403 = vmatpush1.msra.mxu0 0.0
    %2404 = vmatprep.subr.mxu0 0.0
    %2405 = vmatpush1.msra.mxu0 0.0
    %2406 = vmatprep.subr.mxu0 0.0
    %2407 = vmatpush1.msra.mxu0 0.0
    %2408 = vmatprep.subr.mxu0 0.0
    %2409 = vmatpush1.msra.mxu0 0.0
    %2410 = vmatprep.subr.mxu0 0.0
    %2411 = vmatpush1.msra.mxu0 0.0
    %2412 = vmatprep.subr.mxu0 0.0
    %2413 = vmatpush1.msra.mxu0 0.0
    %2414 = vmatprep.subr.mxu0 0.0
    %2415 = vmatpush1.msra.mxu0 0.0
    %2416 = vmatprep.subr.mxu0 0.0
    %2417 = vmatpush1.msra.mxu0 0.0
    %2418 = vmatprep.subr.mxu0 0.0
    %2419 = vmatpush1.msra.mxu0 0.0
    %2420 = vmatprep.subr.mxu0 0.0
    %2421 = vmatpush1.msra.mxu0 0.0
    %2422 = vmatprep.subr.mxu0 0.0
    %2423 = vmatpush1.msra.mxu0 0.0
    %2424 = vmatprep.subr.mxu0 0.0
    %2425 = vmatpush1.msra.mxu0 0.0
    %2426 = vmatprep.subr.mxu0 0.0
    %2427 = vmatpush1.msra.mxu0 0.0
    %2428 = vmatprep.subr.mxu0 0.0
    %2429 = vmatpush1.msra.mxu0 0.0
    %2430 = vmatprep.mubr.f32.mxu0 0.0
    %2431 = vmatmul.mubr.f32.gmra.mrb[0].mxu0 %v2362
    %v2432 = vpop.f32.mrb[0].mxu0
    %v2433 = vadd.f32 0.0, %v2432
    %v2434 = vpop.f32.mrb[0].mxu0
    %2435 = vmatprep.mubr.f32.mxu0 0.0
    %2436 = vmatmul.mubr.f32.gmra.mrb[0].mxu0 %v2362
    %v2437 = vpop.f32.mrb[0].mxu0
    %v2438 = vadd.f32 0.0, %v2437
    %v2439 = vpop.f32.mrb[0].mxu0
    %2440 = vmatprep.mubr.f32.mxu0 0.0
    %2441 = vmatmul.mubr.f32.gmra.mrb[0].mxu0 %v2362
    %v2442 = vpop.f32.mrb[0].mxu0
    %v2443 = vadd.f32 0.0, %v2442
    %v2444 = vpop.f32.mrb[0].mxu0
    %2445 = vmatprep.mubr.f32.mxu0 0.0
    %2446 = vmatmul.mubr.f32.gmra.mrb[0].mxu0 %v2362
    %v2447 = vpop.f32.mrb[0].mxu0
    %v2448 = vadd.f32 0.0, %v2447
    %v2449 = vpop.f32.mrb[0].mxu0
    %2450 = vmatprep.mubr.f32.mxu0 0.0
    %2451 = vmatmul.mubr.f32.gmra.mrb[0].mxu0 %v2362
    %v2452 = vpop.f32.mrb[0].mxu0
    %v2453 = vadd.f32 0.0, %v2452
    %v2454 = vpop.f32.mrb[0].mxu0
    %2455 = vmatprep.mubr.f32.mxu0 0.0
    %2456 = vmatmul.mubr.f32.gmra.mrb[0].mxu0 %v2362
    %v2457 = vpop.f32.mrb[0].mxu0
    %v2458 = vadd.f32 0.0, %v2457
    %v2459 = vpop.f32.mrb[0].mxu0
    %2460 = vmatprep.mubr.f32.mxu0 0.0
    %2461 = vmatmul.mubr.f32.gmra.mrb[0].mxu0 %v2362
    %v2462 = vpop.f32.mrb[0].mxu0
    %v2463 = vadd.f32 0.0, %v2462
    %v2464 = vpop.f32.mrb[0].mxu0
    %2465 = vmatprep.mubr.f32.mxu0 0.0
    %2466 = vmatmul.mubr.f32.gmra.mrb[0].mxu0 %v2362
    %v2467 = vpop.f32.mrb[0].mxu0
    %v2468 = vadd.f32 0.0, %v2467
    %v2469 = vpop.f32.mrb[0].mxu0
    %2470 = vmatprep.mubr.f32.mxu0 0.0
    %2471 = vmatmul.mubr.f32.gmra.mrb[0].mxu0 %v2364
    %v2472 = vpop.f32.mrb[0].mxu0
    %v2473 = vadd.f32 0.0, %v2472
    %v2474 = vpop.f32.mrb[0].mxu0
    %2475 = vmatprep.mubr.f32.mxu0 0.0
    %2476 = vmatmul.mubr.f32.gmra.mrb[0].mxu0 %v2364
    %v2477 = vpop.f32.mrb[0].mxu0
    %v2478 = vadd.f32 0.0, %v2477
    %v2479 = vpop.f32.mrb[0].mxu0
    %2480 = vmatprep.mubr.f32.mxu0 0.0
    %2481 = vmatmul.mubr.f32.gmra.mrb[0].mxu0 %v2364
    %v2482 = vpop.f32.mrb[0].mxu0
    %v2483 = vadd.f32 0.0, %v2482
    %v2484 = vpop.f32.mrb[0].mxu0
    %2485 = vmatprep.mubr.f32.mxu0 0.0
    %2486 = vmatmul.mubr.f32.gmra.mrb[0].mxu0 %v2364
    %v2487 = vpop.f32.mrb[0].mxu0
    %v2488 = vadd.f32 0.0, %v2487
    %v2489 = vpop.f32.mrb[0].mxu0
    %2490 = vmatprep.mubr.f32.mxu0 0.0
    %2491 = vmatmul.mubr.f32.gmra.mrb[0].mxu0 %v2364
    %v2492 = vpop.f32.mrb[0].mxu0
    %v2493 = vadd.f32 0.0, %v2492
    %v2494 = vpop.f32.mrb[0].mxu0
    %2495 = vmatprep.mubr.f32.mxu0 0.0
    %2496 = vmatmul.mubr.f32.gmra.mrb[0].mxu0 %v2364
    %v2497 = vpop.f32.mrb[0].mxu0
    %v2498 = vadd.f32 0.0, %v2497
    %v2499 = vpop.f32.mrb[0].mxu0
    %2500 = vmatprep.mubr.f32.mxu0 0.0
    %2501 = vmatmul.mubr.f32.gmra.mrb[0].mxu0 %v2364
    %v2502 = vpop.f32.mrb[0].mxu0
    %v2503 = vadd.f32 0.0, %v2502
    %v2504 = vpop.f32.mrb[0].mxu0
    %2505 = vmatprep.mubr.f32.mxu0 0.0
    %2506 = vmatmul.mubr.f32.gmra.mrb[0].mxu0 %v2364
    %v2507 = vpop.f32.mrb[0].mxu0
    %v2508 = vadd.f32 0.0, %v2507
    %v2509 = vpop.f32.mrb[0].mxu0
    %2510 = vdwg.mxu0
    %v2511 = vsel %vm660, %v2291, 0
    %v2513 = vsel %vm660, %v2295, 0
    %v2515 = vsel %vm660, %v2299, 0
    %v2517 = vsel %vm660, %v2303, 0
    %v2519 = vsel %vm660, %v2307, 0
    %v2521 = vsel %vm660, %v2311, 0
    %v2523 = vsel %vm660, %v2315, 0
    %v2525 = vsel %vm660, %v2319, 0
    %v2527 = vsel %vm660, %v2323, 0
    %v2529 = vsel %vm660, %v2327, 0
    %v2531 = vsel %vm660, %v2331, 0
    %v2533 = vsel %vm660, %v2335, 0
    %v2535 = vsel %vm660, %v2339, 0
    %v2537 = vsel %vm660, %v2343, 0
    %v2539 = vsel %vm660, %v2347, 0
    %v2541 = vsel %vm660, %v2351, 0
    %2543 = vmatprep.subr.mxu0 0.0
    %2544 = vmatpush1.msra.mxu0 %v2353
    %2545 = vmatprep.subr.mxu0 0.0
    %2546 = vmatpush1.msra.mxu0 %v2354
    %2547 = vmatprep.subr.mxu0 0.0
    %2548 = vmatpush1.msra.mxu0 %v2355
    %2549 = vmatprep.subr.mxu0 0.0
    %2550 = vmatpush1.msra.mxu0 %v2356
    %2551 = vmatprep.subr.mxu0 0.0
    %2552 = vmatpush1.msra.mxu0 0.0
    %2553 = vmatprep.subr.mxu0 0.0
    %2554 = vmatpush1.msra.mxu0 0.0
    %2555 = vmatprep.subr.mxu0 0.0
    %2556 = vmatpush1.msra.mxu0 0.0
    %2557 = vmatprep.subr.mxu0 0.0
    %2558 = vmatpush1.msra.mxu0 0.0
    %2559 = vmatprep.subr.mxu0 0.0
    %2560 = vmatpush1.msra.mxu0 0.0
    %2561 = vmatprep.subr.mxu0 0.0
    %2562 = vmatpush1.msra.mxu0 0.0
    %2563 = vmatprep.subr.mxu0 0.0
    %2564 = vmatpush1.msra.mxu0 0.0
    %2565 = vmatprep.subr.mxu0 0.0
    %2566 = vmatpush1.msra.mxu0 0.0
    %2567 = vmatprep.subr.mxu0 0.0
    %2568 = vmatpush1.msra.mxu0 0.0
    %2569 = vmatprep.subr.mxu0 0.0
    %2570 = vmatpush1.msra.mxu0 0.0
    %2571 = vmatprep.subr.mxu0 0.0
    %2572 = vmatpush1.msra.mxu0 0.0
    %2573 = vmatprep.subr.mxu0 0.0
    %2574 = vmatpush1.msra.mxu0 0.0
    %2575 = vmatprep.subr.mxu0 0.0
    %2576 = vmatpush1.msra.mxu0 0.0
    %2577 = vmatprep.subr.mxu0 0.0
    %2578 = vmatpush1.msra.mxu0 0.0
    %2579 = vmatprep.subr.mxu0 0.0
    %2580 = vmatpush1.msra.mxu0 0.0
    %2581 = vmatprep.subr.mxu0 0.0
    %2582 = vmatpush1.msra.mxu0 0.0
    %2583 = vmatprep.subr.mxu0 0.0
    %2584 = vmatpush1.msra.mxu0 0.0
    %2585 = vmatprep.subr.mxu0 0.0
    %2586 = vmatpush1.msra.mxu0 0.0
    %2587 = vmatprep.subr.mxu0 0.0
    %2588 = vmatpush1.msra.mxu0 0.0
    %2589 = vmatprep.subr.mxu0 0.0
    %2590 = vmatpush1.msra.mxu0 0.0
    %2591 = vmatprep.subr.mxu0 0.0
    %2592 = vmatpush1.msra.mxu0 0.0
    %2593 = vmatprep.subr.mxu0 0.0
    %2594 = vmatpush1.msra.mxu0 0.0
    %2595 = vmatprep.subr.mxu0 0.0
    %2596 = vmatpush1.msra.mxu0 0.0
    %2597 = vmatprep.subr.mxu0 0.0
    %2598 = vmatpush1.msra.mxu0 0.0
    %2599 = vmatprep.subr.mxu0 0.0
    %2600 = vmatpush1.msra.mxu0 0.0
    %2601 = vmatprep.subr.mxu0 0.0
    %2602 = vmatpush1.msra.mxu0 0.0
    %2603 = vmatprep.subr.mxu0 0.0
    %2604 = vmatpush1.msra.mxu0 0.0
    %2605 = vmatprep.subr.mxu0 0.0
    %2606 = vmatpush1.msra.mxu0 0.0
    %2607 = vmatprep.mubr.f32.mxu0 0.0
    %2608 = vmatmul.mubr.f32.gmra.mrb[0].mxu0 %v2511
    %v2609 = vpop.f32.mrb[0].mxu0
    %v2610 = vadd.f32 %v2433, %v2609
    %v2611 = vpop.f32.mrb[0].mxu0
    %2612 = vmatprep.mubr.f32.mxu0 0.0
    %2613 = vmatmul.mubr.f32.gmra.mrb[0].mxu0 %v2513
    %v2614 = vpop.f32.mrb[0].mxu0
    %v2615 = vadd.f32 %v2438, %v2614
    %v2616 = vpop.f32.mrb[0].mxu0
    %2617 = vmatprep.mubr.f32.mxu0 0.0
    %2618 = vmatmul.mubr.f32.gmra.mrb[0].mxu0 %v2515
    %v2619 = vpop.f32.mrb[0].mxu0
    %v2620 = vadd.f32 %v2443, %v2619
    %v2621 = vpop.f32.mrb[0].mxu0
    %2622 = vmatprep.mubr.f32.mxu0 0.0
    %2623 = vmatmul.mubr.f32.gmra.mrb[0].mxu0 %v2517
    %v2624 = vpop.f32.mrb[0].mxu0
    %v2625 = vadd.f32 %v2448, %v2624
    %v2626 = vpop.f32.mrb[0].mxu0
    %2627 = vmatprep.mubr.f32.mxu0 0.0
    %2628 = vmatmul.mubr.f32.gmra.mrb[0].mxu0 %v2519
    %v2629 = vpop.f32.mrb[0].mxu0
    %v2630 = vadd.f32 %v2453, %v2629
    %v2631 = vpop.f32.mrb[0].mxu0
    %2632 = vmatprep.mubr.f32.mxu0 0.0
    %2633 = vmatmul.mubr.f32.gmra.mrb[0].mxu0 %v2521
    %v2634 = vpop.f32.mrb[0].mxu0
    %v2635 = vadd.f32 %v2458, %v2634
    %v2636 = vpop.f32.mrb[0].mxu0
    %2637 = vmatprep.mubr.f32.mxu0 0.0
    %2638 = vmatmul.mubr.f32.gmra.mrb[0].mxu0 %v2523
    %v2639 = vpop.f32.mrb[0].mxu0
    %v2640 = vadd.f32 %v2463, %v2639
    %v2641 = vpop.f32.mrb[0].mxu0
    %2642 = vmatprep.mubr.f32.mxu0 0.0
    %2643 = vmatmul.mubr.f32.gmra.mrb[0].mxu0 %v2525
    %v2644 = vpop.f32.mrb[0].mxu0
    %v2645 = vadd.f32 %v2468, %v2644
    %v2646 = vpop.f32.mrb[0].mxu0
    %2647 = vmatprep.mubr.f32.mxu0 0.0
    %2648 = vmatmul.mubr.f32.gmra.mrb[0].mxu0 %v2527
    %v2649 = vpop.f32.mrb[0].mxu0
    %v2650 = vadd.f32 %v2473, %v2649
    %v2651 = vpop.f32.mrb[0].mxu0
    %2652 = vmatprep.mubr.f32.mxu0 0.0
    %2653 = vmatmul.mubr.f32.gmra.mrb[0].mxu0 %v2529
    %v2654 = vpop.f32.mrb[0].mxu0
    %v2655 = vadd.f32 %v2478, %v2654
    %v2656 = vpop.f32.mrb[0].mxu0
    %2657 = vmatprep.mubr.f32.mxu0 0.0
    %2658 = vmatmul.mubr.f32.gmra.mrb[0].mxu0 %v2531
    %v2659 = vpop.f32.mrb[0].mxu0
    %v2660 = vadd.f32 %v2483, %v2659
    %v2661 = vpop.f32.mrb[0].mxu0
    %2662 = vmatprep.mubr.f32.mxu0 0.0
    %2663 = vmatmul.mubr.f32.gmra.mrb[0].mxu0 %v2533
    %v2664 = vpop.f32.mrb[0].mxu0
    %v2665 = vadd.f32 %v2488, %v2664
    %v2666 = vpop.f32.mrb[0].mxu0
    %2667 = vmatprep.mubr.f32.mxu0 0.0
    %2668 = vmatmul.mubr.f32.gmra.mrb[0].mxu0 %v2535
    %v2669 = vpop.f32.mrb[0].mxu0
    %v2670 = vadd.f32 %v2493, %v2669
    %v2671 = vpop.f32.mrb[0].mxu0
    %2672 = vmatprep.mubr.f32.mxu0 0.0
    %2673 = vmatmul.mubr.f32.gmra.mrb[0].mxu0 %v2537
    %v2674 = vpop.f32.mrb[0].mxu0
    %v2675 = vadd.f32 %v2498, %v2674
    %v2676 = vpop.f32.mrb[0].mxu0
    %2677 = vmatprep.mubr.f32.mxu0 0.0
    %2678 = vmatmul.mubr.f32.gmra.mrb[0].mxu0 %v2539
    %v2679 = vpop.f32.mrb[0].mxu0
    %v2680 = vadd.f32 %v2503, %v2679
    %v2681 = vpop.f32.mrb[0].mxu0
    %2682 = vmatprep.mubr.f32.mxu0 0.0
    %2683 = vmatmul.mubr.f32.gmra.mrb[0].mxu0 %v2541
    %v2684 = vpop.f32.mrb[0].mxu0
    %v2685 = vadd.f32 %v2508, %v2684
    %v2686 = vpop.f32.mrb[0].mxu0
    %2687 = vdwg.mxu0
    %s2688 = scalar_lea.vmem %s5, 2
    %v2689 = vld [vmem:[%s2688] sm:$0x3]
    %v2691 = vsel %vm1037, %v2689, 0
    %2693 = vmatprep.subr.mxu0 0.0
    %2694 = vmatpush1.msra.mxu0 %v2691
    %2695 = vmatprep.subr.mxu0 0.0
    %2696 = vmatpush1.msra.mxu0 0.0
    %2697 = vmatprep.subr.mxu0 0.0
    %2698 = vmatpush1.msra.mxu0 0.0
    %2699 = vmatprep.subr.mxu0 0.0
    %2700 = vmatpush1.msra.mxu0 0.0
    %2701 = vmatprep.subr.mxu0 0.0
    %2702 = vmatpush1.msra.mxu0 0.0
    %2703 = vmatprep.subr.mxu0 0.0
    %2704 = vmatpush1.msra.mxu0 0.0
    %2705 = vmatprep.subr.mxu0 0.0
    %2706 = vmatpush1.msra.mxu0 0.0
    %2707 = vmatprep.subr.mxu0 0.0
    %2708 = vmatpush1.msra.mxu0 0.0
    %2709 = vmatprep.subr.mxu0 0.0
    %2710 = vmatpush1.msra.mxu0 0.0
    %2711 = vmatprep.subr.mxu0 0.0
    %2712 = vmatpush1.msra.mxu0 0.0
    %2713 = vmatprep.subr.mxu0 0.0
    %2714 = vmatpush1.msra.mxu0 0.0
    %2715 = vmatprep.subr.mxu0 0.0
    %2716 = vmatpush1.msra.mxu0 0.0
    %2717 = vmatprep.subr.mxu0 0.0
    %2718 = vmatpush1.msra.mxu0 0.0
    %2719 = vmatprep.subr.mxu0 0.0
    %2720 = vmatpush1.msra.mxu0 0.0
    %2721 = vmatprep.subr.mxu0 0.0
    %2722 = vmatpush1.msra.mxu0 0.0
    %2723 = vmatprep.subr.mxu0 0.0
    %2724 = vmatpush1.msra.mxu0 0.0
    %2725 = vmatprep.subr.mxu0 0.0
    %2726 = vmatpush1.msra.mxu0 0.0
    %2727 = vmatprep.subr.mxu0 0.0
    %2728 = vmatpush1.msra.mxu0 0.0
    %2729 = vmatprep.subr.mxu0 0.0
    %2730 = vmatpush1.msra.mxu0 0.0
    %2731 = vmatprep.subr.mxu0 0.0
    %2732 = vmatpush1.msra.mxu0 0.0
    %2733 = vmatprep.subr.mxu0 0.0
    %2734 = vmatpush1.msra.mxu0 0.0
    %2735 = vmatprep.subr.mxu0 0.0
    %2736 = vmatpush1.msra.mxu0 0.0
    %2737 = vmatprep.subr.mxu0 0.0
    %2738 = vmatpush1.msra.mxu0 0.0
    %2739 = vmatprep.subr.mxu0 0.0
    %2740 = vmatpush1.msra.mxu0 0.0
    %2741 = vmatprep.subr.mxu0 0.0
    %2742 = vmatpush1.msra.mxu0 0.0
    %2743 = vmatprep.subr.mxu0 0.0
    %2744 = vmatpush1.msra.mxu0 0.0
    %2745 = vmatprep.subr.mxu0 0.0
    %2746 = vmatpush1.msra.mxu0 0.0
    %2747 = vmatprep.subr.mxu0 0.0
    %2748 = vmatpush1.msra.mxu0 0.0
    %2749 = vmatprep.subr.mxu0 0.0
    %2750 = vmatpush1.msra.mxu0 0.0
    %2751 = vmatprep.subr.mxu0 0.0
    %2752 = vmatpush1.msra.mxu0 0.0
    %2753 = vmatprep.subr.mxu0 0.0
    %2754 = vmatpush1.msra.mxu0 0.0
    %2755 = vmatprep.subr.mxu0 0.0
    %2756 = vmatpush1.msra.mxu0 0.0
    %2757 = vmatprep.mubr.f32.mxu0 0.0
    %2758 = vmatmul.mubr.f32.gmra.mrb[0].mxu0 %v990
    %v2759 = vpop.f32.mrb[0].mxu0
    %v2760 = vadd.f32 0.0, %v2759
    %v2761 = vpop.f32.mrb[0].mxu0
    %2762 = vmatprep.mubr.f32.mxu0 0.0
    %2763 = vmatmul.mubr.f32.gmra.mrb[0].mxu0 %v993
    %v2764 = vpop.f32.mrb[0].mxu0
    %v2765 = vadd.f32 0.0, %v2764
    %v2766 = vpop.f32.mrb[0].mxu0
    %2767 = vmatprep.mubr.f32.mxu0 0.0
    %2768 = vmatmul.mubr.f32.gmra.mrb[0].mxu0 %v996
    %v2769 = vpop.f32.mrb[0].mxu0
    %v2770 = vadd.f32 0.0, %v2769
    %v2771 = vpop.f32.mrb[0].mxu0
    %2772 = vmatprep.mubr.f32.mxu0 0.0
    %2773 = vmatmul.mubr.f32.gmra.mrb[0].mxu0 %v999
    %v2774 = vpop.f32.mrb[0].mxu0
    %v2775 = vadd.f32 0.0, %v2774
    %v2776 = vpop.f32.mrb[0].mxu0
    %2777 = vmatprep.mubr.f32.mxu0 0.0
    %2778 = vmatmul.mubr.f32.gmra.mrb[0].mxu0 %v1002
    %v2779 = vpop.f32.mrb[0].mxu0
    %v2780 = vadd.f32 0.0, %v2779
    %v2781 = vpop.f32.mrb[0].mxu0
    %2782 = vmatprep.mubr.f32.mxu0 0.0
    %2783 = vmatmul.mubr.f32.gmra.mrb[0].mxu0 %v1005
    %v2784 = vpop.f32.mrb[0].mxu0
    %v2785 = vadd.f32 0.0, %v2784
    %v2786 = vpop.f32.mrb[0].mxu0
    %2787 = vmatprep.mubr.f32.mxu0 0.0
    %2788 = vmatmul.mubr.f32.gmra.mrb[0].mxu0 %v1008
    %v2789 = vpop.f32.mrb[0].mxu0
    %v2790 = vadd.f32 0.0, %v2789
    %v2791 = vpop.f32.mrb[0].mxu0
    %2792 = vmatprep.mubr.f32.mxu0 0.0
    %2793 = vmatmul.mubr.f32.gmra.mrb[0].mxu0 %v1011
    %v2794 = vpop.f32.mrb[0].mxu0
    %v2795 = vadd.f32 0.0, %v2794
    %v2796 = vpop.f32.mrb[0].mxu0
    %2797 = vmatprep.mubr.f32.mxu0 0.0
    %2798 = vmatmul.mubr.f32.gmra.mrb[0].mxu0 %v1014
    %v2799 = vpop.f32.mrb[0].mxu0
    %v2800 = vadd.f32 0.0, %v2799
    %v2801 = vpop.f32.mrb[0].mxu0
    %2802 = vmatprep.mubr.f32.mxu0 0.0
    %2803 = vmatmul.mubr.f32.gmra.mrb[0].mxu0 %v1017
    %v2804 = vpop.f32.mrb[0].mxu0
    %v2805 = vadd.f32 0.0, %v2804
    %v2806 = vpop.f32.mrb[0].mxu0
    %2807 = vmatprep.mubr.f32.mxu0 0.0
    %2808 = vmatmul.mubr.f32.gmra.mrb[0].mxu0 %v1020
    %v2809 = vpop.f32.mrb[0].mxu0
    %v2810 = vadd.f32 0.0, %v2809
    %v2811 = vpop.f32.mrb[0].mxu0
    %2812 = vmatprep.mubr.f32.mxu0 0.0
    %2813 = vmatmul.mubr.f32.gmra.mrb[0].mxu0 %v1023
    %v2814 = vpop.f32.mrb[0].mxu0
    %v2815 = vadd.f32 0.0, %v2814
    %v2816 = vpop.f32.mrb[0].mxu0
    %2817 = vmatprep.mubr.f32.mxu0 0.0
    %2818 = vmatmul.mubr.f32.gmra.mrb[0].mxu0 %v1026
    %v2819 = vpop.f32.mrb[0].mxu0
    %v2820 = vadd.f32 0.0, %v2819
    %v2821 = vpop.f32.mrb[0].mxu0
    %2822 = vmatprep.mubr.f32.mxu0 0.0
    %2823 = vmatmul.mubr.f32.gmra.mrb[0].mxu0 %v1029
    %v2824 = vpop.f32.mrb[0].mxu0
    %v2825 = vadd.f32 0.0, %v2824
    %v2826 = vpop.f32.mrb[0].mxu0
    %2827 = vmatprep.mubr.f32.mxu0 0.0
    %2828 = vmatmul.mubr.f32.gmra.mrb[0].mxu0 %v1032
    %v2829 = vpop.f32.mrb[0].mxu0
    %v2830 = vadd.f32 0.0, %v2829
    %v2831 = vpop.f32.mrb[0].mxu0
    %2832 = vmatprep.mubr.f32.mxu0 0.0
    %2833 = vmatmul.mubr.f32.gmra.mrb[0].mxu0 %v1035
    %v2834 = vpop.f32.mrb[0].mxu0
    %v2835 = vadd.f32 0.0, %v2834
    %v2836 = vpop.f32.mrb[0].mxu0
    %2837 = vdwg.mxu0
    %v2838 = vadd.f32 %v2610, %v2760
    %v2839 = vadd.f32 %v2615, %v2765
    %v2840 = vadd.f32 %v2620, %v2770
    %v2841 = vadd.f32 %v2625, %v2775
    %v2842 = vadd.f32 %v2630, %v2780
    %v2843 = vadd.f32 %v2635, %v2785
    %v2844 = vadd.f32 %v2640, %v2790
    %v2845 = vadd.f32 %v2645, %v2795
    %v2846 = vadd.f32 %v2650, %v2800
    %v2847 = vadd.f32 %v2655, %v2805
    %v2848 = vadd.f32 %v2660, %v2810
    %v2849 = vadd.f32 %v2665, %v2815
    %v2850 = vadd.f32 %v2670, %v2820
    %v2851 = vadd.f32 %v2675, %v2825
    %v2852 = vadd.f32 %v2680, %v2830
    %v2853 = vadd.f32 %v2685, %v2835
    %s2854 = scalar_lea.vmem %s4, 1
    %v2855 = vld [vmem:[%s2854] sm:$0x1]
    %v2857 = vlaneseq
    %v2858 = vshrl.u32 %v2857, 7
    %v2859 = vsub.s32 0, %v2858
    %v2860 = vrot.slane %v2855, %v2859
    %v2862 = vadd.f32 %v2838, %v2860
    %v2863 = vadd.f32 %v2839, %v2860
    %v2864 = vadd.f32 %v2840, %v2860
    %v2865 = vadd.f32 %v2841, %v2860
    %v2866 = vadd.f32 %v2842, %v2860
    %v2867 = vadd.f32 %v2843, %v2860
    %v2868 = vadd.f32 %v2844, %v2860
    %v2869 = vadd.f32 %v2845, %v2860
    %v2870 = vadd.f32 %v2846, %v2860
    %v2871 = vadd.f32 %v2847, %v2860
    %v2872 = vadd.f32 %v2848, %v2860
    %v2873 = vadd.f32 %v2849, %v2860
    %v2874 = vadd.f32 %v2850, %v2860
    %v2875 = vadd.f32 %v2851, %v2860
    %v2876 = vadd.f32 %v2852, %v2860
    %v2877 = vadd.f32 %v2853, %v2860
    %v2878 = vxor.u32 %v2862, 2147483648
    %v2879 = vxor.u32 %v2863, 2147483648
    %v2880 = vxor.u32 %v2864, 2147483648
    %v2881 = vxor.u32 %v2865, 2147483648
    %v2882 = vxor.u32 %v2866, 2147483648
    %v2883 = vxor.u32 %v2867, 2147483648
    %v2884 = vxor.u32 %v2868, 2147483648
    %v2885 = vxor.u32 %v2869, 2147483648
    %v2886 = vxor.u32 %v2870, 2147483648
    %v2887 = vxor.u32 %v2871, 2147483648
    %v2888 = vxor.u32 %v2872, 2147483648
    %v2889 = vxor.u32 %v2873, 2147483648
    %v2890 = vxor.u32 %v2874, 2147483648
    %v2891 = vxor.u32 %v2875, 2147483648
    %v2892 = vxor.u32 %v2876, 2147483648
    %v2893 = vxor.u32 %v2877, 2147483648
    %v2894 = vmul.f32 %v2878, 1.442695
    %v2895 = vpow.pop %v2894
    %v2896 = vmul.f32 %v2879, 1.442695
    %v2897 = vpow.pop %v2896
    %v2898 = vmul.f32 %v2880, 1.442695
    %v2899 = vpow.pop %v2898
    %v2900 = vmul.f32 %v2881, 1.442695
    %v2901 = vpow.pop %v2900
    %v2902 = vmul.f32 %v2882, 1.442695
    %v2903 = vpow.pop %v2902
    %v2904 = vmul.f32 %v2883, 1.442695
    %v2905 = vpow.pop %v2904
    %v2906 = vmul.f32 %v2884, 1.442695
    %v2907 = vpow.pop %v2906
    %v2908 = vmul.f32 %v2885, 1.442695
    %v2909 = vpow.pop %v2908
    %v2910 = vmul.f32 %v2886, 1.442695
    %v2911 = vpow.pop %v2910
    %v2912 = vmul.f32 %v2887, 1.442695
    %v2913 = vpow.pop %v2912
    %v2914 = vmul.f32 %v2888, 1.442695
    %v2915 = vpow.pop %v2914
    %v2916 = vmul.f32 %v2889, 1.442695
    %v2917 = vpow.pop %v2916
    %v2918 = vmul.f32 %v2890, 1.442695
    %v2919 = vpow.pop %v2918
    %v2920 = vmul.f32 %v2891, 1.442695
    %v2921 = vpow.pop %v2920
    %v2922 = vmul.f32 %v2892, 1.442695
    %v2923 = vpow.pop %v2922
    %v2924 = vmul.f32 %v2893, 1.442695
    %v2925 = vpow.pop %v2924
    %v2926 = vadd.f32 %v2895, 1.0
    %v2927 = vadd.f32 %v2897, 1.0
    %v2928 = vadd.f32 %v2899, 1.0
    %v2929 = vadd.f32 %v2901, 1.0
    %v2930 = vadd.f32 %v2903, 1.0
    %v2931 = vadd.f32 %v2905, 1.0
    %v2932 = vadd.f32 %v2907, 1.0
    %v2933 = vadd.f32 %v2909, 1.0
    %v2934 = vadd.f32 %v2911, 1.0
    %v2935 = vadd.f32 %v2913, 1.0
    %v2936 = vadd.f32 %v2915, 1.0
    %v2937 = vadd.f32 %v2917, 1.0
    %v2938 = vadd.f32 %v2919, 1.0
    %v2939 = vadd.f32 %v2921, 1.0
    %v2940 = vadd.f32 %v2923, 1.0
    %v2941 = vadd.f32 %v2925, 1.0
    %v2942 = vrcp.pop %v2926
    %v2943 = vmul.f32 1.0, %v2942
    %v2944 = vrcp.pop %v2927
    %v2945 = vmul.f32 1.0, %v2944
    %v2946 = vrcp.pop %v2928
    %v2947 = vmul.f32 1.0, %v2946
    %v2948 = vrcp.pop %v2929
    %v2949 = vmul.f32 1.0, %v2948
    %v2950 = vrcp.pop %v2930
    %v2951 = vmul.f32 1.0, %v2950
    %v2952 = vrcp.pop %v2931
    %v2953 = vmul.f32 1.0, %v2952
    %v2954 = vrcp.pop %v2932
    %v2955 = vmul.f32 1.0, %v2954
    %v2956 = vrcp.pop %v2933
    %v2957 = vmul.f32 1.0, %v2956
    %v2958 = vrcp.pop %v2934
    %v2959 = vmul.f32 1.0, %v2958
    %v2960 = vrcp.pop %v2935
    %v2961 = vmul.f32 1.0, %v2960
    %v2962 = vrcp.pop %v2936
    %v2963 = vmul.f32 1.0, %v2962
    %v2964 = vrcp.pop %v2937
    %v2965 = vmul.f32 1.0, %v2964
    %v2966 = vrcp.pop %v2938
    %v2967 = vmul.f32 1.0, %v2966
    %v2968 = vrcp.pop %v2939
    %v2969 = vmul.f32 1.0, %v2968
    %v2970 = vrcp.pop %v2940
    %v2971 = vmul.f32 1.0, %v2970
    %v2972 = vrcp.pop %v2941
    %v2973 = vmul.f32 1.0, %v2972
    %v2974 = vmul.f32 %v2862, %v2943
    %v2975 = vmul.f32 %v2863, %v2945
    %v2976 = vmul.f32 %v2864, %v2947
    %v2977 = vmul.f32 %v2865, %v2949
    %v2978 = vmul.f32 %v2866, %v2951
    %v2979 = vmul.f32 %v2867, %v2953
    %v2980 = vmul.f32 %v2868, %v2955
    %v2981 = vmul.f32 %v2869, %v2957
    %v2982 = vmul.f32 %v2870, %v2959
    %v2983 = vmul.f32 %v2871, %v2961
    %v2984 = vmul.f32 %v2872, %v2963
    %v2985 = vmul.f32 %v2873, %v2965
    %v2986 = vmul.f32 %v2874, %v2967
    %v2987 = vmul.f32 %v2875, %v2969
    %v2988 = vmul.f32 %v2876, %v2971
    %v2989 = vmul.f32 %v2877, %v2973
    %s2990 = scalar_lea.vmem [#allocation2], 288
    %v2991 = vld [vmem:[%s2990] sm:$0xff]
    %v2992 = vld [vmem:[%s2990 + $0x8] sm:$0xff]
    %v2993 = vld [vmem:[%s2990 + $0x10] sm:$0xff]
    %v2994 = vld [vmem:[%s2990 + $0x18] sm:$0xff]
    %s2995 = scalar_lea.vmem %s4, 5
    %v2996 = vld [vmem:[%s2995] sm:$0x1]
    %v2998 = vlaneseq
    %v2999 = vshrl.u32 %v2998, 7
    %v3000 = vsub.s32 0, %v2999
    %v3001 = vrot.slane %v2996, %v3000
    %v3004 = vsel %vm660, %v2974, 0
    %v3007 = vsel %vm660, %v2975, 0
    %v3010 = vsel %vm660, %v2976, 0
    %v3013 = vsel %vm660, %v2977, 0
    %v3016 = vsel %vm660, %v2978, 0
    %v3019 = vsel %vm660, %v2979, 0
    %v3022 = vsel %vm660, %v2980, 0
    %v3025 = vsel %vm660, %v2981, 0
    %v3028 = vsel %vm660, %v2982, 0
    %v3031 = vsel %vm660, %v2983, 0
    %v3034 = vsel %vm660, %v2984, 0
    %v3037 = vsel %vm660, %v2985, 0
    %v3040 = vsel %vm660, %v2986, 0
    %v3043 = vsel %vm660, %v2987, 0
    %v3046 = vsel %vm660, %v2988, 0
    %v3049 = vsel %vm660, %v2989, 0
    %3051 = vmatprep.subr.mxu0 0.0
    %3052 = vmatpush1.msra.mxu0 %v2991
    %3053 = vmatprep.subr.mxu0 0.0
    %3054 = vmatpush1.msra.mxu0 %v2992
    %3055 = vmatprep.subr.mxu0 0.0
    %3056 = vmatpush1.msra.mxu0 %v2993
    %3057 = vmatprep.subr.mxu0 0.0
    %3058 = vmatpush1.msra.mxu0 %v2994
    %3059 = vmatprep.subr.mxu0 0.0
    %3060 = vmatpush1.msra.mxu0 0.0
    %3061 = vmatprep.subr.mxu0 0.0
    %3062 = vmatpush1.msra.mxu0 0.0
    %3063 = vmatprep.subr.mxu0 0.0
    %3064 = vmatpush1.msra.mxu0 0.0
    %3065 = vmatprep.subr.mxu0 0.0
    %3066 = vmatpush1.msra.mxu0 0.0
    %3067 = vmatprep.subr.mxu0 0.0
    %3068 = vmatpush1.msra.mxu0 0.0
    %3069 = vmatprep.subr.mxu0 0.0
    %3070 = vmatpush1.msra.mxu0 0.0
    %3071 = vmatprep.subr.mxu0 0.0
    %3072 = vmatpush1.msra.mxu0 0.0
    %3073 = vmatprep.subr.mxu0 0.0
    %3074 = vmatpush1.msra.mxu0 0.0
    %3075 = vmatprep.subr.mxu0 0.0
    %3076 = vmatpush1.msra.mxu0 0.0
    %3077 = vmatprep.subr.mxu0 0.0
    %3078 = vmatpush1.msra.mxu0 0.0
    %3079 = vmatprep.subr.mxu0 0.0
    %3080 = vmatpush1.msra.mxu0 0.0
    %3081 = vmatprep.subr.mxu0 0.0
    %3082 = vmatpush1.msra.mxu0 0.0
    %3083 = vmatprep.subr.mxu0 0.0
    %3084 = vmatpush1.msra.mxu0 0.0
    %3085 = vmatprep.subr.mxu0 0.0
    %3086 = vmatpush1.msra.mxu0 0.0
    %3087 = vmatprep.subr.mxu0 0.0
    %3088 = vmatpush1.msra.mxu0 0.0
    %3089 = vmatprep.subr.mxu0 0.0
    %3090 = vmatpush1.msra.mxu0 0.0
    %3091 = vmatprep.subr.mxu0 0.0
    %3092 = vmatpush1.msra.mxu0 0.0
    %3093 = vmatprep.subr.mxu0 0.0
    %3094 = vmatpush1.msra.mxu0 0.0
    %3095 = vmatprep.subr.mxu0 0.0
    %3096 = vmatpush1.msra.mxu0 0.0
    %3097 = vmatprep.subr.mxu0 0.0
    %3098 = vmatpush1.msra.mxu0 0.0
    %3099 = vmatprep.subr.mxu0 0.0
    %3100 = vmatpush1.msra.mxu0 0.0
    %3101 = vmatprep.subr.mxu0 0.0
    %3102 = vmatpush1.msra.mxu0 0.0
    %3103 = vmatprep.subr.mxu0 0.0
    %3104 = vmatpush1.msra.mxu0 0.0
    %3105 = vmatprep.subr.mxu0 0.0
    %3106 = vmatpush1.msra.mxu0 0.0
    %3107 = vmatprep.subr.mxu0 0.0
    %3108 = vmatpush1.msra.mxu0 0.0
    %3109 = vmatprep.subr.mxu0 0.0
    %3110 = vmatpush1.msra.mxu0 0.0
    %3111 = vmatprep.subr.mxu0 0.0
    %3112 = vmatpush1.msra.mxu0 0.0
    %3113 = vmatprep.subr.mxu0 0.0
    %3114 = vmatpush1.msra.mxu0 0.0
    %3115 = vmatprep.mubr.f32.mxu0 0.0
    %3116 = vmatmul.mubr.f32.gmra.mrb[0].mxu0 %v3004
    %v3117 = vpop.f32.mrb[0].mxu0
    %v3118 = vadd.f32 %v3001, %v3117
    %v3119 = vpop.f32.mrb[0].mxu0
    %3120 = vmatprep.mubr.f32.mxu0 0.0
    %3121 = vmatmul.mubr.f32.gmra.mrb[0].mxu0 %v3007
    %v3122 = vpop.f32.mrb[0].mxu0
    %v3123 = vadd.f32 %v3001, %v3122
    %v3124 = vpop.f32.mrb[0].mxu0
    %3125 = vmatprep.mubr.f32.mxu0 0.0
    %3126 = vmatmul.mubr.f32.gmra.mrb[0].mxu0 %v3010
    %v3127 = vpop.f32.mrb[0].mxu0
    %v3128 = vadd.f32 %v3001, %v3127
    %v3129 = vpop.f32.mrb[0].mxu0
    %3130 = vmatprep.mubr.f32.mxu0 0.0
    %3131 = vmatmul.mubr.f32.gmra.mrb[0].mxu0 %v3013
    %v3132 = vpop.f32.mrb[0].mxu0
    %v3133 = vadd.f32 %v3001, %v3132
    %v3134 = vpop.f32.mrb[0].mxu0
    %3135 = vmatprep.mubr.f32.mxu0 0.0
    %3136 = vmatmul.mubr.f32.gmra.mrb[0].mxu0 %v3016
    %v3137 = vpop.f32.mrb[0].mxu0
    %v3138 = vadd.f32 %v3001, %v3137
    %v3139 = vpop.f32.mrb[0].mxu0
    %3140 = vmatprep.mubr.f32.mxu0 0.0
    %3141 = vmatmul.mubr.f32.gmra.mrb[0].mxu0 %v3019
    %v3142 = vpop.f32.mrb[0].mxu0
    %v3143 = vadd.f32 %v3001, %v3142
    %v3144 = vpop.f32.mrb[0].mxu0
    %3145 = vmatprep.mubr.f32.mxu0 0.0
    %3146 = vmatmul.mubr.f32.gmra.mrb[0].mxu0 %v3022
    %v3147 = vpop.f32.mrb[0].mxu0
    %v3148 = vadd.f32 %v3001, %v3147
    %v3149 = vpop.f32.mrb[0].mxu0
    %3150 = vmatprep.mubr.f32.mxu0 0.0
    %3151 = vmatmul.mubr.f32.gmra.mrb[0].mxu0 %v3025
    %v3152 = vpop.f32.mrb[0].mxu0
    %v3153 = vadd.f32 %v3001, %v3152
    %v3154 = vpop.f32.mrb[0].mxu0
    %3155 = vmatprep.mubr.f32.mxu0 0.0
    %3156 = vmatmul.mubr.f32.gmra.mrb[0].mxu0 %v3028
    %v3157 = vpop.f32.mrb[0].mxu0
    %v3158 = vadd.f32 %v3001, %v3157
    %v3159 = vpop.f32.mrb[0].mxu0
    %3160 = vmatprep.mubr.f32.mxu0 0.0
    %3161 = vmatmul.mubr.f32.gmra.mrb[0].mxu0 %v3031
    %v3162 = vpop.f32.mrb[0].mxu0
    %v3163 = vadd.f32 %v3001, %v3162
    %v3164 = vpop.f32.mrb[0].mxu0
    %3165 = vmatprep.mubr.f32.mxu0 0.0
    %3166 = vmatmul.mubr.f32.gmra.mrb[0].mxu0 %v3034
    %v3167 = vpop.f32.mrb[0].mxu0
    %v3168 = vadd.f32 %v3001, %v3167
    %v3169 = vpop.f32.mrb[0].mxu0
    %3170 = vmatprep.mubr.f32.mxu0 0.0
    %3171 = vmatmul.mubr.f32.gmra.mrb[0].mxu0 %v3037
    %v3172 = vpop.f32.mrb[0].mxu0
    %v3173 = vadd.f32 %v3001, %v3172
    %v3174 = vpop.f32.mrb[0].mxu0
    %3175 = vmatprep.mubr.f32.mxu0 0.0
    %3176 = vmatmul.mubr.f32.gmra.mrb[0].mxu0 %v3040
    %v3177 = vpop.f32.mrb[0].mxu0
    %v3178 = vadd.f32 %v3001, %v3177
    %v3179 = vpop.f32.mrb[0].mxu0
    %3180 = vmatprep.mubr.f32.mxu0 0.0
    %3181 = vmatmul.mubr.f32.gmra.mrb[0].mxu0 %v3043
    %v3182 = vpop.f32.mrb[0].mxu0
    %v3183 = vadd.f32 %v3001, %v3182
    %v3184 = vpop.f32.mrb[0].mxu0
    %3185 = vmatprep.mubr.f32.mxu0 0.0
    %3186 = vmatmul.mubr.f32.gmra.mrb[0].mxu0 %v3046
    %v3187 = vpop.f32.mrb[0].mxu0
    %v3188 = vadd.f32 %v3001, %v3187
    %v3189 = vpop.f32.mrb[0].mxu0
    %3190 = vmatprep.mubr.f32.mxu0 0.0
    %3191 = vmatmul.mubr.f32.gmra.mrb[0].mxu0 %v3049
    %v3192 = vpop.f32.mrb[0].mxu0
    %v3193 = vadd.f32 %v3001, %v3192
    %v3194 = vpop.f32.mrb[0].mxu0
    %3195 = vdwg.mxu0
    %v3196 = vxor.u32 %v3118, 2147483648
    %v3197 = vxor.u32 %v3123, 2147483648
    %v3198 = vxor.u32 %v3128, 2147483648
    %v3199 = vxor.u32 %v3133, 2147483648
    %v3200 = vxor.u32 %v3138, 2147483648
    %v3201 = vxor.u32 %v3143, 2147483648
    %v3202 = vxor.u32 %v3148, 2147483648
    %v3203 = vxor.u32 %v3153, 2147483648
    %v3204 = vxor.u32 %v3158, 2147483648
    %v3205 = vxor.u32 %v3163, 2147483648
    %v3206 = vxor.u32 %v3168, 2147483648
    %v3207 = vxor.u32 %v3173, 2147483648
    %v3208 = vxor.u32 %v3178, 2147483648
    %v3209 = vxor.u32 %v3183, 2147483648
    %v3210 = vxor.u32 %v3188, 2147483648
    %v3211 = vxor.u32 %v3193, 2147483648
    %v3212 = vmul.f32 %v3196, 1.442695
    %v3213 = vpow.pop %v3212
    %v3214 = vmul.f32 %v3197, 1.442695
    %v3215 = vpow.pop %v3214
    %v3216 = vmul.f32 %v3198, 1.442695
    %v3217 = vpow.pop %v3216
    %v3218 = vmul.f32 %v3199, 1.442695
    %v3219 = vpow.pop %v3218
    %v3220 = vmul.f32 %v3200, 1.442695
    %v3221 = vpow.pop %v3220
    %v3222 = vmul.f32 %v3201, 1.442695
    %v3223 = vpow.pop %v3222
    %v3224 = vmul.f32 %v3202, 1.442695
    %v3225 = vpow.pop %v3224
    %v3226 = vmul.f32 %v3203, 1.442695
    %v3227 = vpow.pop %v3226
    %v3228 = vmul.f32 %v3204, 1.442695
    %v3229 = vpow.pop %v3228
    %v3230 = vmul.f32 %v3205, 1.442695
    %v3231 = vpow.pop %v3230
    %v3232 = vmul.f32 %v3206, 1.442695
    %v3233 = vpow.pop %v3232
    %v3234 = vmul.f32 %v3207, 1.442695
    %v3235 = vpow.pop %v3234
    %v3236 = vmul.f32 %v3208, 1.442695
    %v3237 = vpow.pop %v3236
    %v3238 = vmul.f32 %v3209, 1.442695
    %v3239 = vpow.pop %v3238
    %v3240 = vmul.f32 %v3210, 1.442695
    %v3241 = vpow.pop %v3240
    %v3242 = vmul.f32 %v3211, 1.442695
    %v3243 = vpow.pop %v3242
    %v3244 = vadd.f32 %v3213, 1.0
    %v3245 = vadd.f32 %v3215, 1.0
    %v3246 = vadd.f32 %v3217, 1.0
    %v3247 = vadd.f32 %v3219, 1.0
    %v3248 = vadd.f32 %v3221, 1.0
    %v3249 = vadd.f32 %v3223, 1.0
    %v3250 = vadd.f32 %v3225, 1.0
    %v3251 = vadd.f32 %v3227, 1.0
    %v3252 = vadd.f32 %v3229, 1.0
    %v3253 = vadd.f32 %v3231, 1.0
    %v3254 = vadd.f32 %v3233, 1.0
    %v3255 = vadd.f32 %v3235, 1.0
    %v3256 = vadd.f32 %v3237, 1.0
    %v3257 = vadd.f32 %v3239, 1.0
    %v3258 = vadd.f32 %v3241, 1.0
    %v3259 = vadd.f32 %v3243, 1.0
    %v3260 = vrcp.pop %v3244
    %v3261 = vmul.f32 1.0, %v3260
    %v3262 = vrcp.pop %v3245
    %v3263 = vmul.f32 1.0, %v3262
    %v3264 = vrcp.pop %v3246
    %v3265 = vmul.f32 1.0, %v3264
    %v3266 = vrcp.pop %v3247
    %v3267 = vmul.f32 1.0, %v3266
    %v3268 = vrcp.pop %v3248
    %v3269 = vmul.f32 1.0, %v3268
    %v3270 = vrcp.pop %v3249
    %v3271 = vmul.f32 1.0, %v3270
    %v3272 = vrcp.pop %v3250
    %v3273 = vmul.f32 1.0, %v3272
    %v3274 = vrcp.pop %v3251
    %v3275 = vmul.f32 1.0, %v3274
    %v3276 = vrcp.pop %v3252
    %v3277 = vmul.f32 1.0, %v3276
    %v3278 = vrcp.pop %v3253
    %v3279 = vmul.f32 1.0, %v3278
    %v3280 = vrcp.pop %v3254
    %v3281 = vmul.f32 1.0, %v3280
    %v3282 = vrcp.pop %v3255
    %v3283 = vmul.f32 1.0, %v3282
    %v3284 = vrcp.pop %v3256
    %v3285 = vmul.f32 1.0, %v3284
    %v3286 = vrcp.pop %v3257
    %v3287 = vmul.f32 1.0, %v3286
    %v3288 = vrcp.pop %v3258
    %v3289 = vmul.f32 1.0, %v3288
    %v3290 = vrcp.pop %v3259
    %v3291 = vmul.f32 1.0, %v3290
    %v3292 = vmul.f32 %v3118, %v3261
    %v3293 = vmul.f32 %v3123, %v3263
    %v3294 = vmul.f32 %v3128, %v3265
    %v3295 = vmul.f32 %v3133, %v3267
    %v3296 = vmul.f32 %v3138, %v3269
    %v3297 = vmul.f32 %v3143, %v3271
    %v3298 = vmul.f32 %v3148, %v3273
    %v3299 = vmul.f32 %v3153, %v3275
    %v3300 = vmul.f32 %v3158, %v3277
    %v3301 = vmul.f32 %v3163, %v3279
    %v3302 = vmul.f32 %v3168, %v3281
    %v3303 = vmul.f32 %v3173, %v3283
    %v3304 = vmul.f32 %v3178, %v3285
    %v3305 = vmul.f32 %v3183, %v3287
    %v3306 = vmul.f32 %v3188, %v3289
    %v3307 = vmul.f32 %v3193, %v3291
    %v3308 = vmul.f32 %v3292, %v1658
    %v3309 = vmul.f32 %v3293, %v1663
    %v3310 = vmul.f32 %v3294, %v1668
    %v3311 = vmul.f32 %v3295, %v1673
    %v3312 = vmul.f32 %v3296, %v1678
    %v3313 = vmul.f32 %v3297, %v1683
    %v3314 = vmul.f32 %v3298, %v1688
    %v3315 = vmul.f32 %v3299, %v1693
    %v3316 = vmul.f32 %v3300, %v1698
    %v3317 = vmul.f32 %v3301, %v1703
    %v3318 = vmul.f32 %v3302, %v1708
    %v3319 = vmul.f32 %v3303, %v1713
    %v3320 = vmul.f32 %v3304, %v1718
    %v3321 = vmul.f32 %v3305, %v1723
    %v3322 = vmul.f32 %v3306, %v1728
    %v3323 = vmul.f32 %v3307, %v1733
    %v3324 = vsel %vm660, %v3308, 0.0
    %v3325 = vrot.slane %v3324, 4
    %v3326 = vadd.f32 %v3324, %v3325
    %v3327 = vrot.slane %v3326, 2
    %v3328 = vadd.f32 %v3326, %v3327
    %v3329 = vrot.slane %v3328, 1
    %v3330 = vadd.f32 %v3328, %v3329
    %v3331 = vsel %vm660, %v3309, 0.0
    %v3332 = vrot.slane %v3331, 4
    %v3333 = vadd.f32 %v3331, %v3332
    %v3334 = vrot.slane %v3333, 2
    %v3335 = vadd.f32 %v3333, %v3334
    %v3336 = vrot.slane %v3335, 1
    %v3337 = vadd.f32 %v3335, %v3336
    %v3338 = vsel %vm660, %v3310, 0.0
    %v3339 = vrot.slane %v3338, 4
    %v3340 = vadd.f32 %v3338, %v3339
    %v3341 = vrot.slane %v3340, 2
    %v3342 = vadd.f32 %v3340, %v3341
    %v3343 = vrot.slane %v3342, 1
    %v3344 = vadd.f32 %v3342, %v3343
    %v3345 = vsel %vm660, %v3311, 0.0
    %v3346 = vrot.slane %v3345, 4
    %v3347 = vadd.f32 %v3345, %v3346
    %v3348 = vrot.slane %v3347, 2
    %v3349 = vadd.f32 %v3347, %v3348
    %v3350 = vrot.slane %v3349, 1
    %v3351 = vadd.f32 %v3349, %v3350
    %v3352 = vsel %vm660, %v3312, 0.0
    %v3353 = vrot.slane %v3352, 4
    %v3354 = vadd.f32 %v3352, %v3353
    %v3355 = vrot.slane %v3354, 2
    %v3356 = vadd.f32 %v3354, %v3355
    %v3357 = vrot.slane %v3356, 1
    %v3358 = vadd.f32 %v3356, %v3357
    %v3359 = vsel %vm660, %v3313, 0.0
    %v3360 = vrot.slane %v3359, 4
    %v3361 = vadd.f32 %v3359, %v3360
    %v3362 = vrot.slane %v3361, 2
    %v3363 = vadd.f32 %v3361, %v3362
    %v3364 = vrot.slane %v3363, 1
    %v3365 = vadd.f32 %v3363, %v3364
    %v3366 = vsel %vm660, %v3314, 0.0
    %v3367 = vrot.slane %v3366, 4
    %v3368 = vadd.f32 %v3366, %v3367
    %v3369 = vrot.slane %v3368, 2
    %v3370 = vadd.f32 %v3368, %v3369
    %v3371 = vrot.slane %v3370, 1
    %v3372 = vadd.f32 %v3370, %v3371
    %v3373 = vsel %vm660, %v3315, 0.0
    %v3374 = vrot.slane %v3373, 4
    %v3375 = vadd.f32 %v3373, %v3374
    %v3376 = vrot.slane %v3375, 2
    %v3377 = vadd.f32 %v3375, %v3376
    %v3378 = vrot.slane %v3377, 1
    %v3379 = vadd.f32 %v3377, %v3378
    %v3380 = vsel %vm660, %v3316, 0.0
    %v3381 = vrot.slane %v3380, 4
    %v3382 = vadd.f32 %v3380, %v3381
    %v3383 = vrot.slane %v3382, 2
    %v3384 = vadd.f32 %v3382, %v3383
    %v3385 = vrot.slane %v3384, 1
    %v3386 = vadd.f32 %v3384, %v3385
    %v3387 = vsel %vm660, %v3317, 0.0
    %v3388 = vrot.slane %v3387, 4
    %v3389 = vadd.f32 %v3387, %v3388
    %v3390 = vrot.slane %v3389, 2
    %v3391 = vadd.f32 %v3389, %v3390
    %v3392 = vrot.slane %v3391, 1
    %v3393 = vadd.f32 %v3391, %v3392
    %v3394 = vsel %vm660, %v3318, 0.0
    %v3395 = vrot.slane %v3394, 4
    %v3396 = vadd.f32 %v3394, %v3395
    %v3397 = vrot.slane %v3396, 2
    %v3398 = vadd.f32 %v3396, %v3397
    %v3399 = vrot.slane %v3398, 1
    %v3400 = vadd.f32 %v3398, %v3399
    %v3401 = vsel %vm660, %v3319, 0.0
    %v3402 = vrot.slane %v3401, 4
    %v3403 = vadd.f32 %v3401, %v3402
    %v3404 = vrot.slane %v3403, 2
    %v3405 = vadd.f32 %v3403, %v3404
    %v3406 = vrot.slane %v3405, 1
    %v3407 = vadd.f32 %v3405, %v3406
    %v3408 = vsel %vm660, %v3320, 0.0
    %v3409 = vrot.slane %v3408, 4
    %v3410 = vadd.f32 %v3408, %v3409
    %v3411 = vrot.slane %v3410, 2
    %v3412 = vadd.f32 %v3410, %v3411
    %v3413 = vrot.slane %v3412, 1
    %v3414 = vadd.f32 %v3412, %v3413
    %v3415 = vsel %vm660, %v3321, 0.0
    %v3416 = vrot.slane %v3415, 4
    %v3417 = vadd.f32 %v3415, %v3416
    %v3418 = vrot.slane %v3417, 2
    %v3419 = vadd.f32 %v3417, %v3418
    %v3420 = vrot.slane %v3419, 1
    %v3421 = vadd.f32 %v3419, %v3420
    %v3422 = vsel %vm660, %v3322, 0.0
    %v3423 = vrot.slane %v3422, 4
    %v3424 = vadd.f32 %v3422, %v3423
    %v3425 = vrot.slane %v3424, 2
    %v3426 = vadd.f32 %v3424, %v3425
    %v3427 = vrot.slane %v3426, 1
    %v3428 = vadd.f32 %v3426, %v3427
    %v3429 = vsel %vm660, %v3323, 0.0
    %v3430 = vrot.slane %v3429, 4
    %v3431 = vadd.f32 %v3429, %v3430
    %v3432 = vrot.slane %v3431, 2
    %v3433 = vadd.f32 %v3431, %v3432
    %v3434 = vrot.slane %v3433, 1
    %v3435 = vadd.f32 %v3433, %v3434
    %s3436 = scalar_lea.vmem [#allocation2], 416
    %v3437 = vld [vmem:[%s3436] sm:$0xff]
    %v3438 = vld [vmem:[%s3436 + $0x8] sm:$0xff]
    %v3439 = vld [vmem:[%s3436 + $0x10] sm:$0xff]
    %v3440 = vld [vmem:[%s3436 + $0x18] sm:$0xff]
    %s3441 = scalar_lea.vmem [#allocation2], 544
    %v3442 = vld [vmem:[%s3441] sm:$0xff]
    %v3443 = vld [vmem:[%s3441 + $0x8] sm:$0xff]
    %v3444 = vld [vmem:[%s3441 + $0x10] sm:$0xff]
    %v3445 = vld [vmem:[%s3441 + $0x18] sm:$0xff]
    %v3462 = vsel %vm1889, %v3337, %v3330
    %v3463 = vsel %vm1891, %v3344, %v3462
    %v3464 = vsel %vm1893, %v3351, %v3463
    %v3465 = vsel %vm1895, %v3358, %v3464
    %v3466 = vsel %vm1897, %v3365, %v3465
    %v3467 = vsel %vm1899, %v3372, %v3466
    %v3468 = vsel %vm1901, %v3379, %v3467
    %v3469 = vsel %vm1889, %v3393, %v3386
    %v3470 = vsel %vm1891, %v3400, %v3469
    %v3471 = vsel %vm1893, %v3407, %v3470
    %v3472 = vsel %vm1895, %v3414, %v3471
    %v3473 = vsel %vm1897, %v3421, %v3472
    %v3474 = vsel %vm1899, %v3428, %v3473
    %v3475 = vsel %vm1901, %v3435, %v3474
    %v3476 = vsel %vm660, %v3468, 0
    %v3478 = vsel %vm660, %v3475, 0
    %3480 = vmatprep.subr.mxu0 0.0
    %3481 = vmatpush1.msra.mxu0 %v3442
    %3482 = vmatprep.subr.mxu0 0.0
    %3483 = vmatpush1.msra.mxu0 %v3443
    %3484 = vmatprep.subr.mxu0 0.0
    %3485 = vmatpush1.msra.mxu0 %v3444
    %3486 = vmatprep.subr.mxu0 0.0
    %3487 = vmatpush1.msra.mxu0 %v3445
    %3488 = vmatprep.subr.mxu0 0.0
    %3489 = vmatpush1.msra.mxu0 0.0
    %3490 = vmatprep.subr.mxu0 0.0
    %3491 = vmatpush1.msra.mxu0 0.0
    %3492 = vmatprep.subr.mxu0 0.0
    %3493 = vmatpush1.msra.mxu0 0.0
    %3494 = vmatprep.subr.mxu0 0.0
    %3495 = vmatpush1.msra.mxu0 0.0
    %3496 = vmatprep.subr.mxu0 0.0
    %3497 = vmatpush1.msra.mxu0 0.0
    %3498 = vmatprep.subr.mxu0 0.0
    %3499 = vmatpush1.msra.mxu0 0.0
    %3500 = vmatprep.subr.mxu0 0.0
    %3501 = vmatpush1.msra.mxu0 0.0
    %3502 = vmatprep.subr.mxu0 0.0
    %3503 = vmatpush1.msra.mxu0 0.0
    %3504 = vmatprep.subr.mxu0 0.0
    %3505 = vmatpush1.msra.mxu0 0.0
    %3506 = vmatprep.subr.mxu0 0.0
    %3507 = vmatpush1.msra.mxu0 0.0
    %3508 = vmatprep.subr.mxu0 0.0
    %3509 = vmatpush1.msra.mxu0 0.0
    %3510 = vmatprep.subr.mxu0 0.0
    %3511 = vmatpush1.msra.mxu0 0.0
    %3512 = vmatprep.subr.mxu0 0.0
    %3513 = vmatpush1.msra.mxu0 0.0
    %3514 = vmatprep.subr.mxu0 0.0
    %3515 = vmatpush1.msra.mxu0 0.0
    %3516 = vmatprep.subr.mxu0 0.0
    %3517 = vmatpush1.msra.mxu0 0.0
    %3518 = vmatprep.subr.mxu0 0.0
    %3519 = vmatpush1.msra.mxu0 0.0
    %3520 = vmatprep.subr.mxu0 0.0
    %3521 = vmatpush1.msra.mxu0 0.0
    %3522 = vmatprep.subr.mxu0 0.0
    %3523 = vmatpush1.msra.mxu0 0.0
    %3524 = vmatprep.subr.mxu0 0.0
    %3525 = vmatpush1.msra.mxu0 0.0
    %3526 = vmatprep.subr.mxu0 0.0
    %3527 = vmatpush1.msra.mxu0 0.0
    %3528 = vmatprep.subr.mxu0 0.0
    %3529 = vmatpush1.msra.mxu0 0.0
    %3530 = vmatprep.subr.mxu0 0.0
    %3531 = vmatpush1.msra.mxu0 0.0
    %3532 = vmatprep.subr.mxu0 0.0
    %3533 = vmatpush1.msra.mxu0 0.0
    %3534 = vmatprep.subr.mxu0 0.0
    %3535 = vmatpush1.msra.mxu0 0.0
    %3536 = vmatprep.subr.mxu0 0.0
    %3537 = vmatpush1.msra.mxu0 0.0
    %3538 = vmatprep.subr.mxu0 0.0
    %3539 = vmatpush1.msra.mxu0 0.0
    %3540 = vmatprep.subr.mxu0 0.0
    %3541 = vmatpush1.msra.mxu0 0.0
    %3542 = vmatprep.subr.mxu0 0.0
    %3543 = vmatpush1.msra.mxu0 0.0
    %3544 = vmatprep.mubr.f32.mxu0 0.0
    %3545 = vmatmul.mubr.f32.gmra.mrb[0].mxu0 %v3476
    %v3546 = vpop.f32.mrb[0].mxu0
    %v3547 = vadd.f32 0.0, %v3546
    %v3548 = vpop.f32.mrb[0].mxu0
    %3549 = vmatprep.mubr.f32.mxu0 0.0
    %3550 = vmatmul.mubr.f32.gmra.mrb[0].mxu0 %v3478
    %v3551 = vpop.f32.mrb[0].mxu0
    %v3552 = vadd.f32 0.0, %v3551
    %v3553 = vpop.f32.mrb[0].mxu0
    %3554 = vdwg.mxu0
    %3555 = vmatprep.subr.mxu0 0.0
    %3556 = vmatpush1.msra.mxu0 %v3437
    %3557 = vmatprep.subr.mxu0 0.0
    %3558 = vmatpush1.msra.mxu0 %v3438
    %3559 = vmatprep.subr.mxu0 0.0
    %3560 = vmatpush1.msra.mxu0 %v3439
    %3561 = vmatprep.subr.mxu0 0.0
    %3562 = vmatpush1.msra.mxu0 %v3440
    %3563 = vmatprep.subr.mxu0 0.0
    %3564 = vmatpush1.msra.mxu0 0.0
    %3565 = vmatprep.subr.mxu0 0.0
    %3566 = vmatpush1.msra.mxu0 0.0
    %3567 = vmatprep.subr.mxu0 0.0
    %3568 = vmatpush1.msra.mxu0 0.0
    %3569 = vmatprep.subr.mxu0 0.0
    %3570 = vmatpush1.msra.mxu0 0.0
    %3571 = vmatprep.subr.mxu0 0.0
    %3572 = vmatpush1.msra.mxu0 0.0
    %3573 = vmatprep.subr.mxu0 0.0
    %3574 = vmatpush1.msra.mxu0 0.0
    %3575 = vmatprep.subr.mxu0 0.0
    %3576 = vmatpush1.msra.mxu0 0.0
    %3577 = vmatprep.subr.mxu0 0.0
    %3578 = vmatpush1.msra.mxu0 0.0
    %3579 = vmatprep.subr.mxu0 0.0
    %3580 = vmatpush1.msra.mxu0 0.0
    %3581 = vmatprep.subr.mxu0 0.0
    %3582 = vmatpush1.msra.mxu0 0.0
    %3583 = vmatprep.subr.mxu0 0.0
    %3584 = vmatpush1.msra.mxu0 0.0
    %3585 = vmatprep.subr.mxu0 0.0
    %3586 = vmatpush1.msra.mxu0 0.0
    %3587 = vmatprep.subr.mxu0 0.0
    %3588 = vmatpush1.msra.mxu0 0.0
    %3589 = vmatprep.subr.mxu0 0.0
    %3590 = vmatpush1.msra.mxu0 0.0
    %3591 = vmatprep.subr.mxu0 0.0
    %3592 = vmatpush1.msra.mxu0 0.0
    %3593 = vmatprep.subr.mxu0 0.0
    %3594 = vmatpush1.msra.mxu0 0.0
    %3595 = vmatprep.subr.mxu0 0.0
    %3596 = vmatpush1.msra.mxu0 0.0
    %3597 = vmatprep.subr.mxu0 0.0
    %3598 = vmatpush1.msra.mxu0 0.0
    %3599 = vmatprep.subr.mxu0 0.0
    %3600 = vmatpush1.msra.mxu0 0.0
    %3601 = vmatprep.subr.mxu0 0.0
    %3602 = vmatpush1.msra.mxu0 0.0
    %3603 = vmatprep.subr.mxu0 0.0
    %3604 = vmatpush1.msra.mxu0 0.0
    %3605 = vmatprep.subr.mxu0 0.0
    %3606 = vmatpush1.msra.mxu0 0.0
    %3607 = vmatprep.subr.mxu0 0.0
    %3608 = vmatpush1.msra.mxu0 0.0
    %3609 = vmatprep.subr.mxu0 0.0
    %3610 = vmatpush1.msra.mxu0 0.0
    %3611 = vmatprep.subr.mxu0 0.0
    %3612 = vmatpush1.msra.mxu0 0.0
    %3613 = vmatprep.subr.mxu0 0.0
    %3614 = vmatpush1.msra.mxu0 0.0
    %3615 = vmatprep.subr.mxu0 0.0
    %3616 = vmatpush1.msra.mxu0 0.0
    %3617 = vmatprep.subr.mxu0 0.0
    %3618 = vmatpush1.msra.mxu0 0.0
    %3619 = vmatprep.mubr.f32.mxu0 0.0
    %3620 = vmatmul.mubr.f32.gmra.mrb[0].mxu0 %v2362
    %v3621 = vpop.f32.mrb[0].mxu0
    %v3622 = vadd.f32 %v3547, %v3621
    %v3623 = vpop.f32.mrb[0].mxu0
    %3624 = vmatprep.mubr.f32.mxu0 0.0
    %3625 = vmatmul.mubr.f32.gmra.mrb[0].mxu0 %v2364
    %v3626 = vpop.f32.mrb[0].mxu0
    %v3627 = vadd.f32 %v3552, %v3626
    %v3628 = vpop.f32.mrb[0].mxu0
    %3629 = vdwg.mxu0
    %s3630 = scalar_lea.vmem %s4, 9
    %v3631 = vld [vmem:[%s3630] sm:$0x1]
    %v3633 = vlaneseq
    %v3634 = vshrl.u32 %v3633, 7
    %v3635 = vsub.s32 0, %v3634
    %v3636 = vrot.slane %v3631, %v3635
    %v3638 = vadd.f32 %v3622, %v3636
    %v3639 = vadd.f32 %v3627, %v3636
    %v3640 = vxor.u32 %v3638, 2147483648
    %v3641 = vxor.u32 %v3639, 2147483648
    %v3642 = vmul.f32 %v3640, 1.442695
    %v3643 = vpow.pop %v3642
    %v3644 = vmul.f32 %v3641, 1.442695
    %v3645 = vpow.pop %v3644
    %v3646 = vadd.f32 %v3643, 1.0
    %v3647 = vadd.f32 %v3645, 1.0
    %v3648 = vrcp.pop %v3646
    %v3649 = vmul.f32 1.0, %v3648
    %v3650 = vrcp.pop %v3647
    %v3651 = vmul.f32 1.0, %v3650
    %v3652 = vmul.f32 %v3638, %v3649
    %v3653 = vmul.f32 %v3639, %v3651
    %s3654 = scalar_lea.vmem [#allocation2], 672
    %v3655 = vld [vmem:[%s3654] sm:$0xff]
    %v3656 = vld [vmem:[%s3654 + $0x8] sm:$0xff]
    %v3657 = vld [vmem:[%s3654 + $0x10] sm:$0xff]
    %v3658 = vld [vmem:[%s3654 + $0x18] sm:$0xff]
    %v3660 = vsel %vm660, %v3652, 0
    %v3663 = vsel %vm660, %v3653, 0
    %3665 = vmatprep.subr.mxu0 0.0
    %3666 = vmatpush1.msra.mxu0 %v3655
    %3667 = vmatprep.subr.mxu0 0.0
    %3668 = vmatpush1.msra.mxu0 %v3656
    %3669 = vmatprep.subr.mxu0 0.0
    %3670 = vmatpush1.msra.mxu0 %v3657
    %3671 = vmatprep.subr.mxu0 0.0
    %3672 = vmatpush1.msra.mxu0 %v3658
    %3673 = vmatprep.subr.mxu0 0.0
    %3674 = vmatpush1.msra.mxu0 0.0
    %3675 = vmatprep.subr.mxu0 0.0
    %3676 = vmatpush1.msra.mxu0 0.0
    %3677 = vmatprep.subr.mxu0 0.0
    %3678 = vmatpush1.msra.mxu0 0.0
    %3679 = vmatprep.subr.mxu0 0.0
    %3680 = vmatpush1.msra.mxu0 0.0
    %3681 = vmatprep.subr.mxu0 0.0
    %3682 = vmatpush1.msra.mxu0 0.0
    %3683 = vmatprep.subr.mxu0 0.0
    %3684 = vmatpush1.msra.mxu0 0.0
    %3685 = vmatprep.subr.mxu0 0.0
    %3686 = vmatpush1.msra.mxu0 0.0
    %3687 = vmatprep.subr.mxu0 0.0
    %3688 = vmatpush1.msra.mxu0 0.0
    %3689 = vmatprep.subr.mxu0 0.0
    %3690 = vmatpush1.msra.mxu0 0.0
    %3691 = vmatprep.subr.mxu0 0.0
    %3692 = vmatpush1.msra.mxu0 0.0
    %3693 = vmatprep.subr.mxu0 0.0
    %3694 = vmatpush1.msra.mxu0 0.0
    %3695 = vmatprep.subr.mxu0 0.0
    %3696 = vmatpush1.msra.mxu0 0.0
    %3697 = vmatprep.subr.mxu0 0.0
    %3698 = vmatpush1.msra.mxu0 0.0
    %3699 = vmatprep.subr.mxu0 0.0
    %3700 = vmatpush1.msra.mxu0 0.0
    %3701 = vmatprep.subr.mxu0 0.0
    %3702 = vmatpush1.msra.mxu0 0.0
    %3703 = vmatprep.subr.mxu0 0.0
    %3704 = vmatpush1.msra.mxu0 0.0
    %3705 = vmatprep.subr.mxu0 0.0
    %3706 = vmatpush1.msra.mxu0 0.0
    %3707 = vmatprep.subr.mxu0 0.0
    %3708 = vmatpush1.msra.mxu0 0.0
    %3709 = vmatprep.subr.mxu0 0.0
    %3710 = vmatpush1.msra.mxu0 0.0
    %3711 = vmatprep.subr.mxu0 0.0
    %3712 = vmatpush1.msra.mxu0 0.0
    %3713 = vmatprep.subr.mxu0 0.0
    %3714 = vmatpush1.msra.mxu0 0.0
    %3715 = vmatprep.subr.mxu0 0.0
    %3716 = vmatpush1.msra.mxu0 0.0
    %3717 = vmatprep.subr.mxu0 0.0
    %3718 = vmatpush1.msra.mxu0 0.0
    %3719 = vmatprep.subr.mxu0 0.0
    %3720 = vmatpush1.msra.mxu0 0.0
    %3721 = vmatprep.subr.mxu0 0.0
    %3722 = vmatpush1.msra.mxu0 0.0
    %3723 = vmatprep.subr.mxu0 0.0
    %3724 = vmatpush1.msra.mxu0 0.0
    %3725 = vmatprep.subr.mxu0 0.0
    %3726 = vmatpush1.msra.mxu0 0.0
    %3727 = vmatprep.subr.mxu0 0.0
    %3728 = vmatpush1.msra.mxu0 0.0
    %3729 = vmatprep.mubr.f32.mxu0 0.0
    %3730 = vmatmul.mubr.f32.gmra.mrb[0].mxu0 %v3660
    %v3731 = vpop.f32.mrb[0].mxu0
    %v3732 = vadd.f32 0.0, %v3731
    %v3733 = vpop.f32.mrb[0].mxu0
    %3734 = vmatprep.mubr.f32.mxu0 0.0
    %3735 = vmatmul.mubr.f32.gmra.mrb[0].mxu0 %v3663
    %v3736 = vpop.f32.mrb[0].mxu0
    %v3737 = vadd.f32 0.0, %v3736
    %v3738 = vpop.f32.mrb[0].mxu0
    %3739 = vdwg.mxu0
    %v3740 = vadd.f32 %v2186, %v3732
    %v3741 = vadd.f32 %v2187, %v3737
    %s3742 = scalar_lea.vmem %s4, 13
    %v3743 = vld [vmem:[%s3742] sm:$0x1]
    %v3745 = vlaneseq
    %v3746 = vshrl.u32 %v3745, 7
    %v3747 = vsub.s32 0, %v3746
    %v3748 = vrot.slane %v3743, %v3747
    %v3750 = vadd.f32 %v3740, %v3748
    %v3751 = vadd.f32 %v3741, %v3748
    %v3752 = vmul.f32 %v3750, %v72
    %v3753 = vmul.f32 %v3751, %v77
    %v3756 = vcombine.high %v3752, %v3752
    %v3758 = vunpack.c.l.s4 1966171168
    %v3759 = vunpack.c.0.s8 %v3758
    %v3760 = vlaneseq
    %v3761 = vshrl.u32 %v3760, 7
    %v3762 = vsub.s32 %v3759, %v3761
    %v3763 = vrot.slane %v3752, %v3762
    %v3765 = vunpack.c.l.s4 1966171168
    %v3766 = vunpack.c.0.s8 %v3765
    %v3767 = vlaneseq
    %v3768 = vshrl.u32 %v3767, 7
    %v3769 = vsub.s32 %v3766, %v3768
    %v3770 = vrot.slane %v3756, %v3769
    %v3771 = vcombine.high %v3763, %v3763
    %v3772 = vcombine.high %v3770, %v3770
    %v3774 = vunpack.c.l.s4 1966171168
    %v3775 = vunpack.c.0.s8 %v3774
    %v3776 = vlaneseq
    %v3777 = vshrl.u32 %v3776, 7
    %v3778 = vsub.s32 %v3775, %v3777
    %v3779 = vrot.slane %v3763, %v3778
    %v3781 = vunpack.c.l.s4 1966171168
    %v3782 = vunpack.c.0.s8 %v3781
    %v3783 = vlaneseq
    %v3784 = vshrl.u32 %v3783, 7
    %v3785 = vsub.s32 %v3782, %v3784
    %v3786 = vrot.slane %v3770, %v3785
    %v3788 = vunpack.c.l.s4 1966171168
    %v3789 = vunpack.c.0.s8 %v3788
    %v3790 = vlaneseq
    %v3791 = vshrl.u32 %v3790, 7
    %v3792 = vsub.s32 %v3789, %v3791
    %v3793 = vrot.slane %v3771, %v3792
    %v3795 = vunpack.c.l.s4 1966171168
    %v3796 = vunpack.c.0.s8 %v3795
    %v3797 = vlaneseq
    %v3798 = vshrl.u32 %v3797, 7
    %v3799 = vsub.s32 %v3796, %v3798
    %v3800 = vrot.slane %v3772, %v3799
    %v3801 = vcombine.high %v3779, %v3779
    %v3802 = vcombine.high %v3786, %v3786
    %v3803 = vcombine.high %v3793, %v3793
    %v3804 = vcombine.high %v3800, %v3800
    %v3805 = vcombine.high %v3753, %v3753
    %v3807 = vunpack.c.l.s4 1966171168
    %v3808 = vunpack.c.0.s8 %v3807
    %v3809 = vlaneseq
    %v3810 = vshrl.u32 %v3809, 7
    %v3811 = vsub.s32 %v3808, %v3810
    %v3812 = vrot.slane %v3753, %v3811
    %v3814 = vunpack.c.l.s4 1966171168
    %v3815 = vunpack.c.0.s8 %v3814
    %v3816 = vlaneseq
    %v3817 = vshrl.u32 %v3816, 7
    %v3818 = vsub.s32 %v3815, %v3817
    %v3819 = vrot.slane %v3805, %v3818
    %v3820 = vcombine.high %v3812, %v3812
    %v3821 = vcombine.high %v3819, %v3819
    %v3823 = vunpack.c.l.s4 1966171168
    %v3824 = vunpack.c.0.s8 %v3823
    %v3825 = vlaneseq
    %v3826 = vshrl.u32 %v3825, 7
    %v3827 = vsub.s32 %v3824, %v3826
    %v3828 = vrot.slane %v3812, %v3827
    %v3830 = vunpack.c.l.s4 1966171168
    %v3831 = vunpack.c.0.s8 %v3830
    %v3832 = vlaneseq
    %v3833 = vshrl.u32 %v3832, 7
    %v3834 = vsub.s32 %v3831, %v3833
    %v3835 = vrot.slane %v3819, %v3834
    %v3837 = vunpack.c.l.s4 1966171168
    %v3838 = vunpack.c.0.s8 %v3837
    %v3839 = vlaneseq
    %v3840 = vshrl.u32 %v3839, 7
    %v3841 = vsub.s32 %v3838, %v3840
    %v3842 = vrot.slane %v3820, %v3841
    %v3844 = vunpack.c.l.s4 1966171168
    %v3845 = vunpack.c.0.s8 %v3844
    %v3846 = vlaneseq
    %v3847 = vshrl.u32 %v3846, 7
    %v3848 = vsub.s32 %v3845, %v3847
    %v3849 = vrot.slane %v3821, %v3848
    %v3850 = vcombine.high %v3828, %v3828
    %v3851 = vcombine.high %v3835, %v3835
    %v3852 = vcombine.high %v3842, %v3842
    %v3853 = vcombine.high %v3849, %v3849
    %v3854 = vlaneseq
    %v3855 = vshrl.u32 %v3854, 7
    %v3856 = vsub.s32 0, %v3855
    %v3857 = vrot.slane %v3779, %v3856
    %v3858 = vlaneseq
    %v3859 = vshrl.u32 %v3858, 7
    %v3860 = vsub.s32 0, %v3859
    %v3861 = vrot.slane %v3793, %v3860
    %v3862 = vlaneseq
    %v3863 = vshrl.u32 %v3862, 7
    %v3864 = vsub.s32 0, %v3863
    %v3865 = vrot.slane %v3801, %v3864
    %v3866 = vlaneseq
    %v3867 = vshrl.u32 %v3866, 7
    %v3868 = vsub.s32 0, %v3867
    %v3869 = vrot.slane %v3803, %v3868
    %v3870 = vlaneseq
    %v3871 = vshrl.u32 %v3870, 7
    %v3872 = vsub.s32 0, %v3871
    %v3873 = vrot.slane %v3786, %v3872
    %v3874 = vlaneseq
    %v3875 = vshrl.u32 %v3874, 7
    %v3876 = vsub.s32 0, %v3875
    %v3877 = vrot.slane %v3800, %v3876
    %v3878 = vlaneseq
    %v3879 = vshrl.u32 %v3878, 7
    %v3880 = vsub.s32 0, %v3879
    %v3881 = vrot.slane %v3802, %v3880
    %v3882 = vlaneseq
    %v3883 = vshrl.u32 %v3882, 7
    %v3884 = vsub.s32 0, %v3883
    %v3885 = vrot.slane %v3804, %v3884
    %v3886 = vlaneseq
    %v3887 = vshrl.u32 %v3886, 7
    %v3888 = vsub.s32 0, %v3887
    %v3889 = vrot.slane %v3828, %v3888
    %v3890 = vlaneseq
    %v3891 = vshrl.u32 %v3890, 7
    %v3892 = vsub.s32 0, %v3891
    %v3893 = vrot.slane %v3842, %v3892
    %v3894 = vlaneseq
    %v3895 = vshrl.u32 %v3894, 7
    %v3896 = vsub.s32 0, %v3895
    %v3897 = vrot.slane %v3850, %v3896
    %v3898 = vlaneseq
    %v3899 = vshrl.u32 %v3898, 7
    %v3900 = vsub.s32 0, %v3899
    %v3901 = vrot.slane %v3852, %v3900
    %v3902 = vlaneseq
    %v3903 = vshrl.u32 %v3902, 7
    %v3904 = vsub.s32 0, %v3903
    %v3905 = vrot.slane %v3835, %v3904
    %v3906 = vlaneseq
    %v3907 = vshrl.u32 %v3906, 7
    %v3908 = vsub.s32 0, %v3907
    %v3909 = vrot.slane %v3849, %v3908
    %v3910 = vlaneseq
    %v3911 = vshrl.u32 %v3910, 7
    %v3912 = vsub.s32 0, %v3911
    %v3913 = vrot.slane %v3851, %v3912
    %v3914 = vlaneseq
    %v3915 = vshrl.u32 %v3914, 7
    %v3916 = vsub.s32 0, %v3915
    %v3917 = vrot.slane %v3853, %v3916
    %s3918 = scalar_lea.vmem [#allocation2], 768
    %v3919 = vld [vmem:[%s3918] sm:$0xff]
    %v3920 = vld [vmem:[%s3918 + $0x8] sm:$0xff]
    %v3921 = vld [vmem:[%s3918 + $0x10] sm:$0xff]
    %v3922 = vld [vmem:[%s3918 + $0x18] sm:$0xff]
    %s3923 = scalar_lea.vmem [#allocation2], 832
    %v3924 = vld [vmem:[%s3923] sm:$0xff]
    %v3925 = vld [vmem:[%s3923 + $0x8] sm:$0xff]
    %v3926 = vld [vmem:[%s3923 + $0x10] sm:$0xff]
    %v3927 = vld [vmem:[%s3923 + $0x18] sm:$0xff]
    %v3928 = vsel %vm660, %v3752, 0
    %v3930 = vsel %vm660, %v3753, 0
    %3932 = vmatprep.subr.mxu0 0.0
    %3933 = vmatpush1.msra.mxu0 %v3924
    %3934 = vmatprep.subr.mxu0 0.0
    %3935 = vmatpush1.msra.mxu0 %v3925
    %3936 = vmatprep.subr.mxu0 0.0
    %3937 = vmatpush1.msra.mxu0 %v3926
    %3938 = vmatprep.subr.mxu0 0.0
    %3939 = vmatpush1.msra.mxu0 %v3927
    %3940 = vmatprep.subr.mxu0 0.0
    %3941 = vmatpush1.msra.mxu0 0.0
    %3942 = vmatprep.subr.mxu0 0.0
    %3943 = vmatpush1.msra.mxu0 0.0
    %3944 = vmatprep.subr.mxu0 0.0
    %3945 = vmatpush1.msra.mxu0 0.0
    %3946 = vmatprep.subr.mxu0 0.0
    %3947 = vmatpush1.msra.mxu0 0.0
    %3948 = vmatprep.subr.mxu0 0.0
    %3949 = vmatpush1.msra.mxu0 0.0
    %3950 = vmatprep.subr.mxu0 0.0
    %3951 = vmatpush1.msra.mxu0 0.0
    %3952 = vmatprep.subr.mxu0 0.0
    %3953 = vmatpush1.msra.mxu0 0.0
    %3954 = vmatprep.subr.mxu0 0.0
    %3955 = vmatpush1.msra.mxu0 0.0
    %3956 = vmatprep.subr.mxu0 0.0
    %3957 = vmatpush1.msra.mxu0 0.0
    %3958 = vmatprep.subr.mxu0 0.0
    %3959 = vmatpush1.msra.mxu0 0.0
    %3960 = vmatprep.subr.mxu0 0.0
    %3961 = vmatpush1.msra.mxu0 0.0
    %3962 = vmatprep.subr.mxu0 0.0
    %3963 = vmatpush1.msra.mxu0 0.0
    %3964 = vmatprep.subr.mxu0 0.0
    %3965 = vmatpush1.msra.mxu0 0.0
    %3966 = vmatprep.subr.mxu0 0.0
    %3967 = vmatpush1.msra.mxu0 0.0
    %3968 = vmatprep.subr.mxu0 0.0
    %3969 = vmatpush1.msra.mxu0 0.0
    %3970 = vmatprep.subr.mxu0 0.0
    %3971 = vmatpush1.msra.mxu0 0.0
    %3972 = vmatprep.subr.mxu0 0.0
    %3973 = vmatpush1.msra.mxu0 0.0
    %3974 = vmatprep.subr.mxu0 0.0
    %3975 = vmatpush1.msra.mxu0 0.0
    %3976 = vmatprep.subr.mxu0 0.0
    %3977 = vmatpush1.msra.mxu0 0.0
    %3978 = vmatprep.subr.mxu0 0.0
    %3979 = vmatpush1.msra.mxu0 0.0
    %3980 = vmatprep.subr.mxu0 0.0
    %3981 = vmatpush1.msra.mxu0 0.0
    %3982 = vmatprep.subr.mxu0 0.0
    %3983 = vmatpush1.msra.mxu0 0.0
    %3984 = vmatprep.subr.mxu0 0.0
    %3985 = vmatpush1.msra.mxu0 0.0
    %3986 = vmatprep.subr.mxu0 0.0
    %3987 = vmatpush1.msra.mxu0 0.0
    %3988 = vmatprep.subr.mxu0 0.0
    %3989 = vmatpush1.msra.mxu0 0.0
    %3990 = vmatprep.subr.mxu0 0.0
    %3991 = vmatpush1.msra.mxu0 0.0
    %3992 = vmatprep.subr.mxu0 0.0
    %3993 = vmatpush1.msra.mxu0 0.0
    %3994 = vmatprep.subr.mxu0 0.0
    %3995 = vmatpush1.msra.mxu0 0.0
    %3996 = vmatprep.mubr.f32.mxu0 0.0
    %3997 = vmatmul.mubr.f32.gmra.mrb[0].mxu0 %v3928
    %v3998 = vpop.f32.mrb[0].mxu0
    %v3999 = vadd.f32 0.0, %v3998
    %v4000 = vpop.f32.mrb[0].mxu0
    %4001 = vmatprep.mubr.f32.mxu0 0.0
    %4002 = vmatmul.mubr.f32.gmra.mrb[0].mxu0 %v3928
    %v4003 = vpop.f32.mrb[0].mxu0
    %v4004 = vadd.f32 0.0, %v4003
    %v4005 = vpop.f32.mrb[0].mxu0
    %4006 = vmatprep.mubr.f32.mxu0 0.0
    %4007 = vmatmul.mubr.f32.gmra.mrb[0].mxu0 %v3928
    %v4008 = vpop.f32.mrb[0].mxu0
    %v4009 = vadd.f32 0.0, %v4008
    %v4010 = vpop.f32.mrb[0].mxu0
    %4011 = vmatprep.mubr.f32.mxu0 0.0
    %4012 = vmatmul.mubr.f32.gmra.mrb[0].mxu0 %v3928
    %v4013 = vpop.f32.mrb[0].mxu0
    %v4014 = vadd.f32 0.0, %v4013
    %v4015 = vpop.f32.mrb[0].mxu0
    %4016 = vmatprep.mubr.f32.mxu0 0.0
    %4017 = vmatmul.mubr.f32.gmra.mrb[0].mxu0 %v3928
    %v4018 = vpop.f32.mrb[0].mxu0
    %v4019 = vadd.f32 0.0, %v4018
    %v4020 = vpop.f32.mrb[0].mxu0
    %4021 = vmatprep.mubr.f32.mxu0 0.0
    %4022 = vmatmul.mubr.f32.gmra.mrb[0].mxu0 %v3928
    %v4023 = vpop.f32.mrb[0].mxu0
    %v4024 = vadd.f32 0.0, %v4023
    %v4025 = vpop.f32.mrb[0].mxu0
    %4026 = vmatprep.mubr.f32.mxu0 0.0
    %4027 = vmatmul.mubr.f32.gmra.mrb[0].mxu0 %v3928
    %v4028 = vpop.f32.mrb[0].mxu0
    %v4029 = vadd.f32 0.0, %v4028
    %v4030 = vpop.f32.mrb[0].mxu0
    %4031 = vmatprep.mubr.f32.mxu0 0.0
    %4032 = vmatmul.mubr.f32.gmra.mrb[0].mxu0 %v3928
    %v4033 = vpop.f32.mrb[0].mxu0
    %v4034 = vadd.f32 0.0, %v4033
    %v4035 = vpop.f32.mrb[0].mxu0
    %4036 = vmatprep.mubr.f32.mxu0 0.0
    %4037 = vmatmul.mubr.f32.gmra.mrb[0].mxu0 %v3930
    %v4038 = vpop.f32.mrb[0].mxu0
    %v4039 = vadd.f32 0.0, %v4038
    %v4040 = vpop.f32.mrb[0].mxu0
    %4041 = vmatprep.mubr.f32.mxu0 0.0
    %4042 = vmatmul.mubr.f32.gmra.mrb[0].mxu0 %v3930
    %v4043 = vpop.f32.mrb[0].mxu0
    %v4044 = vadd.f32 0.0, %v4043
    %v4045 = vpop.f32.mrb[0].mxu0
    %4046 = vmatprep.mubr.f32.mxu0 0.0
    %4047 = vmatmul.mubr.f32.gmra.mrb[0].mxu0 %v3930
    %v4048 = vpop.f32.mrb[0].mxu0
    %v4049 = vadd.f32 0.0, %v4048
    %v4050 = vpop.f32.mrb[0].mxu0
    %4051 = vmatprep.mubr.f32.mxu0 0.0
    %4052 = vmatmul.mubr.f32.gmra.mrb[0].mxu0 %v3930
    %v4053 = vpop.f32.mrb[0].mxu0
    %v4054 = vadd.f32 0.0, %v4053
    %v4055 = vpop.f32.mrb[0].mxu0
    %4056 = vmatprep.mubr.f32.mxu0 0.0
    %4057 = vmatmul.mubr.f32.gmra.mrb[0].mxu0 %v3930
    %v4058 = vpop.f32.mrb[0].mxu0
    %v4059 = vadd.f32 0.0, %v4058
    %v4060 = vpop.f32.mrb[0].mxu0
    %4061 = vmatprep.mubr.f32.mxu0 0.0
    %4062 = vmatmul.mubr.f32.gmra.mrb[0].mxu0 %v3930
    %v4063 = vpop.f32.mrb[0].mxu0
    %v4064 = vadd.f32 0.0, %v4063
    %v4065 = vpop.f32.mrb[0].mxu0
    %4066 = vmatprep.mubr.f32.mxu0 0.0
    %4067 = vmatmul.mubr.f32.gmra.mrb[0].mxu0 %v3930
    %v4068 = vpop.f32.mrb[0].mxu0
    %v4069 = vadd.f32 0.0, %v4068
    %v4070 = vpop.f32.mrb[0].mxu0
    %4071 = vmatprep.mubr.f32.mxu0 0.0
    %4072 = vmatmul.mubr.f32.gmra.mrb[0].mxu0 %v3930
    %v4073 = vpop.f32.mrb[0].mxu0
    %v4074 = vadd.f32 0.0, %v4073
    %v4075 = vpop.f32.mrb[0].mxu0
    %4076 = vdwg.mxu0
    %v4077 = vsel %vm660, %v3857, 0
    %v4079 = vsel %vm660, %v3861, 0
    %v4081 = vsel %vm660, %v3865, 0
    %v4083 = vsel %vm660, %v3869, 0
    %v4085 = vsel %vm660, %v3873, 0
    %v4087 = vsel %vm660, %v3877, 0
    %v4089 = vsel %vm660, %v3881, 0
    %v4091 = vsel %vm660, %v3885, 0
    %v4093 = vsel %vm660, %v3889, 0
    %v4095 = vsel %vm660, %v3893, 0
    %v4097 = vsel %vm660, %v3897, 0
    %v4099 = vsel %vm660, %v3901, 0
    %v4101 = vsel %vm660, %v3905, 0
    %v4103 = vsel %vm660, %v3909, 0
    %v4105 = vsel %vm660, %v3913, 0
    %v4107 = vsel %vm660, %v3917, 0
    %4109 = vmatprep.subr.mxu0 0.0
    %4110 = vmatpush1.msra.mxu0 %v3919
    %4111 = vmatprep.subr.mxu0 0.0
    %4112 = vmatpush1.msra.mxu0 %v3920
    %4113 = vmatprep.subr.mxu0 0.0
    %4114 = vmatpush1.msra.mxu0 %v3921
    %4115 = vmatprep.subr.mxu0 0.0
    %4116 = vmatpush1.msra.mxu0 %v3922
    %4117 = vmatprep.subr.mxu0 0.0
    %4118 = vmatpush1.msra.mxu0 0.0
    %4119 = vmatprep.subr.mxu0 0.0
    %4120 = vmatpush1.msra.mxu0 0.0
    %4121 = vmatprep.subr.mxu0 0.0
    %4122 = vmatpush1.msra.mxu0 0.0
    %4123 = vmatprep.subr.mxu0 0.0
    %4124 = vmatpush1.msra.mxu0 0.0
    %4125 = vmatprep.subr.mxu0 0.0
    %4126 = vmatpush1.msra.mxu0 0.0
    %4127 = vmatprep.subr.mxu0 0.0
    %4128 = vmatpush1.msra.mxu0 0.0
    %4129 = vmatprep.subr.mxu0 0.0
    %4130 = vmatpush1.msra.mxu0 0.0
    %4131 = vmatprep.subr.mxu0 0.0
    %4132 = vmatpush1.msra.mxu0 0.0
    %4133 = vmatprep.subr.mxu0 0.0
    %4134 = vmatpush1.msra.mxu0 0.0
    %4135 = vmatprep.subr.mxu0 0.0
    %4136 = vmatpush1.msra.mxu0 0.0
    %4137 = vmatprep.subr.mxu0 0.0
    %4138 = vmatpush1.msra.mxu0 0.0
    %4139 = vmatprep.subr.mxu0 0.0
    %4140 = vmatpush1.msra.mxu0 0.0
    %4141 = vmatprep.subr.mxu0 0.0
    %4142 = vmatpush1.msra.mxu0 0.0
    %4143 = vmatprep.subr.mxu0 0.0
    %4144 = vmatpush1.msra.mxu0 0.0
    %4145 = vmatprep.subr.mxu0 0.0
    %4146 = vmatpush1.msra.mxu0 0.0
    %4147 = vmatprep.subr.mxu0 0.0
    %4148 = vmatpush1.msra.mxu0 0.0
    %4149 = vmatprep.subr.mxu0 0.0
    %4150 = vmatpush1.msra.mxu0 0.0
    %4151 = vmatprep.subr.mxu0 0.0
    %4152 = vmatpush1.msra.mxu0 0.0
    %4153 = vmatprep.subr.mxu0 0.0
    %4154 = vmatpush1.msra.mxu0 0.0
    %4155 = vmatprep.subr.mxu0 0.0
    %4156 = vmatpush1.msra.mxu0 0.0
    %4157 = vmatprep.subr.mxu0 0.0
    %4158 = vmatpush1.msra.mxu0 0.0
    %4159 = vmatprep.subr.mxu0 0.0
    %4160 = vmatpush1.msra.mxu0 0.0
    %4161 = vmatprep.subr.mxu0 0.0
    %4162 = vmatpush1.msra.mxu0 0.0
    %4163 = vmatprep.subr.mxu0 0.0
    %4164 = vmatpush1.msra.mxu0 0.0
    %4165 = vmatprep.subr.mxu0 0.0
    %4166 = vmatpush1.msra.mxu0 0.0
    %4167 = vmatprep.subr.mxu0 0.0
    %4168 = vmatpush1.msra.mxu0 0.0
    %4169 = vmatprep.subr.mxu0 0.0
    %4170 = vmatpush1.msra.mxu0 0.0
    %4171 = vmatprep.subr.mxu0 0.0
    %4172 = vmatpush1.msra.mxu0 0.0
    %4173 = vmatprep.mubr.f32.mxu0 0.0
    %4174 = vmatmul.mubr.f32.gmra.mrb[0].mxu0 %v4077
    %v4175 = vpop.f32.mrb[0].mxu0
    %v4176 = vadd.f32 %v3999, %v4175
    %v4177 = vpop.f32.mrb[0].mxu0
    %4178 = vmatprep.mubr.f32.mxu0 0.0
    %4179 = vmatmul.mubr.f32.gmra.mrb[0].mxu0 %v4079
    %v4180 = vpop.f32.mrb[0].mxu0
    %v4181 = vadd.f32 %v4004, %v4180
    %v4182 = vpop.f32.mrb[0].mxu0
    %4183 = vmatprep.mubr.f32.mxu0 0.0
    %4184 = vmatmul.mubr.f32.gmra.mrb[0].mxu0 %v4081
    %v4185 = vpop.f32.mrb[0].mxu0
    %v4186 = vadd.f32 %v4009, %v4185
    %v4187 = vpop.f32.mrb[0].mxu0
    %4188 = vmatprep.mubr.f32.mxu0 0.0
    %4189 = vmatmul.mubr.f32.gmra.mrb[0].mxu0 %v4083
    %v4190 = vpop.f32.mrb[0].mxu0
    %v4191 = vadd.f32 %v4014, %v4190
    %v4192 = vpop.f32.mrb[0].mxu0
    %4193 = vmatprep.mubr.f32.mxu0 0.0
    %4194 = vmatmul.mubr.f32.gmra.mrb[0].mxu0 %v4085
    %v4195 = vpop.f32.mrb[0].mxu0
    %v4196 = vadd.f32 %v4019, %v4195
    %v4197 = vpop.f32.mrb[0].mxu0
    %4198 = vmatprep.mubr.f32.mxu0 0.0
    %4199 = vmatmul.mubr.f32.gmra.mrb[0].mxu0 %v4087
    %v4200 = vpop.f32.mrb[0].mxu0
    %v4201 = vadd.f32 %v4024, %v4200
    %v4202 = vpop.f32.mrb[0].mxu0
    %4203 = vmatprep.mubr.f32.mxu0 0.0
    %4204 = vmatmul.mubr.f32.gmra.mrb[0].mxu0 %v4089
    %v4205 = vpop.f32.mrb[0].mxu0
    %v4206 = vadd.f32 %v4029, %v4205
    %v4207 = vpop.f32.mrb[0].mxu0
    %4208 = vmatprep.mubr.f32.mxu0 0.0
    %4209 = vmatmul.mubr.f32.gmra.mrb[0].mxu0 %v4091
    %v4210 = vpop.f32.mrb[0].mxu0
    %v4211 = vadd.f32 %v4034, %v4210
    %v4212 = vpop.f32.mrb[0].mxu0
    %4213 = vmatprep.mubr.f32.mxu0 0.0
    %4214 = vmatmul.mubr.f32.gmra.mrb[0].mxu0 %v4093
    %v4215 = vpop.f32.mrb[0].mxu0
    %v4216 = vadd.f32 %v4039, %v4215
    %v4217 = vpop.f32.mrb[0].mxu0
    %4218 = vmatprep.mubr.f32.mxu0 0.0
    %4219 = vmatmul.mubr.f32.gmra.mrb[0].mxu0 %v4095
    %v4220 = vpop.f32.mrb[0].mxu0
    %v4221 = vadd.f32 %v4044, %v4220
    %v4222 = vpop.f32.mrb[0].mxu0
    %4223 = vmatprep.mubr.f32.mxu0 0.0
    %4224 = vmatmul.mubr.f32.gmra.mrb[0].mxu0 %v4097
    %v4225 = vpop.f32.mrb[0].mxu0
    %v4226 = vadd.f32 %v4049, %v4225
    %v4227 = vpop.f32.mrb[0].mxu0
    %4228 = vmatprep.mubr.f32.mxu0 0.0
    %4229 = vmatmul.mubr.f32.gmra.mrb[0].mxu0 %v4099
    %v4230 = vpop.f32.mrb[0].mxu0
    %v4231 = vadd.f32 %v4054, %v4230
    %v4232 = vpop.f32.mrb[0].mxu0
    %4233 = vmatprep.mubr.f32.mxu0 0.0
    %4234 = vmatmul.mubr.f32.gmra.mrb[0].mxu0 %v4101
    %v4235 = vpop.f32.mrb[0].mxu0
    %v4236 = vadd.f32 %v4059, %v4235
    %v4237 = vpop.f32.mrb[0].mxu0
    %4238 = vmatprep.mubr.f32.mxu0 0.0
    %4239 = vmatmul.mubr.f32.gmra.mrb[0].mxu0 %v4103
    %v4240 = vpop.f32.mrb[0].mxu0
    %v4241 = vadd.f32 %v4064, %v4240
    %v4242 = vpop.f32.mrb[0].mxu0
    %4243 = vmatprep.mubr.f32.mxu0 0.0
    %4244 = vmatmul.mubr.f32.gmra.mrb[0].mxu0 %v4105
    %v4245 = vpop.f32.mrb[0].mxu0
    %v4246 = vadd.f32 %v4069, %v4245
    %v4247 = vpop.f32.mrb[0].mxu0
    %4248 = vmatprep.mubr.f32.mxu0 0.0
    %4249 = vmatmul.mubr.f32.gmra.mrb[0].mxu0 %v4107
    %v4250 = vpop.f32.mrb[0].mxu0
    %v4251 = vadd.f32 %v4074, %v4250
    %v4252 = vpop.f32.mrb[0].mxu0
    %4253 = vdwg.mxu0
    %s4254 = scalar_lea.vmem %s5, 8
    %v4255 = vld [vmem:[%s4254] sm:$0x3]
    %v4257 = vsel %vm1037, %v4255, 0
    %4259 = vmatprep.subr.mxu0 0.0
    %4260 = vmatpush1.msra.mxu0 %v4257
    %4261 = vmatprep.subr.mxu0 0.0
    %4262 = vmatpush1.msra.mxu0 0.0
    %4263 = vmatprep.subr.mxu0 0.0
    %4264 = vmatpush1.msra.mxu0 0.0
    %4265 = vmatprep.subr.mxu0 0.0
    %4266 = vmatpush1.msra.mxu0 0.0
    %4267 = vmatprep.subr.mxu0 0.0
    %4268 = vmatpush1.msra.mxu0 0.0
    %4269 = vmatprep.subr.mxu0 0.0
    %4270 = vmatpush1.msra.mxu0 0.0
    %4271 = vmatprep.subr.mxu0 0.0
    %4272 = vmatpush1.msra.mxu0 0.0
    %4273 = vmatprep.subr.mxu0 0.0
    %4274 = vmatpush1.msra.mxu0 0.0
    %4275 = vmatprep.subr.mxu0 0.0
    %4276 = vmatpush1.msra.mxu0 0.0
    %4277 = vmatprep.subr.mxu0 0.0
    %4278 = vmatpush1.msra.mxu0 0.0
    %4279 = vmatprep.subr.mxu0 0.0
    %4280 = vmatpush1.msra.mxu0 0.0
    %4281 = vmatprep.subr.mxu0 0.0
    %4282 = vmatpush1.msra.mxu0 0.0
    %4283 = vmatprep.subr.mxu0 0.0
    %4284 = vmatpush1.msra.mxu0 0.0
    %4285 = vmatprep.subr.mxu0 0.0
    %4286 = vmatpush1.msra.mxu0 0.0
    %4287 = vmatprep.subr.mxu0 0.0
    %4288 = vmatpush1.msra.mxu0 0.0
    %4289 = vmatprep.subr.mxu0 0.0
    %4290 = vmatpush1.msra.mxu0 0.0
    %4291 = vmatprep.subr.mxu0 0.0
    %4292 = vmatpush1.msra.mxu0 0.0
    %4293 = vmatprep.subr.mxu0 0.0
    %4294 = vmatpush1.msra.mxu0 0.0
    %4295 = vmatprep.subr.mxu0 0.0
    %4296 = vmatpush1.msra.mxu0 0.0
    %4297 = vmatprep.subr.mxu0 0.0
    %4298 = vmatpush1.msra.mxu0 0.0
    %4299 = vmatprep.subr.mxu0 0.0
    %4300 = vmatpush1.msra.mxu0 0.0
    %4301 = vmatprep.subr.mxu0 0.0
    %4302 = vmatpush1.msra.mxu0 0.0
    %4303 = vmatprep.subr.mxu0 0.0
    %4304 = vmatpush1.msra.mxu0 0.0
    %4305 = vmatprep.subr.mxu0 0.0
    %4306 = vmatpush1.msra.mxu0 0.0
    %4307 = vmatprep.subr.mxu0 0.0
    %4308 = vmatpush1.msra.mxu0 0.0
    %4309 = vmatprep.subr.mxu0 0.0
    %4310 = vmatpush1.msra.mxu0 0.0
    %4311 = vmatprep.subr.mxu0 0.0
    %4312 = vmatpush1.msra.mxu0 0.0
    %4313 = vmatprep.subr.mxu0 0.0
    %4314 = vmatpush1.msra.mxu0 0.0
    %4315 = vmatprep.subr.mxu0 0.0
    %4316 = vmatpush1.msra.mxu0 0.0
    %4317 = vmatprep.subr.mxu0 0.0
    %4318 = vmatpush1.msra.mxu0 0.0
    %4319 = vmatprep.subr.mxu0 0.0
    %4320 = vmatpush1.msra.mxu0 0.0
    %4321 = vmatprep.subr.mxu0 0.0
    %4322 = vmatpush1.msra.mxu0 0.0
    %4323 = vmatprep.mubr.f32.mxu0 0.0
    %4324 = vmatmul.mubr.f32.gmra.mrb[0].mxu0 %v990
    %v4325 = vpop.f32.mrb[0].mxu0
    %v4326 = vadd.f32 0.0, %v4325
    %v4327 = vpop.f32.mrb[0].mxu0
    %4328 = vmatprep.mubr.f32.mxu0 0.0
    %4329 = vmatmul.mubr.f32.gmra.mrb[0].mxu0 %v993
    %v4330 = vpop.f32.mrb[0].mxu0
    %v4331 = vadd.f32 0.0, %v4330
    %v4332 = vpop.f32.mrb[0].mxu0
    %4333 = vmatprep.mubr.f32.mxu0 0.0
    %4334 = vmatmul.mubr.f32.gmra.mrb[0].mxu0 %v996
    %v4335 = vpop.f32.mrb[0].mxu0
    %v4336 = vadd.f32 0.0, %v4335
    %v4337 = vpop.f32.mrb[0].mxu0
    %4338 = vmatprep.mubr.f32.mxu0 0.0
    %4339 = vmatmul.mubr.f32.gmra.mrb[0].mxu0 %v999
    %v4340 = vpop.f32.mrb[0].mxu0
    %v4341 = vadd.f32 0.0, %v4340
    %v4342 = vpop.f32.mrb[0].mxu0
    %4343 = vmatprep.mubr.f32.mxu0 0.0
    %4344 = vmatmul.mubr.f32.gmra.mrb[0].mxu0 %v1002
    %v4345 = vpop.f32.mrb[0].mxu0
    %v4346 = vadd.f32 0.0, %v4345
    %v4347 = vpop.f32.mrb[0].mxu0
    %4348 = vmatprep.mubr.f32.mxu0 0.0
    %4349 = vmatmul.mubr.f32.gmra.mrb[0].mxu0 %v1005
    %v4350 = vpop.f32.mrb[0].mxu0
    %v4351 = vadd.f32 0.0, %v4350
    %v4352 = vpop.f32.mrb[0].mxu0
    %4353 = vmatprep.mubr.f32.mxu0 0.0
    %4354 = vmatmul.mubr.f32.gmra.mrb[0].mxu0 %v1008
    %v4355 = vpop.f32.mrb[0].mxu0
    %v4356 = vadd.f32 0.0, %v4355
    %v4357 = vpop.f32.mrb[0].mxu0
    %4358 = vmatprep.mubr.f32.mxu0 0.0
    %4359 = vmatmul.mubr.f32.gmra.mrb[0].mxu0 %v1011
    %v4360 = vpop.f32.mrb[0].mxu0
    %v4361 = vadd.f32 0.0, %v4360
    %v4362 = vpop.f32.mrb[0].mxu0
    %4363 = vmatprep.mubr.f32.mxu0 0.0
    %4364 = vmatmul.mubr.f32.gmra.mrb[0].mxu0 %v1014
    %v4365 = vpop.f32.mrb[0].mxu0
    %v4366 = vadd.f32 0.0, %v4365
    %v4367 = vpop.f32.mrb[0].mxu0
    %4368 = vmatprep.mubr.f32.mxu0 0.0
    %4369 = vmatmul.mubr.f32.gmra.mrb[0].mxu0 %v1017
    %v4370 = vpop.f32.mrb[0].mxu0
    %v4371 = vadd.f32 0.0, %v4370
    %v4372 = vpop.f32.mrb[0].mxu0
    %4373 = vmatprep.mubr.f32.mxu0 0.0
    %4374 = vmatmul.mubr.f32.gmra.mrb[0].mxu0 %v1020
    %v4375 = vpop.f32.mrb[0].mxu0
    %v4376 = vadd.f32 0.0, %v4375
    %v4377 = vpop.f32.mrb[0].mxu0
    %4378 = vmatprep.mubr.f32.mxu0 0.0
    %4379 = vmatmul.mubr.f32.gmra.mrb[0].mxu0 %v1023
    %v4380 = vpop.f32.mrb[0].mxu0
    %v4381 = vadd.f32 0.0, %v4380
    %v4382 = vpop.f32.mrb[0].mxu0
    %4383 = vmatprep.mubr.f32.mxu0 0.0
    %4384 = vmatmul.mubr.f32.gmra.mrb[0].mxu0 %v1026
    %v4385 = vpop.f32.mrb[0].mxu0
    %v4386 = vadd.f32 0.0, %v4385
    %v4387 = vpop.f32.mrb[0].mxu0
    %4388 = vmatprep.mubr.f32.mxu0 0.0
    %4389 = vmatmul.mubr.f32.gmra.mrb[0].mxu0 %v1029
    %v4390 = vpop.f32.mrb[0].mxu0
    %v4391 = vadd.f32 0.0, %v4390
    %v4392 = vpop.f32.mrb[0].mxu0
    %4393 = vmatprep.mubr.f32.mxu0 0.0
    %4394 = vmatmul.mubr.f32.gmra.mrb[0].mxu0 %v1032
    %v4395 = vpop.f32.mrb[0].mxu0
    %v4396 = vadd.f32 0.0, %v4395
    %v4397 = vpop.f32.mrb[0].mxu0
    %4398 = vmatprep.mubr.f32.mxu0 0.0
    %4399 = vmatmul.mubr.f32.gmra.mrb[0].mxu0 %v1035
    %v4400 = vpop.f32.mrb[0].mxu0
    %v4401 = vadd.f32 0.0, %v4400
    %v4402 = vpop.f32.mrb[0].mxu0
    %4403 = vdwg.mxu0
    %v4404 = vadd.f32 %v4176, %v4326
    %v4405 = vadd.f32 %v4181, %v4331
    %v4406 = vadd.f32 %v4186, %v4336
    %v4407 = vadd.f32 %v4191, %v4341
    %v4408 = vadd.f32 %v4196, %v4346
    %v4409 = vadd.f32 %v4201, %v4351
    %v4410 = vadd.f32 %v4206, %v4356
    %v4411 = vadd.f32 %v4211, %v4361
    %v4412 = vadd.f32 %v4216, %v4366
    %v4413 = vadd.f32 %v4221, %v4371
    %v4414 = vadd.f32 %v4226, %v4376
    %v4415 = vadd.f32 %v4231, %v4381
    %v4416 = vadd.f32 %v4236, %v4386
    %v4417 = vadd.f32 %v4241, %v4391
    %v4418 = vadd.f32 %v4246, %v4396
    %v4419 = vadd.f32 %v4251, %v4401
    %s4420 = scalar_lea.vmem %s4, 16
    %v4421 = vld [vmem:[%s4420] sm:$0x1]
    %v4423 = vlaneseq
    %v4424 = vshrl.u32 %v4423, 7
    %v4425 = vsub.s32 0, %v4424
    %v4426 = vrot.slane %v4421, %v4425
    %v4428 = vadd.f32 %v4404, %v4426
    %v4429 = vadd.f32 %v4405, %v4426
    %v4430 = vadd.f32 %v4406, %v4426
    %v4431 = vadd.f32 %v4407, %v4426
    %v4432 = vadd.f32 %v4408, %v4426
    %v4433 = vadd.f32 %v4409, %v4426
    %v4434 = vadd.f32 %v4410, %v4426
    %v4435 = vadd.f32 %v4411, %v4426
    %v4436 = vadd.f32 %v4412, %v4426
    %v4437 = vadd.f32 %v4413, %v4426
    %v4438 = vadd.f32 %v4414, %v4426
    %v4439 = vadd.f32 %v4415, %v4426
    %v4440 = vadd.f32 %v4416, %v4426
    %v4441 = vadd.f32 %v4417, %v4426
    %v4442 = vadd.f32 %v4418, %v4426
    %v4443 = vadd.f32 %v4419, %v4426
    %v4444 = vxor.u32 %v4428, 2147483648
    %v4445 = vxor.u32 %v4429, 2147483648
    %v4446 = vxor.u32 %v4430, 2147483648
    %v4447 = vxor.u32 %v4431, 2147483648
    %v4448 = vxor.u32 %v4432, 2147483648
    %v4449 = vxor.u32 %v4433, 2147483648
    %v4450 = vxor.u32 %v4434, 2147483648
    %v4451 = vxor.u32 %v4435, 2147483648
    %v4452 = vxor.u32 %v4436, 2147483648
    %v4453 = vxor.u32 %v4437, 2147483648
    %v4454 = vxor.u32 %v4438, 2147483648
    %v4455 = vxor.u32 %v4439, 2147483648
    %v4456 = vxor.u32 %v4440, 2147483648
    %v4457 = vxor.u32 %v4441, 2147483648
    %v4458 = vxor.u32 %v4442, 2147483648
    %v4459 = vxor.u32 %v4443, 2147483648
    %v4460 = vmul.f32 %v4444, 1.442695
    %v4461 = vpow.pop %v4460
    %v4462 = vmul.f32 %v4445, 1.442695
    %v4463 = vpow.pop %v4462
    %v4464 = vmul.f32 %v4446, 1.442695
    %v4465 = vpow.pop %v4464
    %v4466 = vmul.f32 %v4447, 1.442695
    %v4467 = vpow.pop %v4466
    %v4468 = vmul.f32 %v4448, 1.442695
    %v4469 = vpow.pop %v4468
    %v4470 = vmul.f32 %v4449, 1.442695
    %v4471 = vpow.pop %v4470
    %v4472 = vmul.f32 %v4450, 1.442695
    %v4473 = vpow.pop %v4472
    %v4474 = vmul.f32 %v4451, 1.442695
    %v4475 = vpow.pop %v4474
    %v4476 = vmul.f32 %v4452, 1.442695
    %v4477 = vpow.pop %v4476
    %v4478 = vmul.f32 %v4453, 1.442695
    %v4479 = vpow.pop %v4478
    %v4480 = vmul.f32 %v4454, 1.442695
    %v4481 = vpow.pop %v4480
    %v4482 = vmul.f32 %v4455, 1.442695
    %v4483 = vpow.pop %v4482
    %v4484 = vmul.f32 %v4456, 1.442695
    %v4485 = vpow.pop %v4484
    %v4486 = vmul.f32 %v4457, 1.442695
    %v4487 = vpow.pop %v4486
    %v4488 = vmul.f32 %v4458, 1.442695
    %v4489 = vpow.pop %v4488
    %v4490 = vmul.f32 %v4459, 1.442695
    %v4491 = vpow.pop %v4490
    %v4492 = vadd.f32 %v4461, 1.0
    %v4493 = vadd.f32 %v4463, 1.0
    %v4494 = vadd.f32 %v4465, 1.0
    %v4495 = vadd.f32 %v4467, 1.0
    %v4496 = vadd.f32 %v4469, 1.0
    %v4497 = vadd.f32 %v4471, 1.0
    %v4498 = vadd.f32 %v4473, 1.0
    %v4499 = vadd.f32 %v4475, 1.0
    %v4500 = vadd.f32 %v4477, 1.0
    %v4501 = vadd.f32 %v4479, 1.0
    %v4502 = vadd.f32 %v4481, 1.0
    %v4503 = vadd.f32 %v4483, 1.0
    %v4504 = vadd.f32 %v4485, 1.0
    %v4505 = vadd.f32 %v4487, 1.0
    %v4506 = vadd.f32 %v4489, 1.0
    %v4507 = vadd.f32 %v4491, 1.0
    %v4508 = vrcp.pop %v4492
    %v4509 = vmul.f32 1.0, %v4508
    %v4510 = vrcp.pop %v4493
    %v4511 = vmul.f32 1.0, %v4510
    %v4512 = vrcp.pop %v4494
    %v4513 = vmul.f32 1.0, %v4512
    %v4514 = vrcp.pop %v4495
    %v4515 = vmul.f32 1.0, %v4514
    %v4516 = vrcp.pop %v4496
    %v4517 = vmul.f32 1.0, %v4516
    %v4518 = vrcp.pop %v4497
    %v4519 = vmul.f32 1.0, %v4518
    %v4520 = vrcp.pop %v4498
    %v4521 = vmul.f32 1.0, %v4520
    %v4522 = vrcp.pop %v4499
    %v4523 = vmul.f32 1.0, %v4522
    %v4524 = vrcp.pop %v4500
    %v4525 = vmul.f32 1.0, %v4524
    %v4526 = vrcp.pop %v4501
    %v4527 = vmul.f32 1.0, %v4526
    %v4528 = vrcp.pop %v4502
    %v4529 = vmul.f32 1.0, %v4528
    %v4530 = vrcp.pop %v4503
    %v4531 = vmul.f32 1.0, %v4530
    %v4532 = vrcp.pop %v4504
    %v4533 = vmul.f32 1.0, %v4532
    %v4534 = vrcp.pop %v4505
    %v4535 = vmul.f32 1.0, %v4534
    %v4536 = vrcp.pop %v4506
    %v4537 = vmul.f32 1.0, %v4536
    %v4538 = vrcp.pop %v4507
    %v4539 = vmul.f32 1.0, %v4538
    %v4540 = vmul.f32 %v4428, %v4509
    %v4541 = vmul.f32 %v4429, %v4511
    %v4542 = vmul.f32 %v4430, %v4513
    %v4543 = vmul.f32 %v4431, %v4515
    %v4544 = vmul.f32 %v4432, %v4517
    %v4545 = vmul.f32 %v4433, %v4519
    %v4546 = vmul.f32 %v4434, %v4521
    %v4547 = vmul.f32 %v4435, %v4523
    %v4548 = vmul.f32 %v4436, %v4525
    %v4549 = vmul.f32 %v4437, %v4527
    %v4550 = vmul.f32 %v4438, %v4529
    %v4551 = vmul.f32 %v4439, %v4531
    %v4552 = vmul.f32 %v4440, %v4533
    %v4553 = vmul.f32 %v4441, %v4535
    %v4554 = vmul.f32 %v4442, %v4537
    %v4555 = vmul.f32 %v4443, %v4539
    %s4556 = scalar_lea.vmem [#allocation2], 896
    %v4557 = vld [vmem:[%s4556] sm:$0xff]
    %v4558 = vld [vmem:[%s4556 + $0x8] sm:$0xff]
    %v4559 = vld [vmem:[%s4556 + $0x10] sm:$0xff]
    %v4560 = vld [vmem:[%s4556 + $0x18] sm:$0xff]
    %s4561 = scalar_lea.vmem %s4, 18
    %v4562 = vld [vmem:[%s4561] sm:$0x1]
    %v4564 = vlaneseq
    %v4565 = vshrl.u32 %v4564, 7
    %v4566 = vsub.s32 0, %v4565
    %v4567 = vrot.slane %v4562, %v4566
    %v4570 = vsel %vm660, %v4540, 0
    %v4573 = vsel %vm660, %v4541, 0
    %v4576 = vsel %vm660, %v4542, 0
    %v4579 = vsel %vm660, %v4543, 0
    %v4582 = vsel %vm660, %v4544, 0
    %v4585 = vsel %vm660, %v4545, 0
    %v4588 = vsel %vm660, %v4546, 0
    %v4591 = vsel %vm660, %v4547, 0
    %v4594 = vsel %vm660, %v4548, 0
    %v4597 = vsel %vm660, %v4549, 0
    %v4600 = vsel %vm660, %v4550, 0
    %v4603 = vsel %vm660, %v4551, 0
    %v4606 = vsel %vm660, %v4552, 0
    %v4609 = vsel %vm660, %v4553, 0
    %v4612 = vsel %vm660, %v4554, 0
    %v4615 = vsel %vm660, %v4555, 0
    %4617 = vmatprep.subr.mxu0 0.0
    %4618 = vmatpush1.msra.mxu0 %v4557
    %4619 = vmatprep.subr.mxu0 0.0
    %4620 = vmatpush1.msra.mxu0 %v4558
    %4621 = vmatprep.subr.mxu0 0.0
    %4622 = vmatpush1.msra.mxu0 %v4559
    %4623 = vmatprep.subr.mxu0 0.0
    %4624 = vmatpush1.msra.mxu0 %v4560
    %4625 = vmatprep.subr.mxu0 0.0
    %4626 = vmatpush1.msra.mxu0 0.0
    %4627 = vmatprep.subr.mxu0 0.0
    %4628 = vmatpush1.msra.mxu0 0.0
    %4629 = vmatprep.subr.mxu0 0.0
    %4630 = vmatpush1.msra.mxu0 0.0
    %4631 = vmatprep.subr.mxu0 0.0
    %4632 = vmatpush1.msra.mxu0 0.0
    %4633 = vmatprep.subr.mxu0 0.0
    %4634 = vmatpush1.msra.mxu0 0.0
    %4635 = vmatprep.subr.mxu0 0.0
    %4636 = vmatpush1.msra.mxu0 0.0
    %4637 = vmatprep.subr.mxu0 0.0
    %4638 = vmatpush1.msra.mxu0 0.0
    %4639 = vmatprep.subr.mxu0 0.0
    %4640 = vmatpush1.msra.mxu0 0.0
    %4641 = vmatprep.subr.mxu0 0.0
    %4642 = vmatpush1.msra.mxu0 0.0
    %4643 = vmatprep.subr.mxu0 0.0
    %4644 = vmatpush1.msra.mxu0 0.0
    %4645 = vmatprep.subr.mxu0 0.0
    %4646 = vmatpush1.msra.mxu0 0.0
    %4647 = vmatprep.subr.mxu0 0.0
    %4648 = vmatpush1.msra.mxu0 0.0
    %4649 = vmatprep.subr.mxu0 0.0
    %4650 = vmatpush1.msra.mxu0 0.0
    %4651 = vmatprep.subr.mxu0 0.0
    %4652 = vmatpush1.msra.mxu0 0.0
    %4653 = vmatprep.subr.mxu0 0.0
    %4654 = vmatpush1.msra.mxu0 0.0
    %4655 = vmatprep.subr.mxu0 0.0
    %4656 = vmatpush1.msra.mxu0 0.0
    %4657 = vmatprep.subr.mxu0 0.0
    %4658 = vmatpush1.msra.mxu0 0.0
    %4659 = vmatprep.subr.mxu0 0.0
    %4660 = vmatpush1.msra.mxu0 0.0
    %4661 = vmatprep.subr.mxu0 0.0
    %4662 = vmatpush1.msra.mxu0 0.0
    %4663 = vmatprep.subr.mxu0 0.0
    %4664 = vmatpush1.msra.mxu0 0.0
    %4665 = vmatprep.subr.mxu0 0.0
    %4666 = vmatpush1.msra.mxu0 0.0
    %4667 = vmatprep.subr.mxu0 0.0
    %4668 = vmatpush1.msra.mxu0 0.0
    %4669 = vmatprep.subr.mxu0 0.0
    %4670 = vmatpush1.msra.mxu0 0.0
    %4671 = vmatprep.subr.mxu0 0.0
    %4672 = vmatpush1.msra.mxu0 0.0
    %4673 = vmatprep.subr.mxu0 0.0
    %4674 = vmatpush1.msra.mxu0 0.0
    %4675 = vmatprep.subr.mxu0 0.0
    %4676 = vmatpush1.msra.mxu0 0.0
    %4677 = vmatprep.subr.mxu0 0.0
    %4678 = vmatpush1.msra.mxu0 0.0
    %4679 = vmatprep.subr.mxu0 0.0
    %4680 = vmatpush1.msra.mxu0 0.0
    %4681 = vmatprep.mubr.f32.mxu0 0.0
    %4682 = vmatmul.mubr.f32.gmra.mrb[0].mxu0 %v4570
    %v4683 = vpop.f32.mrb[0].mxu0
    %v4684 = vadd.f32 %v4567, %v4683
    %v4685 = vpop.f32.mrb[0].mxu0
    %4686 = vmatprep.mubr.f32.mxu0 0.0
    %4687 = vmatmul.mubr.f32.gmra.mrb[0].mxu0 %v4573
    %v4688 = vpop.f32.mrb[0].mxu0
    %v4689 = vadd.f32 %v4567, %v4688
    %v4690 = vpop.f32.mrb[0].mxu0
    %4691 = vmatprep.mubr.f32.mxu0 0.0
    %4692 = vmatmul.mubr.f32.gmra.mrb[0].mxu0 %v4576
    %v4693 = vpop.f32.mrb[0].mxu0
    %v4694 = vadd.f32 %v4567, %v4693
    %v4695 = vpop.f32.mrb[0].mxu0
    %4696 = vmatprep.mubr.f32.mxu0 0.0
    %4697 = vmatmul.mubr.f32.gmra.mrb[0].mxu0 %v4579
    %v4698 = vpop.f32.mrb[0].mxu0
    %v4699 = vadd.f32 %v4567, %v4698
    %v4700 = vpop.f32.mrb[0].mxu0
    %4701 = vmatprep.mubr.f32.mxu0 0.0
    %4702 = vmatmul.mubr.f32.gmra.mrb[0].mxu0 %v4582
    %v4703 = vpop.f32.mrb[0].mxu0
    %v4704 = vadd.f32 %v4567, %v4703
    %v4705 = vpop.f32.mrb[0].mxu0
    %4706 = vmatprep.mubr.f32.mxu0 0.0
    %4707 = vmatmul.mubr.f32.gmra.mrb[0].mxu0 %v4585
    %v4708 = vpop.f32.mrb[0].mxu0
    %v4709 = vadd.f32 %v4567, %v4708
    %v4710 = vpop.f32.mrb[0].mxu0
    %4711 = vmatprep.mubr.f32.mxu0 0.0
    %4712 = vmatmul.mubr.f32.gmra.mrb[0].mxu0 %v4588
    %v4713 = vpop.f32.mrb[0].mxu0
    %v4714 = vadd.f32 %v4567, %v4713
    %v4715 = vpop.f32.mrb[0].mxu0
    %4716 = vmatprep.mubr.f32.mxu0 0.0
    %4717 = vmatmul.mubr.f32.gmra.mrb[0].mxu0 %v4591
    %v4718 = vpop.f32.mrb[0].mxu0
    %v4719 = vadd.f32 %v4567, %v4718
    %v4720 = vpop.f32.mrb[0].mxu0
    %4721 = vmatprep.mubr.f32.mxu0 0.0
    %4722 = vmatmul.mubr.f32.gmra.mrb[0].mxu0 %v4594
    %v4723 = vpop.f32.mrb[0].mxu0
    %v4724 = vadd.f32 %v4567, %v4723
    %v4725 = vpop.f32.mrb[0].mxu0
    %4726 = vmatprep.mubr.f32.mxu0 0.0
    %4727 = vmatmul.mubr.f32.gmra.mrb[0].mxu0 %v4597
    %v4728 = vpop.f32.mrb[0].mxu0
    %v4729 = vadd.f32 %v4567, %v4728
    %v4730 = vpop.f32.mrb[0].mxu0
    %4731 = vmatprep.mubr.f32.mxu0 0.0
    %4732 = vmatmul.mubr.f32.gmra.mrb[0].mxu0 %v4600
    %v4733 = vpop.f32.mrb[0].mxu0
    %v4734 = vadd.f32 %v4567, %v4733
    %v4735 = vpop.f32.mrb[0].mxu0
    %4736 = vmatprep.mubr.f32.mxu0 0.0
    %4737 = vmatmul.mubr.f32.gmra.mrb[0].mxu0 %v4603
    %v4738 = vpop.f32.mrb[0].mxu0
    %v4739 = vadd.f32 %v4567, %v4738
    %v4740 = vpop.f32.mrb[0].mxu0
    %4741 = vmatprep.mubr.f32.mxu0 0.0
    %4742 = vmatmul.mubr.f32.gmra.mrb[0].mxu0 %v4606
    %v4743 = vpop.f32.mrb[0].mxu0
    %v4744 = vadd.f32 %v4567, %v4743
    %v4745 = vpop.f32.mrb[0].mxu0
    %4746 = vmatprep.mubr.f32.mxu0 0.0
    %4747 = vmatmul.mubr.f32.gmra.mrb[0].mxu0 %v4609
    %v4748 = vpop.f32.mrb[0].mxu0
    %v4749 = vadd.f32 %v4567, %v4748
    %v4750 = vpop.f32.mrb[0].mxu0
    %4751 = vmatprep.mubr.f32.mxu0 0.0
    %4752 = vmatmul.mubr.f32.gmra.mrb[0].mxu0 %v4612
    %v4753 = vpop.f32.mrb[0].mxu0
    %v4754 = vadd.f32 %v4567, %v4753
    %v4755 = vpop.f32.mrb[0].mxu0
    %4756 = vmatprep.mubr.f32.mxu0 0.0
    %4757 = vmatmul.mubr.f32.gmra.mrb[0].mxu0 %v4615
    %v4758 = vpop.f32.mrb[0].mxu0
    %v4759 = vadd.f32 %v4567, %v4758
    %v4760 = vpop.f32.mrb[0].mxu0
    %4761 = vdwg.mxu0
    %v4762 = vxor.u32 %v4684, 2147483648
    %v4763 = vxor.u32 %v4689, 2147483648
    %v4764 = vxor.u32 %v4694, 2147483648
    %v4765 = vxor.u32 %v4699, 2147483648
    %v4766 = vxor.u32 %v4704, 2147483648
    %v4767 = vxor.u32 %v4709, 2147483648
    %v4768 = vxor.u32 %v4714, 2147483648
    %v4769 = vxor.u32 %v4719, 2147483648
    %v4770 = vxor.u32 %v4724, 2147483648
    %v4771 = vxor.u32 %v4729, 2147483648
    %v4772 = vxor.u32 %v4734, 2147483648
    %v4773 = vxor.u32 %v4739, 2147483648
    %v4774 = vxor.u32 %v4744, 2147483648
    %v4775 = vxor.u32 %v4749, 2147483648
    %v4776 = vxor.u32 %v4754, 2147483648
    %v4777 = vxor.u32 %v4759, 2147483648
    %v4778 = vmul.f32 %v4762, 1.442695
    %v4779 = vpow.pop %v4778
    %v4780 = vmul.f32 %v4763, 1.442695
    %v4781 = vpow.pop %v4780
    %v4782 = vmul.f32 %v4764, 1.442695
    %v4783 = vpow.pop %v4782
    %v4784 = vmul.f32 %v4765, 1.442695
    %v4785 = vpow.pop %v4784
    %v4786 = vmul.f32 %v4766, 1.442695
    %v4787 = vpow.pop %v4786
    %v4788 = vmul.f32 %v4767, 1.442695
    %v4789 = vpow.pop %v4788
    %v4790 = vmul.f32 %v4768, 1.442695
    %v4791 = vpow.pop %v4790
    %v4792 = vmul.f32 %v4769, 1.442695
    %v4793 = vpow.pop %v4792
    %v4794 = vmul.f32 %v4770, 1.442695
    %v4795 = vpow.pop %v4794
    %v4796 = vmul.f32 %v4771, 1.442695
    %v4797 = vpow.pop %v4796
    %v4798 = vmul.f32 %v4772, 1.442695
    %v4799 = vpow.pop %v4798
    %v4800 = vmul.f32 %v4773, 1.442695
    %v4801 = vpow.pop %v4800
    %v4802 = vmul.f32 %v4774, 1.442695
    %v4803 = vpow.pop %v4802
    %v4804 = vmul.f32 %v4775, 1.442695
    %v4805 = vpow.pop %v4804
    %v4806 = vmul.f32 %v4776, 1.442695
    %v4807 = vpow.pop %v4806
    %v4808 = vmul.f32 %v4777, 1.442695
    %v4809 = vpow.pop %v4808
    %v4810 = vadd.f32 %v4779, 1.0
    %v4811 = vadd.f32 %v4781, 1.0
    %v4812 = vadd.f32 %v4783, 1.0
    %v4813 = vadd.f32 %v4785, 1.0
    %v4814 = vadd.f32 %v4787, 1.0
    %v4815 = vadd.f32 %v4789, 1.0
    %v4816 = vadd.f32 %v4791, 1.0
    %v4817 = vadd.f32 %v4793, 1.0
    %v4818 = vadd.f32 %v4795, 1.0
    %v4819 = vadd.f32 %v4797, 1.0
    %v4820 = vadd.f32 %v4799, 1.0
    %v4821 = vadd.f32 %v4801, 1.0
    %v4822 = vadd.f32 %v4803, 1.0
    %v4823 = vadd.f32 %v4805, 1.0
    %v4824 = vadd.f32 %v4807, 1.0
    %v4825 = vadd.f32 %v4809, 1.0
    %v4826 = vrcp.pop %v4810
    %v4827 = vmul.f32 1.0, %v4826
    %v4828 = vrcp.pop %v4811
    %v4829 = vmul.f32 1.0, %v4828
    %v4830 = vrcp.pop %v4812
    %v4831 = vmul.f32 1.0, %v4830
    %v4832 = vrcp.pop %v4813
    %v4833 = vmul.f32 1.0, %v4832
    %v4834 = vrcp.pop %v4814
    %v4835 = vmul.f32 1.0, %v4834
    %v4836 = vrcp.pop %v4815
    %v4837 = vmul.f32 1.0, %v4836
    %v4838 = vrcp.pop %v4816
    %v4839 = vmul.f32 1.0, %v4838
    %v4840 = vrcp.pop %v4817
    %v4841 = vmul.f32 1.0, %v4840
    %v4842 = vrcp.pop %v4818
    %v4843 = vmul.f32 1.0, %v4842
    %v4844 = vrcp.pop %v4819
    %v4845 = vmul.f32 1.0, %v4844
    %v4846 = vrcp.pop %v4820
    %v4847 = vmul.f32 1.0, %v4846
    %v4848 = vrcp.pop %v4821
    %v4849 = vmul.f32 1.0, %v4848
    %v4850 = vrcp.pop %v4822
    %v4851 = vmul.f32 1.0, %v4850
    %v4852 = vrcp.pop %v4823
    %v4853 = vmul.f32 1.0, %v4852
    %v4854 = vrcp.pop %v4824
    %v4855 = vmul.f32 1.0, %v4854
    %v4856 = vrcp.pop %v4825
    %v4857 = vmul.f32 1.0, %v4856
    %v4858 = vmul.f32 %v4684, %v4827
    %v4859 = vmul.f32 %v4689, %v4829
    %v4860 = vmul.f32 %v4694, %v4831
    %v4861 = vmul.f32 %v4699, %v4833
    %v4862 = vmul.f32 %v4704, %v4835
    %v4863 = vmul.f32 %v4709, %v4837
    %v4864 = vmul.f32 %v4714, %v4839
    %v4865 = vmul.f32 %v4719, %v4841
    %v4866 = vmul.f32 %v4724, %v4843
    %v4867 = vmul.f32 %v4729, %v4845
    %v4868 = vmul.f32 %v4734, %v4847
    %v4869 = vmul.f32 %v4739, %v4849
    %v4870 = vmul.f32 %v4744, %v4851
    %v4871 = vmul.f32 %v4749, %v4853
    %v4872 = vmul.f32 %v4754, %v4855
    %v4873 = vmul.f32 %v4759, %v4857
    %v4874 = vld [vmem:[%s7] sm:$0xff]
    %v4875 = vld [vmem:[%s7 + $0x8] sm:$0xff]
    %v4876 = vld [vmem:[%s7 + $0x10] sm:$0xff]
    %v4877 = vld [vmem:[%s7 + $0x18] sm:$0xff]
    %v4879 = vsel %vm660, %v4858, 0
    %v4882 = vsel %vm660, %v4859, 0
    %v4885 = vsel %vm660, %v4860, 0
    %v4888 = vsel %vm660, %v4861, 0
    %v4891 = vsel %vm660, %v4862, 0
    %v4894 = vsel %vm660, %v4863, 0
    %v4897 = vsel %vm660, %v4864, 0
    %v4900 = vsel %vm660, %v4865, 0
    %v4903 = vsel %vm660, %v4866, 0
    %v4906 = vsel %vm660, %v4867, 0
    %v4909 = vsel %vm660, %v4868, 0
    %v4912 = vsel %vm660, %v4869, 0
    %v4915 = vsel %vm660, %v4870, 0
    %v4918 = vsel %vm660, %v4871, 0
    %v4921 = vsel %vm660, %v4872, 0
    %v4924 = vsel %vm660, %v4873, 0
    %4926 = vmatprep.subr.mxu0 0.0
    %4927 = vmatpush1.msra.mxu0 %v4874
    %4928 = vmatprep.subr.mxu0 0.0
    %4929 = vmatpush1.msra.mxu0 %v4875
    %4930 = vmatprep.subr.mxu0 0.0
    %4931 = vmatpush1.msra.mxu0 %v4876
    %4932 = vmatprep.subr.mxu0 0.0
    %4933 = vmatpush1.msra.mxu0 %v4877
    %4934 = vmatprep.subr.mxu0 0.0
    %4935 = vmatpush1.msra.mxu0 0.0
    %4936 = vmatprep.subr.mxu0 0.0
    %4937 = vmatpush1.msra.mxu0 0.0
    %4938 = vmatprep.subr.mxu0 0.0
    %4939 = vmatpush1.msra.mxu0 0.0
    %4940 = vmatprep.subr.mxu0 0.0
    %4941 = vmatpush1.msra.mxu0 0.0
    %4942 = vmatprep.subr.mxu0 0.0
    %4943 = vmatpush1.msra.mxu0 0.0
    %4944 = vmatprep.subr.mxu0 0.0
    %4945 = vmatpush1.msra.mxu0 0.0
    %4946 = vmatprep.subr.mxu0 0.0
    %4947 = vmatpush1.msra.mxu0 0.0
    %4948 = vmatprep.subr.mxu0 0.0
    %4949 = vmatpush1.msra.mxu0 0.0
    %4950 = vmatprep.subr.mxu0 0.0
    %4951 = vmatpush1.msra.mxu0 0.0
    %4952 = vmatprep.subr.mxu0 0.0
    %4953 = vmatpush1.msra.mxu0 0.0
    %4954 = vmatprep.subr.mxu0 0.0
    %4955 = vmatpush1.msra.mxu0 0.0
    %4956 = vmatprep.subr.mxu0 0.0
    %4957 = vmatpush1.msra.mxu0 0.0
    %4958 = vmatprep.subr.mxu0 0.0
    %4959 = vmatpush1.msra.mxu0 0.0
    %4960 = vmatprep.subr.mxu0 0.0
    %4961 = vmatpush1.msra.mxu0 0.0
    %4962 = vmatprep.subr.mxu0 0.0
    %4963 = vmatpush1.msra.mxu0 0.0
    %4964 = vmatprep.subr.mxu0 0.0
    %4965 = vmatpush1.msra.mxu0 0.0
    %4966 = vmatprep.subr.mxu0 0.0
    %4967 = vmatpush1.msra.mxu0 0.0
    %4968 = vmatprep.subr.mxu0 0.0
    %4969 = vmatpush1.msra.mxu0 0.0
    %4970 = vmatprep.subr.mxu0 0.0
    %4971 = vmatpush1.msra.mxu0 0.0
    %4972 = vmatprep.subr.mxu0 0.0
    %4973 = vmatpush1.msra.mxu0 0.0
    %4974 = vmatprep.subr.mxu0 0.0
    %4975 = vmatpush1.msra.mxu0 0.0
    %4976 = vmatprep.subr.mxu0 0.0
    %4977 = vmatpush1.msra.mxu0 0.0
    %4978 = vmatprep.subr.mxu0 0.0
    %4979 = vmatpush1.msra.mxu0 0.0
    %4980 = vmatprep.subr.mxu0 0.0
    %4981 = vmatpush1.msra.mxu0 0.0
    %4982 = vmatprep.subr.mxu0 0.0
    %4983 = vmatpush1.msra.mxu0 0.0
    %4984 = vmatprep.subr.mxu0 0.0
    %4985 = vmatpush1.msra.mxu0 0.0
    %4986 = vmatprep.subr.mxu0 0.0
    %4987 = vmatpush1.msra.mxu0 0.0
    %4988 = vmatprep.subr.mxu0 0.0
    %4989 = vmatpush1.msra.mxu0 0.0
    %4990 = vmatprep.mubr.f32.mxu0 0.0
    %4991 = vmatmul.mubr.f32.gmra.mrb[0].mxu0 %v4879
    %v4992 = vpop.f32.mrb[0].mxu0
    %v4993 = vadd.f32 0.0, %v4992
    %v4994 = vpop.f32.mrb[0].mxu0
    %4995 = vmatprep.mubr.f32.mxu0 0.0
    %4996 = vmatmul.mubr.f32.gmra.mrb[0].mxu0 %v4882
    %v4997 = vpop.f32.mrb[0].mxu0
    %v4998 = vadd.f32 0.0, %v4997
    %v4999 = vpop.f32.mrb[0].mxu0
    %5000 = vmatprep.mubr.f32.mxu0 0.0
    %5001 = vmatmul.mubr.f32.gmra.mrb[0].mxu0 %v4885
    %v5002 = vpop.f32.mrb[0].mxu0
    %v5003 = vadd.f32 0.0, %v5002
    %v5004 = vpop.f32.mrb[0].mxu0
    %5005 = vmatprep.mubr.f32.mxu0 0.0
    %5006 = vmatmul.mubr.f32.gmra.mrb[0].mxu0 %v4888
    %v5007 = vpop.f32.mrb[0].mxu0
    %v5008 = vadd.f32 0.0, %v5007
    %v5009 = vpop.f32.mrb[0].mxu0
    %5010 = vmatprep.mubr.f32.mxu0 0.0
    %5011 = vmatmul.mubr.f32.gmra.mrb[0].mxu0 %v4891
    %v5012 = vpop.f32.mrb[0].mxu0
    %v5013 = vadd.f32 0.0, %v5012
    %v5014 = vpop.f32.mrb[0].mxu0
    %5015 = vmatprep.mubr.f32.mxu0 0.0
    %5016 = vmatmul.mubr.f32.gmra.mrb[0].mxu0 %v4894
    %v5017 = vpop.f32.mrb[0].mxu0
    %v5018 = vadd.f32 0.0, %v5017
    %v5019 = vpop.f32.mrb[0].mxu0
    %5020 = vmatprep.mubr.f32.mxu0 0.0
    %5021 = vmatmul.mubr.f32.gmra.mrb[0].mxu0 %v4897
    %v5022 = vpop.f32.mrb[0].mxu0
    %v5023 = vadd.f32 0.0, %v5022
    %v5024 = vpop.f32.mrb[0].mxu0
    %5025 = vmatprep.mubr.f32.mxu0 0.0
    %5026 = vmatmul.mubr.f32.gmra.mrb[0].mxu0 %v4900
    %v5027 = vpop.f32.mrb[0].mxu0
    %v5028 = vadd.f32 0.0, %v5027
    %v5029 = vpop.f32.mrb[0].mxu0
    %5030 = vmatprep.mubr.f32.mxu0 0.0
    %5031 = vmatmul.mubr.f32.gmra.mrb[0].mxu0 %v4903
    %v5032 = vpop.f32.mrb[0].mxu0
    %v5033 = vadd.f32 0.0, %v5032
    %v5034 = vpop.f32.mrb[0].mxu0
    %5035 = vmatprep.mubr.f32.mxu0 0.0
    %5036 = vmatmul.mubr.f32.gmra.mrb[0].mxu0 %v4906
    %v5037 = vpop.f32.mrb[0].mxu0
    %v5038 = vadd.f32 0.0, %v5037
    %v5039 = vpop.f32.mrb[0].mxu0
    %5040 = vmatprep.mubr.f32.mxu0 0.0
    %5041 = vmatmul.mubr.f32.gmra.mrb[0].mxu0 %v4909
    %v5042 = vpop.f32.mrb[0].mxu0
    %v5043 = vadd.f32 0.0, %v5042
    %v5044 = vpop.f32.mrb[0].mxu0
    %5045 = vmatprep.mubr.f32.mxu0 0.0
    %5046 = vmatmul.mubr.f32.gmra.mrb[0].mxu0 %v4912
    %v5047 = vpop.f32.mrb[0].mxu0
    %v5048 = vadd.f32 0.0, %v5047
    %v5049 = vpop.f32.mrb[0].mxu0
    %5050 = vmatprep.mubr.f32.mxu0 0.0
    %5051 = vmatmul.mubr.f32.gmra.mrb[0].mxu0 %v4915
    %v5052 = vpop.f32.mrb[0].mxu0
    %v5053 = vadd.f32 0.0, %v5052
    %v5054 = vpop.f32.mrb[0].mxu0
    %5055 = vmatprep.mubr.f32.mxu0 0.0
    %5056 = vmatmul.mubr.f32.gmra.mrb[0].mxu0 %v4918
    %v5057 = vpop.f32.mrb[0].mxu0
    %v5058 = vadd.f32 0.0, %v5057
    %v5059 = vpop.f32.mrb[0].mxu0
    %5060 = vmatprep.mubr.f32.mxu0 0.0
    %5061 = vmatmul.mubr.f32.gmra.mrb[0].mxu0 %v4921
    %v5062 = vpop.f32.mrb[0].mxu0
    %v5063 = vadd.f32 0.0, %v5062
    %v5064 = vpop.f32.mrb[0].mxu0
    %5065 = vmatprep.mubr.f32.mxu0 0.0
    %5066 = vmatmul.mubr.f32.gmra.mrb[0].mxu0 %v4924
    %v5067 = vpop.f32.mrb[0].mxu0
    %v5068 = vadd.f32 0.0, %v5067
    %v5069 = vpop.f32.mrb[0].mxu0
    %5070 = vdwg.mxu0
    %5072 = vset.pattern.permute.xlu0 0
    %5073 = vperm.xlu0 %5072, %v4993
    %v5074 = vpop.permute.xlu0 %5073
    %5077 = vset.pattern.permute.xlu0 0
    %5078 = vperm.xlu0 %5077, %v4998
    %v5079 = vpop.permute.xlu0 %5078
    %5082 = vset.pattern.permute.xlu0 0
    %5083 = vperm.xlu0 %5082, %v5003
    %v5084 = vpop.permute.xlu0 %5083
    %5087 = vset.pattern.permute.xlu0 0
    %5088 = vperm.xlu0 %5087, %v5008
    %v5089 = vpop.permute.xlu0 %5088
    %5092 = vset.pattern.permute.xlu0 0
    %5093 = vperm.xlu0 %5092, %v5013
    %v5094 = vpop.permute.xlu0 %5093
    %5097 = vset.pattern.permute.xlu0 0
    %5098 = vperm.xlu0 %5097, %v5018
    %v5099 = vpop.permute.xlu0 %5098
    %5102 = vset.pattern.permute.xlu0 0
    %5103 = vperm.xlu0 %5102, %v5023
    %v5104 = vpop.permute.xlu0 %5103
    %5107 = vset.pattern.permute.xlu0 0
    %5108 = vperm.xlu0 %5107, %v5028
    %v5109 = vpop.permute.xlu0 %5108
    %5112 = vset.pattern.permute.xlu0 0
    %5113 = vperm.xlu0 %5112, %v5033
    %v5114 = vpop.permute.xlu0 %5113
    %5117 = vset.pattern.permute.xlu0 0
    %5118 = vperm.xlu0 %5117, %v5038
    %v5119 = vpop.permute.xlu0 %5118
    %5122 = vset.pattern.permute.xlu0 0
    %5123 = vperm.xlu0 %5122, %v5043
    %v5124 = vpop.permute.xlu0 %5123
    %5127 = vset.pattern.permute.xlu0 0
    %5128 = vperm.xlu0 %5127, %v5048
    %v5129 = vpop.permute.xlu0 %5128
    %5132 = vset.pattern.permute.xlu0 0
    %5133 = vperm.xlu0 %5132, %v5053
    %v5134 = vpop.permute.xlu0 %5133
    %5137 = vset.pattern.permute.xlu0 0
    %5138 = vperm.xlu0 %5137, %v5058
    %v5139 = vpop.permute.xlu0 %5138
    %5142 = vset.pattern.permute.xlu0 0
    %5143 = vperm.xlu0 %5142, %v5063
    %v5144 = vpop.permute.xlu0 %5143
    %5147 = vset.pattern.permute.xlu0 0
    %5148 = vperm.xlu0 %5147, %v5068
    %v5149 = vpop.permute.xlu0 %5148
    %v5151 = vmul.f32 %v471, %v5074
    %v5152 = vmul.f32 %v472, %v5079
    %v5153 = vmul.f32 %v473, %v5084
    %v5154 = vmul.f32 %v474, %v5089
    %v5155 = vmul.f32 %v475, %v5094
    %v5156 = vmul.f32 %v476, %v5099
    %v5157 = vmul.f32 %v477, %v5104
    %v5158 = vmul.f32 %v478, %v5109
    %v5159 = vmul.f32 %v479, %v5114
    %v5160 = vmul.f32 %v480, %v5119
    %v5161 = vmul.f32 %v481, %v5124
    %v5162 = vmul.f32 %v482, %v5129
    %v5163 = vmul.f32 %v483, %v5134
    %v5164 = vmul.f32 %v484, %v5139
    %v5165 = vmul.f32 %v485, %v5144
    %v5166 = vmul.f32 %v486, %v5149
    %v5167 = vmul.f32 %v5151, %v1658
    %v5168 = vmul.f32 %v5152, %v1663
    %v5169 = vmul.f32 %v5153, %v1668
    %v5170 = vmul.f32 %v5154, %v1673
    %v5171 = vmul.f32 %v5155, %v1678
    %v5172 = vmul.f32 %v5156, %v1683
    %v5173 = vmul.f32 %v5157, %v1688
    %v5174 = vmul.f32 %v5158, %v1693
    %v5175 = vmul.f32 %v5159, %v1698
    %v5176 = vmul.f32 %v5160, %v1703
    %v5177 = vmul.f32 %v5161, %v1708
    %v5178 = vmul.f32 %v5162, %v1713
    %v5179 = vmul.f32 %v5163, %v1718
    %v5180 = vmul.f32 %v5164, %v1723
    %v5181 = vmul.f32 %v5165, %v1728
    %v5182 = vmul.f32 %v5166, %v1733
    %v5183 = vsel %vm293, %v5167, 0.0
    %v5184 = vrot.slane %v5183, 4
    %v5185 = vadd.f32 %v5183, %v5184
    %v5186 = vrot.slane %v5185, 2
    %v5187 = vadd.f32 %v5185, %v5186
    %v5188 = vrot.slane %v5187, 1
    %v5189 = vadd.f32 %v5187, %v5188
    %v5190 = vsel %vm293, %v5168, 0.0
    %v5191 = vrot.slane %v5190, 4
    %v5192 = vadd.f32 %v5190, %v5191
    %v5193 = vrot.slane %v5192, 2
    %v5194 = vadd.f32 %v5192, %v5193
    %v5195 = vrot.slane %v5194, 1
    %v5196 = vadd.f32 %v5194, %v5195
    %v5197 = vsel %vm293, %v5169, 0.0
    %v5198 = vrot.slane %v5197, 4
    %v5199 = vadd.f32 %v5197, %v5198
    %v5200 = vrot.slane %v5199, 2
    %v5201 = vadd.f32 %v5199, %v5200
    %v5202 = vrot.slane %v5201, 1
    %v5203 = vadd.f32 %v5201, %v5202
    %v5204 = vsel %vm293, %v5170, 0.0
    %v5205 = vrot.slane %v5204, 4
    %v5206 = vadd.f32 %v5204, %v5205
    %v5207 = vrot.slane %v5206, 2
    %v5208 = vadd.f32 %v5206, %v5207
    %v5209 = vrot.slane %v5208, 1
    %v5210 = vadd.f32 %v5208, %v5209
    %v5211 = vsel %vm293, %v5171, 0.0
    %v5212 = vrot.slane %v5211, 4
    %v5213 = vadd.f32 %v5211, %v5212
    %v5214 = vrot.slane %v5213, 2
    %v5215 = vadd.f32 %v5213, %v5214
    %v5216 = vrot.slane %v5215, 1
    %v5217 = vadd.f32 %v5215, %v5216
    %v5218 = vsel %vm293, %v5172, 0.0
    %v5219 = vrot.slane %v5218, 4
    %v5220 = vadd.f32 %v5218, %v5219
    %v5221 = vrot.slane %v5220, 2
    %v5222 = vadd.f32 %v5220, %v5221
    %v5223 = vrot.slane %v5222, 1
    %v5224 = vadd.f32 %v5222, %v5223
    %v5225 = vsel %vm293, %v5173, 0.0
    %v5226 = vrot.slane %v5225, 4
    %v5227 = vadd.f32 %v5225, %v5226
    %v5228 = vrot.slane %v5227, 2
    %v5229 = vadd.f32 %v5227, %v5228
    %v5230 = vrot.slane %v5229, 1
    %v5231 = vadd.f32 %v5229, %v5230
    %v5232 = vsel %vm293, %v5174, 0.0
    %v5233 = vrot.slane %v5232, 4
    %v5234 = vadd.f32 %v5232, %v5233
    %v5235 = vrot.slane %v5234, 2
    %v5236 = vadd.f32 %v5234, %v5235
    %v5237 = vrot.slane %v5236, 1
    %v5238 = vadd.f32 %v5236, %v5237
    %v5239 = vsel %vm293, %v5175, 0.0
    %v5240 = vrot.slane %v5239, 4
    %v5241 = vadd.f32 %v5239, %v5240
    %v5242 = vrot.slane %v5241, 2
    %v5243 = vadd.f32 %v5241, %v5242
    %v5244 = vrot.slane %v5243, 1
    %v5245 = vadd.f32 %v5243, %v5244
    %v5246 = vsel %vm293, %v5176, 0.0
    %v5247 = vrot.slane %v5246, 4
    %v5248 = vadd.f32 %v5246, %v5247
    %v5249 = vrot.slane %v5248, 2
    %v5250 = vadd.f32 %v5248, %v5249
    %v5251 = vrot.slane %v5250, 1
    %v5252 = vadd.f32 %v5250, %v5251
    %v5253 = vsel %vm293, %v5177, 0.0
    %v5254 = vrot.slane %v5253, 4
    %v5255 = vadd.f32 %v5253, %v5254
    %v5256 = vrot.slane %v5255, 2
    %v5257 = vadd.f32 %v5255, %v5256
    %v5258 = vrot.slane %v5257, 1
    %v5259 = vadd.f32 %v5257, %v5258
    %v5260 = vsel %vm293, %v5178, 0.0
    %v5261 = vrot.slane %v5260, 4
    %v5262 = vadd.f32 %v5260, %v5261
    %v5263 = vrot.slane %v5262, 2
    %v5264 = vadd.f32 %v5262, %v5263
    %v5265 = vrot.slane %v5264, 1
    %v5266 = vadd.f32 %v5264, %v5265
    %v5267 = vsel %vm293, %v5179, 0.0
    %v5268 = vrot.slane %v5267, 4
    %v5269 = vadd.f32 %v5267, %v5268
    %v5270 = vrot.slane %v5269, 2
    %v5271 = vadd.f32 %v5269, %v5270
    %v5272 = vrot.slane %v5271, 1
    %v5273 = vadd.f32 %v5271, %v5272
    %v5274 = vsel %vm293, %v5180, 0.0
    %v5275 = vrot.slane %v5274, 4
    %v5276 = vadd.f32 %v5274, %v5275
    %v5277 = vrot.slane %v5276, 2
    %v5278 = vadd.f32 %v5276, %v5277
    %v5279 = vrot.slane %v5278, 1
    %v5280 = vadd.f32 %v5278, %v5279
    %v5281 = vsel %vm293, %v5181, 0.0
    %v5282 = vrot.slane %v5281, 4
    %v5283 = vadd.f32 %v5281, %v5282
    %v5284 = vrot.slane %v5283, 2
    %v5285 = vadd.f32 %v5283, %v5284
    %v5286 = vrot.slane %v5285, 1
    %v5287 = vadd.f32 %v5285, %v5286
    %v5288 = vsel %vm293, %v5182, 0.0
    %v5289 = vrot.slane %v5288, 4
    %v5290 = vadd.f32 %v5288, %v5289
    %v5291 = vrot.slane %v5290, 2
    %v5292 = vadd.f32 %v5290, %v5291
    %v5293 = vrot.slane %v5292, 1
    %v5294 = vadd.f32 %v5292, %v5293
    %v5311 = vsel %vm1889, %v5196, %v5189
    %v5312 = vsel %vm1891, %v5203, %v5311
    %v5313 = vsel %vm1893, %v5210, %v5312
    %v5314 = vsel %vm1895, %v5217, %v5313
    %v5315 = vsel %vm1897, %v5224, %v5314
    %v5316 = vsel %vm1899, %v5231, %v5315
    %v5317 = vsel %vm1901, %v5238, %v5316
    %v5318 = vsel %vm1889, %v5252, %v5245
    %v5319 = vsel %vm1891, %v5259, %v5318
    %v5320 = vsel %vm1893, %v5266, %v5319
    %v5321 = vsel %vm1895, %v5273, %v5320
    %v5322 = vsel %vm1897, %v5280, %v5321
    %v5323 = vsel %vm1899, %v5287, %v5322
    %v5324 = vsel %vm1901, %v5294, %v5323
    %v5327 = vadd.f32 %v79, %v5317
    %v5328 = vadd.f32 %v80, %v5324
    %v5329 = vmul.f32 %v5327, %v72
    %v5330 = vmul.f32 %v5328, %v77
    %v5331 = vmul.f32 %v3752, %v72
    %v5332 = vmul.f32 %v3753, %v77
    %v5335 = vcombine.high %v5329, %v5329
    %v5337 = vunpack.c.l.s4 1966171168
    %v5338 = vunpack.c.0.s8 %v5337
    %v5339 = vlaneseq
    %v5340 = vshrl.u32 %v5339, 7
    %v5341 = vsub.s32 %v5338, %v5340
    %v5342 = vrot.slane %v5329, %v5341
    %v5344 = vunpack.c.l.s4 1966171168
    %v5345 = vunpack.c.0.s8 %v5344
    %v5346 = vlaneseq
    %v5347 = vshrl.u32 %v5346, 7
    %v5348 = vsub.s32 %v5345, %v5347
    %v5349 = vrot.slane %v5335, %v5348
    %v5350 = vcombine.high %v5342, %v5342
    %v5351 = vcombine.high %v5349, %v5349
    %v5353 = vunpack.c.l.s4 1966171168
    %v5354 = vunpack.c.0.s8 %v5353
    %v5355 = vlaneseq
    %v5356 = vshrl.u32 %v5355, 7
    %v5357 = vsub.s32 %v5354, %v5356
    %v5358 = vrot.slane %v5342, %v5357
    %v5360 = vunpack.c.l.s4 1966171168
    %v5361 = vunpack.c.0.s8 %v5360
    %v5362 = vlaneseq
    %v5363 = vshrl.u32 %v5362, 7
    %v5364 = vsub.s32 %v5361, %v5363
    %v5365 = vrot.slane %v5349, %v5364
    %v5367 = vunpack.c.l.s4 1966171168
    %v5368 = vunpack.c.0.s8 %v5367
    %v5369 = vlaneseq
    %v5370 = vshrl.u32 %v5369, 7
    %v5371 = vsub.s32 %v5368, %v5370
    %v5372 = vrot.slane %v5350, %v5371
    %v5374 = vunpack.c.l.s4 1966171168
    %v5375 = vunpack.c.0.s8 %v5374
    %v5376 = vlaneseq
    %v5377 = vshrl.u32 %v5376, 7
    %v5378 = vsub.s32 %v5375, %v5377
    %v5379 = vrot.slane %v5351, %v5378
    %v5380 = vcombine.high %v5358, %v5358
    %v5381 = vcombine.high %v5365, %v5365
    %v5382 = vcombine.high %v5372, %v5372
    %v5383 = vcombine.high %v5379, %v5379
    %v5384 = vcombine.high %v5330, %v5330
    %v5386 = vunpack.c.l.s4 1966171168
    %v5387 = vunpack.c.0.s8 %v5386
    %v5388 = vlaneseq
    %v5389 = vshrl.u32 %v5388, 7
    %v5390 = vsub.s32 %v5387, %v5389
    %v5391 = vrot.slane %v5330, %v5390
    %v5393 = vunpack.c.l.s4 1966171168
    %v5394 = vunpack.c.0.s8 %v5393
    %v5395 = vlaneseq
    %v5396 = vshrl.u32 %v5395, 7
    %v5397 = vsub.s32 %v5394, %v5396
    %v5398 = vrot.slane %v5384, %v5397
    %v5399 = vcombine.high %v5391, %v5391
    %v5400 = vcombine.high %v5398, %v5398
    %v5402 = vunpack.c.l.s4 1966171168
    %v5403 = vunpack.c.0.s8 %v5402
    %v5404 = vlaneseq
    %v5405 = vshrl.u32 %v5404, 7
    %v5406 = vsub.s32 %v5403, %v5405
    %v5407 = vrot.slane %v5391, %v5406
    %v5409 = vunpack.c.l.s4 1966171168
    %v5410 = vunpack.c.0.s8 %v5409
    %v5411 = vlaneseq
    %v5412 = vshrl.u32 %v5411, 7
    %v5413 = vsub.s32 %v5410, %v5412
    %v5414 = vrot.slane %v5398, %v5413
    %v5416 = vunpack.c.l.s4 1966171168
    %v5417 = vunpack.c.0.s8 %v5416
    %v5418 = vlaneseq
    %v5419 = vshrl.u32 %v5418, 7
    %v5420 = vsub.s32 %v5417, %v5419
    %v5421 = vrot.slane %v5399, %v5420
    %v5423 = vunpack.c.l.s4 1966171168
    %v5424 = vunpack.c.0.s8 %v5423
    %v5425 = vlaneseq
    %v5426 = vshrl.u32 %v5425, 7
    %v5427 = vsub.s32 %v5424, %v5426
    %v5428 = vrot.slane %v5400, %v5427
    %v5429 = vcombine.high %v5407, %v5407
    %v5430 = vcombine.high %v5414, %v5414
    %v5431 = vcombine.high %v5421, %v5421
    %v5432 = vcombine.high %v5428, %v5428
    %v5433 = vlaneseq
    %v5434 = vshrl.u32 %v5433, 7
    %v5435 = vsub.s32 0, %v5434
    %v5436 = vrot.slane %v5358, %v5435
    %v5437 = vlaneseq
    %v5438 = vshrl.u32 %v5437, 7
    %v5439 = vsub.s32 0, %v5438
    %v5440 = vrot.slane %v5372, %v5439
    %v5441 = vlaneseq
    %v5442 = vshrl.u32 %v5441, 7
    %v5443 = vsub.s32 0, %v5442
    %v5444 = vrot.slane %v5380, %v5443
    %v5445 = vlaneseq
    %v5446 = vshrl.u32 %v5445, 7
    %v5447 = vsub.s32 0, %v5446
    %v5448 = vrot.slane %v5382, %v5447
    %v5449 = vlaneseq
    %v5450 = vshrl.u32 %v5449, 7
    %v5451 = vsub.s32 0, %v5450
    %v5452 = vrot.slane %v5365, %v5451
    %v5453 = vlaneseq
    %v5454 = vshrl.u32 %v5453, 7
    %v5455 = vsub.s32 0, %v5454
    %v5456 = vrot.slane %v5379, %v5455
    %v5457 = vlaneseq
    %v5458 = vshrl.u32 %v5457, 7
    %v5459 = vsub.s32 0, %v5458
    %v5460 = vrot.slane %v5381, %v5459
    %v5461 = vlaneseq
    %v5462 = vshrl.u32 %v5461, 7
    %v5463 = vsub.s32 0, %v5462
    %v5464 = vrot.slane %v5383, %v5463
    %v5465 = vlaneseq
    %v5466 = vshrl.u32 %v5465, 7
    %v5467 = vsub.s32 0, %v5466
    %v5468 = vrot.slane %v5407, %v5467
    %v5469 = vlaneseq
    %v5470 = vshrl.u32 %v5469, 7
    %v5471 = vsub.s32 0, %v5470
    %v5472 = vrot.slane %v5421, %v5471
    %v5473 = vlaneseq
    %v5474 = vshrl.u32 %v5473, 7
    %v5475 = vsub.s32 0, %v5474
    %v5476 = vrot.slane %v5429, %v5475
    %v5477 = vlaneseq
    %v5478 = vshrl.u32 %v5477, 7
    %v5479 = vsub.s32 0, %v5478
    %v5480 = vrot.slane %v5431, %v5479
    %v5481 = vlaneseq
    %v5482 = vshrl.u32 %v5481, 7
    %v5483 = vsub.s32 0, %v5482
    %v5484 = vrot.slane %v5414, %v5483
    %v5485 = vlaneseq
    %v5486 = vshrl.u32 %v5485, 7
    %v5487 = vsub.s32 0, %v5486
    %v5488 = vrot.slane %v5428, %v5487
    %v5489 = vlaneseq
    %v5490 = vshrl.u32 %v5489, 7
    %v5491 = vsub.s32 0, %v5490
    %v5492 = vrot.slane %v5430, %v5491
    %v5493 = vlaneseq
    %v5494 = vshrl.u32 %v5493, 7
    %v5495 = vsub.s32 0, %v5494
    %v5496 = vrot.slane %v5432, %v5495
    %v5513 = vsub.f32 %v5436, %v5329
    %v5514 = vsub.f32 %v5440, %v5329
    %v5515 = vsub.f32 %v5444, %v5329
    %v5516 = vsub.f32 %v5448, %v5329
    %v5517 = vsub.f32 %v5452, %v5329
    %v5518 = vsub.f32 %v5456, %v5329
    %v5519 = vsub.f32 %v5460, %v5329
    %v5520 = vsub.f32 %v5464, %v5329
    %v5521 = vsub.f32 %v5468, %v5330
    %v5522 = vsub.f32 %v5472, %v5330
    %v5523 = vsub.f32 %v5476, %v5330
    %v5524 = vsub.f32 %v5480, %v5330
    %v5525 = vsub.f32 %v5484, %v5330
    %v5526 = vsub.f32 %v5488, %v5330
    %v5527 = vsub.f32 %v5492, %v5330
    %v5528 = vsub.f32 %v5496, %v5330
    %v5529 = vmul.f32 %v5513, %v5513
    %v5530 = vmul.f32 %v5514, %v5514
    %v5531 = vmul.f32 %v5515, %v5515
    %v5532 = vmul.f32 %v5516, %v5516
    %v5533 = vmul.f32 %v5517, %v5517
    %v5534 = vmul.f32 %v5518, %v5518
    %v5535 = vmul.f32 %v5519, %v5519
    %v5536 = vmul.f32 %v5520, %v5520
    %v5537 = vmul.f32 %v5521, %v5521
    %v5538 = vmul.f32 %v5522, %v5522
    %v5539 = vmul.f32 %v5523, %v5523
    %v5540 = vmul.f32 %v5524, %v5524
    %v5541 = vmul.f32 %v5525, %v5525
    %v5542 = vmul.f32 %v5526, %v5526
    %v5543 = vmul.f32 %v5527, %v5527
    %v5544 = vmul.f32 %v5528, %v5528
    %v5545 = vsel %vm293, %v5529, 0.0
    %5546 = vadd.xlane.f32.xlu0 %v5545
    %v5547 = vpop.xlane.xlu0 %5546
    %v5548 = vsel %vm293, %v5530, 0.0
    %5549 = vadd.xlane.f32.xlu0 %v5548
    %v5550 = vpop.xlane.xlu0 %5549
    %v5551 = vsel %vm293, %v5531, 0.0
    %5552 = vadd.xlane.f32.xlu0 %v5551
    %v5553 = vpop.xlane.xlu0 %5552
    %v5554 = vsel %vm293, %v5532, 0.0
    %5555 = vadd.xlane.f32.xlu0 %v5554
    %v5556 = vpop.xlane.xlu0 %5555
    %v5557 = vsel %vm293, %v5533, 0.0
    %5558 = vadd.xlane.f32.xlu0 %v5557
    %v5559 = vpop.xlane.xlu0 %5558
    %v5560 = vsel %vm293, %v5534, 0.0
    %5561 = vadd.xlane.f32.xlu0 %v5560
    %v5562 = vpop.xlane.xlu0 %5561
    %v5563 = vsel %vm293, %v5535, 0.0
    %5564 = vadd.xlane.f32.xlu0 %v5563
    %v5565 = vpop.xlane.xlu0 %5564
    %v5566 = vsel %vm293, %v5536, 0.0
    %5567 = vadd.xlane.f32.xlu0 %v5566
    %v5568 = vpop.xlane.xlu0 %5567
    %v5569 = vsel %vm293, %v5537, 0.0
    %5570 = vadd.xlane.f32.xlu0 %v5569
    %v5571 = vpop.xlane.xlu0 %5570
    %v5572 = vsel %vm293, %v5538, 0.0
    %5573 = vadd.xlane.f32.xlu0 %v5572
    %v5574 = vpop.xlane.xlu0 %5573
    %v5575 = vsel %vm293, %v5539, 0.0
    %5576 = vadd.xlane.f32.xlu0 %v5575
    %v5577 = vpop.xlane.xlu0 %5576
    %v5578 = vsel %vm293, %v5540, 0.0
    %5579 = vadd.xlane.f32.xlu0 %v5578
    %v5580 = vpop.xlane.xlu0 %5579
    %v5581 = vsel %vm293, %v5541, 0.0
    %5582 = vadd.xlane.f32.xlu0 %v5581
    %v5583 = vpop.xlane.xlu0 %5582
    %v5584 = vsel %vm293, %v5542, 0.0
    %5585 = vadd.xlane.f32.xlu0 %v5584
    %v5586 = vpop.xlane.xlu0 %5585
    %v5587 = vsel %vm293, %v5543, 0.0
    %5588 = vadd.xlane.f32.xlu0 %v5587
    %v5589 = vpop.xlane.xlu0 %5588
    %v5590 = vsel %vm293, %v5544, 0.0
    %5591 = vadd.xlane.f32.xlu0 %v5590
    %v5592 = vpop.xlane.xlu0 %5591
    %v5593 = vadd.f32 %v5547, 1e-08
    %v5594 = vadd.f32 %v5550, 1e-08
    %v5595 = vadd.f32 %v5553, 1e-08
    %v5596 = vadd.f32 %v5556, 1e-08
    %v5597 = vadd.f32 %v5559, 1e-08
    %v5598 = vadd.f32 %v5562, 1e-08
    %v5599 = vadd.f32 %v5565, 1e-08
    %v5600 = vadd.f32 %v5568, 1e-08
    %v5601 = vadd.f32 %v5571, 1e-08
    %v5602 = vadd.f32 %v5574, 1e-08
    %v5603 = vadd.f32 %v5577, 1e-08
    %v5604 = vadd.f32 %v5580, 1e-08
    %v5605 = vadd.f32 %v5583, 1e-08
    %v5606 = vadd.f32 %v5586, 1e-08
    %v5607 = vadd.f32 %v5589, 1e-08
    %v5608 = vadd.f32 %v5592, 1e-08
    %v5609 = vrsqrt.pop %v5593
    %v5610 = vrsqrt.pop %v5594
    %v5611 = vrsqrt.pop %v5595
    %v5612 = vrsqrt.pop %v5596
    %v5613 = vrsqrt.pop %v5597
    %v5614 = vrsqrt.pop %v5598
    %v5615 = vrsqrt.pop %v5599
    %v5616 = vrsqrt.pop %v5600
    %v5617 = vrsqrt.pop %v5601
    %v5618 = vrsqrt.pop %v5602
    %v5619 = vrsqrt.pop %v5603
    %v5620 = vrsqrt.pop %v5604
    %v5621 = vrsqrt.pop %v5605
    %v5622 = vrsqrt.pop %v5606
    %v5623 = vrsqrt.pop %v5607
    %v5624 = vrsqrt.pop %v5608
    %v5625 = vmul.f32 %v5513, %v5609
    %v5626 = vmul.f32 %v5514, %v5610
    %v5627 = vmul.f32 %v5515, %v5611
    %v5628 = vmul.f32 %v5516, %v5612
    %v5629 = vmul.f32 %v5517, %v5613
    %v5630 = vmul.f32 %v5518, %v5614
    %v5631 = vmul.f32 %v5519, %v5615
    %v5632 = vmul.f32 %v5520, %v5616
    %v5633 = vmul.f32 %v5521, %v5617
    %v5634 = vmul.f32 %v5522, %v5618
    %v5635 = vmul.f32 %v5523, %v5619
    %v5636 = vmul.f32 %v5524, %v5620
    %v5637 = vmul.f32 %v5525, %v5621
    %v5638 = vmul.f32 %v5526, %v5622
    %v5639 = vmul.f32 %v5527, %v5623
    %v5640 = vmul.f32 %v5528, %v5624
    %vm5641 = vcmask 7168
    %v5642 = vsel %vm5641, %v5547, %v296
    %v5643 = vsel %vm5641, %v5550, %v299
    %v5644 = vsel %vm5641, %v5553, %v302
    %v5645 = vsel %vm5641, %v5556, %v305
    %v5646 = vsel %vm5641, %v5559, %v308
    %v5647 = vsel %vm5641, %v5562, %v311
    %v5648 = vsel %vm5641, %v5565, %v314
    %v5649 = vsel %vm5641, %v5568, %v317
    %v5650 = vsel %vm5641, %v5571, %v320
    %v5651 = vsel %vm5641, %v5574, %v323
    %v5652 = vsel %vm5641, %v5577, %v326
    %v5653 = vsel %vm5641, %v5580, %v329
    %v5654 = vsel %vm5641, %v5583, %v332
    %v5655 = vsel %vm5641, %v5586, %v335
    %v5656 = vsel %vm5641, %v5589, %v338
    %v5657 = vsel %vm5641, %v5592, %v341
    %v5660 = vcombine.high %v5331, %v5331
    %v5662 = vunpack.c.l.s4 1966171168
    %v5663 = vunpack.c.0.s8 %v5662
    %v5664 = vlaneseq
    %v5665 = vshrl.u32 %v5664, 7
    %v5666 = vsub.s32 %v5663, %v5665
    %v5667 = vrot.slane %v5331, %v5666
    %v5669 = vunpack.c.l.s4 1966171168
    %v5670 = vunpack.c.0.s8 %v5669
    %v5671 = vlaneseq
    %v5672 = vshrl.u32 %v5671, 7
    %v5673 = vsub.s32 %v5670, %v5672
    %v5674 = vrot.slane %v5660, %v5673
    %v5675 = vcombine.high %v5667, %v5667
    %v5676 = vcombine.high %v5674, %v5674
    %v5678 = vunpack.c.l.s4 1966171168
    %v5679 = vunpack.c.0.s8 %v5678
    %v5680 = vlaneseq
    %v5681 = vshrl.u32 %v5680, 7
    %v5682 = vsub.s32 %v5679, %v5681
    %v5683 = vrot.slane %v5667, %v5682
    %v5685 = vunpack.c.l.s4 1966171168
    %v5686 = vunpack.c.0.s8 %v5685
    %v5687 = vlaneseq
    %v5688 = vshrl.u32 %v5687, 7
    %v5689 = vsub.s32 %v5686, %v5688
    %v5690 = vrot.slane %v5674, %v5689
    %v5692 = vunpack.c.l.s4 1966171168
    %v5693 = vunpack.c.0.s8 %v5692
    %v5694 = vlaneseq
    %v5695 = vshrl.u32 %v5694, 7
    %v5696 = vsub.s32 %v5693, %v5695
    %v5697 = vrot.slane %v5675, %v5696
    %v5699 = vunpack.c.l.s4 1966171168
    %v5700 = vunpack.c.0.s8 %v5699
    %v5701 = vlaneseq
    %v5702 = vshrl.u32 %v5701, 7
    %v5703 = vsub.s32 %v5700, %v5702
    %v5704 = vrot.slane %v5676, %v5703
    %v5705 = vcombine.high %v5683, %v5683
    %v5706 = vcombine.high %v5690, %v5690
    %v5707 = vcombine.high %v5697, %v5697
    %v5708 = vcombine.high %v5704, %v5704
    %v5709 = vcombine.high %v5332, %v5332
    %v5711 = vunpack.c.l.s4 1966171168
    %v5712 = vunpack.c.0.s8 %v5711
    %v5713 = vlaneseq
    %v5714 = vshrl.u32 %v5713, 7
    %v5715 = vsub.s32 %v5712, %v5714
    %v5716 = vrot.slane %v5332, %v5715
    %v5718 = vunpack.c.l.s4 1966171168
    %v5719 = vunpack.c.0.s8 %v5718
    %v5720 = vlaneseq
    %v5721 = vshrl.u32 %v5720, 7
    %v5722 = vsub.s32 %v5719, %v5721
    %v5723 = vrot.slane %v5709, %v5722
    %v5724 = vcombine.high %v5716, %v5716
    %v5725 = vcombine.high %v5723, %v5723
    %v5727 = vunpack.c.l.s4 1966171168
    %v5728 = vunpack.c.0.s8 %v5727
    %v5729 = vlaneseq
    %v5730 = vshrl.u32 %v5729, 7
    %v5731 = vsub.s32 %v5728, %v5730
    %v5732 = vrot.slane %v5716, %v5731
    %v5734 = vunpack.c.l.s4 1966171168
    %v5735 = vunpack.c.0.s8 %v5734
    %v5736 = vlaneseq
    %v5737 = vshrl.u32 %v5736, 7
    %v5738 = vsub.s32 %v5735, %v5737
    %v5739 = vrot.slane %v5723, %v5738
    %v5741 = vunpack.c.l.s4 1966171168
    %v5742 = vunpack.c.0.s8 %v5741
    %v5743 = vlaneseq
    %v5744 = vshrl.u32 %v5743, 7
    %v5745 = vsub.s32 %v5742, %v5744
    %v5746 = vrot.slane %v5724, %v5745
    %v5748 = vunpack.c.l.s4 1966171168
    %v5749 = vunpack.c.0.s8 %v5748
    %v5750 = vlaneseq
    %v5751 = vshrl.u32 %v5750, 7
    %v5752 = vsub.s32 %v5749, %v5751
    %v5753 = vrot.slane %v5725, %v5752
    %v5754 = vcombine.high %v5732, %v5732
    %v5755 = vcombine.high %v5739, %v5739
    %v5756 = vcombine.high %v5746, %v5746
    %v5757 = vcombine.high %v5753, %v5753
    %v5758 = vlaneseq
    %v5759 = vshrl.u32 %v5758, 7
    %v5760 = vsub.s32 0, %v5759
    %v5761 = vrot.slane %v5683, %v5760
    %v5762 = vlaneseq
    %v5763 = vshrl.u32 %v5762, 7
    %v5764 = vsub.s32 0, %v5763
    %v5765 = vrot.slane %v5697, %v5764
    %v5766 = vlaneseq
    %v5767 = vshrl.u32 %v5766, 7
    %v5768 = vsub.s32 0, %v5767
    %v5769 = vrot.slane %v5705, %v5768
    %v5770 = vlaneseq
    %v5771 = vshrl.u32 %v5770, 7
    %v5772 = vsub.s32 0, %v5771
    %v5773 = vrot.slane %v5707, %v5772
    %v5774 = vlaneseq
    %v5775 = vshrl.u32 %v5774, 7
    %v5776 = vsub.s32 0, %v5775
    %v5777 = vrot.slane %v5690, %v5776
    %v5778 = vlaneseq
    %v5779 = vshrl.u32 %v5778, 7
    %v5780 = vsub.s32 0, %v5779
    %v5781 = vrot.slane %v5704, %v5780
    %v5782 = vlaneseq
    %v5783 = vshrl.u32 %v5782, 7
    %v5784 = vsub.s32 0, %v5783
    %v5785 = vrot.slane %v5706, %v5784
    %v5786 = vlaneseq
    %v5787 = vshrl.u32 %v5786, 7
    %v5788 = vsub.s32 0, %v5787
    %v5789 = vrot.slane %v5708, %v5788
    %v5790 = vlaneseq
    %v5791 = vshrl.u32 %v5790, 7
    %v5792 = vsub.s32 0, %v5791
    %v5793 = vrot.slane %v5732, %v5792
    %v5794 = vlaneseq
    %v5795 = vshrl.u32 %v5794, 7
    %v5796 = vsub.s32 0, %v5795
    %v5797 = vrot.slane %v5746, %v5796
    %v5798 = vlaneseq
    %v5799 = vshrl.u32 %v5798, 7
    %v5800 = vsub.s32 0, %v5799
    %v5801 = vrot.slane %v5754, %v5800
    %v5802 = vlaneseq
    %v5803 = vshrl.u32 %v5802, 7
    %v5804 = vsub.s32 0, %v5803
    %v5805 = vrot.slane %v5756, %v5804
    %v5806 = vlaneseq
    %v5807 = vshrl.u32 %v5806, 7
    %v5808 = vsub.s32 0, %v5807
    %v5809 = vrot.slane %v5739, %v5808
    %v5810 = vlaneseq
    %v5811 = vshrl.u32 %v5810, 7
    %v5812 = vsub.s32 0, %v5811
    %v5813 = vrot.slane %v5753, %v5812
    %v5814 = vlaneseq
    %v5815 = vshrl.u32 %v5814, 7
    %v5816 = vsub.s32 0, %v5815
    %v5817 = vrot.slane %v5755, %v5816
    %v5818 = vlaneseq
    %v5819 = vshrl.u32 %v5818, 7
    %v5820 = vsub.s32 0, %v5819
    %v5821 = vrot.slane %v5757, %v5820
    %s5822 = scalar_lea.vmem [#allocation2], 64
    %v5823 = vld [vmem:[%s5822] sm:$0xff]
    %v5824 = vld [vmem:[%s5822 + $0x8] sm:$0xff]
    %v5825 = vld [vmem:[%s5822 + $0x10] sm:$0xff]
    %v5826 = vld [vmem:[%s5822 + $0x18] sm:$0xff]
    %s5827 = scalar_lea.vmem [#allocation2], 192
    %v5828 = vld [vmem:[%s5827] sm:$0xff]
    %v5829 = vld [vmem:[%s5827 + $0x8] sm:$0xff]
    %v5830 = vld [vmem:[%s5827 + $0x10] sm:$0xff]
    %v5831 = vld [vmem:[%s5827 + $0x18] sm:$0xff]
    %v5832 = vsel %vm660, %v5331, 0
    %v5834 = vsel %vm660, %v5332, 0
    %5836 = vmatprep.subr.mxu0 0.0
    %5837 = vmatpush1.msra.mxu0 %v5828
    %5838 = vmatprep.subr.mxu0 0.0
    %5839 = vmatpush1.msra.mxu0 %v5829
    %5840 = vmatprep.subr.mxu0 0.0
    %5841 = vmatpush1.msra.mxu0 %v5830
    %5842 = vmatprep.subr.mxu0 0.0
    %5843 = vmatpush1.msra.mxu0 %v5831
    %5844 = vmatprep.subr.mxu0 0.0
    %5845 = vmatpush1.msra.mxu0 0.0
    %5846 = vmatprep.subr.mxu0 0.0
    %5847 = vmatpush1.msra.mxu0 0.0
    %5848 = vmatprep.subr.mxu0 0.0
    %5849 = vmatpush1.msra.mxu0 0.0
    %5850 = vmatprep.subr.mxu0 0.0
    %5851 = vmatpush1.msra.mxu0 0.0
    %5852 = vmatprep.subr.mxu0 0.0
    %5853 = vmatpush1.msra.mxu0 0.0
    %5854 = vmatprep.subr.mxu0 0.0
    %5855 = vmatpush1.msra.mxu0 0.0
    %5856 = vmatprep.subr.mxu0 0.0
    %5857 = vmatpush1.msra.mxu0 0.0
    %5858 = vmatprep.subr.mxu0 0.0
    %5859 = vmatpush1.msra.mxu0 0.0
    %5860 = vmatprep.subr.mxu0 0.0
    %5861 = vmatpush1.msra.mxu0 0.0
    %5862 = vmatprep.subr.mxu0 0.0
    %5863 = vmatpush1.msra.mxu0 0.0
    %5864 = vmatprep.subr.mxu0 0.0
    %5865 = vmatpush1.msra.mxu0 0.0
    %5866 = vmatprep.subr.mxu0 0.0
    %5867 = vmatpush1.msra.mxu0 0.0
    %5868 = vmatprep.subr.mxu0 0.0
    %5869 = vmatpush1.msra.mxu0 0.0
    %5870 = vmatprep.subr.mxu0 0.0
    %5871 = vmatpush1.msra.mxu0 0.0
    %5872 = vmatprep.subr.mxu0 0.0
    %5873 = vmatpush1.msra.mxu0 0.0
    %5874 = vmatprep.subr.mxu0 0.0
    %5875 = vmatpush1.msra.mxu0 0.0
    %5876 = vmatprep.subr.mxu0 0.0
    %5877 = vmatpush1.msra.mxu0 0.0
    %5878 = vmatprep.subr.mxu0 0.0
    %5879 = vmatpush1.msra.mxu0 0.0
    %5880 = vmatprep.subr.mxu0 0.0
    %5881 = vmatpush1.msra.mxu0 0.0
    %5882 = vmatprep.subr.mxu0 0.0
    %5883 = vmatpush1.msra.mxu0 0.0
    %5884 = vmatprep.subr.mxu0 0.0
    %5885 = vmatpush1.msra.mxu0 0.0
    %5886 = vmatprep.subr.mxu0 0.0
    %5887 = vmatpush1.msra.mxu0 0.0
    %5888 = vmatprep.subr.mxu0 0.0
    %5889 = vmatpush1.msra.mxu0 0.0
    %5890 = vmatprep.subr.mxu0 0.0
    %5891 = vmatpush1.msra.mxu0 0.0
    %5892 = vmatprep.subr.mxu0 0.0
    %5893 = vmatpush1.msra.mxu0 0.0
    %5894 = vmatprep.subr.mxu0 0.0
    %5895 = vmatpush1.msra.mxu0 0.0
    %5896 = vmatprep.subr.mxu0 0.0
    %5897 = vmatpush1.msra.mxu0 0.0
    %5898 = vmatprep.subr.mxu0 0.0
    %5899 = vmatpush1.msra.mxu0 0.0
    %5900 = vmatprep.mubr.f32.mxu0 0.0
    %5901 = vmatmul.mubr.f32.gmra.mrb[0].mxu0 %v5832
    %v5902 = vpop.f32.mrb[0].mxu0
    %v5903 = vadd.f32 0.0, %v5902
    %v5904 = vpop.f32.mrb[0].mxu0
    %5905 = vmatprep.mubr.f32.mxu0 0.0
    %5906 = vmatmul.mubr.f32.gmra.mrb[0].mxu0 %v5832
    %v5907 = vpop.f32.mrb[0].mxu0
    %v5908 = vadd.f32 0.0, %v5907
    %v5909 = vpop.f32.mrb[0].mxu0
    %5910 = vmatprep.mubr.f32.mxu0 0.0
    %5911 = vmatmul.mubr.f32.gmra.mrb[0].mxu0 %v5832
    %v5912 = vpop.f32.mrb[0].mxu0
    %v5913 = vadd.f32 0.0, %v5912
    %v5914 = vpop.f32.mrb[0].mxu0
    %5915 = vmatprep.mubr.f32.mxu0 0.0
    %5916 = vmatmul.mubr.f32.gmra.mrb[0].mxu0 %v5832
    %v5917 = vpop.f32.mrb[0].mxu0
    %v5918 = vadd.f32 0.0, %v5917
    %v5919 = vpop.f32.mrb[0].mxu0
    %5920 = vmatprep.mubr.f32.mxu0 0.0
    %5921 = vmatmul.mubr.f32.gmra.mrb[0].mxu0 %v5832
    %v5922 = vpop.f32.mrb[0].mxu0
    %v5923 = vadd.f32 0.0, %v5922
    %v5924 = vpop.f32.mrb[0].mxu0
    %5925 = vmatprep.mubr.f32.mxu0 0.0
    %5926 = vmatmul.mubr.f32.gmra.mrb[0].mxu0 %v5832
    %v5927 = vpop.f32.mrb[0].mxu0
    %v5928 = vadd.f32 0.0, %v5927
    %v5929 = vpop.f32.mrb[0].mxu0
    %5930 = vmatprep.mubr.f32.mxu0 0.0
    %5931 = vmatmul.mubr.f32.gmra.mrb[0].mxu0 %v5832
    %v5932 = vpop.f32.mrb[0].mxu0
    %v5933 = vadd.f32 0.0, %v5932
    %v5934 = vpop.f32.mrb[0].mxu0
    %5935 = vmatprep.mubr.f32.mxu0 0.0
    %5936 = vmatmul.mubr.f32.gmra.mrb[0].mxu0 %v5832
    %v5937 = vpop.f32.mrb[0].mxu0
    %v5938 = vadd.f32 0.0, %v5937
    %v5939 = vpop.f32.mrb[0].mxu0
    %5940 = vmatprep.mubr.f32.mxu0 0.0
    %5941 = vmatmul.mubr.f32.gmra.mrb[0].mxu0 %v5834
    %v5942 = vpop.f32.mrb[0].mxu0
    %v5943 = vadd.f32 0.0, %v5942
    %v5944 = vpop.f32.mrb[0].mxu0
    %5945 = vmatprep.mubr.f32.mxu0 0.0
    %5946 = vmatmul.mubr.f32.gmra.mrb[0].mxu0 %v5834
    %v5947 = vpop.f32.mrb[0].mxu0
    %v5948 = vadd.f32 0.0, %v5947
    %v5949 = vpop.f32.mrb[0].mxu0
    %5950 = vmatprep.mubr.f32.mxu0 0.0
    %5951 = vmatmul.mubr.f32.gmra.mrb[0].mxu0 %v5834
    %v5952 = vpop.f32.mrb[0].mxu0
    %v5953 = vadd.f32 0.0, %v5952
    %v5954 = vpop.f32.mrb[0].mxu0
    %5955 = vmatprep.mubr.f32.mxu0 0.0
    %5956 = vmatmul.mubr.f32.gmra.mrb[0].mxu0 %v5834
    %v5957 = vpop.f32.mrb[0].mxu0
    %v5958 = vadd.f32 0.0, %v5957
    %v5959 = vpop.f32.mrb[0].mxu0
    %5960 = vmatprep.mubr.f32.mxu0 0.0
    %5961 = vmatmul.mubr.f32.gmra.mrb[0].mxu0 %v5834
    %v5962 = vpop.f32.mrb[0].mxu0
    %v5963 = vadd.f32 0.0, %v5962
    %v5964 = vpop.f32.mrb[0].mxu0
    %5965 = vmatprep.mubr.f32.mxu0 0.0
    %5966 = vmatmul.mubr.f32.gmra.mrb[0].mxu0 %v5834
    %v5967 = vpop.f32.mrb[0].mxu0
    %v5968 = vadd.f32 0.0, %v5967
    %v5969 = vpop.f32.mrb[0].mxu0
    %5970 = vmatprep.mubr.f32.mxu0 0.0
    %5971 = vmatmul.mubr.f32.gmra.mrb[0].mxu0 %v5834
    %v5972 = vpop.f32.mrb[0].mxu0
    %v5973 = vadd.f32 0.0, %v5972
    %v5974 = vpop.f32.mrb[0].mxu0
    %5975 = vmatprep.mubr.f32.mxu0 0.0
    %5976 = vmatmul.mubr.f32.gmra.mrb[0].mxu0 %v5834
    %v5977 = vpop.f32.mrb[0].mxu0
    %v5978 = vadd.f32 0.0, %v5977
    %v5979 = vpop.f32.mrb[0].mxu0
    %5980 = vdwg.mxu0
    %v5981 = vsel %vm660, %v5761, 0
    %v5983 = vsel %vm660, %v5765, 0
    %v5985 = vsel %vm660, %v5769, 0
    %v5987 = vsel %vm660, %v5773, 0
    %v5989 = vsel %vm660, %v5777, 0
    %v5991 = vsel %vm660, %v5781, 0
    %v5993 = vsel %vm660, %v5785, 0
    %v5995 = vsel %vm660, %v5789, 0
    %v5997 = vsel %vm660, %v5793, 0
    %v5999 = vsel %vm660, %v5797, 0
    %v6001 = vsel %vm660, %v5801, 0
    %v6003 = vsel %vm660, %v5805, 0
    %v6005 = vsel %vm660, %v5809, 0
    %v6007 = vsel %vm660, %v5813, 0
    %v6009 = vsel %vm660, %v5817, 0
    %v6011 = vsel %vm660, %v5821, 0
    %6013 = vmatprep.subr.mxu0 0.0
    %6014 = vmatpush1.msra.mxu0 %v5823
    %6015 = vmatprep.subr.mxu0 0.0
    %6016 = vmatpush1.msra.mxu0 %v5824
    %6017 = vmatprep.subr.mxu0 0.0
    %6018 = vmatpush1.msra.mxu0 %v5825
    %6019 = vmatprep.subr.mxu0 0.0
    %6020 = vmatpush1.msra.mxu0 %v5826
    %6021 = vmatprep.subr.mxu0 0.0
    %6022 = vmatpush1.msra.mxu0 0.0
    %6023 = vmatprep.subr.mxu0 0.0
    %6024 = vmatpush1.msra.mxu0 0.0
    %6025 = vmatprep.subr.mxu0 0.0
    %6026 = vmatpush1.msra.mxu0 0.0
    %6027 = vmatprep.subr.mxu0 0.0
    %6028 = vmatpush1.msra.mxu0 0.0
    %6029 = vmatprep.subr.mxu0 0.0
    %6030 = vmatpush1.msra.mxu0 0.0
    %6031 = vmatprep.subr.mxu0 0.0
    %6032 = vmatpush1.msra.mxu0 0.0
    %6033 = vmatprep.subr.mxu0 0.0
    %6034 = vmatpush1.msra.mxu0 0.0
    %6035 = vmatprep.subr.mxu0 0.0
    %6036 = vmatpush1.msra.mxu0 0.0
    %6037 = vmatprep.subr.mxu0 0.0
    %6038 = vmatpush1.msra.mxu0 0.0
    %6039 = vmatprep.subr.mxu0 0.0
    %6040 = vmatpush1.msra.mxu0 0.0
    %6041 = vmatprep.subr.mxu0 0.0
    %6042 = vmatpush1.msra.mxu0 0.0
    %6043 = vmatprep.subr.mxu0 0.0
    %6044 = vmatpush1.msra.mxu0 0.0
    %6045 = vmatprep.subr.mxu0 0.0
    %6046 = vmatpush1.msra.mxu0 0.0
    %6047 = vmatprep.subr.mxu0 0.0
    %6048 = vmatpush1.msra.mxu0 0.0
    %6049 = vmatprep.subr.mxu0 0.0
    %6050 = vmatpush1.msra.mxu0 0.0
    %6051 = vmatprep.subr.mxu0 0.0
    %6052 = vmatpush1.msra.mxu0 0.0
    %6053 = vmatprep.subr.mxu0 0.0
    %6054 = vmatpush1.msra.mxu0 0.0
    %6055 = vmatprep.subr.mxu0 0.0
    %6056 = vmatpush1.msra.mxu0 0.0
    %6057 = vmatprep.subr.mxu0 0.0
    %6058 = vmatpush1.msra.mxu0 0.0
    %6059 = vmatprep.subr.mxu0 0.0
    %6060 = vmatpush1.msra.mxu0 0.0
    %6061 = vmatprep.subr.mxu0 0.0
    %6062 = vmatpush1.msra.mxu0 0.0
    %6063 = vmatprep.subr.mxu0 0.0
    %6064 = vmatpush1.msra.mxu0 0.0
    %6065 = vmatprep.subr.mxu0 0.0
    %6066 = vmatpush1.msra.mxu0 0.0
    %6067 = vmatprep.subr.mxu0 0.0
    %6068 = vmatpush1.msra.mxu0 0.0
    %6069 = vmatprep.subr.mxu0 0.0
    %6070 = vmatpush1.msra.mxu0 0.0
    %6071 = vmatprep.subr.mxu0 0.0
    %6072 = vmatpush1.msra.mxu0 0.0
    %6073 = vmatprep.subr.mxu0 0.0
    %6074 = vmatpush1.msra.mxu0 0.0
    %6075 = vmatprep.subr.mxu0 0.0
    %6076 = vmatpush1.msra.mxu0 0.0
    %6077 = vmatprep.mubr.f32.mxu0 0.0
    %6078 = vmatmul.mubr.f32.gmra.mrb[0].mxu0 %v5981
    %v6079 = vpop.f32.mrb[0].mxu0
    %v6080 = vadd.f32 %v5903, %v6079
    %v6081 = vpop.f32.mrb[0].mxu0
    %6082 = vmatprep.mubr.f32.mxu0 0.0
    %6083 = vmatmul.mubr.f32.gmra.mrb[0].mxu0 %v5983
    %v6084 = vpop.f32.mrb[0].mxu0
    %v6085 = vadd.f32 %v5908, %v6084
    %v6086 = vpop.f32.mrb[0].mxu0
    %6087 = vmatprep.mubr.f32.mxu0 0.0
    %6088 = vmatmul.mubr.f32.gmra.mrb[0].mxu0 %v5985
    %v6089 = vpop.f32.mrb[0].mxu0
    %v6090 = vadd.f32 %v5913, %v6089
    %v6091 = vpop.f32.mrb[0].mxu0
    %6092 = vmatprep.mubr.f32.mxu0 0.0
    %6093 = vmatmul.mubr.f32.gmra.mrb[0].mxu0 %v5987
    %v6094 = vpop.f32.mrb[0].mxu0
    %v6095 = vadd.f32 %v5918, %v6094
    %v6096 = vpop.f32.mrb[0].mxu0
    %6097 = vmatprep.mubr.f32.mxu0 0.0
    %6098 = vmatmul.mubr.f32.gmra.mrb[0].mxu0 %v5989
    %v6099 = vpop.f32.mrb[0].mxu0
    %v6100 = vadd.f32 %v5923, %v6099
    %v6101 = vpop.f32.mrb[0].mxu0
    %6102 = vmatprep.mubr.f32.mxu0 0.0
    %6103 = vmatmul.mubr.f32.gmra.mrb[0].mxu0 %v5991
    %v6104 = vpop.f32.mrb[0].mxu0
    %v6105 = vadd.f32 %v5928, %v6104
    %v6106 = vpop.f32.mrb[0].mxu0
    %6107 = vmatprep.mubr.f32.mxu0 0.0
    %6108 = vmatmul.mubr.f32.gmra.mrb[0].mxu0 %v5993
    %v6109 = vpop.f32.mrb[0].mxu0
    %v6110 = vadd.f32 %v5933, %v6109
    %v6111 = vpop.f32.mrb[0].mxu0
    %6112 = vmatprep.mubr.f32.mxu0 0.0
    %6113 = vmatmul.mubr.f32.gmra.mrb[0].mxu0 %v5995
    %v6114 = vpop.f32.mrb[0].mxu0
    %v6115 = vadd.f32 %v5938, %v6114
    %v6116 = vpop.f32.mrb[0].mxu0
    %6117 = vmatprep.mubr.f32.mxu0 0.0
    %6118 = vmatmul.mubr.f32.gmra.mrb[0].mxu0 %v5997
    %v6119 = vpop.f32.mrb[0].mxu0
    %v6120 = vadd.f32 %v5943, %v6119
    %v6121 = vpop.f32.mrb[0].mxu0
    %6122 = vmatprep.mubr.f32.mxu0 0.0
    %6123 = vmatmul.mubr.f32.gmra.mrb[0].mxu0 %v5999
    %v6124 = vpop.f32.mrb[0].mxu0
    %v6125 = vadd.f32 %v5948, %v6124
    %v6126 = vpop.f32.mrb[0].mxu0
    %6127 = vmatprep.mubr.f32.mxu0 0.0
    %6128 = vmatmul.mubr.f32.gmra.mrb[0].mxu0 %v6001
    %v6129 = vpop.f32.mrb[0].mxu0
    %v6130 = vadd.f32 %v5953, %v6129
    %v6131 = vpop.f32.mrb[0].mxu0
    %6132 = vmatprep.mubr.f32.mxu0 0.0
    %6133 = vmatmul.mubr.f32.gmra.mrb[0].mxu0 %v6003
    %v6134 = vpop.f32.mrb[0].mxu0
    %v6135 = vadd.f32 %v5958, %v6134
    %v6136 = vpop.f32.mrb[0].mxu0
    %6137 = vmatprep.mubr.f32.mxu0 0.0
    %6138 = vmatmul.mubr.f32.gmra.mrb[0].mxu0 %v6005
    %v6139 = vpop.f32.mrb[0].mxu0
    %v6140 = vadd.f32 %v5963, %v6139
    %v6141 = vpop.f32.mrb[0].mxu0
    %6142 = vmatprep.mubr.f32.mxu0 0.0
    %6143 = vmatmul.mubr.f32.gmra.mrb[0].mxu0 %v6007
    %v6144 = vpop.f32.mrb[0].mxu0
    %v6145 = vadd.f32 %v5968, %v6144
    %v6146 = vpop.f32.mrb[0].mxu0
    %6147 = vmatprep.mubr.f32.mxu0 0.0
    %6148 = vmatmul.mubr.f32.gmra.mrb[0].mxu0 %v6009
    %v6149 = vpop.f32.mrb[0].mxu0
    %v6150 = vadd.f32 %v5973, %v6149
    %v6151 = vpop.f32.mrb[0].mxu0
    %6152 = vmatprep.mubr.f32.mxu0 0.0
    %6153 = vmatmul.mubr.f32.gmra.mrb[0].mxu0 %v6011
    %v6154 = vpop.f32.mrb[0].mxu0
    %v6155 = vadd.f32 %v5978, %v6154
    %v6156 = vpop.f32.mrb[0].mxu0
    %6157 = vdwg.mxu0
    %s6158 = scalar_lea.vmem %s5, 4
    %v6159 = vld [vmem:[%s6158] sm:$0x3]
    %v6161 = vsel %vm988, %v5642, 0
    %v6164 = vsel %vm988, %v5643, 0
    %v6167 = vsel %vm988, %v5644, 0
    %v6170 = vsel %vm988, %v5645, 0
    %v6173 = vsel %vm988, %v5646, 0
    %v6176 = vsel %vm988, %v5647, 0
    %v6179 = vsel %vm988, %v5648, 0
    %v6182 = vsel %vm988, %v5649, 0
    %v6185 = vsel %vm988, %v5650, 0
    %v6188 = vsel %vm988, %v5651, 0
    %v6191 = vsel %vm988, %v5652, 0
    %v6194 = vsel %vm988, %v5653, 0
    %v6197 = vsel %vm988, %v5654, 0
    %v6200 = vsel %vm988, %v5655, 0
    %v6203 = vsel %vm988, %v5656, 0
    %v6206 = vsel %vm988, %v5657, 0
    %v6209 = vsel %vm1037, %v6159, 0
    %6211 = vmatprep.subr.mxu0 0.0
    %6212 = vmatpush1.msra.mxu0 %v6209
    %6213 = vmatprep.subr.mxu0 0.0
    %6214 = vmatpush1.msra.mxu0 0.0
    %6215 = vmatprep.subr.mxu0 0.0
    %6216 = vmatpush1.msra.mxu0 0.0
    %6217 = vmatprep.subr.mxu0 0.0
    %6218 = vmatpush1.msra.mxu0 0.0
    %6219 = vmatprep.subr.mxu0 0.0
    %6220 = vmatpush1.msra.mxu0 0.0
    %6221 = vmatprep.subr.mxu0 0.0
    %6222 = vmatpush1.msra.mxu0 0.0
    %6223 = vmatprep.subr.mxu0 0.0
    %6224 = vmatpush1.msra.mxu0 0.0
    %6225 = vmatprep.subr.mxu0 0.0
    %6226 = vmatpush1.msra.mxu0 0.0
    %6227 = vmatprep.subr.mxu0 0.0
    %6228 = vmatpush1.msra.mxu0 0.0
    %6229 = vmatprep.subr.mxu0 0.0
    %6230 = vmatpush1.msra.mxu0 0.0
    %6231 = vmatprep.subr.mxu0 0.0
    %6232 = vmatpush1.msra.mxu0 0.0
    %6233 = vmatprep.subr.mxu0 0.0
    %6234 = vmatpush1.msra.mxu0 0.0
    %6235 = vmatprep.subr.mxu0 0.0
    %6236 = vmatpush1.msra.mxu0 0.0
    %6237 = vmatprep.subr.mxu0 0.0
    %6238 = vmatpush1.msra.mxu0 0.0
    %6239 = vmatprep.subr.mxu0 0.0
    %6240 = vmatpush1.msra.mxu0 0.0
    %6241 = vmatprep.subr.mxu0 0.0
    %6242 = vmatpush1.msra.mxu0 0.0
    %6243 = vmatprep.subr.mxu0 0.0
    %6244 = vmatpush1.msra.mxu0 0.0
    %6245 = vmatprep.subr.mxu0 0.0
    %6246 = vmatpush1.msra.mxu0 0.0
    %6247 = vmatprep.subr.mxu0 0.0
    %6248 = vmatpush1.msra.mxu0 0.0
    %6249 = vmatprep.subr.mxu0 0.0
    %6250 = vmatpush1.msra.mxu0 0.0
    %6251 = vmatprep.subr.mxu0 0.0
    %6252 = vmatpush1.msra.mxu0 0.0
    %6253 = vmatprep.subr.mxu0 0.0
    %6254 = vmatpush1.msra.mxu0 0.0
    %6255 = vmatprep.subr.mxu0 0.0
    %6256 = vmatpush1.msra.mxu0 0.0
    %6257 = vmatprep.subr.mxu0 0.0
    %6258 = vmatpush1.msra.mxu0 0.0
    %6259 = vmatprep.subr.mxu0 0.0
    %6260 = vmatpush1.msra.mxu0 0.0
    %6261 = vmatprep.subr.mxu0 0.0
    %6262 = vmatpush1.msra.mxu0 0.0
    %6263 = vmatprep.subr.mxu0 0.0
    %6264 = vmatpush1.msra.mxu0 0.0
    %6265 = vmatprep.subr.mxu0 0.0
    %6266 = vmatpush1.msra.mxu0 0.0
    %6267 = vmatprep.subr.mxu0 0.0
    %6268 = vmatpush1.msra.mxu0 0.0
    %6269 = vmatprep.subr.mxu0 0.0
    %6270 = vmatpush1.msra.mxu0 0.0
    %6271 = vmatprep.subr.mxu0 0.0
    %6272 = vmatpush1.msra.mxu0 0.0
    %6273 = vmatprep.subr.mxu0 0.0
    %6274 = vmatpush1.msra.mxu0 0.0
    %6275 = vmatprep.mubr.f32.mxu0 0.0
    %6276 = vmatmul.mubr.f32.gmra.mrb[0].mxu0 %v6161
    %v6277 = vpop.f32.mrb[0].mxu0
    %v6278 = vadd.f32 0.0, %v6277
    %v6279 = vpop.f32.mrb[0].mxu0
    %6280 = vmatprep.mubr.f32.mxu0 0.0
    %6281 = vmatmul.mubr.f32.gmra.mrb[0].mxu0 %v6164
    %v6282 = vpop.f32.mrb[0].mxu0
    %v6283 = vadd.f32 0.0, %v6282
    %v6284 = vpop.f32.mrb[0].mxu0
    %6285 = vmatprep.mubr.f32.mxu0 0.0
    %6286 = vmatmul.mubr.f32.gmra.mrb[0].mxu0 %v6167
    %v6287 = vpop.f32.mrb[0].mxu0
    %v6288 = vadd.f32 0.0, %v6287
    %v6289 = vpop.f32.mrb[0].mxu0
    %6290 = vmatprep.mubr.f32.mxu0 0.0
    %6291 = vmatmul.mubr.f32.gmra.mrb[0].mxu0 %v6170
    %v6292 = vpop.f32.mrb[0].mxu0
    %v6293 = vadd.f32 0.0, %v6292
    %v6294 = vpop.f32.mrb[0].mxu0
    %6295 = vmatprep.mubr.f32.mxu0 0.0
    %6296 = vmatmul.mubr.f32.gmra.mrb[0].mxu0 %v6173
    %v6297 = vpop.f32.mrb[0].mxu0
    %v6298 = vadd.f32 0.0, %v6297
    %v6299 = vpop.f32.mrb[0].mxu0
    %6300 = vmatprep.mubr.f32.mxu0 0.0
    %6301 = vmatmul.mubr.f32.gmra.mrb[0].mxu0 %v6176
    %v6302 = vpop.f32.mrb[0].mxu0
    %v6303 = vadd.f32 0.0, %v6302
    %v6304 = vpop.f32.mrb[0].mxu0
    %6305 = vmatprep.mubr.f32.mxu0 0.0
    %6306 = vmatmul.mubr.f32.gmra.mrb[0].mxu0 %v6179
    %v6307 = vpop.f32.mrb[0].mxu0
    %v6308 = vadd.f32 0.0, %v6307
    %v6309 = vpop.f32.mrb[0].mxu0
    %6310 = vmatprep.mubr.f32.mxu0 0.0
    %6311 = vmatmul.mubr.f32.gmra.mrb[0].mxu0 %v6182
    %v6312 = vpop.f32.mrb[0].mxu0
    %v6313 = vadd.f32 0.0, %v6312
    %v6314 = vpop.f32.mrb[0].mxu0
    %6315 = vmatprep.mubr.f32.mxu0 0.0
    %6316 = vmatmul.mubr.f32.gmra.mrb[0].mxu0 %v6185
    %v6317 = vpop.f32.mrb[0].mxu0
    %v6318 = vadd.f32 0.0, %v6317
    %v6319 = vpop.f32.mrb[0].mxu0
    %6320 = vmatprep.mubr.f32.mxu0 0.0
    %6321 = vmatmul.mubr.f32.gmra.mrb[0].mxu0 %v6188
    %v6322 = vpop.f32.mrb[0].mxu0
    %v6323 = vadd.f32 0.0, %v6322
    %v6324 = vpop.f32.mrb[0].mxu0
    %6325 = vmatprep.mubr.f32.mxu0 0.0
    %6326 = vmatmul.mubr.f32.gmra.mrb[0].mxu0 %v6191
    %v6327 = vpop.f32.mrb[0].mxu0
    %v6328 = vadd.f32 0.0, %v6327
    %v6329 = vpop.f32.mrb[0].mxu0
    %6330 = vmatprep.mubr.f32.mxu0 0.0
    %6331 = vmatmul.mubr.f32.gmra.mrb[0].mxu0 %v6194
    %v6332 = vpop.f32.mrb[0].mxu0
    %v6333 = vadd.f32 0.0, %v6332
    %v6334 = vpop.f32.mrb[0].mxu0
    %6335 = vmatprep.mubr.f32.mxu0 0.0
    %6336 = vmatmul.mubr.f32.gmra.mrb[0].mxu0 %v6197
    %v6337 = vpop.f32.mrb[0].mxu0
    %v6338 = vadd.f32 0.0, %v6337
    %v6339 = vpop.f32.mrb[0].mxu0
    %6340 = vmatprep.mubr.f32.mxu0 0.0
    %6341 = vmatmul.mubr.f32.gmra.mrb[0].mxu0 %v6200
    %v6342 = vpop.f32.mrb[0].mxu0
    %v6343 = vadd.f32 0.0, %v6342
    %v6344 = vpop.f32.mrb[0].mxu0
    %6345 = vmatprep.mubr.f32.mxu0 0.0
    %6346 = vmatmul.mubr.f32.gmra.mrb[0].mxu0 %v6203
    %v6347 = vpop.f32.mrb[0].mxu0
    %v6348 = vadd.f32 0.0, %v6347
    %v6349 = vpop.f32.mrb[0].mxu0
    %6350 = vmatprep.mubr.f32.mxu0 0.0
    %6351 = vmatmul.mubr.f32.gmra.mrb[0].mxu0 %v6206
    %v6352 = vpop.f32.mrb[0].mxu0
    %v6353 = vadd.f32 0.0, %v6352
    %v6354 = vpop.f32.mrb[0].mxu0
    %6355 = vdwg.mxu0
    %v6356 = vadd.f32 %v6080, %v6278
    %v6357 = vadd.f32 %v6085, %v6283
    %v6358 = vadd.f32 %v6090, %v6288
    %v6359 = vadd.f32 %v6095, %v6293
    %v6360 = vadd.f32 %v6100, %v6298
    %v6361 = vadd.f32 %v6105, %v6303
    %v6362 = vadd.f32 %v6110, %v6308
    %v6363 = vadd.f32 %v6115, %v6313
    %v6364 = vadd.f32 %v6120, %v6318
    %v6365 = vadd.f32 %v6125, %v6323
    %v6366 = vadd.f32 %v6130, %v6328
    %v6367 = vadd.f32 %v6135, %v6333
    %v6368 = vadd.f32 %v6140, %v6338
    %v6369 = vadd.f32 %v6145, %v6343
    %v6370 = vadd.f32 %v6150, %v6348
    %v6371 = vadd.f32 %v6155, %v6353
    %s6372 = scalar_lea.vmem %s4, 2
    %v6373 = vld [vmem:[%s6372] sm:$0x1]
    %v6375 = vlaneseq
    %v6376 = vshrl.u32 %v6375, 7
    %v6377 = vsub.s32 0, %v6376
    %v6378 = vrot.slane %v6373, %v6377
    %v6380 = vadd.f32 %v6356, %v6378
    %v6381 = vadd.f32 %v6357, %v6378
    %v6382 = vadd.f32 %v6358, %v6378
    %v6383 = vadd.f32 %v6359, %v6378
    %v6384 = vadd.f32 %v6360, %v6378
    %v6385 = vadd.f32 %v6361, %v6378
    %v6386 = vadd.f32 %v6362, %v6378
    %v6387 = vadd.f32 %v6363, %v6378
    %v6388 = vadd.f32 %v6364, %v6378
    %v6389 = vadd.f32 %v6365, %v6378
    %v6390 = vadd.f32 %v6366, %v6378
    %v6391 = vadd.f32 %v6367, %v6378
    %v6392 = vadd.f32 %v6368, %v6378
    %v6393 = vadd.f32 %v6369, %v6378
    %v6394 = vadd.f32 %v6370, %v6378
    %v6395 = vadd.f32 %v6371, %v6378
    %v6396 = vxor.u32 %v6380, 2147483648
    %v6397 = vxor.u32 %v6381, 2147483648
    %v6398 = vxor.u32 %v6382, 2147483648
    %v6399 = vxor.u32 %v6383, 2147483648
    %v6400 = vxor.u32 %v6384, 2147483648
    %v6401 = vxor.u32 %v6385, 2147483648
    %v6402 = vxor.u32 %v6386, 2147483648
    %v6403 = vxor.u32 %v6387, 2147483648
    %v6404 = vxor.u32 %v6388, 2147483648
    %v6405 = vxor.u32 %v6389, 2147483648
    %v6406 = vxor.u32 %v6390, 2147483648
    %v6407 = vxor.u32 %v6391, 2147483648
    %v6408 = vxor.u32 %v6392, 2147483648
    %v6409 = vxor.u32 %v6393, 2147483648
    %v6410 = vxor.u32 %v6394, 2147483648
    %v6411 = vxor.u32 %v6395, 2147483648
    %v6412 = vmul.f32 %v6396, 1.442695
    %v6413 = vpow.pop %v6412
    %v6414 = vmul.f32 %v6397, 1.442695
    %v6415 = vpow.pop %v6414
    %v6416 = vmul.f32 %v6398, 1.442695
    %v6417 = vpow.pop %v6416
    %v6418 = vmul.f32 %v6399, 1.442695
    %v6419 = vpow.pop %v6418
    %v6420 = vmul.f32 %v6400, 1.442695
    %v6421 = vpow.pop %v6420
    %v6422 = vmul.f32 %v6401, 1.442695
    %v6423 = vpow.pop %v6422
    %v6424 = vmul.f32 %v6402, 1.442695
    %v6425 = vpow.pop %v6424
    %v6426 = vmul.f32 %v6403, 1.442695
    %v6427 = vpow.pop %v6426
    %v6428 = vmul.f32 %v6404, 1.442695
    %v6429 = vpow.pop %v6428
    %v6430 = vmul.f32 %v6405, 1.442695
    %v6431 = vpow.pop %v6430
    %v6432 = vmul.f32 %v6406, 1.442695
    %v6433 = vpow.pop %v6432
    %v6434 = vmul.f32 %v6407, 1.442695
    %v6435 = vpow.pop %v6434
    %v6436 = vmul.f32 %v6408, 1.442695
    %v6437 = vpow.pop %v6436
    %v6438 = vmul.f32 %v6409, 1.442695
    %v6439 = vpow.pop %v6438
    %v6440 = vmul.f32 %v6410, 1.442695
    %v6441 = vpow.pop %v6440
    %v6442 = vmul.f32 %v6411, 1.442695
    %v6443 = vpow.pop %v6442
    %v6444 = vadd.f32 %v6413, 1.0
    %v6445 = vadd.f32 %v6415, 1.0
    %v6446 = vadd.f32 %v6417, 1.0
    %v6447 = vadd.f32 %v6419, 1.0
    %v6448 = vadd.f32 %v6421, 1.0
    %v6449 = vadd.f32 %v6423, 1.0
    %v6450 = vadd.f32 %v6425, 1.0
    %v6451 = vadd.f32 %v6427, 1.0
    %v6452 = vadd.f32 %v6429, 1.0
    %v6453 = vadd.f32 %v6431, 1.0
    %v6454 = vadd.f32 %v6433, 1.0
    %v6455 = vadd.f32 %v6435, 1.0
    %v6456 = vadd.f32 %v6437, 1.0
    %v6457 = vadd.f32 %v6439, 1.0
    %v6458 = vadd.f32 %v6441, 1.0
    %v6459 = vadd.f32 %v6443, 1.0
    %v6460 = vrcp.pop %v6444
    %v6461 = vmul.f32 1.0, %v6460
    %v6462 = vrcp.pop %v6445
    %v6463 = vmul.f32 1.0, %v6462
    %v6464 = vrcp.pop %v6446
    %v6465 = vmul.f32 1.0, %v6464
    %v6466 = vrcp.pop %v6447
    %v6467 = vmul.f32 1.0, %v6466
    %v6468 = vrcp.pop %v6448
    %v6469 = vmul.f32 1.0, %v6468
    %v6470 = vrcp.pop %v6449
    %v6471 = vmul.f32 1.0, %v6470
    %v6472 = vrcp.pop %v6450
    %v6473 = vmul.f32 1.0, %v6472
    %v6474 = vrcp.pop %v6451
    %v6475 = vmul.f32 1.0, %v6474
    %v6476 = vrcp.pop %v6452
    %v6477 = vmul.f32 1.0, %v6476
    %v6478 = vrcp.pop %v6453
    %v6479 = vmul.f32 1.0, %v6478
    %v6480 = vrcp.pop %v6454
    %v6481 = vmul.f32 1.0, %v6480
    %v6482 = vrcp.pop %v6455
    %v6483 = vmul.f32 1.0, %v6482
    %v6484 = vrcp.pop %v6456
    %v6485 = vmul.f32 1.0, %v6484
    %v6486 = vrcp.pop %v6457
    %v6487 = vmul.f32 1.0, %v6486
    %v6488 = vrcp.pop %v6458
    %v6489 = vmul.f32 1.0, %v6488
    %v6490 = vrcp.pop %v6459
    %v6491 = vmul.f32 1.0, %v6490
    %v6492 = vmul.f32 %v6380, %v6461
    %v6493 = vmul.f32 %v6381, %v6463
    %v6494 = vmul.f32 %v6382, %v6465
    %v6495 = vmul.f32 %v6383, %v6467
    %v6496 = vmul.f32 %v6384, %v6469
    %v6497 = vmul.f32 %v6385, %v6471
    %v6498 = vmul.f32 %v6386, %v6473
    %v6499 = vmul.f32 %v6387, %v6475
    %v6500 = vmul.f32 %v6388, %v6477
    %v6501 = vmul.f32 %v6389, %v6479
    %v6502 = vmul.f32 %v6390, %v6481
    %v6503 = vmul.f32 %v6391, %v6483
    %v6504 = vmul.f32 %v6392, %v6485
    %v6505 = vmul.f32 %v6393, %v6487
    %v6506 = vmul.f32 %v6394, %v6489
    %v6507 = vmul.f32 %v6395, %v6491
    %s6508 = scalar_lea.vmem [#allocation2], 320
    %v6509 = vld [vmem:[%s6508] sm:$0xff]
    %v6510 = vld [vmem:[%s6508 + $0x8] sm:$0xff]
    %v6511 = vld [vmem:[%s6508 + $0x10] sm:$0xff]
    %v6512 = vld [vmem:[%s6508 + $0x18] sm:$0xff]
    %s6513 = scalar_lea.vmem %s4, 6
    %v6514 = vld [vmem:[%s6513] sm:$0x1]
    %v6516 = vlaneseq
    %v6517 = vshrl.u32 %v6516, 7
    %v6518 = vsub.s32 0, %v6517
    %v6519 = vrot.slane %v6514, %v6518
    %v6522 = vsel %vm660, %v6492, 0
    %v6525 = vsel %vm660, %v6493, 0
    %v6528 = vsel %vm660, %v6494, 0
    %v6531 = vsel %vm660, %v6495, 0
    %v6534 = vsel %vm660, %v6496, 0
    %v6537 = vsel %vm660, %v6497, 0
    %v6540 = vsel %vm660, %v6498, 0
    %v6543 = vsel %vm660, %v6499, 0
    %v6546 = vsel %vm660, %v6500, 0
    %v6549 = vsel %vm660, %v6501, 0
    %v6552 = vsel %vm660, %v6502, 0
    %v6555 = vsel %vm660, %v6503, 0
    %v6558 = vsel %vm660, %v6504, 0
    %v6561 = vsel %vm660, %v6505, 0
    %v6564 = vsel %vm660, %v6506, 0
    %v6567 = vsel %vm660, %v6507, 0
    %6569 = vmatprep.subr.mxu0 0.0
    %6570 = vmatpush1.msra.mxu0 %v6509
    %6571 = vmatprep.subr.mxu0 0.0
    %6572 = vmatpush1.msra.mxu0 %v6510
    %6573 = vmatprep.subr.mxu0 0.0
    %6574 = vmatpush1.msra.mxu0 %v6511
    %6575 = vmatprep.subr.mxu0 0.0
    %6576 = vmatpush1.msra.mxu0 %v6512
    %6577 = vmatprep.subr.mxu0 0.0
    %6578 = vmatpush1.msra.mxu0 0.0
    %6579 = vmatprep.subr.mxu0 0.0
    %6580 = vmatpush1.msra.mxu0 0.0
    %6581 = vmatprep.subr.mxu0 0.0
    %6582 = vmatpush1.msra.mxu0 0.0
    %6583 = vmatprep.subr.mxu0 0.0
    %6584 = vmatpush1.msra.mxu0 0.0
    %6585 = vmatprep.subr.mxu0 0.0
    %6586 = vmatpush1.msra.mxu0 0.0
    %6587 = vmatprep.subr.mxu0 0.0
    %6588 = vmatpush1.msra.mxu0 0.0
    %6589 = vmatprep.subr.mxu0 0.0
    %6590 = vmatpush1.msra.mxu0 0.0
    %6591 = vmatprep.subr.mxu0 0.0
    %6592 = vmatpush1.msra.mxu0 0.0
    %6593 = vmatprep.subr.mxu0 0.0
    %6594 = vmatpush1.msra.mxu0 0.0
    %6595 = vmatprep.subr.mxu0 0.0
    %6596 = vmatpush1.msra.mxu0 0.0
    %6597 = vmatprep.subr.mxu0 0.0
    %6598 = vmatpush1.msra.mxu0 0.0
    %6599 = vmatprep.subr.mxu0 0.0
    %6600 = vmatpush1.msra.mxu0 0.0
    %6601 = vmatprep.subr.mxu0 0.0
    %6602 = vmatpush1.msra.mxu0 0.0
    %6603 = vmatprep.subr.mxu0 0.0
    %6604 = vmatpush1.msra.mxu0 0.0
    %6605 = vmatprep.subr.mxu0 0.0
    %6606 = vmatpush1.msra.mxu0 0.0
    %6607 = vmatprep.subr.mxu0 0.0
    %6608 = vmatpush1.msra.mxu0 0.0
    %6609 = vmatprep.subr.mxu0 0.0
    %6610 = vmatpush1.msra.mxu0 0.0
    %6611 = vmatprep.subr.mxu0 0.0
    %6612 = vmatpush1.msra.mxu0 0.0
    %6613 = vmatprep.subr.mxu0 0.0
    %6614 = vmatpush1.msra.mxu0 0.0
    %6615 = vmatprep.subr.mxu0 0.0
    %6616 = vmatpush1.msra.mxu0 0.0
    %6617 = vmatprep.subr.mxu0 0.0
    %6618 = vmatpush1.msra.mxu0 0.0
    %6619 = vmatprep.subr.mxu0 0.0
    %6620 = vmatpush1.msra.mxu0 0.0
    %6621 = vmatprep.subr.mxu0 0.0
    %6622 = vmatpush1.msra.mxu0 0.0
    %6623 = vmatprep.subr.mxu0 0.0
    %6624 = vmatpush1.msra.mxu0 0.0
    %6625 = vmatprep.subr.mxu0 0.0
    %6626 = vmatpush1.msra.mxu0 0.0
    %6627 = vmatprep.subr.mxu0 0.0
    %6628 = vmatpush1.msra.mxu0 0.0
    %6629 = vmatprep.subr.mxu0 0.0
    %6630 = vmatpush1.msra.mxu0 0.0
    %6631 = vmatprep.subr.mxu0 0.0
    %6632 = vmatpush1.msra.mxu0 0.0
    %6633 = vmatprep.mubr.f32.mxu0 0.0
    %6634 = vmatmul.mubr.f32.gmra.mrb[0].mxu0 %v6522
    %v6635 = vpop.f32.mrb[0].mxu0
    %v6636 = vadd.f32 %v6519, %v6635
    %v6637 = vpop.f32.mrb[0].mxu0
    %6638 = vmatprep.mubr.f32.mxu0 0.0
    %6639 = vmatmul.mubr.f32.gmra.mrb[0].mxu0 %v6525
    %v6640 = vpop.f32.mrb[0].mxu0
    %v6641 = vadd.f32 %v6519, %v6640
    %v6642 = vpop.f32.mrb[0].mxu0
    %6643 = vmatprep.mubr.f32.mxu0 0.0
    %6644 = vmatmul.mubr.f32.gmra.mrb[0].mxu0 %v6528
    %v6645 = vpop.f32.mrb[0].mxu0
    %v6646 = vadd.f32 %v6519, %v6645
    %v6647 = vpop.f32.mrb[0].mxu0
    %6648 = vmatprep.mubr.f32.mxu0 0.0
    %6649 = vmatmul.mubr.f32.gmra.mrb[0].mxu0 %v6531
    %v6650 = vpop.f32.mrb[0].mxu0
    %v6651 = vadd.f32 %v6519, %v6650
    %v6652 = vpop.f32.mrb[0].mxu0
    %6653 = vmatprep.mubr.f32.mxu0 0.0
    %6654 = vmatmul.mubr.f32.gmra.mrb[0].mxu0 %v6534
    %v6655 = vpop.f32.mrb[0].mxu0
    %v6656 = vadd.f32 %v6519, %v6655
    %v6657 = vpop.f32.mrb[0].mxu0
    %6658 = vmatprep.mubr.f32.mxu0 0.0
    %6659 = vmatmul.mubr.f32.gmra.mrb[0].mxu0 %v6537
    %v6660 = vpop.f32.mrb[0].mxu0
    %v6661 = vadd.f32 %v6519, %v6660
    %v6662 = vpop.f32.mrb[0].mxu0
    %6663 = vmatprep.mubr.f32.mxu0 0.0
    %6664 = vmatmul.mubr.f32.gmra.mrb[0].mxu0 %v6540
    %v6665 = vpop.f32.mrb[0].mxu0
    %v6666 = vadd.f32 %v6519, %v6665
    %v6667 = vpop.f32.mrb[0].mxu0
    %6668 = vmatprep.mubr.f32.mxu0 0.0
    %6669 = vmatmul.mubr.f32.gmra.mrb[0].mxu0 %v6543
    %v6670 = vpop.f32.mrb[0].mxu0
    %v6671 = vadd.f32 %v6519, %v6670
    %v6672 = vpop.f32.mrb[0].mxu0
    %6673 = vmatprep.mubr.f32.mxu0 0.0
    %6674 = vmatmul.mubr.f32.gmra.mrb[0].mxu0 %v6546
    %v6675 = vpop.f32.mrb[0].mxu0
    %v6676 = vadd.f32 %v6519, %v6675
    %v6677 = vpop.f32.mrb[0].mxu0
    %6678 = vmatprep.mubr.f32.mxu0 0.0
    %6679 = vmatmul.mubr.f32.gmra.mrb[0].mxu0 %v6549
    %v6680 = vpop.f32.mrb[0].mxu0
    %v6681 = vadd.f32 %v6519, %v6680
    %v6682 = vpop.f32.mrb[0].mxu0
    %6683 = vmatprep.mubr.f32.mxu0 0.0
    %6684 = vmatmul.mubr.f32.gmra.mrb[0].mxu0 %v6552
    %v6685 = vpop.f32.mrb[0].mxu0
    %v6686 = vadd.f32 %v6519, %v6685
    %v6687 = vpop.f32.mrb[0].mxu0
    %6688 = vmatprep.mubr.f32.mxu0 0.0
    %6689 = vmatmul.mubr.f32.gmra.mrb[0].mxu0 %v6555
    %v6690 = vpop.f32.mrb[0].mxu0
    %v6691 = vadd.f32 %v6519, %v6690
    %v6692 = vpop.f32.mrb[0].mxu0
    %6693 = vmatprep.mubr.f32.mxu0 0.0
    %6694 = vmatmul.mubr.f32.gmra.mrb[0].mxu0 %v6558
    %v6695 = vpop.f32.mrb[0].mxu0
    %v6696 = vadd.f32 %v6519, %v6695
    %v6697 = vpop.f32.mrb[0].mxu0
    %6698 = vmatprep.mubr.f32.mxu0 0.0
    %6699 = vmatmul.mubr.f32.gmra.mrb[0].mxu0 %v6561
    %v6700 = vpop.f32.mrb[0].mxu0
    %v6701 = vadd.f32 %v6519, %v6700
    %v6702 = vpop.f32.mrb[0].mxu0
    %6703 = vmatprep.mubr.f32.mxu0 0.0
    %6704 = vmatmul.mubr.f32.gmra.mrb[0].mxu0 %v6564
    %v6705 = vpop.f32.mrb[0].mxu0
    %v6706 = vadd.f32 %v6519, %v6705
    %v6707 = vpop.f32.mrb[0].mxu0
    %6708 = vmatprep.mubr.f32.mxu0 0.0
    %6709 = vmatmul.mubr.f32.gmra.mrb[0].mxu0 %v6567
    %v6710 = vpop.f32.mrb[0].mxu0
    %v6711 = vadd.f32 %v6519, %v6710
    %v6712 = vpop.f32.mrb[0].mxu0
    %6713 = vdwg.mxu0
    %v6714 = vxor.u32 %v6636, 2147483648
    %v6715 = vxor.u32 %v6641, 2147483648
    %v6716 = vxor.u32 %v6646, 2147483648
    %v6717 = vxor.u32 %v6651, 2147483648
    %v6718 = vxor.u32 %v6656, 2147483648
    %v6719 = vxor.u32 %v6661, 2147483648
    %v6720 = vxor.u32 %v6666, 2147483648
    %v6721 = vxor.u32 %v6671, 2147483648
    %v6722 = vxor.u32 %v6676, 2147483648
    %v6723 = vxor.u32 %v6681, 2147483648
    %v6724 = vxor.u32 %v6686, 2147483648
    %v6725 = vxor.u32 %v6691, 2147483648
    %v6726 = vxor.u32 %v6696, 2147483648
    %v6727 = vxor.u32 %v6701, 2147483648
    %v6728 = vxor.u32 %v6706, 2147483648
    %v6729 = vxor.u32 %v6711, 2147483648
    %v6730 = vmul.f32 %v6714, 1.442695
    %v6731 = vpow.pop %v6730
    %v6732 = vmul.f32 %v6715, 1.442695
    %v6733 = vpow.pop %v6732
    %v6734 = vmul.f32 %v6716, 1.442695
    %v6735 = vpow.pop %v6734
    %v6736 = vmul.f32 %v6717, 1.442695
    %v6737 = vpow.pop %v6736
    %v6738 = vmul.f32 %v6718, 1.442695
    %v6739 = vpow.pop %v6738
    %v6740 = vmul.f32 %v6719, 1.442695
    %v6741 = vpow.pop %v6740
    %v6742 = vmul.f32 %v6720, 1.442695
    %v6743 = vpow.pop %v6742
    %v6744 = vmul.f32 %v6721, 1.442695
    %v6745 = vpow.pop %v6744
    %v6746 = vmul.f32 %v6722, 1.442695
    %v6747 = vpow.pop %v6746
    %v6748 = vmul.f32 %v6723, 1.442695
    %v6749 = vpow.pop %v6748
    %v6750 = vmul.f32 %v6724, 1.442695
    %v6751 = vpow.pop %v6750
    %v6752 = vmul.f32 %v6725, 1.442695
    %v6753 = vpow.pop %v6752
    %v6754 = vmul.f32 %v6726, 1.442695
    %v6755 = vpow.pop %v6754
    %v6756 = vmul.f32 %v6727, 1.442695
    %v6757 = vpow.pop %v6756
    %v6758 = vmul.f32 %v6728, 1.442695
    %v6759 = vpow.pop %v6758
    %v6760 = vmul.f32 %v6729, 1.442695
    %v6761 = vpow.pop %v6760
    %v6762 = vadd.f32 %v6731, 1.0
    %v6763 = vadd.f32 %v6733, 1.0
    %v6764 = vadd.f32 %v6735, 1.0
    %v6765 = vadd.f32 %v6737, 1.0
    %v6766 = vadd.f32 %v6739, 1.0
    %v6767 = vadd.f32 %v6741, 1.0
    %v6768 = vadd.f32 %v6743, 1.0
    %v6769 = vadd.f32 %v6745, 1.0
    %v6770 = vadd.f32 %v6747, 1.0
    %v6771 = vadd.f32 %v6749, 1.0
    %v6772 = vadd.f32 %v6751, 1.0
    %v6773 = vadd.f32 %v6753, 1.0
    %v6774 = vadd.f32 %v6755, 1.0
    %v6775 = vadd.f32 %v6757, 1.0
    %v6776 = vadd.f32 %v6759, 1.0
    %v6777 = vadd.f32 %v6761, 1.0
    %v6778 = vrcp.pop %v6762
    %v6779 = vmul.f32 1.0, %v6778
    %v6780 = vrcp.pop %v6763
    %v6781 = vmul.f32 1.0, %v6780
    %v6782 = vrcp.pop %v6764
    %v6783 = vmul.f32 1.0, %v6782
    %v6784 = vrcp.pop %v6765
    %v6785 = vmul.f32 1.0, %v6784
    %v6786 = vrcp.pop %v6766
    %v6787 = vmul.f32 1.0, %v6786
    %v6788 = vrcp.pop %v6767
    %v6789 = vmul.f32 1.0, %v6788
    %v6790 = vrcp.pop %v6768
    %v6791 = vmul.f32 1.0, %v6790
    %v6792 = vrcp.pop %v6769
    %v6793 = vmul.f32 1.0, %v6792
    %v6794 = vrcp.pop %v6770
    %v6795 = vmul.f32 1.0, %v6794
    %v6796 = vrcp.pop %v6771
    %v6797 = vmul.f32 1.0, %v6796
    %v6798 = vrcp.pop %v6772
    %v6799 = vmul.f32 1.0, %v6798
    %v6800 = vrcp.pop %v6773
    %v6801 = vmul.f32 1.0, %v6800
    %v6802 = vrcp.pop %v6774
    %v6803 = vmul.f32 1.0, %v6802
    %v6804 = vrcp.pop %v6775
    %v6805 = vmul.f32 1.0, %v6804
    %v6806 = vrcp.pop %v6776
    %v6807 = vmul.f32 1.0, %v6806
    %v6808 = vrcp.pop %v6777
    %v6809 = vmul.f32 1.0, %v6808
    %v6810 = vmul.f32 %v6636, %v6779
    %v6811 = vmul.f32 %v6641, %v6781
    %v6812 = vmul.f32 %v6646, %v6783
    %v6813 = vmul.f32 %v6651, %v6785
    %v6814 = vmul.f32 %v6656, %v6787
    %v6815 = vmul.f32 %v6661, %v6789
    %v6816 = vmul.f32 %v6666, %v6791
    %v6817 = vmul.f32 %v6671, %v6793
    %v6818 = vmul.f32 %v6676, %v6795
    %v6819 = vmul.f32 %v6681, %v6797
    %v6820 = vmul.f32 %v6686, %v6799
    %v6821 = vmul.f32 %v6691, %v6801
    %v6822 = vmul.f32 %v6696, %v6803
    %v6823 = vmul.f32 %v6701, %v6805
    %v6824 = vmul.f32 %v6706, %v6807
    %v6825 = vmul.f32 %v6711, %v6809
    %v6826 = vmul.f32 %v6810, %v1658
    %v6827 = vmul.f32 %v6811, %v1663
    %v6828 = vmul.f32 %v6812, %v1668
    %v6829 = vmul.f32 %v6813, %v1673
    %v6830 = vmul.f32 %v6814, %v1678
    %v6831 = vmul.f32 %v6815, %v1683
    %v6832 = vmul.f32 %v6816, %v1688
    %v6833 = vmul.f32 %v6817, %v1693
    %v6834 = vmul.f32 %v6818, %v1698
    %v6835 = vmul.f32 %v6819, %v1703
    %v6836 = vmul.f32 %v6820, %v1708
    %v6837 = vmul.f32 %v6821, %v1713
    %v6838 = vmul.f32 %v6822, %v1718
    %v6839 = vmul.f32 %v6823, %v1723
    %v6840 = vmul.f32 %v6824, %v1728
    %v6841 = vmul.f32 %v6825, %v1733
    %v6842 = vsel %vm660, %v6826, 0.0
    %v6843 = vrot.slane %v6842, 4
    %v6844 = vadd.f32 %v6842, %v6843
    %v6845 = vrot.slane %v6844, 2
    %v6846 = vadd.f32 %v6844, %v6845
    %v6847 = vrot.slane %v6846, 1
    %v6848 = vadd.f32 %v6846, %v6847
    %v6849 = vsel %vm660, %v6827, 0.0
    %v6850 = vrot.slane %v6849, 4
    %v6851 = vadd.f32 %v6849, %v6850
    %v6852 = vrot.slane %v6851, 2
    %v6853 = vadd.f32 %v6851, %v6852
    %v6854 = vrot.slane %v6853, 1
    %v6855 = vadd.f32 %v6853, %v6854
    %v6856 = vsel %vm660, %v6828, 0.0
    %v6857 = vrot.slane %v6856, 4
    %v6858 = vadd.f32 %v6856, %v6857
    %v6859 = vrot.slane %v6858, 2
    %v6860 = vadd.f32 %v6858, %v6859
    %v6861 = vrot.slane %v6860, 1
    %v6862 = vadd.f32 %v6860, %v6861
    %v6863 = vsel %vm660, %v6829, 0.0
    %v6864 = vrot.slane %v6863, 4
    %v6865 = vadd.f32 %v6863, %v6864
    %v6866 = vrot.slane %v6865, 2
    %v6867 = vadd.f32 %v6865, %v6866
    %v6868 = vrot.slane %v6867, 1
    %v6869 = vadd.f32 %v6867, %v6868
    %v6870 = vsel %vm660, %v6830, 0.0
    %v6871 = vrot.slane %v6870, 4
    %v6872 = vadd.f32 %v6870, %v6871
    %v6873 = vrot.slane %v6872, 2
    %v6874 = vadd.f32 %v6872, %v6873
    %v6875 = vrot.slane %v6874, 1
    %v6876 = vadd.f32 %v6874, %v6875
    %v6877 = vsel %vm660, %v6831, 0.0
    %v6878 = vrot.slane %v6877, 4
    %v6879 = vadd.f32 %v6877, %v6878
    %v6880 = vrot.slane %v6879, 2
    %v6881 = vadd.f32 %v6879, %v6880
    %v6882 = vrot.slane %v6881, 1
    %v6883 = vadd.f32 %v6881, %v6882
    %v6884 = vsel %vm660, %v6832, 0.0
    %v6885 = vrot.slane %v6884, 4
    %v6886 = vadd.f32 %v6884, %v6885
    %v6887 = vrot.slane %v6886, 2
    %v6888 = vadd.f32 %v6886, %v6887
    %v6889 = vrot.slane %v6888, 1
    %v6890 = vadd.f32 %v6888, %v6889
    %v6891 = vsel %vm660, %v6833, 0.0
    %v6892 = vrot.slane %v6891, 4
    %v6893 = vadd.f32 %v6891, %v6892
    %v6894 = vrot.slane %v6893, 2
    %v6895 = vadd.f32 %v6893, %v6894
    %v6896 = vrot.slane %v6895, 1
    %v6897 = vadd.f32 %v6895, %v6896
    %v6898 = vsel %vm660, %v6834, 0.0
    %v6899 = vrot.slane %v6898, 4
    %v6900 = vadd.f32 %v6898, %v6899
    %v6901 = vrot.slane %v6900, 2
    %v6902 = vadd.f32 %v6900, %v6901
    %v6903 = vrot.slane %v6902, 1
    %v6904 = vadd.f32 %v6902, %v6903
    %v6905 = vsel %vm660, %v6835, 0.0
    %v6906 = vrot.slane %v6905, 4
    %v6907 = vadd.f32 %v6905, %v6906
    %v6908 = vrot.slane %v6907, 2
    %v6909 = vadd.f32 %v6907, %v6908
    %v6910 = vrot.slane %v6909, 1
    %v6911 = vadd.f32 %v6909, %v6910
    %v6912 = vsel %vm660, %v6836, 0.0
    %v6913 = vrot.slane %v6912, 4
    %v6914 = vadd.f32 %v6912, %v6913
    %v6915 = vrot.slane %v6914, 2
    %v6916 = vadd.f32 %v6914, %v6915
    %v6917 = vrot.slane %v6916, 1
    %v6918 = vadd.f32 %v6916, %v6917
    %v6919 = vsel %vm660, %v6837, 0.0
    %v6920 = vrot.slane %v6919, 4
    %v6921 = vadd.f32 %v6919, %v6920
    %v6922 = vrot.slane %v6921, 2
    %v6923 = vadd.f32 %v6921, %v6922
    %v6924 = vrot.slane %v6923, 1
    %v6925 = vadd.f32 %v6923, %v6924
    %v6926 = vsel %vm660, %v6838, 0.0
    %v6927 = vrot.slane %v6926, 4
    %v6928 = vadd.f32 %v6926, %v6927
    %v6929 = vrot.slane %v6928, 2
    %v6930 = vadd.f32 %v6928, %v6929
    %v6931 = vrot.slane %v6930, 1
    %v6932 = vadd.f32 %v6930, %v6931
    %v6933 = vsel %vm660, %v6839, 0.0
    %v6934 = vrot.slane %v6933, 4
    %v6935 = vadd.f32 %v6933, %v6934
    %v6936 = vrot.slane %v6935, 2
    %v6937 = vadd.f32 %v6935, %v6936
    %v6938 = vrot.slane %v6937, 1
    %v6939 = vadd.f32 %v6937, %v6938
    %v6940 = vsel %vm660, %v6840, 0.0
    %v6941 = vrot.slane %v6940, 4
    %v6942 = vadd.f32 %v6940, %v6941
    %v6943 = vrot.slane %v6942, 2
    %v6944 = vadd.f32 %v6942, %v6943
    %v6945 = vrot.slane %v6944, 1
    %v6946 = vadd.f32 %v6944, %v6945
    %v6947 = vsel %vm660, %v6841, 0.0
    %v6948 = vrot.slane %v6947, 4
    %v6949 = vadd.f32 %v6947, %v6948
    %v6950 = vrot.slane %v6949, 2
    %v6951 = vadd.f32 %v6949, %v6950
    %v6952 = vrot.slane %v6951, 1
    %v6953 = vadd.f32 %v6951, %v6952
    %s6954 = scalar_lea.vmem [#allocation2], 448
    %v6955 = vld [vmem:[%s6954] sm:$0xff]
    %v6956 = vld [vmem:[%s6954 + $0x8] sm:$0xff]
    %v6957 = vld [vmem:[%s6954 + $0x10] sm:$0xff]
    %v6958 = vld [vmem:[%s6954 + $0x18] sm:$0xff]
    %s6959 = scalar_lea.vmem [#allocation2], 576
    %v6960 = vld [vmem:[%s6959] sm:$0xff]
    %v6961 = vld [vmem:[%s6959 + $0x8] sm:$0xff]
    %v6962 = vld [vmem:[%s6959 + $0x10] sm:$0xff]
    %v6963 = vld [vmem:[%s6959 + $0x18] sm:$0xff]
    %v6980 = vsel %vm1889, %v6855, %v6848
    %v6981 = vsel %vm1891, %v6862, %v6980
    %v6982 = vsel %vm1893, %v6869, %v6981
    %v6983 = vsel %vm1895, %v6876, %v6982
    %v6984 = vsel %vm1897, %v6883, %v6983
    %v6985 = vsel %vm1899, %v6890, %v6984
    %v6986 = vsel %vm1901, %v6897, %v6985
    %v6987 = vsel %vm1889, %v6911, %v6904
    %v6988 = vsel %vm1891, %v6918, %v6987
    %v6989 = vsel %vm1893, %v6925, %v6988
    %v6990 = vsel %vm1895, %v6932, %v6989
    %v6991 = vsel %vm1897, %v6939, %v6990
    %v6992 = vsel %vm1899, %v6946, %v6991
    %v6993 = vsel %vm1901, %v6953, %v6992
    %v6994 = vsel %vm660, %v6986, 0
    %v6996 = vsel %vm660, %v6993, 0
    %6998 = vmatprep.subr.mxu0 0.0
    %6999 = vmatpush1.msra.mxu0 %v6960
    %7000 = vmatprep.subr.mxu0 0.0
    %7001 = vmatpush1.msra.mxu0 %v6961
    %7002 = vmatprep.subr.mxu0 0.0
    %7003 = vmatpush1.msra.mxu0 %v6962
    %7004 = vmatprep.subr.mxu0 0.0
    %7005 = vmatpush1.msra.mxu0 %v6963
    %7006 = vmatprep.subr.mxu0 0.0
    %7007 = vmatpush1.msra.mxu0 0.0
    %7008 = vmatprep.subr.mxu0 0.0
    %7009 = vmatpush1.msra.mxu0 0.0
    %7010 = vmatprep.subr.mxu0 0.0
    %7011 = vmatpush1.msra.mxu0 0.0
    %7012 = vmatprep.subr.mxu0 0.0
    %7013 = vmatpush1.msra.mxu0 0.0
    %7014 = vmatprep.subr.mxu0 0.0
    %7015 = vmatpush1.msra.mxu0 0.0
    %7016 = vmatprep.subr.mxu0 0.0
    %7017 = vmatpush1.msra.mxu0 0.0
    %7018 = vmatprep.subr.mxu0 0.0
    %7019 = vmatpush1.msra.mxu0 0.0
    %7020 = vmatprep.subr.mxu0 0.0
    %7021 = vmatpush1.msra.mxu0 0.0
    %7022 = vmatprep.subr.mxu0 0.0
    %7023 = vmatpush1.msra.mxu0 0.0
    %7024 = vmatprep.subr.mxu0 0.0
    %7025 = vmatpush1.msra.mxu0 0.0
    %7026 = vmatprep.subr.mxu0 0.0
    %7027 = vmatpush1.msra.mxu0 0.0
    %7028 = vmatprep.subr.mxu0 0.0
    %7029 = vmatpush1.msra.mxu0 0.0
    %7030 = vmatprep.subr.mxu0 0.0
    %7031 = vmatpush1.msra.mxu0 0.0
    %7032 = vmatprep.subr.mxu0 0.0
    %7033 = vmatpush1.msra.mxu0 0.0
    %7034 = vmatprep.subr.mxu0 0.0
    %7035 = vmatpush1.msra.mxu0 0.0
    %7036 = vmatprep.subr.mxu0 0.0
    %7037 = vmatpush1.msra.mxu0 0.0
    %7038 = vmatprep.subr.mxu0 0.0
    %7039 = vmatpush1.msra.mxu0 0.0
    %7040 = vmatprep.subr.mxu0 0.0
    %7041 = vmatpush1.msra.mxu0 0.0
    %7042 = vmatprep.subr.mxu0 0.0
    %7043 = vmatpush1.msra.mxu0 0.0
    %7044 = vmatprep.subr.mxu0 0.0
    %7045 = vmatpush1.msra.mxu0 0.0
    %7046 = vmatprep.subr.mxu0 0.0
    %7047 = vmatpush1.msra.mxu0 0.0
    %7048 = vmatprep.subr.mxu0 0.0
    %7049 = vmatpush1.msra.mxu0 0.0
    %7050 = vmatprep.subr.mxu0 0.0
    %7051 = vmatpush1.msra.mxu0 0.0
    %7052 = vmatprep.subr.mxu0 0.0
    %7053 = vmatpush1.msra.mxu0 0.0
    %7054 = vmatprep.subr.mxu0 0.0
    %7055 = vmatpush1.msra.mxu0 0.0
    %7056 = vmatprep.subr.mxu0 0.0
    %7057 = vmatpush1.msra.mxu0 0.0
    %7058 = vmatprep.subr.mxu0 0.0
    %7059 = vmatpush1.msra.mxu0 0.0
    %7060 = vmatprep.subr.mxu0 0.0
    %7061 = vmatpush1.msra.mxu0 0.0
    %7062 = vmatprep.mubr.f32.mxu0 0.0
    %7063 = vmatmul.mubr.f32.gmra.mrb[0].mxu0 %v6994
    %v7064 = vpop.f32.mrb[0].mxu0
    %v7065 = vadd.f32 0.0, %v7064
    %v7066 = vpop.f32.mrb[0].mxu0
    %7067 = vmatprep.mubr.f32.mxu0 0.0
    %7068 = vmatmul.mubr.f32.gmra.mrb[0].mxu0 %v6996
    %v7069 = vpop.f32.mrb[0].mxu0
    %v7070 = vadd.f32 0.0, %v7069
    %v7071 = vpop.f32.mrb[0].mxu0
    %7072 = vdwg.mxu0
    %7073 = vmatprep.subr.mxu0 0.0
    %7074 = vmatpush1.msra.mxu0 %v6955
    %7075 = vmatprep.subr.mxu0 0.0
    %7076 = vmatpush1.msra.mxu0 %v6956
    %7077 = vmatprep.subr.mxu0 0.0
    %7078 = vmatpush1.msra.mxu0 %v6957
    %7079 = vmatprep.subr.mxu0 0.0
    %7080 = vmatpush1.msra.mxu0 %v6958
    %7081 = vmatprep.subr.mxu0 0.0
    %7082 = vmatpush1.msra.mxu0 0.0
    %7083 = vmatprep.subr.mxu0 0.0
    %7084 = vmatpush1.msra.mxu0 0.0
    %7085 = vmatprep.subr.mxu0 0.0
    %7086 = vmatpush1.msra.mxu0 0.0
    %7087 = vmatprep.subr.mxu0 0.0
    %7088 = vmatpush1.msra.mxu0 0.0
    %7089 = vmatprep.subr.mxu0 0.0
    %7090 = vmatpush1.msra.mxu0 0.0
    %7091 = vmatprep.subr.mxu0 0.0
    %7092 = vmatpush1.msra.mxu0 0.0
    %7093 = vmatprep.subr.mxu0 0.0
    %7094 = vmatpush1.msra.mxu0 0.0
    %7095 = vmatprep.subr.mxu0 0.0
    %7096 = vmatpush1.msra.mxu0 0.0
    %7097 = vmatprep.subr.mxu0 0.0
    %7098 = vmatpush1.msra.mxu0 0.0
    %7099 = vmatprep.subr.mxu0 0.0
    %7100 = vmatpush1.msra.mxu0 0.0
    %7101 = vmatprep.subr.mxu0 0.0
    %7102 = vmatpush1.msra.mxu0 0.0
    %7103 = vmatprep.subr.mxu0 0.0
    %7104 = vmatpush1.msra.mxu0 0.0
    %7105 = vmatprep.subr.mxu0 0.0
    %7106 = vmatpush1.msra.mxu0 0.0
    %7107 = vmatprep.subr.mxu0 0.0
    %7108 = vmatpush1.msra.mxu0 0.0
    %7109 = vmatprep.subr.mxu0 0.0
    %7110 = vmatpush1.msra.mxu0 0.0
    %7111 = vmatprep.subr.mxu0 0.0
    %7112 = vmatpush1.msra.mxu0 0.0
    %7113 = vmatprep.subr.mxu0 0.0
    %7114 = vmatpush1.msra.mxu0 0.0
    %7115 = vmatprep.subr.mxu0 0.0
    %7116 = vmatpush1.msra.mxu0 0.0
    %7117 = vmatprep.subr.mxu0 0.0
    %7118 = vmatpush1.msra.mxu0 0.0
    %7119 = vmatprep.subr.mxu0 0.0
    %7120 = vmatpush1.msra.mxu0 0.0
    %7121 = vmatprep.subr.mxu0 0.0
    %7122 = vmatpush1.msra.mxu0 0.0
    %7123 = vmatprep.subr.mxu0 0.0
    %7124 = vmatpush1.msra.mxu0 0.0
    %7125 = vmatprep.subr.mxu0 0.0
    %7126 = vmatpush1.msra.mxu0 0.0
    %7127 = vmatprep.subr.mxu0 0.0
    %7128 = vmatpush1.msra.mxu0 0.0
    %7129 = vmatprep.subr.mxu0 0.0
    %7130 = vmatpush1.msra.mxu0 0.0
    %7131 = vmatprep.subr.mxu0 0.0
    %7132 = vmatpush1.msra.mxu0 0.0
    %7133 = vmatprep.subr.mxu0 0.0
    %7134 = vmatpush1.msra.mxu0 0.0
    %7135 = vmatprep.subr.mxu0 0.0
    %7136 = vmatpush1.msra.mxu0 0.0
    %7137 = vmatprep.mubr.f32.mxu0 0.0
    %7138 = vmatmul.mubr.f32.gmra.mrb[0].mxu0 %v5832
    %v7139 = vpop.f32.mrb[0].mxu0
    %v7140 = vadd.f32 %v7065, %v7139
    %v7141 = vpop.f32.mrb[0].mxu0
    %7142 = vmatprep.mubr.f32.mxu0 0.0
    %7143 = vmatmul.mubr.f32.gmra.mrb[0].mxu0 %v5834
    %v7144 = vpop.f32.mrb[0].mxu0
    %v7145 = vadd.f32 %v7070, %v7144
    %v7146 = vpop.f32.mrb[0].mxu0
    %7147 = vdwg.mxu0
    %s7148 = scalar_lea.vmem %s4, 10
    %v7149 = vld [vmem:[%s7148] sm:$0x1]
    %v7151 = vlaneseq
    %v7152 = vshrl.u32 %v7151, 7
    %v7153 = vsub.s32 0, %v7152
    %v7154 = vrot.slane %v7149, %v7153
    %v7156 = vadd.f32 %v7140, %v7154
    %v7157 = vadd.f32 %v7145, %v7154
    %v7158 = vxor.u32 %v7156, 2147483648
    %v7159 = vxor.u32 %v7157, 2147483648
    %v7160 = vmul.f32 %v7158, 1.442695
    %v7161 = vpow.pop %v7160
    %v7162 = vmul.f32 %v7159, 1.442695
    %v7163 = vpow.pop %v7162
    %v7164 = vadd.f32 %v7161, 1.0
    %v7165 = vadd.f32 %v7163, 1.0
    %v7166 = vrcp.pop %v7164
    %v7167 = vmul.f32 1.0, %v7166
    %v7168 = vrcp.pop %v7165
    %v7169 = vmul.f32 1.0, %v7168
    %v7170 = vmul.f32 %v7156, %v7167
    %v7171 = vmul.f32 %v7157, %v7169
    %s7172 = scalar_lea.vmem [#allocation2], 704
    %v7173 = vld [vmem:[%s7172] sm:$0xff]
    %v7174 = vld [vmem:[%s7172 + $0x8] sm:$0xff]
    %v7175 = vld [vmem:[%s7172 + $0x10] sm:$0xff]
    %v7176 = vld [vmem:[%s7172 + $0x18] sm:$0xff]
    %v7178 = vsel %vm660, %v7170, 0
    %v7181 = vsel %vm660, %v7171, 0
    %7183 = vmatprep.subr.mxu0 0.0
    %7184 = vmatpush1.msra.mxu0 %v7173
    %7185 = vmatprep.subr.mxu0 0.0
    %7186 = vmatpush1.msra.mxu0 %v7174
    %7187 = vmatprep.subr.mxu0 0.0
    %7188 = vmatpush1.msra.mxu0 %v7175
    %7189 = vmatprep.subr.mxu0 0.0
    %7190 = vmatpush1.msra.mxu0 %v7176
    %7191 = vmatprep.subr.mxu0 0.0
    %7192 = vmatpush1.msra.mxu0 0.0
    %7193 = vmatprep.subr.mxu0 0.0
    %7194 = vmatpush1.msra.mxu0 0.0
    %7195 = vmatprep.subr.mxu0 0.0
    %7196 = vmatpush1.msra.mxu0 0.0
    %7197 = vmatprep.subr.mxu0 0.0
    %7198 = vmatpush1.msra.mxu0 0.0
    %7199 = vmatprep.subr.mxu0 0.0
    %7200 = vmatpush1.msra.mxu0 0.0
    %7201 = vmatprep.subr.mxu0 0.0
    %7202 = vmatpush1.msra.mxu0 0.0
    %7203 = vmatprep.subr.mxu0 0.0
    %7204 = vmatpush1.msra.mxu0 0.0
    %7205 = vmatprep.subr.mxu0 0.0
    %7206 = vmatpush1.msra.mxu0 0.0
    %7207 = vmatprep.subr.mxu0 0.0
    %7208 = vmatpush1.msra.mxu0 0.0
    %7209 = vmatprep.subr.mxu0 0.0
    %7210 = vmatpush1.msra.mxu0 0.0
    %7211 = vmatprep.subr.mxu0 0.0
    %7212 = vmatpush1.msra.mxu0 0.0
    %7213 = vmatprep.subr.mxu0 0.0
    %7214 = vmatpush1.msra.mxu0 0.0
    %7215 = vmatprep.subr.mxu0 0.0
    %7216 = vmatpush1.msra.mxu0 0.0
    %7217 = vmatprep.subr.mxu0 0.0
    %7218 = vmatpush1.msra.mxu0 0.0
    %7219 = vmatprep.subr.mxu0 0.0
    %7220 = vmatpush1.msra.mxu0 0.0
    %7221 = vmatprep.subr.mxu0 0.0
    %7222 = vmatpush1.msra.mxu0 0.0
    %7223 = vmatprep.subr.mxu0 0.0
    %7224 = vmatpush1.msra.mxu0 0.0
    %7225 = vmatprep.subr.mxu0 0.0
    %7226 = vmatpush1.msra.mxu0 0.0
    %7227 = vmatprep.subr.mxu0 0.0
    %7228 = vmatpush1.msra.mxu0 0.0
    %7229 = vmatprep.subr.mxu0 0.0
    %7230 = vmatpush1.msra.mxu0 0.0
    %7231 = vmatprep.subr.mxu0 0.0
    %7232 = vmatpush1.msra.mxu0 0.0
    %7233 = vmatprep.subr.mxu0 0.0
    %7234 = vmatpush1.msra.mxu0 0.0
    %7235 = vmatprep.subr.mxu0 0.0
    %7236 = vmatpush1.msra.mxu0 0.0
    %7237 = vmatprep.subr.mxu0 0.0
    %7238 = vmatpush1.msra.mxu0 0.0
    %7239 = vmatprep.subr.mxu0 0.0
    %7240 = vmatpush1.msra.mxu0 0.0
    %7241 = vmatprep.subr.mxu0 0.0
    %7242 = vmatpush1.msra.mxu0 0.0
    %7243 = vmatprep.subr.mxu0 0.0
    %7244 = vmatpush1.msra.mxu0 0.0
    %7245 = vmatprep.subr.mxu0 0.0
    %7246 = vmatpush1.msra.mxu0 0.0
    %7247 = vmatprep.mubr.f32.mxu0 0.0
    %7248 = vmatmul.mubr.f32.gmra.mrb[0].mxu0 %v7178
    %v7249 = vpop.f32.mrb[0].mxu0
    %v7250 = vadd.f32 0.0, %v7249
    %v7251 = vpop.f32.mrb[0].mxu0
    %7252 = vmatprep.mubr.f32.mxu0 0.0
    %7253 = vmatmul.mubr.f32.gmra.mrb[0].mxu0 %v7181
    %v7254 = vpop.f32.mrb[0].mxu0
    %v7255 = vadd.f32 0.0, %v7254
    %v7256 = vpop.f32.mrb[0].mxu0
    %7257 = vdwg.mxu0
    %v7258 = vadd.f32 %v5331, %v7250
    %v7259 = vadd.f32 %v5332, %v7255
    %s7260 = scalar_lea.vmem %s4, 14
    %v7261 = vld [vmem:[%s7260] sm:$0x1]
    %v7263 = vlaneseq
    %v7264 = vshrl.u32 %v7263, 7
    %v7265 = vsub.s32 0, %v7264
    %v7266 = vrot.slane %v7261, %v7265
    %v7268 = vadd.f32 %v7258, %v7266
    %v7269 = vadd.f32 %v7259, %v7266
    %v7270 = vmul.f32 %v7268, %v72
    %v7271 = vmul.f32 %v7269, %v77
    %v7274 = vcombine.high %v7270, %v7270
    %v7276 = vunpack.c.l.s4 1966171168
    %v7277 = vunpack.c.0.s8 %v7276
    %v7278 = vlaneseq
    %v7279 = vshrl.u32 %v7278, 7
    %v7280 = vsub.s32 %v7277, %v7279
    %v7281 = vrot.slane %v7270, %v7280
    %v7283 = vunpack.c.l.s4 1966171168
    %v7284 = vunpack.c.0.s8 %v7283
    %v7285 = vlaneseq
    %v7286 = vshrl.u32 %v7285, 7
    %v7287 = vsub.s32 %v7284, %v7286
    %v7288 = vrot.slane %v7274, %v7287
    %v7289 = vcombine.high %v7281, %v7281
    %v7290 = vcombine.high %v7288, %v7288
    %v7292 = vunpack.c.l.s4 1966171168
    %v7293 = vunpack.c.0.s8 %v7292
    %v7294 = vlaneseq
    %v7295 = vshrl.u32 %v7294, 7
    %v7296 = vsub.s32 %v7293, %v7295
    %v7297 = vrot.slane %v7281, %v7296
    %v7299 = vunpack.c.l.s4 1966171168
    %v7300 = vunpack.c.0.s8 %v7299
    %v7301 = vlaneseq
    %v7302 = vshrl.u32 %v7301, 7
    %v7303 = vsub.s32 %v7300, %v7302
    %v7304 = vrot.slane %v7288, %v7303
    %v7306 = vunpack.c.l.s4 1966171168
    %v7307 = vunpack.c.0.s8 %v7306
    %v7308 = vlaneseq
    %v7309 = vshrl.u32 %v7308, 7
    %v7310 = vsub.s32 %v7307, %v7309
    %v7311 = vrot.slane %v7289, %v7310
    %v7313 = vunpack.c.l.s4 1966171168
    %v7314 = vunpack.c.0.s8 %v7313
    %v7315 = vlaneseq
    %v7316 = vshrl.u32 %v7315, 7
    %v7317 = vsub.s32 %v7314, %v7316
    %v7318 = vrot.slane %v7290, %v7317
    %v7319 = vcombine.high %v7297, %v7297
    %v7320 = vcombine.high %v7304, %v7304
    %v7321 = vcombine.high %v7311, %v7311
    %v7322 = vcombine.high %v7318, %v7318
    %v7323 = vcombine.high %v7271, %v7271
    %v7325 = vunpack.c.l.s4 1966171168
    %v7326 = vunpack.c.0.s8 %v7325
    %v7327 = vlaneseq
    %v7328 = vshrl.u32 %v7327, 7
    %v7329 = vsub.s32 %v7326, %v7328
    %v7330 = vrot.slane %v7271, %v7329
    %v7332 = vunpack.c.l.s4 1966171168
    %v7333 = vunpack.c.0.s8 %v7332
    %v7334 = vlaneseq
    %v7335 = vshrl.u32 %v7334, 7
    %v7336 = vsub.s32 %v7333, %v7335
    %v7337 = vrot.slane %v7323, %v7336
    %v7338 = vcombine.high %v7330, %v7330
    %v7339 = vcombine.high %v7337, %v7337
    %v7341 = vunpack.c.l.s4 1966171168
    %v7342 = vunpack.c.0.s8 %v7341
    %v7343 = vlaneseq
    %v7344 = vshrl.u32 %v7343, 7
    %v7345 = vsub.s32 %v7342, %v7344
    %v7346 = vrot.slane %v7330, %v7345
    %v7348 = vunpack.c.l.s4 1966171168
    %v7349 = vunpack.c.0.s8 %v7348
    %v7350 = vlaneseq
    %v7351 = vshrl.u32 %v7350, 7
    %v7352 = vsub.s32 %v7349, %v7351
    %v7353 = vrot.slane %v7337, %v7352
    %v7355 = vunpack.c.l.s4 1966171168
    %v7356 = vunpack.c.0.s8 %v7355
    %v7357 = vlaneseq
    %v7358 = vshrl.u32 %v7357, 7
    %v7359 = vsub.s32 %v7356, %v7358
    %v7360 = vrot.slane %v7338, %v7359
    %v7362 = vunpack.c.l.s4 1966171168
    %v7363 = vunpack.c.0.s8 %v7362
    %v7364 = vlaneseq
    %v7365 = vshrl.u32 %v7364, 7
    %v7366 = vsub.s32 %v7363, %v7365
    %v7367 = vrot.slane %v7339, %v7366
    %v7368 = vcombine.high %v7346, %v7346
    %v7369 = vcombine.high %v7353, %v7353
    %v7370 = vcombine.high %v7360, %v7360
    %v7371 = vcombine.high %v7367, %v7367
    %v7372 = vlaneseq
    %v7373 = vshrl.u32 %v7372, 7
    %v7374 = vsub.s32 0, %v7373
    %v7375 = vrot.slane %v7297, %v7374
    %v7376 = vlaneseq
    %v7377 = vshrl.u32 %v7376, 7
    %v7378 = vsub.s32 0, %v7377
    %v7379 = vrot.slane %v7311, %v7378
    %v7380 = vlaneseq
    %v7381 = vshrl.u32 %v7380, 7
    %v7382 = vsub.s32 0, %v7381
    %v7383 = vrot.slane %v7319, %v7382
    %v7384 = vlaneseq
    %v7385 = vshrl.u32 %v7384, 7
    %v7386 = vsub.s32 0, %v7385
    %v7387 = vrot.slane %v7321, %v7386
    %v7388 = vlaneseq
    %v7389 = vshrl.u32 %v7388, 7
    %v7390 = vsub.s32 0, %v7389
    %v7391 = vrot.slane %v7304, %v7390
    %v7392 = vlaneseq
    %v7393 = vshrl.u32 %v7392, 7
    %v7394 = vsub.s32 0, %v7393
    %v7395 = vrot.slane %v7318, %v7394
    %v7396 = vlaneseq
    %v7397 = vshrl.u32 %v7396, 7
    %v7398 = vsub.s32 0, %v7397
    %v7399 = vrot.slane %v7320, %v7398
    %v7400 = vlaneseq
    %v7401 = vshrl.u32 %v7400, 7
    %v7402 = vsub.s32 0, %v7401
    %v7403 = vrot.slane %v7322, %v7402
    %v7404 = vlaneseq
    %v7405 = vshrl.u32 %v7404, 7
    %v7406 = vsub.s32 0, %v7405
    %v7407 = vrot.slane %v7346, %v7406
    %v7408 = vlaneseq
    %v7409 = vshrl.u32 %v7408, 7
    %v7410 = vsub.s32 0, %v7409
    %v7411 = vrot.slane %v7360, %v7410
    %v7412 = vlaneseq
    %v7413 = vshrl.u32 %v7412, 7
    %v7414 = vsub.s32 0, %v7413
    %v7415 = vrot.slane %v7368, %v7414
    %v7416 = vlaneseq
    %v7417 = vshrl.u32 %v7416, 7
    %v7418 = vsub.s32 0, %v7417
    %v7419 = vrot.slane %v7370, %v7418
    %v7420 = vlaneseq
    %v7421 = vshrl.u32 %v7420, 7
    %v7422 = vsub.s32 0, %v7421
    %v7423 = vrot.slane %v7353, %v7422
    %v7424 = vlaneseq
    %v7425 = vshrl.u32 %v7424, 7
    %v7426 = vsub.s32 0, %v7425
    %v7427 = vrot.slane %v7367, %v7426
    %v7428 = vlaneseq
    %v7429 = vshrl.u32 %v7428, 7
    %v7430 = vsub.s32 0, %v7429
    %v7431 = vrot.slane %v7369, %v7430
    %v7432 = vlaneseq
    %v7433 = vshrl.u32 %v7432, 7
    %v7434 = vsub.s32 0, %v7433
    %v7435 = vrot.slane %v7371, %v7434
    %s7436 = scalar_lea.vmem [#allocation2], 96
    %v7437 = vld [vmem:[%s7436] sm:$0xff]
    %v7438 = vld [vmem:[%s7436 + $0x8] sm:$0xff]
    %v7439 = vld [vmem:[%s7436 + $0x10] sm:$0xff]
    %v7440 = vld [vmem:[%s7436 + $0x18] sm:$0xff]
    %s7441 = scalar_lea.vmem [#allocation2], 224
    %v7442 = vld [vmem:[%s7441] sm:$0xff]
    %v7443 = vld [vmem:[%s7441 + $0x8] sm:$0xff]
    %v7444 = vld [vmem:[%s7441 + $0x10] sm:$0xff]
    %v7445 = vld [vmem:[%s7441 + $0x18] sm:$0xff]
    %v7446 = vsel %vm660, %v7270, 0
    %v7448 = vsel %vm660, %v7271, 0
    %7450 = vmatprep.subr.mxu0 0.0
    %7451 = vmatpush1.msra.mxu0 %v7442
    %7452 = vmatprep.subr.mxu0 0.0
    %7453 = vmatpush1.msra.mxu0 %v7443
    %7454 = vmatprep.subr.mxu0 0.0
    %7455 = vmatpush1.msra.mxu0 %v7444
    %7456 = vmatprep.subr.mxu0 0.0
    %7457 = vmatpush1.msra.mxu0 %v7445
    %7458 = vmatprep.subr.mxu0 0.0
    %7459 = vmatpush1.msra.mxu0 0.0
    %7460 = vmatprep.subr.mxu0 0.0
    %7461 = vmatpush1.msra.mxu0 0.0
    %7462 = vmatprep.subr.mxu0 0.0
    %7463 = vmatpush1.msra.mxu0 0.0
    %7464 = vmatprep.subr.mxu0 0.0
    %7465 = vmatpush1.msra.mxu0 0.0
    %7466 = vmatprep.subr.mxu0 0.0
    %7467 = vmatpush1.msra.mxu0 0.0
    %7468 = vmatprep.subr.mxu0 0.0
    %7469 = vmatpush1.msra.mxu0 0.0
    %7470 = vmatprep.subr.mxu0 0.0
    %7471 = vmatpush1.msra.mxu0 0.0
    %7472 = vmatprep.subr.mxu0 0.0
    %7473 = vmatpush1.msra.mxu0 0.0
    %7474 = vmatprep.subr.mxu0 0.0
    %7475 = vmatpush1.msra.mxu0 0.0
    %7476 = vmatprep.subr.mxu0 0.0
    %7477 = vmatpush1.msra.mxu0 0.0
    %7478 = vmatprep.subr.mxu0 0.0
    %7479 = vmatpush1.msra.mxu0 0.0
    %7480 = vmatprep.subr.mxu0 0.0
    %7481 = vmatpush1.msra.mxu0 0.0
    %7482 = vmatprep.subr.mxu0 0.0
    %7483 = vmatpush1.msra.mxu0 0.0
    %7484 = vmatprep.subr.mxu0 0.0
    %7485 = vmatpush1.msra.mxu0 0.0
    %7486 = vmatprep.subr.mxu0 0.0
    %7487 = vmatpush1.msra.mxu0 0.0
    %7488 = vmatprep.subr.mxu0 0.0
    %7489 = vmatpush1.msra.mxu0 0.0
    %7490 = vmatprep.subr.mxu0 0.0
    %7491 = vmatpush1.msra.mxu0 0.0
    %7492 = vmatprep.subr.mxu0 0.0
    %7493 = vmatpush1.msra.mxu0 0.0
    %7494 = vmatprep.subr.mxu0 0.0
    %7495 = vmatpush1.msra.mxu0 0.0
    %7496 = vmatprep.subr.mxu0 0.0
    %7497 = vmatpush1.msra.mxu0 0.0
    %7498 = vmatprep.subr.mxu0 0.0
    %7499 = vmatpush1.msra.mxu0 0.0
    %7500 = vmatprep.subr.mxu0 0.0
    %7501 = vmatpush1.msra.mxu0 0.0
    %7502 = vmatprep.subr.mxu0 0.0
    %7503 = vmatpush1.msra.mxu0 0.0
    %7504 = vmatprep.subr.mxu0 0.0
    %7505 = vmatpush1.msra.mxu0 0.0
    %7506 = vmatprep.subr.mxu0 0.0
    %7507 = vmatpush1.msra.mxu0 0.0
    %7508 = vmatprep.subr.mxu0 0.0
    %7509 = vmatpush1.msra.mxu0 0.0
    %7510 = vmatprep.subr.mxu0 0.0
    %7511 = vmatpush1.msra.mxu0 0.0
    %7512 = vmatprep.subr.mxu0 0.0
    %7513 = vmatpush1.msra.mxu0 0.0
    %7514 = vmatprep.mubr.f32.mxu0 0.0
    %7515 = vmatmul.mubr.f32.gmra.mrb[0].mxu0 %v7446
    %v7516 = vpop.f32.mrb[0].mxu0
    %v7517 = vadd.f32 0.0, %v7516
    %v7518 = vpop.f32.mrb[0].mxu0
    %7519 = vmatprep.mubr.f32.mxu0 0.0
    %7520 = vmatmul.mubr.f32.gmra.mrb[0].mxu0 %v7446
    %v7521 = vpop.f32.mrb[0].mxu0
    %v7522 = vadd.f32 0.0, %v7521
    %v7523 = vpop.f32.mrb[0].mxu0
    %7524 = vmatprep.mubr.f32.mxu0 0.0
    %7525 = vmatmul.mubr.f32.gmra.mrb[0].mxu0 %v7446
    %v7526 = vpop.f32.mrb[0].mxu0
    %v7527 = vadd.f32 0.0, %v7526
    %v7528 = vpop.f32.mrb[0].mxu0
    %7529 = vmatprep.mubr.f32.mxu0 0.0
    %7530 = vmatmul.mubr.f32.gmra.mrb[0].mxu0 %v7446
    %v7531 = vpop.f32.mrb[0].mxu0
    %v7532 = vadd.f32 0.0, %v7531
    %v7533 = vpop.f32.mrb[0].mxu0
    %7534 = vmatprep.mubr.f32.mxu0 0.0
    %7535 = vmatmul.mubr.f32.gmra.mrb[0].mxu0 %v7446
    %v7536 = vpop.f32.mrb[0].mxu0
    %v7537 = vadd.f32 0.0, %v7536
    %v7538 = vpop.f32.mrb[0].mxu0
    %7539 = vmatprep.mubr.f32.mxu0 0.0
    %7540 = vmatmul.mubr.f32.gmra.mrb[0].mxu0 %v7446
    %v7541 = vpop.f32.mrb[0].mxu0
    %v7542 = vadd.f32 0.0, %v7541
    %v7543 = vpop.f32.mrb[0].mxu0
    %7544 = vmatprep.mubr.f32.mxu0 0.0
    %7545 = vmatmul.mubr.f32.gmra.mrb[0].mxu0 %v7446
    %v7546 = vpop.f32.mrb[0].mxu0
    %v7547 = vadd.f32 0.0, %v7546
    %v7548 = vpop.f32.mrb[0].mxu0
    %7549 = vmatprep.mubr.f32.mxu0 0.0
    %7550 = vmatmul.mubr.f32.gmra.mrb[0].mxu0 %v7446
    %v7551 = vpop.f32.mrb[0].mxu0
    %v7552 = vadd.f32 0.0, %v7551
    %v7553 = vpop.f32.mrb[0].mxu0
    %7554 = vmatprep.mubr.f32.mxu0 0.0
    %7555 = vmatmul.mubr.f32.gmra.mrb[0].mxu0 %v7448
    %v7556 = vpop.f32.mrb[0].mxu0
    %v7557 = vadd.f32 0.0, %v7556
    %v7558 = vpop.f32.mrb[0].mxu0
    %7559 = vmatprep.mubr.f32.mxu0 0.0
    %7560 = vmatmul.mubr.f32.gmra.mrb[0].mxu0 %v7448
    %v7561 = vpop.f32.mrb[0].mxu0
    %v7562 = vadd.f32 0.0, %v7561
    %v7563 = vpop.f32.mrb[0].mxu0
    %7564 = vmatprep.mubr.f32.mxu0 0.0
    %7565 = vmatmul.mubr.f32.gmra.mrb[0].mxu0 %v7448
    %v7566 = vpop.f32.mrb[0].mxu0
    %v7567 = vadd.f32 0.0, %v7566
    %v7568 = vpop.f32.mrb[0].mxu0
    %7569 = vmatprep.mubr.f32.mxu0 0.0
    %7570 = vmatmul.mubr.f32.gmra.mrb[0].mxu0 %v7448
    %v7571 = vpop.f32.mrb[0].mxu0
    %v7572 = vadd.f32 0.0, %v7571
    %v7573 = vpop.f32.mrb[0].mxu0
    %7574 = vmatprep.mubr.f32.mxu0 0.0
    %7575 = vmatmul.mubr.f32.gmra.mrb[0].mxu0 %v7448
    %v7576 = vpop.f32.mrb[0].mxu0
    %v7577 = vadd.f32 0.0, %v7576
    %v7578 = vpop.f32.mrb[0].mxu0
    %7579 = vmatprep.mubr.f32.mxu0 0.0
    %7580 = vmatmul.mubr.f32.gmra.mrb[0].mxu0 %v7448
    %v7581 = vpop.f32.mrb[0].mxu0
    %v7582 = vadd.f32 0.0, %v7581
    %v7583 = vpop.f32.mrb[0].mxu0
    %7584 = vmatprep.mubr.f32.mxu0 0.0
    %7585 = vmatmul.mubr.f32.gmra.mrb[0].mxu0 %v7448
    %v7586 = vpop.f32.mrb[0].mxu0
    %v7587 = vadd.f32 0.0, %v7586
    %v7588 = vpop.f32.mrb[0].mxu0
    %7589 = vmatprep.mubr.f32.mxu0 0.0
    %7590 = vmatmul.mubr.f32.gmra.mrb[0].mxu0 %v7448
    %v7591 = vpop.f32.mrb[0].mxu0
    %v7592 = vadd.f32 0.0, %v7591
    %v7593 = vpop.f32.mrb[0].mxu0
    %7594 = vdwg.mxu0
    %v7595 = vsel %vm660, %v7375, 0
    %v7597 = vsel %vm660, %v7379, 0
    %v7599 = vsel %vm660, %v7383, 0
    %v7601 = vsel %vm660, %v7387, 0
    %v7603 = vsel %vm660, %v7391, 0
    %v7605 = vsel %vm660, %v7395, 0
    %v7607 = vsel %vm660, %v7399, 0
    %v7609 = vsel %vm660, %v7403, 0
    %v7611 = vsel %vm660, %v7407, 0
    %v7613 = vsel %vm660, %v7411, 0
    %v7615 = vsel %vm660, %v7415, 0
    %v7617 = vsel %vm660, %v7419, 0
    %v7619 = vsel %vm660, %v7423, 0
    %v7621 = vsel %vm660, %v7427, 0
    %v7623 = vsel %vm660, %v7431, 0
    %v7625 = vsel %vm660, %v7435, 0
    %7627 = vmatprep.subr.mxu0 0.0
    %7628 = vmatpush1.msra.mxu0 %v7437
    %7629 = vmatprep.subr.mxu0 0.0
    %7630 = vmatpush1.msra.mxu0 %v7438
    %7631 = vmatprep.subr.mxu0 0.0
    %7632 = vmatpush1.msra.mxu0 %v7439
    %7633 = vmatprep.subr.mxu0 0.0
    %7634 = vmatpush1.msra.mxu0 %v7440
    %7635 = vmatprep.subr.mxu0 0.0
    %7636 = vmatpush1.msra.mxu0 0.0
    %7637 = vmatprep.subr.mxu0 0.0
    %7638 = vmatpush1.msra.mxu0 0.0
    %7639 = vmatprep.subr.mxu0 0.0
    %7640 = vmatpush1.msra.mxu0 0.0
    %7641 = vmatprep.subr.mxu0 0.0
    %7642 = vmatpush1.msra.mxu0 0.0
    %7643 = vmatprep.subr.mxu0 0.0
    %7644 = vmatpush1.msra.mxu0 0.0
    %7645 = vmatprep.subr.mxu0 0.0
    %7646 = vmatpush1.msra.mxu0 0.0
    %7647 = vmatprep.subr.mxu0 0.0
    %7648 = vmatpush1.msra.mxu0 0.0
    %7649 = vmatprep.subr.mxu0 0.0
    %7650 = vmatpush1.msra.mxu0 0.0
    %7651 = vmatprep.subr.mxu0 0.0
    %7652 = vmatpush1.msra.mxu0 0.0
    %7653 = vmatprep.subr.mxu0 0.0
    %7654 = vmatpush1.msra.mxu0 0.0
    %7655 = vmatprep.subr.mxu0 0.0
    %7656 = vmatpush1.msra.mxu0 0.0
    %7657 = vmatprep.subr.mxu0 0.0
    %7658 = vmatpush1.msra.mxu0 0.0
    %7659 = vmatprep.subr.mxu0 0.0
    %7660 = vmatpush1.msra.mxu0 0.0
    %7661 = vmatprep.subr.mxu0 0.0
    %7662 = vmatpush1.msra.mxu0 0.0
    %7663 = vmatprep.subr.mxu0 0.0
    %7664 = vmatpush1.msra.mxu0 0.0
    %7665 = vmatprep.subr.mxu0 0.0
    %7666 = vmatpush1.msra.mxu0 0.0
    %7667 = vmatprep.subr.mxu0 0.0
    %7668 = vmatpush1.msra.mxu0 0.0
    %7669 = vmatprep.subr.mxu0 0.0
    %7670 = vmatpush1.msra.mxu0 0.0
    %7671 = vmatprep.subr.mxu0 0.0
    %7672 = vmatpush1.msra.mxu0 0.0
    %7673 = vmatprep.subr.mxu0 0.0
    %7674 = vmatpush1.msra.mxu0 0.0
    %7675 = vmatprep.subr.mxu0 0.0
    %7676 = vmatpush1.msra.mxu0 0.0
    %7677 = vmatprep.subr.mxu0 0.0
    %7678 = vmatpush1.msra.mxu0 0.0
    %7679 = vmatprep.subr.mxu0 0.0
    %7680 = vmatpush1.msra.mxu0 0.0
    %7681 = vmatprep.subr.mxu0 0.0
    %7682 = vmatpush1.msra.mxu0 0.0
    %7683 = vmatprep.subr.mxu0 0.0
    %7684 = vmatpush1.msra.mxu0 0.0
    %7685 = vmatprep.subr.mxu0 0.0
    %7686 = vmatpush1.msra.mxu0 0.0
    %7687 = vmatprep.subr.mxu0 0.0
    %7688 = vmatpush1.msra.mxu0 0.0
    %7689 = vmatprep.subr.mxu0 0.0
    %7690 = vmatpush1.msra.mxu0 0.0
    %7691 = vmatprep.mubr.f32.mxu0 0.0
    %7692 = vmatmul.mubr.f32.gmra.mrb[0].mxu0 %v7595
    %v7693 = vpop.f32.mrb[0].mxu0
    %v7694 = vadd.f32 %v7517, %v7693
    %v7695 = vpop.f32.mrb[0].mxu0
    %7696 = vmatprep.mubr.f32.mxu0 0.0
    %7697 = vmatmul.mubr.f32.gmra.mrb[0].mxu0 %v7597
    %v7698 = vpop.f32.mrb[0].mxu0
    %v7699 = vadd.f32 %v7522, %v7698
    %v7700 = vpop.f32.mrb[0].mxu0
    %7701 = vmatprep.mubr.f32.mxu0 0.0
    %7702 = vmatmul.mubr.f32.gmra.mrb[0].mxu0 %v7599
    %v7703 = vpop.f32.mrb[0].mxu0
    %v7704 = vadd.f32 %v7527, %v7703
    %v7705 = vpop.f32.mrb[0].mxu0
    %7706 = vmatprep.mubr.f32.mxu0 0.0
    %7707 = vmatmul.mubr.f32.gmra.mrb[0].mxu0 %v7601
    %v7708 = vpop.f32.mrb[0].mxu0
    %v7709 = vadd.f32 %v7532, %v7708
    %v7710 = vpop.f32.mrb[0].mxu0
    %7711 = vmatprep.mubr.f32.mxu0 0.0
    %7712 = vmatmul.mubr.f32.gmra.mrb[0].mxu0 %v7603
    %v7713 = vpop.f32.mrb[0].mxu0
    %v7714 = vadd.f32 %v7537, %v7713
    %v7715 = vpop.f32.mrb[0].mxu0
    %7716 = vmatprep.mubr.f32.mxu0 0.0
    %7717 = vmatmul.mubr.f32.gmra.mrb[0].mxu0 %v7605
    %v7718 = vpop.f32.mrb[0].mxu0
    %v7719 = vadd.f32 %v7542, %v7718
    %v7720 = vpop.f32.mrb[0].mxu0
    %7721 = vmatprep.mubr.f32.mxu0 0.0
    %7722 = vmatmul.mubr.f32.gmra.mrb[0].mxu0 %v7607
    %v7723 = vpop.f32.mrb[0].mxu0
    %v7724 = vadd.f32 %v7547, %v7723
    %v7725 = vpop.f32.mrb[0].mxu0
    %7726 = vmatprep.mubr.f32.mxu0 0.0
    %7727 = vmatmul.mubr.f32.gmra.mrb[0].mxu0 %v7609
    %v7728 = vpop.f32.mrb[0].mxu0
    %v7729 = vadd.f32 %v7552, %v7728
    %v7730 = vpop.f32.mrb[0].mxu0
    %7731 = vmatprep.mubr.f32.mxu0 0.0
    %7732 = vmatmul.mubr.f32.gmra.mrb[0].mxu0 %v7611
    %v7733 = vpop.f32.mrb[0].mxu0
    %v7734 = vadd.f32 %v7557, %v7733
    %v7735 = vpop.f32.mrb[0].mxu0
    %7736 = vmatprep.mubr.f32.mxu0 0.0
    %7737 = vmatmul.mubr.f32.gmra.mrb[0].mxu0 %v7613
    %v7738 = vpop.f32.mrb[0].mxu0
    %v7739 = vadd.f32 %v7562, %v7738
    %v7740 = vpop.f32.mrb[0].mxu0
    %7741 = vmatprep.mubr.f32.mxu0 0.0
    %7742 = vmatmul.mubr.f32.gmra.mrb[0].mxu0 %v7615
    %v7743 = vpop.f32.mrb[0].mxu0
    %v7744 = vadd.f32 %v7567, %v7743
    %v7745 = vpop.f32.mrb[0].mxu0
    %7746 = vmatprep.mubr.f32.mxu0 0.0
    %7747 = vmatmul.mubr.f32.gmra.mrb[0].mxu0 %v7617
    %v7748 = vpop.f32.mrb[0].mxu0
    %v7749 = vadd.f32 %v7572, %v7748
    %v7750 = vpop.f32.mrb[0].mxu0
    %7751 = vmatprep.mubr.f32.mxu0 0.0
    %7752 = vmatmul.mubr.f32.gmra.mrb[0].mxu0 %v7619
    %v7753 = vpop.f32.mrb[0].mxu0
    %v7754 = vadd.f32 %v7577, %v7753
    %v7755 = vpop.f32.mrb[0].mxu0
    %7756 = vmatprep.mubr.f32.mxu0 0.0
    %7757 = vmatmul.mubr.f32.gmra.mrb[0].mxu0 %v7621
    %v7758 = vpop.f32.mrb[0].mxu0
    %v7759 = vadd.f32 %v7582, %v7758
    %v7760 = vpop.f32.mrb[0].mxu0
    %7761 = vmatprep.mubr.f32.mxu0 0.0
    %7762 = vmatmul.mubr.f32.gmra.mrb[0].mxu0 %v7623
    %v7763 = vpop.f32.mrb[0].mxu0
    %v7764 = vadd.f32 %v7587, %v7763
    %v7765 = vpop.f32.mrb[0].mxu0
    %7766 = vmatprep.mubr.f32.mxu0 0.0
    %7767 = vmatmul.mubr.f32.gmra.mrb[0].mxu0 %v7625
    %v7768 = vpop.f32.mrb[0].mxu0
    %v7769 = vadd.f32 %v7592, %v7768
    %v7770 = vpop.f32.mrb[0].mxu0
    %7771 = vdwg.mxu0
    %s7772 = scalar_lea.vmem %s5, 6
    %v7773 = vld [vmem:[%s7772] sm:$0x3]
    %v7775 = vsel %vm1037, %v7773, 0
    %7777 = vmatprep.subr.mxu0 0.0
    %7778 = vmatpush1.msra.mxu0 %v7775
    %7779 = vmatprep.subr.mxu0 0.0
    %7780 = vmatpush1.msra.mxu0 0.0
    %7781 = vmatprep.subr.mxu0 0.0
    %7782 = vmatpush1.msra.mxu0 0.0
    %7783 = vmatprep.subr.mxu0 0.0
    %7784 = vmatpush1.msra.mxu0 0.0
    %7785 = vmatprep.subr.mxu0 0.0
    %7786 = vmatpush1.msra.mxu0 0.0
    %7787 = vmatprep.subr.mxu0 0.0
    %7788 = vmatpush1.msra.mxu0 0.0
    %7789 = vmatprep.subr.mxu0 0.0
    %7790 = vmatpush1.msra.mxu0 0.0
    %7791 = vmatprep.subr.mxu0 0.0
    %7792 = vmatpush1.msra.mxu0 0.0
    %7793 = vmatprep.subr.mxu0 0.0
    %7794 = vmatpush1.msra.mxu0 0.0
    %7795 = vmatprep.subr.mxu0 0.0
    %7796 = vmatpush1.msra.mxu0 0.0
    %7797 = vmatprep.subr.mxu0 0.0
    %7798 = vmatpush1.msra.mxu0 0.0
    %7799 = vmatprep.subr.mxu0 0.0
    %7800 = vmatpush1.msra.mxu0 0.0
    %7801 = vmatprep.subr.mxu0 0.0
    %7802 = vmatpush1.msra.mxu0 0.0
    %7803 = vmatprep.subr.mxu0 0.0
    %7804 = vmatpush1.msra.mxu0 0.0
    %7805 = vmatprep.subr.mxu0 0.0
    %7806 = vmatpush1.msra.mxu0 0.0
    %7807 = vmatprep.subr.mxu0 0.0
    %7808 = vmatpush1.msra.mxu0 0.0
    %7809 = vmatprep.subr.mxu0 0.0
    %7810 = vmatpush1.msra.mxu0 0.0
    %7811 = vmatprep.subr.mxu0 0.0
    %7812 = vmatpush1.msra.mxu0 0.0
    %7813 = vmatprep.subr.mxu0 0.0
    %7814 = vmatpush1.msra.mxu0 0.0
    %7815 = vmatprep.subr.mxu0 0.0
    %7816 = vmatpush1.msra.mxu0 0.0
    %7817 = vmatprep.subr.mxu0 0.0
    %7818 = vmatpush1.msra.mxu0 0.0
    %7819 = vmatprep.subr.mxu0 0.0
    %7820 = vmatpush1.msra.mxu0 0.0
    %7821 = vmatprep.subr.mxu0 0.0
    %7822 = vmatpush1.msra.mxu0 0.0
    %7823 = vmatprep.subr.mxu0 0.0
    %7824 = vmatpush1.msra.mxu0 0.0
    %7825 = vmatprep.subr.mxu0 0.0
    %7826 = vmatpush1.msra.mxu0 0.0
    %7827 = vmatprep.subr.mxu0 0.0
    %7828 = vmatpush1.msra.mxu0 0.0
    %7829 = vmatprep.subr.mxu0 0.0
    %7830 = vmatpush1.msra.mxu0 0.0
    %7831 = vmatprep.subr.mxu0 0.0
    %7832 = vmatpush1.msra.mxu0 0.0
    %7833 = vmatprep.subr.mxu0 0.0
    %7834 = vmatpush1.msra.mxu0 0.0
    %7835 = vmatprep.subr.mxu0 0.0
    %7836 = vmatpush1.msra.mxu0 0.0
    %7837 = vmatprep.subr.mxu0 0.0
    %7838 = vmatpush1.msra.mxu0 0.0
    %7839 = vmatprep.subr.mxu0 0.0
    %7840 = vmatpush1.msra.mxu0 0.0
    %7841 = vmatprep.mubr.f32.mxu0 0.0
    %7842 = vmatmul.mubr.f32.gmra.mrb[0].mxu0 %v6161
    %v7843 = vpop.f32.mrb[0].mxu0
    %v7844 = vadd.f32 0.0, %v7843
    %v7845 = vpop.f32.mrb[0].mxu0
    %7846 = vmatprep.mubr.f32.mxu0 0.0
    %7847 = vmatmul.mubr.f32.gmra.mrb[0].mxu0 %v6164
    %v7848 = vpop.f32.mrb[0].mxu0
    %v7849 = vadd.f32 0.0, %v7848
    %v7850 = vpop.f32.mrb[0].mxu0
    %7851 = vmatprep.mubr.f32.mxu0 0.0
    %7852 = vmatmul.mubr.f32.gmra.mrb[0].mxu0 %v6167
    %v7853 = vpop.f32.mrb[0].mxu0
    %v7854 = vadd.f32 0.0, %v7853
    %v7855 = vpop.f32.mrb[0].mxu0
    %7856 = vmatprep.mubr.f32.mxu0 0.0
    %7857 = vmatmul.mubr.f32.gmra.mrb[0].mxu0 %v6170
    %v7858 = vpop.f32.mrb[0].mxu0
    %v7859 = vadd.f32 0.0, %v7858
    %v7860 = vpop.f32.mrb[0].mxu0
    %7861 = vmatprep.mubr.f32.mxu0 0.0
    %7862 = vmatmul.mubr.f32.gmra.mrb[0].mxu0 %v6173
    %v7863 = vpop.f32.mrb[0].mxu0
    %v7864 = vadd.f32 0.0, %v7863
    %v7865 = vpop.f32.mrb[0].mxu0
    %7866 = vmatprep.mubr.f32.mxu0 0.0
    %7867 = vmatmul.mubr.f32.gmra.mrb[0].mxu0 %v6176
    %v7868 = vpop.f32.mrb[0].mxu0
    %v7869 = vadd.f32 0.0, %v7868
    %v7870 = vpop.f32.mrb[0].mxu0
    %7871 = vmatprep.mubr.f32.mxu0 0.0
    %7872 = vmatmul.mubr.f32.gmra.mrb[0].mxu0 %v6179
    %v7873 = vpop.f32.mrb[0].mxu0
    %v7874 = vadd.f32 0.0, %v7873
    %v7875 = vpop.f32.mrb[0].mxu0
    %7876 = vmatprep.mubr.f32.mxu0 0.0
    %7877 = vmatmul.mubr.f32.gmra.mrb[0].mxu0 %v6182
    %v7878 = vpop.f32.mrb[0].mxu0
    %v7879 = vadd.f32 0.0, %v7878
    %v7880 = vpop.f32.mrb[0].mxu0
    %7881 = vmatprep.mubr.f32.mxu0 0.0
    %7882 = vmatmul.mubr.f32.gmra.mrb[0].mxu0 %v6185
    %v7883 = vpop.f32.mrb[0].mxu0
    %v7884 = vadd.f32 0.0, %v7883
    %v7885 = vpop.f32.mrb[0].mxu0
    %7886 = vmatprep.mubr.f32.mxu0 0.0
    %7887 = vmatmul.mubr.f32.gmra.mrb[0].mxu0 %v6188
    %v7888 = vpop.f32.mrb[0].mxu0
    %v7889 = vadd.f32 0.0, %v7888
    %v7890 = vpop.f32.mrb[0].mxu0
    %7891 = vmatprep.mubr.f32.mxu0 0.0
    %7892 = vmatmul.mubr.f32.gmra.mrb[0].mxu0 %v6191
    %v7893 = vpop.f32.mrb[0].mxu0
    %v7894 = vadd.f32 0.0, %v7893
    %v7895 = vpop.f32.mrb[0].mxu0
    %7896 = vmatprep.mubr.f32.mxu0 0.0
    %7897 = vmatmul.mubr.f32.gmra.mrb[0].mxu0 %v6194
    %v7898 = vpop.f32.mrb[0].mxu0
    %v7899 = vadd.f32 0.0, %v7898
    %v7900 = vpop.f32.mrb[0].mxu0
    %7901 = vmatprep.mubr.f32.mxu0 0.0
    %7902 = vmatmul.mubr.f32.gmra.mrb[0].mxu0 %v6197
    %v7903 = vpop.f32.mrb[0].mxu0
    %v7904 = vadd.f32 0.0, %v7903
    %v7905 = vpop.f32.mrb[0].mxu0
    %7906 = vmatprep.mubr.f32.mxu0 0.0
    %7907 = vmatmul.mubr.f32.gmra.mrb[0].mxu0 %v6200
    %v7908 = vpop.f32.mrb[0].mxu0
    %v7909 = vadd.f32 0.0, %v7908
    %v7910 = vpop.f32.mrb[0].mxu0
    %7911 = vmatprep.mubr.f32.mxu0 0.0
    %7912 = vmatmul.mubr.f32.gmra.mrb[0].mxu0 %v6203
    %v7913 = vpop.f32.mrb[0].mxu0
    %v7914 = vadd.f32 0.0, %v7913
    %v7915 = vpop.f32.mrb[0].mxu0
    %7916 = vmatprep.mubr.f32.mxu0 0.0
    %7917 = vmatmul.mubr.f32.gmra.mrb[0].mxu0 %v6206
    %v7918 = vpop.f32.mrb[0].mxu0
    %v7919 = vadd.f32 0.0, %v7918
    %v7920 = vpop.f32.mrb[0].mxu0
    %7921 = vdwg.mxu0
    %v7922 = vadd.f32 %v7694, %v7844
    %v7923 = vadd.f32 %v7699, %v7849
    %v7924 = vadd.f32 %v7704, %v7854
    %v7925 = vadd.f32 %v7709, %v7859
    %v7926 = vadd.f32 %v7714, %v7864
    %v7927 = vadd.f32 %v7719, %v7869
    %v7928 = vadd.f32 %v7724, %v7874
    %v7929 = vadd.f32 %v7729, %v7879
    %v7930 = vadd.f32 %v7734, %v7884
    %v7931 = vadd.f32 %v7739, %v7889
    %v7932 = vadd.f32 %v7744, %v7894
    %v7933 = vadd.f32 %v7749, %v7899
    %v7934 = vadd.f32 %v7754, %v7904
    %v7935 = vadd.f32 %v7759, %v7909
    %v7936 = vadd.f32 %v7764, %v7914
    %v7937 = vadd.f32 %v7769, %v7919
    %s7938 = scalar_lea.vmem %s4, 3
    %v7939 = vld [vmem:[%s7938] sm:$0x1]
    %v7941 = vlaneseq
    %v7942 = vshrl.u32 %v7941, 7
    %v7943 = vsub.s32 0, %v7942
    %v7944 = vrot.slane %v7939, %v7943
    %v7946 = vadd.f32 %v7922, %v7944
    %v7947 = vadd.f32 %v7923, %v7944
    %v7948 = vadd.f32 %v7924, %v7944
    %v7949 = vadd.f32 %v7925, %v7944
    %v7950 = vadd.f32 %v7926, %v7944
    %v7951 = vadd.f32 %v7927, %v7944
    %v7952 = vadd.f32 %v7928, %v7944
    %v7953 = vadd.f32 %v7929, %v7944
    %v7954 = vadd.f32 %v7930, %v7944
    %v7955 = vadd.f32 %v7931, %v7944
    %v7956 = vadd.f32 %v7932, %v7944
    %v7957 = vadd.f32 %v7933, %v7944
    %v7958 = vadd.f32 %v7934, %v7944
    %v7959 = vadd.f32 %v7935, %v7944
    %v7960 = vadd.f32 %v7936, %v7944
    %v7961 = vadd.f32 %v7937, %v7944
    %v7962 = vxor.u32 %v7946, 2147483648
    %v7963 = vxor.u32 %v7947, 2147483648
    %v7964 = vxor.u32 %v7948, 2147483648
    %v7965 = vxor.u32 %v7949, 2147483648
    %v7966 = vxor.u32 %v7950, 2147483648
    %v7967 = vxor.u32 %v7951, 2147483648
    %v7968 = vxor.u32 %v7952, 2147483648
    %v7969 = vxor.u32 %v7953, 2147483648
    %v7970 = vxor.u32 %v7954, 2147483648
    %v7971 = vxor.u32 %v7955, 2147483648
    %v7972 = vxor.u32 %v7956, 2147483648
    %v7973 = vxor.u32 %v7957, 2147483648
    %v7974 = vxor.u32 %v7958, 2147483648
    %v7975 = vxor.u32 %v7959, 2147483648
    %v7976 = vxor.u32 %v7960, 2147483648
    %v7977 = vxor.u32 %v7961, 2147483648
    %v7978 = vmul.f32 %v7962, 1.442695
    %v7979 = vpow.pop %v7978
    %v7980 = vmul.f32 %v7963, 1.442695
    %v7981 = vpow.pop %v7980
    %v7982 = vmul.f32 %v7964, 1.442695
    %v7983 = vpow.pop %v7982
    %v7984 = vmul.f32 %v7965, 1.442695
    %v7985 = vpow.pop %v7984
    %v7986 = vmul.f32 %v7966, 1.442695
    %v7987 = vpow.pop %v7986
    %v7988 = vmul.f32 %v7967, 1.442695
    %v7989 = vpow.pop %v7988
    %v7990 = vmul.f32 %v7968, 1.442695
    %v7991 = vpow.pop %v7990
    %v7992 = vmul.f32 %v7969, 1.442695
    %v7993 = vpow.pop %v7992
    %v7994 = vmul.f32 %v7970, 1.442695
    %v7995 = vpow.pop %v7994
    %v7996 = vmul.f32 %v7971, 1.442695
    %v7997 = vpow.pop %v7996
    %v7998 = vmul.f32 %v7972, 1.442695
    %v7999 = vpow.pop %v7998
    %v8000 = vmul.f32 %v7973, 1.442695
    %v8001 = vpow.pop %v8000
    %v8002 = vmul.f32 %v7974, 1.442695
    %v8003 = vpow.pop %v8002
    %v8004 = vmul.f32 %v7975, 1.442695
    %v8005 = vpow.pop %v8004
    %v8006 = vmul.f32 %v7976, 1.442695
    %v8007 = vpow.pop %v8006
    %v8008 = vmul.f32 %v7977, 1.442695
    %v8009 = vpow.pop %v8008
    %v8010 = vadd.f32 %v7979, 1.0
    %v8011 = vadd.f32 %v7981, 1.0
    %v8012 = vadd.f32 %v7983, 1.0
    %v8013 = vadd.f32 %v7985, 1.0
    %v8014 = vadd.f32 %v7987, 1.0
    %v8015 = vadd.f32 %v7989, 1.0
    %v8016 = vadd.f32 %v7991, 1.0
    %v8017 = vadd.f32 %v7993, 1.0
    %v8018 = vadd.f32 %v7995, 1.0
    %v8019 = vadd.f32 %v7997, 1.0
    %v8020 = vadd.f32 %v7999, 1.0
    %v8021 = vadd.f32 %v8001, 1.0
    %v8022 = vadd.f32 %v8003, 1.0
    %v8023 = vadd.f32 %v8005, 1.0
    %v8024 = vadd.f32 %v8007, 1.0
    %v8025 = vadd.f32 %v8009, 1.0
    %v8026 = vrcp.pop %v8010
    %v8027 = vmul.f32 1.0, %v8026
    %v8028 = vrcp.pop %v8011
    %v8029 = vmul.f32 1.0, %v8028
    %v8030 = vrcp.pop %v8012
    %v8031 = vmul.f32 1.0, %v8030
    %v8032 = vrcp.pop %v8013
    %v8033 = vmul.f32 1.0, %v8032
    %v8034 = vrcp.pop %v8014
    %v8035 = vmul.f32 1.0, %v8034
    %v8036 = vrcp.pop %v8015
    %v8037 = vmul.f32 1.0, %v8036
    %v8038 = vrcp.pop %v8016
    %v8039 = vmul.f32 1.0, %v8038
    %v8040 = vrcp.pop %v8017
    %v8041 = vmul.f32 1.0, %v8040
    %v8042 = vrcp.pop %v8018
    %v8043 = vmul.f32 1.0, %v8042
    %v8044 = vrcp.pop %v8019
    %v8045 = vmul.f32 1.0, %v8044
    %v8046 = vrcp.pop %v8020
    %v8047 = vmul.f32 1.0, %v8046
    %v8048 = vrcp.pop %v8021
    %v8049 = vmul.f32 1.0, %v8048
    %v8050 = vrcp.pop %v8022
    %v8051 = vmul.f32 1.0, %v8050
    %v8052 = vrcp.pop %v8023
    %v8053 = vmul.f32 1.0, %v8052
    %v8054 = vrcp.pop %v8024
    %v8055 = vmul.f32 1.0, %v8054
    %v8056 = vrcp.pop %v8025
    %v8057 = vmul.f32 1.0, %v8056
    %v8058 = vmul.f32 %v7946, %v8027
    %v8059 = vmul.f32 %v7947, %v8029
    %v8060 = vmul.f32 %v7948, %v8031
    %v8061 = vmul.f32 %v7949, %v8033
    %v8062 = vmul.f32 %v7950, %v8035
    %v8063 = vmul.f32 %v7951, %v8037
    %v8064 = vmul.f32 %v7952, %v8039
    %v8065 = vmul.f32 %v7953, %v8041
    %v8066 = vmul.f32 %v7954, %v8043
    %v8067 = vmul.f32 %v7955, %v8045
    %v8068 = vmul.f32 %v7956, %v8047
    %v8069 = vmul.f32 %v7957, %v8049
    %v8070 = vmul.f32 %v7958, %v8051
    %v8071 = vmul.f32 %v7959, %v8053
    %v8072 = vmul.f32 %v7960, %v8055
    %v8073 = vmul.f32 %v7961, %v8057
    %s8074 = scalar_lea.vmem [#allocation2], 352
    %v8075 = vld [vmem:[%s8074] sm:$0xff]
    %v8076 = vld [vmem:[%s8074 + $0x8] sm:$0xff]
    %v8077 = vld [vmem:[%s8074 + $0x10] sm:$0xff]
    %v8078 = vld [vmem:[%s8074 + $0x18] sm:$0xff]
    %s8079 = scalar_lea.vmem %s4, 7
    %v8080 = vld [vmem:[%s8079] sm:$0x1]
    %v8082 = vlaneseq
    %v8083 = vshrl.u32 %v8082, 7
    %v8084 = vsub.s32 0, %v8083
    %v8085 = vrot.slane %v8080, %v8084
    %v8088 = vsel %vm660, %v8058, 0
    %v8091 = vsel %vm660, %v8059, 0
    %v8094 = vsel %vm660, %v8060, 0
    %v8097 = vsel %vm660, %v8061, 0
    %v8100 = vsel %vm660, %v8062, 0
    %v8103 = vsel %vm660, %v8063, 0
    %v8106 = vsel %vm660, %v8064, 0
    %v8109 = vsel %vm660, %v8065, 0
    %v8112 = vsel %vm660, %v8066, 0
    %v8115 = vsel %vm660, %v8067, 0
    %v8118 = vsel %vm660, %v8068, 0
    %v8121 = vsel %vm660, %v8069, 0
    %v8124 = vsel %vm660, %v8070, 0
    %v8127 = vsel %vm660, %v8071, 0
    %v8130 = vsel %vm660, %v8072, 0
    %v8133 = vsel %vm660, %v8073, 0
    %8135 = vmatprep.subr.mxu0 0.0
    %8136 = vmatpush1.msra.mxu0 %v8075
    %8137 = vmatprep.subr.mxu0 0.0
    %8138 = vmatpush1.msra.mxu0 %v8076
    %8139 = vmatprep.subr.mxu0 0.0
    %8140 = vmatpush1.msra.mxu0 %v8077
    %8141 = vmatprep.subr.mxu0 0.0
    %8142 = vmatpush1.msra.mxu0 %v8078
    %8143 = vmatprep.subr.mxu0 0.0
    %8144 = vmatpush1.msra.mxu0 0.0
    %8145 = vmatprep.subr.mxu0 0.0
    %8146 = vmatpush1.msra.mxu0 0.0
    %8147 = vmatprep.subr.mxu0 0.0
    %8148 = vmatpush1.msra.mxu0 0.0
    %8149 = vmatprep.subr.mxu0 0.0
    %8150 = vmatpush1.msra.mxu0 0.0
    %8151 = vmatprep.subr.mxu0 0.0
    %8152 = vmatpush1.msra.mxu0 0.0
    %8153 = vmatprep.subr.mxu0 0.0
    %8154 = vmatpush1.msra.mxu0 0.0
    %8155 = vmatprep.subr.mxu0 0.0
    %8156 = vmatpush1.msra.mxu0 0.0
    %8157 = vmatprep.subr.mxu0 0.0
    %8158 = vmatpush1.msra.mxu0 0.0
    %8159 = vmatprep.subr.mxu0 0.0
    %8160 = vmatpush1.msra.mxu0 0.0
    %8161 = vmatprep.subr.mxu0 0.0
    %8162 = vmatpush1.msra.mxu0 0.0
    %8163 = vmatprep.subr.mxu0 0.0
    %8164 = vmatpush1.msra.mxu0 0.0
    %8165 = vmatprep.subr.mxu0 0.0
    %8166 = vmatpush1.msra.mxu0 0.0
    %8167 = vmatprep.subr.mxu0 0.0
    %8168 = vmatpush1.msra.mxu0 0.0
    %8169 = vmatprep.subr.mxu0 0.0
    %8170 = vmatpush1.msra.mxu0 0.0
    %8171 = vmatprep.subr.mxu0 0.0
    %8172 = vmatpush1.msra.mxu0 0.0
    %8173 = vmatprep.subr.mxu0 0.0
    %8174 = vmatpush1.msra.mxu0 0.0
    %8175 = vmatprep.subr.mxu0 0.0
    %8176 = vmatpush1.msra.mxu0 0.0
    %8177 = vmatprep.subr.mxu0 0.0
    %8178 = vmatpush1.msra.mxu0 0.0
    %8179 = vmatprep.subr.mxu0 0.0
    %8180 = vmatpush1.msra.mxu0 0.0
    %8181 = vmatprep.subr.mxu0 0.0
    %8182 = vmatpush1.msra.mxu0 0.0
    %8183 = vmatprep.subr.mxu0 0.0
    %8184 = vmatpush1.msra.mxu0 0.0
    %8185 = vmatprep.subr.mxu0 0.0
    %8186 = vmatpush1.msra.mxu0 0.0
    %8187 = vmatprep.subr.mxu0 0.0
    %8188 = vmatpush1.msra.mxu0 0.0
    %8189 = vmatprep.subr.mxu0 0.0
    %8190 = vmatpush1.msra.mxu0 0.0
    %8191 = vmatprep.subr.mxu0 0.0
    %8192 = vmatpush1.msra.mxu0 0.0
    %8193 = vmatprep.subr.mxu0 0.0
    %8194 = vmatpush1.msra.mxu0 0.0
    %8195 = vmatprep.subr.mxu0 0.0
    %8196 = vmatpush1.msra.mxu0 0.0
    %8197 = vmatprep.subr.mxu0 0.0
    %8198 = vmatpush1.msra.mxu0 0.0
    %8199 = vmatprep.mubr.f32.mxu0 0.0
    %8200 = vmatmul.mubr.f32.gmra.mrb[0].mxu0 %v8088
    %v8201 = vpop.f32.mrb[0].mxu0
    %v8202 = vadd.f32 %v8085, %v8201
    %v8203 = vpop.f32.mrb[0].mxu0
    %8204 = vmatprep.mubr.f32.mxu0 0.0
    %8205 = vmatmul.mubr.f32.gmra.mrb[0].mxu0 %v8091
    %v8206 = vpop.f32.mrb[0].mxu0
    %v8207 = vadd.f32 %v8085, %v8206
    %v8208 = vpop.f32.mrb[0].mxu0
    %8209 = vmatprep.mubr.f32.mxu0 0.0
    %8210 = vmatmul.mubr.f32.gmra.mrb[0].mxu0 %v8094
    %v8211 = vpop.f32.mrb[0].mxu0
    %v8212 = vadd.f32 %v8085, %v8211
    %v8213 = vpop.f32.mrb[0].mxu0
    %8214 = vmatprep.mubr.f32.mxu0 0.0
    %8215 = vmatmul.mubr.f32.gmra.mrb[0].mxu0 %v8097
    %v8216 = vpop.f32.mrb[0].mxu0
    %v8217 = vadd.f32 %v8085, %v8216
    %v8218 = vpop.f32.mrb[0].mxu0
    %8219 = vmatprep.mubr.f32.mxu0 0.0
    %8220 = vmatmul.mubr.f32.gmra.mrb[0].mxu0 %v8100
    %v8221 = vpop.f32.mrb[0].mxu0
    %v8222 = vadd.f32 %v8085, %v8221
    %v8223 = vpop.f32.mrb[0].mxu0
    %8224 = vmatprep.mubr.f32.mxu0 0.0
    %8225 = vmatmul.mubr.f32.gmra.mrb[0].mxu0 %v8103
    %v8226 = vpop.f32.mrb[0].mxu0
    %v8227 = vadd.f32 %v8085, %v8226
    %v8228 = vpop.f32.mrb[0].mxu0
    %8229 = vmatprep.mubr.f32.mxu0 0.0
    %8230 = vmatmul.mubr.f32.gmra.mrb[0].mxu0 %v8106
    %v8231 = vpop.f32.mrb[0].mxu0
    %v8232 = vadd.f32 %v8085, %v8231
    %v8233 = vpop.f32.mrb[0].mxu0
    %8234 = vmatprep.mubr.f32.mxu0 0.0
    %8235 = vmatmul.mubr.f32.gmra.mrb[0].mxu0 %v8109
    %v8236 = vpop.f32.mrb[0].mxu0
    %v8237 = vadd.f32 %v8085, %v8236
    %v8238 = vpop.f32.mrb[0].mxu0
    %8239 = vmatprep.mubr.f32.mxu0 0.0
    %8240 = vmatmul.mubr.f32.gmra.mrb[0].mxu0 %v8112
    %v8241 = vpop.f32.mrb[0].mxu0
    %v8242 = vadd.f32 %v8085, %v8241
    %v8243 = vpop.f32.mrb[0].mxu0
    %8244 = vmatprep.mubr.f32.mxu0 0.0
    %8245 = vmatmul.mubr.f32.gmra.mrb[0].mxu0 %v8115
    %v8246 = vpop.f32.mrb[0].mxu0
    %v8247 = vadd.f32 %v8085, %v8246
    %v8248 = vpop.f32.mrb[0].mxu0
    %8249 = vmatprep.mubr.f32.mxu0 0.0
    %8250 = vmatmul.mubr.f32.gmra.mrb[0].mxu0 %v8118
    %v8251 = vpop.f32.mrb[0].mxu0
    %v8252 = vadd.f32 %v8085, %v8251
    %v8253 = vpop.f32.mrb[0].mxu0
    %8254 = vmatprep.mubr.f32.mxu0 0.0
    %8255 = vmatmul.mubr.f32.gmra.mrb[0].mxu0 %v8121
    %v8256 = vpop.f32.mrb[0].mxu0
    %v8257 = vadd.f32 %v8085, %v8256
    %v8258 = vpop.f32.mrb[0].mxu0
    %8259 = vmatprep.mubr.f32.mxu0 0.0
    %8260 = vmatmul.mubr.f32.gmra.mrb[0].mxu0 %v8124
    %v8261 = vpop.f32.mrb[0].mxu0
    %v8262 = vadd.f32 %v8085, %v8261
    %v8263 = vpop.f32.mrb[0].mxu0
    %8264 = vmatprep.mubr.f32.mxu0 0.0
    %8265 = vmatmul.mubr.f32.gmra.mrb[0].mxu0 %v8127
    %v8266 = vpop.f32.mrb[0].mxu0
    %v8267 = vadd.f32 %v8085, %v8266
    %v8268 = vpop.f32.mrb[0].mxu0
    %8269 = vmatprep.mubr.f32.mxu0 0.0
    %8270 = vmatmul.mubr.f32.gmra.mrb[0].mxu0 %v8130
    %v8271 = vpop.f32.mrb[0].mxu0
    %v8272 = vadd.f32 %v8085, %v8271
    %v8273 = vpop.f32.mrb[0].mxu0
    %8274 = vmatprep.mubr.f32.mxu0 0.0
    %8275 = vmatmul.mubr.f32.gmra.mrb[0].mxu0 %v8133
    %v8276 = vpop.f32.mrb[0].mxu0
    %v8277 = vadd.f32 %v8085, %v8276
    %v8278 = vpop.f32.mrb[0].mxu0
    %8279 = vdwg.mxu0
    %v8280 = vxor.u32 %v8202, 2147483648
    %v8281 = vxor.u32 %v8207, 2147483648
    %v8282 = vxor.u32 %v8212, 2147483648
    %v8283 = vxor.u32 %v8217, 2147483648
    %v8284 = vxor.u32 %v8222, 2147483648
    %v8285 = vxor.u32 %v8227, 2147483648
    %v8286 = vxor.u32 %v8232, 2147483648
    %v8287 = vxor.u32 %v8237, 2147483648
    %v8288 = vxor.u32 %v8242, 2147483648
    %v8289 = vxor.u32 %v8247, 2147483648
    %v8290 = vxor.u32 %v8252, 2147483648
    %v8291 = vxor.u32 %v8257, 2147483648
    %v8292 = vxor.u32 %v8262, 2147483648
    %v8293 = vxor.u32 %v8267, 2147483648
    %v8294 = vxor.u32 %v8272, 2147483648
    %v8295 = vxor.u32 %v8277, 2147483648
    %v8296 = vmul.f32 %v8280, 1.442695
    %v8297 = vpow.pop %v8296
    %v8298 = vmul.f32 %v8281, 1.442695
    %v8299 = vpow.pop %v8298
    %v8300 = vmul.f32 %v8282, 1.442695
    %v8301 = vpow.pop %v8300
    %v8302 = vmul.f32 %v8283, 1.442695
    %v8303 = vpow.pop %v8302
    %v8304 = vmul.f32 %v8284, 1.442695
    %v8305 = vpow.pop %v8304
    %v8306 = vmul.f32 %v8285, 1.442695
    %v8307 = vpow.pop %v8306
    %v8308 = vmul.f32 %v8286, 1.442695
    %v8309 = vpow.pop %v8308
    %v8310 = vmul.f32 %v8287, 1.442695
    %v8311 = vpow.pop %v8310
    %v8312 = vmul.f32 %v8288, 1.442695
    %v8313 = vpow.pop %v8312
    %v8314 = vmul.f32 %v8289, 1.442695
    %v8315 = vpow.pop %v8314
    %v8316 = vmul.f32 %v8290, 1.442695
    %v8317 = vpow.pop %v8316
    %v8318 = vmul.f32 %v8291, 1.442695
    %v8319 = vpow.pop %v8318
    %v8320 = vmul.f32 %v8292, 1.442695
    %v8321 = vpow.pop %v8320
    %v8322 = vmul.f32 %v8293, 1.442695
    %v8323 = vpow.pop %v8322
    %v8324 = vmul.f32 %v8294, 1.442695
    %v8325 = vpow.pop %v8324
    %v8326 = vmul.f32 %v8295, 1.442695
    %v8327 = vpow.pop %v8326
    %v8328 = vadd.f32 %v8297, 1.0
    %v8329 = vadd.f32 %v8299, 1.0
    %v8330 = vadd.f32 %v8301, 1.0
    %v8331 = vadd.f32 %v8303, 1.0
    %v8332 = vadd.f32 %v8305, 1.0
    %v8333 = vadd.f32 %v8307, 1.0
    %v8334 = vadd.f32 %v8309, 1.0
    %v8335 = vadd.f32 %v8311, 1.0
    %v8336 = vadd.f32 %v8313, 1.0
    %v8337 = vadd.f32 %v8315, 1.0
    %v8338 = vadd.f32 %v8317, 1.0
    %v8339 = vadd.f32 %v8319, 1.0
    %v8340 = vadd.f32 %v8321, 1.0
    %v8341 = vadd.f32 %v8323, 1.0
    %v8342 = vadd.f32 %v8325, 1.0
    %v8343 = vadd.f32 %v8327, 1.0
    %v8344 = vrcp.pop %v8328
    %v8345 = vmul.f32 1.0, %v8344
    %v8346 = vrcp.pop %v8329
    %v8347 = vmul.f32 1.0, %v8346
    %v8348 = vrcp.pop %v8330
    %v8349 = vmul.f32 1.0, %v8348
    %v8350 = vrcp.pop %v8331
    %v8351 = vmul.f32 1.0, %v8350
    %v8352 = vrcp.pop %v8332
    %v8353 = vmul.f32 1.0, %v8352
    %v8354 = vrcp.pop %v8333
    %v8355 = vmul.f32 1.0, %v8354
    %v8356 = vrcp.pop %v8334
    %v8357 = vmul.f32 1.0, %v8356
    %v8358 = vrcp.pop %v8335
    %v8359 = vmul.f32 1.0, %v8358
    %v8360 = vrcp.pop %v8336
    %v8361 = vmul.f32 1.0, %v8360
    %v8362 = vrcp.pop %v8337
    %v8363 = vmul.f32 1.0, %v8362
    %v8364 = vrcp.pop %v8338
    %v8365 = vmul.f32 1.0, %v8364
    %v8366 = vrcp.pop %v8339
    %v8367 = vmul.f32 1.0, %v8366
    %v8368 = vrcp.pop %v8340
    %v8369 = vmul.f32 1.0, %v8368
    %v8370 = vrcp.pop %v8341
    %v8371 = vmul.f32 1.0, %v8370
    %v8372 = vrcp.pop %v8342
    %v8373 = vmul.f32 1.0, %v8372
    %v8374 = vrcp.pop %v8343
    %v8375 = vmul.f32 1.0, %v8374
    %v8376 = vmul.f32 %v8202, %v8345
    %v8377 = vmul.f32 %v8207, %v8347
    %v8378 = vmul.f32 %v8212, %v8349
    %v8379 = vmul.f32 %v8217, %v8351
    %v8380 = vmul.f32 %v8222, %v8353
    %v8381 = vmul.f32 %v8227, %v8355
    %v8382 = vmul.f32 %v8232, %v8357
    %v8383 = vmul.f32 %v8237, %v8359
    %v8384 = vmul.f32 %v8242, %v8361
    %v8385 = vmul.f32 %v8247, %v8363
    %v8386 = vmul.f32 %v8252, %v8365
    %v8387 = vmul.f32 %v8257, %v8367
    %v8388 = vmul.f32 %v8262, %v8369
    %v8389 = vmul.f32 %v8267, %v8371
    %v8390 = vmul.f32 %v8272, %v8373
    %v8391 = vmul.f32 %v8277, %v8375
    %v8392 = vmul.f32 %v8376, %v1658
    %v8393 = vmul.f32 %v8377, %v1663
    %v8394 = vmul.f32 %v8378, %v1668
    %v8395 = vmul.f32 %v8379, %v1673
    %v8396 = vmul.f32 %v8380, %v1678
    %v8397 = vmul.f32 %v8381, %v1683
    %v8398 = vmul.f32 %v8382, %v1688
    %v8399 = vmul.f32 %v8383, %v1693
    %v8400 = vmul.f32 %v8384, %v1698
    %v8401 = vmul.f32 %v8385, %v1703
    %v8402 = vmul.f32 %v8386, %v1708
    %v8403 = vmul.f32 %v8387, %v1713
    %v8404 = vmul.f32 %v8388, %v1718
    %v8405 = vmul.f32 %v8389, %v1723
    %v8406 = vmul.f32 %v8390, %v1728
    %v8407 = vmul.f32 %v8391, %v1733
    %v8408 = vsel %vm660, %v8392, 0.0
    %v8409 = vrot.slane %v8408, 4
    %v8410 = vadd.f32 %v8408, %v8409
    %v8411 = vrot.slane %v8410, 2
    %v8412 = vadd.f32 %v8410, %v8411
    %v8413 = vrot.slane %v8412, 1
    %v8414 = vadd.f32 %v8412, %v8413
    %v8415 = vsel %vm660, %v8393, 0.0
    %v8416 = vrot.slane %v8415, 4
    %v8417 = vadd.f32 %v8415, %v8416
    %v8418 = vrot.slane %v8417, 2
    %v8419 = vadd.f32 %v8417, %v8418
    %v8420 = vrot.slane %v8419, 1
    %v8421 = vadd.f32 %v8419, %v8420
    %v8422 = vsel %vm660, %v8394, 0.0
    %v8423 = vrot.slane %v8422, 4
    %v8424 = vadd.f32 %v8422, %v8423
    %v8425 = vrot.slane %v8424, 2
    %v8426 = vadd.f32 %v8424, %v8425
    %v8427 = vrot.slane %v8426, 1
    %v8428 = vadd.f32 %v8426, %v8427
    %v8429 = vsel %vm660, %v8395, 0.0
    %v8430 = vrot.slane %v8429, 4
    %v8431 = vadd.f32 %v8429, %v8430
    %v8432 = vrot.slane %v8431, 2
    %v8433 = vadd.f32 %v8431, %v8432
    %v8434 = vrot.slane %v8433, 1
    %v8435 = vadd.f32 %v8433, %v8434
    %v8436 = vsel %vm660, %v8396, 0.0
    %v8437 = vrot.slane %v8436, 4
    %v8438 = vadd.f32 %v8436, %v8437
    %v8439 = vrot.slane %v8438, 2
    %v8440 = vadd.f32 %v8438, %v8439
    %v8441 = vrot.slane %v8440, 1
    %v8442 = vadd.f32 %v8440, %v8441
    %v8443 = vsel %vm660, %v8397, 0.0
    %v8444 = vrot.slane %v8443, 4
    %v8445 = vadd.f32 %v8443, %v8444
    %v8446 = vrot.slane %v8445, 2
    %v8447 = vadd.f32 %v8445, %v8446
    %v8448 = vrot.slane %v8447, 1
    %v8449 = vadd.f32 %v8447, %v8448
    %v8450 = vsel %vm660, %v8398, 0.0
    %v8451 = vrot.slane %v8450, 4
    %v8452 = vadd.f32 %v8450, %v8451
    %v8453 = vrot.slane %v8452, 2
    %v8454 = vadd.f32 %v8452, %v8453
    %v8455 = vrot.slane %v8454, 1
    %v8456 = vadd.f32 %v8454, %v8455
    %v8457 = vsel %vm660, %v8399, 0.0
    %v8458 = vrot.slane %v8457, 4
    %v8459 = vadd.f32 %v8457, %v8458
    %v8460 = vrot.slane %v8459, 2
    %v8461 = vadd.f32 %v8459, %v8460
    %v8462 = vrot.slane %v8461, 1
    %v8463 = vadd.f32 %v8461, %v8462
    %v8464 = vsel %vm660, %v8400, 0.0
    %v8465 = vrot.slane %v8464, 4
    %v8466 = vadd.f32 %v8464, %v8465
    %v8467 = vrot.slane %v8466, 2
    %v8468 = vadd.f32 %v8466, %v8467
    %v8469 = vrot.slane %v8468, 1
    %v8470 = vadd.f32 %v8468, %v8469
    %v8471 = vsel %vm660, %v8401, 0.0
    %v8472 = vrot.slane %v8471, 4
    %v8473 = vadd.f32 %v8471, %v8472
    %v8474 = vrot.slane %v8473, 2
    %v8475 = vadd.f32 %v8473, %v8474
    %v8476 = vrot.slane %v8475, 1
    %v8477 = vadd.f32 %v8475, %v8476
    %v8478 = vsel %vm660, %v8402, 0.0
    %v8479 = vrot.slane %v8478, 4
    %v8480 = vadd.f32 %v8478, %v8479
    %v8481 = vrot.slane %v8480, 2
    %v8482 = vadd.f32 %v8480, %v8481
    %v8483 = vrot.slane %v8482, 1
    %v8484 = vadd.f32 %v8482, %v8483
    %v8485 = vsel %vm660, %v8403, 0.0
    %v8486 = vrot.slane %v8485, 4
    %v8487 = vadd.f32 %v8485, %v8486
    %v8488 = vrot.slane %v8487, 2
    %v8489 = vadd.f32 %v8487, %v8488
    %v8490 = vrot.slane %v8489, 1
    %v8491 = vadd.f32 %v8489, %v8490
    %v8492 = vsel %vm660, %v8404, 0.0
    %v8493 = vrot.slane %v8492, 4
    %v8494 = vadd.f32 %v8492, %v8493
    %v8495 = vrot.slane %v8494, 2
    %v8496 = vadd.f32 %v8494, %v8495
    %v8497 = vrot.slane %v8496, 1
    %v8498 = vadd.f32 %v8496, %v8497
    %v8499 = vsel %vm660, %v8405, 0.0
    %v8500 = vrot.slane %v8499, 4
    %v8501 = vadd.f32 %v8499, %v8500
    %v8502 = vrot.slane %v8501, 2
    %v8503 = vadd.f32 %v8501, %v8502
    %v8504 = vrot.slane %v8503, 1
    %v8505 = vadd.f32 %v8503, %v8504
    %v8506 = vsel %vm660, %v8406, 0.0
    %v8507 = vrot.slane %v8506, 4
    %v8508 = vadd.f32 %v8506, %v8507
    %v8509 = vrot.slane %v8508, 2
    %v8510 = vadd.f32 %v8508, %v8509
    %v8511 = vrot.slane %v8510, 1
    %v8512 = vadd.f32 %v8510, %v8511
    %v8513 = vsel %vm660, %v8407, 0.0
    %v8514 = vrot.slane %v8513, 4
    %v8515 = vadd.f32 %v8513, %v8514
    %v8516 = vrot.slane %v8515, 2
    %v8517 = vadd.f32 %v8515, %v8516
    %v8518 = vrot.slane %v8517, 1
    %v8519 = vadd.f32 %v8517, %v8518
    %s8520 = scalar_lea.vmem [#allocation2], 480
    %v8521 = vld [vmem:[%s8520] sm:$0xff]
    %v8522 = vld [vmem:[%s8520 + $0x8] sm:$0xff]
    %v8523 = vld [vmem:[%s8520 + $0x10] sm:$0xff]
    %v8524 = vld [vmem:[%s8520 + $0x18] sm:$0xff]
    %s8525 = scalar_lea.vmem [#allocation2], 608
    %v8526 = vld [vmem:[%s8525] sm:$0xff]
    %v8527 = vld [vmem:[%s8525 + $0x8] sm:$0xff]
    %v8528 = vld [vmem:[%s8525 + $0x10] sm:$0xff]
    %v8529 = vld [vmem:[%s8525 + $0x18] sm:$0xff]
    %v8546 = vsel %vm1889, %v8421, %v8414
    %v8547 = vsel %vm1891, %v8428, %v8546
    %v8548 = vsel %vm1893, %v8435, %v8547
    %v8549 = vsel %vm1895, %v8442, %v8548
    %v8550 = vsel %vm1897, %v8449, %v8549
    %v8551 = vsel %vm1899, %v8456, %v8550
    %v8552 = vsel %vm1901, %v8463, %v8551
    %v8553 = vsel %vm1889, %v8477, %v8470
    %v8554 = vsel %vm1891, %v8484, %v8553
    %v8555 = vsel %vm1893, %v8491, %v8554
    %v8556 = vsel %vm1895, %v8498, %v8555
    %v8557 = vsel %vm1897, %v8505, %v8556
    %v8558 = vsel %vm1899, %v8512, %v8557
    %v8559 = vsel %vm1901, %v8519, %v8558
    %v8560 = vsel %vm660, %v8552, 0
    %v8562 = vsel %vm660, %v8559, 0
    %8564 = vmatprep.subr.mxu0 0.0
    %8565 = vmatpush1.msra.mxu0 %v8526
    %8566 = vmatprep.subr.mxu0 0.0
    %8567 = vmatpush1.msra.mxu0 %v8527
    %8568 = vmatprep.subr.mxu0 0.0
    %8569 = vmatpush1.msra.mxu0 %v8528
    %8570 = vmatprep.subr.mxu0 0.0
    %8571 = vmatpush1.msra.mxu0 %v8529
    %8572 = vmatprep.subr.mxu0 0.0
    %8573 = vmatpush1.msra.mxu0 0.0
    %8574 = vmatprep.subr.mxu0 0.0
    %8575 = vmatpush1.msra.mxu0 0.0
    %8576 = vmatprep.subr.mxu0 0.0
    %8577 = vmatpush1.msra.mxu0 0.0
    %8578 = vmatprep.subr.mxu0 0.0
    %8579 = vmatpush1.msra.mxu0 0.0
    %8580 = vmatprep.subr.mxu0 0.0
    %8581 = vmatpush1.msra.mxu0 0.0
    %8582 = vmatprep.subr.mxu0 0.0
    %8583 = vmatpush1.msra.mxu0 0.0
    %8584 = vmatprep.subr.mxu0 0.0
    %8585 = vmatpush1.msra.mxu0 0.0
    %8586 = vmatprep.subr.mxu0 0.0
    %8587 = vmatpush1.msra.mxu0 0.0
    %8588 = vmatprep.subr.mxu0 0.0
    %8589 = vmatpush1.msra.mxu0 0.0
    %8590 = vmatprep.subr.mxu0 0.0
    %8591 = vmatpush1.msra.mxu0 0.0
    %8592 = vmatprep.subr.mxu0 0.0
    %8593 = vmatpush1.msra.mxu0 0.0
    %8594 = vmatprep.subr.mxu0 0.0
    %8595 = vmatpush1.msra.mxu0 0.0
    %8596 = vmatprep.subr.mxu0 0.0
    %8597 = vmatpush1.msra.mxu0 0.0
    %8598 = vmatprep.subr.mxu0 0.0
    %8599 = vmatpush1.msra.mxu0 0.0
    %8600 = vmatprep.subr.mxu0 0.0
    %8601 = vmatpush1.msra.mxu0 0.0
    %8602 = vmatprep.subr.mxu0 0.0
    %8603 = vmatpush1.msra.mxu0 0.0
    %8604 = vmatprep.subr.mxu0 0.0
    %8605 = vmatpush1.msra.mxu0 0.0
    %8606 = vmatprep.subr.mxu0 0.0
    %8607 = vmatpush1.msra.mxu0 0.0
    %8608 = vmatprep.subr.mxu0 0.0
    %8609 = vmatpush1.msra.mxu0 0.0
    %8610 = vmatprep.subr.mxu0 0.0
    %8611 = vmatpush1.msra.mxu0 0.0
    %8612 = vmatprep.subr.mxu0 0.0
    %8613 = vmatpush1.msra.mxu0 0.0
    %8614 = vmatprep.subr.mxu0 0.0
    %8615 = vmatpush1.msra.mxu0 0.0
    %8616 = vmatprep.subr.mxu0 0.0
    %8617 = vmatpush1.msra.mxu0 0.0
    %8618 = vmatprep.subr.mxu0 0.0
    %8619 = vmatpush1.msra.mxu0 0.0
    %8620 = vmatprep.subr.mxu0 0.0
    %8621 = vmatpush1.msra.mxu0 0.0
    %8622 = vmatprep.subr.mxu0 0.0
    %8623 = vmatpush1.msra.mxu0 0.0
    %8624 = vmatprep.subr.mxu0 0.0
    %8625 = vmatpush1.msra.mxu0 0.0
    %8626 = vmatprep.subr.mxu0 0.0
    %8627 = vmatpush1.msra.mxu0 0.0
    %8628 = vmatprep.mubr.f32.mxu0 0.0
    %8629 = vmatmul.mubr.f32.gmra.mrb[0].mxu0 %v8560
    %v8630 = vpop.f32.mrb[0].mxu0
    %v8631 = vadd.f32 0.0, %v8630
    %v8632 = vpop.f32.mrb[0].mxu0
    %8633 = vmatprep.mubr.f32.mxu0 0.0
    %8634 = vmatmul.mubr.f32.gmra.mrb[0].mxu0 %v8562
    %v8635 = vpop.f32.mrb[0].mxu0
    %v8636 = vadd.f32 0.0, %v8635
    %v8637 = vpop.f32.mrb[0].mxu0
    %8638 = vdwg.mxu0
    %8639 = vmatprep.subr.mxu0 0.0
    %8640 = vmatpush1.msra.mxu0 %v8521
    %8641 = vmatprep.subr.mxu0 0.0
    %8642 = vmatpush1.msra.mxu0 %v8522
    %8643 = vmatprep.subr.mxu0 0.0
    %8644 = vmatpush1.msra.mxu0 %v8523
    %8645 = vmatprep.subr.mxu0 0.0
    %8646 = vmatpush1.msra.mxu0 %v8524
    %8647 = vmatprep.subr.mxu0 0.0
    %8648 = vmatpush1.msra.mxu0 0.0
    %8649 = vmatprep.subr.mxu0 0.0
    %8650 = vmatpush1.msra.mxu0 0.0
    %8651 = vmatprep.subr.mxu0 0.0
    %8652 = vmatpush1.msra.mxu0 0.0
    %8653 = vmatprep.subr.mxu0 0.0
    %8654 = vmatpush1.msra.mxu0 0.0
    %8655 = vmatprep.subr.mxu0 0.0
    %8656 = vmatpush1.msra.mxu0 0.0
    %8657 = vmatprep.subr.mxu0 0.0
    %8658 = vmatpush1.msra.mxu0 0.0
    %8659 = vmatprep.subr.mxu0 0.0
    %8660 = vmatpush1.msra.mxu0 0.0
    %8661 = vmatprep.subr.mxu0 0.0
    %8662 = vmatpush1.msra.mxu0 0.0
    %8663 = vmatprep.subr.mxu0 0.0
    %8664 = vmatpush1.msra.mxu0 0.0
    %8665 = vmatprep.subr.mxu0 0.0
    %8666 = vmatpush1.msra.mxu0 0.0
    %8667 = vmatprep.subr.mxu0 0.0
    %8668 = vmatpush1.msra.mxu0 0.0
    %8669 = vmatprep.subr.mxu0 0.0
    %8670 = vmatpush1.msra.mxu0 0.0
    %8671 = vmatprep.subr.mxu0 0.0
    %8672 = vmatpush1.msra.mxu0 0.0
    %8673 = vmatprep.subr.mxu0 0.0
    %8674 = vmatpush1.msra.mxu0 0.0
    %8675 = vmatprep.subr.mxu0 0.0
    %8676 = vmatpush1.msra.mxu0 0.0
    %8677 = vmatprep.subr.mxu0 0.0
    %8678 = vmatpush1.msra.mxu0 0.0
    %8679 = vmatprep.subr.mxu0 0.0
    %8680 = vmatpush1.msra.mxu0 0.0
    %8681 = vmatprep.subr.mxu0 0.0
    %8682 = vmatpush1.msra.mxu0 0.0
    %8683 = vmatprep.subr.mxu0 0.0
    %8684 = vmatpush1.msra.mxu0 0.0
    %8685 = vmatprep.subr.mxu0 0.0
    %8686 = vmatpush1.msra.mxu0 0.0
    %8687 = vmatprep.subr.mxu0 0.0
    %8688 = vmatpush1.msra.mxu0 0.0
    %8689 = vmatprep.subr.mxu0 0.0
    %8690 = vmatpush1.msra.mxu0 0.0
    %8691 = vmatprep.subr.mxu0 0.0
    %8692 = vmatpush1.msra.mxu0 0.0
    %8693 = vmatprep.subr.mxu0 0.0
    %8694 = vmatpush1.msra.mxu0 0.0
    %8695 = vmatprep.subr.mxu0 0.0
    %8696 = vmatpush1.msra.mxu0 0.0
    %8697 = vmatprep.subr.mxu0 0.0
    %8698 = vmatpush1.msra.mxu0 0.0
    %8699 = vmatprep.subr.mxu0 0.0
    %8700 = vmatpush1.msra.mxu0 0.0
    %8701 = vmatprep.subr.mxu0 0.0
    %8702 = vmatpush1.msra.mxu0 0.0
    %8703 = vmatprep.mubr.f32.mxu0 0.0
    %8704 = vmatmul.mubr.f32.gmra.mrb[0].mxu0 %v7446
    %v8705 = vpop.f32.mrb[0].mxu0
    %v8706 = vadd.f32 %v8631, %v8705
    %v8707 = vpop.f32.mrb[0].mxu0
    %8708 = vmatprep.mubr.f32.mxu0 0.0
    %8709 = vmatmul.mubr.f32.gmra.mrb[0].mxu0 %v7448
    %v8710 = vpop.f32.mrb[0].mxu0
    %v8711 = vadd.f32 %v8636, %v8710
    %v8712 = vpop.f32.mrb[0].mxu0
    %8713 = vdwg.mxu0
    %s8714 = scalar_lea.vmem %s4, 11
    %v8715 = vld [vmem:[%s8714] sm:$0x1]
    %v8717 = vlaneseq
    %v8718 = vshrl.u32 %v8717, 7
    %v8719 = vsub.s32 0, %v8718
    %v8720 = vrot.slane %v8715, %v8719
    %v8722 = vadd.f32 %v8706, %v8720
    %v8723 = vadd.f32 %v8711, %v8720
    %v8724 = vxor.u32 %v8722, 2147483648
    %v8725 = vxor.u32 %v8723, 2147483648
    %v8726 = vmul.f32 %v8724, 1.442695
    %v8727 = vpow.pop %v8726
    %v8728 = vmul.f32 %v8725, 1.442695
    %v8729 = vpow.pop %v8728
    %v8730 = vadd.f32 %v8727, 1.0
    %v8731 = vadd.f32 %v8729, 1.0
    %v8732 = vrcp.pop %v8730
    %v8733 = vmul.f32 1.0, %v8732
    %v8734 = vrcp.pop %v8731
    %v8735 = vmul.f32 1.0, %v8734
    %v8736 = vmul.f32 %v8722, %v8733
    %v8737 = vmul.f32 %v8723, %v8735
    %s8738 = scalar_lea.vmem [#allocation2], 736
    %v8739 = vld [vmem:[%s8738] sm:$0xff]
    %v8740 = vld [vmem:[%s8738 + $0x8] sm:$0xff]
    %v8741 = vld [vmem:[%s8738 + $0x10] sm:$0xff]
    %v8742 = vld [vmem:[%s8738 + $0x18] sm:$0xff]
    %v8744 = vsel %vm660, %v8736, 0
    %v8747 = vsel %vm660, %v8737, 0
    %8749 = vmatprep.subr.mxu0 0.0
    %8750 = vmatpush1.msra.mxu0 %v8739
    %8751 = vmatprep.subr.mxu0 0.0
    %8752 = vmatpush1.msra.mxu0 %v8740
    %8753 = vmatprep.subr.mxu0 0.0
    %8754 = vmatpush1.msra.mxu0 %v8741
    %8755 = vmatprep.subr.mxu0 0.0
    %8756 = vmatpush1.msra.mxu0 %v8742
    %8757 = vmatprep.subr.mxu0 0.0
    %8758 = vmatpush1.msra.mxu0 0.0
    %8759 = vmatprep.subr.mxu0 0.0
    %8760 = vmatpush1.msra.mxu0 0.0
    %8761 = vmatprep.subr.mxu0 0.0
    %8762 = vmatpush1.msra.mxu0 0.0
    %8763 = vmatprep.subr.mxu0 0.0
    %8764 = vmatpush1.msra.mxu0 0.0
    %8765 = vmatprep.subr.mxu0 0.0
    %8766 = vmatpush1.msra.mxu0 0.0
    %8767 = vmatprep.subr.mxu0 0.0
    %8768 = vmatpush1.msra.mxu0 0.0
    %8769 = vmatprep.subr.mxu0 0.0
    %8770 = vmatpush1.msra.mxu0 0.0
    %8771 = vmatprep.subr.mxu0 0.0
    %8772 = vmatpush1.msra.mxu0 0.0
    %8773 = vmatprep.subr.mxu0 0.0
    %8774 = vmatpush1.msra.mxu0 0.0
    %8775 = vmatprep.subr.mxu0 0.0
    %8776 = vmatpush1.msra.mxu0 0.0
    %8777 = vmatprep.subr.mxu0 0.0
    %8778 = vmatpush1.msra.mxu0 0.0
    %8779 = vmatprep.subr.mxu0 0.0
    %8780 = vmatpush1.msra.mxu0 0.0
    %8781 = vmatprep.subr.mxu0 0.0
    %8782 = vmatpush1.msra.mxu0 0.0
    %8783 = vmatprep.subr.mxu0 0.0
    %8784 = vmatpush1.msra.mxu0 0.0
    %8785 = vmatprep.subr.mxu0 0.0
    %8786 = vmatpush1.msra.mxu0 0.0
    %8787 = vmatprep.subr.mxu0 0.0
    %8788 = vmatpush1.msra.mxu0 0.0
    %8789 = vmatprep.subr.mxu0 0.0
    %8790 = vmatpush1.msra.mxu0 0.0
    %8791 = vmatprep.subr.mxu0 0.0
    %8792 = vmatpush1.msra.mxu0 0.0
    %8793 = vmatprep.subr.mxu0 0.0
    %8794 = vmatpush1.msra.mxu0 0.0
    %8795 = vmatprep.subr.mxu0 0.0
    %8796 = vmatpush1.msra.mxu0 0.0
    %8797 = vmatprep.subr.mxu0 0.0
    %8798 = vmatpush1.msra.mxu0 0.0
    %8799 = vmatprep.subr.mxu0 0.0
    %8800 = vmatpush1.msra.mxu0 0.0
    %8801 = vmatprep.subr.mxu0 0.0
    %8802 = vmatpush1.msra.mxu0 0.0
    %8803 = vmatprep.subr.mxu0 0.0
    %8804 = vmatpush1.msra.mxu0 0.0
    %8805 = vmatprep.subr.mxu0 0.0
    %8806 = vmatpush1.msra.mxu0 0.0
    %8807 = vmatprep.subr.mxu0 0.0
    %8808 = vmatpush1.msra.mxu0 0.0
    %8809 = vmatprep.subr.mxu0 0.0
    %8810 = vmatpush1.msra.mxu0 0.0
    %8811 = vmatprep.subr.mxu0 0.0
    %8812 = vmatpush1.msra.mxu0 0.0
    %8813 = vmatprep.mubr.f32.mxu0 0.0
    %8814 = vmatmul.mubr.f32.gmra.mrb[0].mxu0 %v8744
    %v8815 = vpop.f32.mrb[0].mxu0
    %v8816 = vadd.f32 0.0, %v8815
    %v8817 = vpop.f32.mrb[0].mxu0
    %8818 = vmatprep.mubr.f32.mxu0 0.0
    %8819 = vmatmul.mubr.f32.gmra.mrb[0].mxu0 %v8747
    %v8820 = vpop.f32.mrb[0].mxu0
    %v8821 = vadd.f32 0.0, %v8820
    %v8822 = vpop.f32.mrb[0].mxu0
    %8823 = vdwg.mxu0
    %v8824 = vadd.f32 %v7270, %v8816
    %v8825 = vadd.f32 %v7271, %v8821
    %s8826 = scalar_lea.vmem %s4, 15
    %v8827 = vld [vmem:[%s8826] sm:$0x1]
    %v8829 = vlaneseq
    %v8830 = vshrl.u32 %v8829, 7
    %v8831 = vsub.s32 0, %v8830
    %v8832 = vrot.slane %v8827, %v8831
    %v8834 = vadd.f32 %v8824, %v8832
    %v8835 = vadd.f32 %v8825, %v8832
    %v8836 = vmul.f32 %v8834, %v72
    %v8837 = vmul.f32 %v8835, %v77
    %v8840 = vcombine.high %v8836, %v8836
    %v8842 = vunpack.c.l.s4 1966171168
    %v8843 = vunpack.c.0.s8 %v8842
    %v8844 = vlaneseq
    %v8845 = vshrl.u32 %v8844, 7
    %v8846 = vsub.s32 %v8843, %v8845
    %v8847 = vrot.slane %v8836, %v8846
    %v8849 = vunpack.c.l.s4 1966171168
    %v8850 = vunpack.c.0.s8 %v8849
    %v8851 = vlaneseq
    %v8852 = vshrl.u32 %v8851, 7
    %v8853 = vsub.s32 %v8850, %v8852
    %v8854 = vrot.slane %v8840, %v8853
    %v8855 = vcombine.high %v8847, %v8847
    %v8856 = vcombine.high %v8854, %v8854
    %v8858 = vunpack.c.l.s4 1966171168
    %v8859 = vunpack.c.0.s8 %v8858
    %v8860 = vlaneseq
    %v8861 = vshrl.u32 %v8860, 7
    %v8862 = vsub.s32 %v8859, %v8861
    %v8863 = vrot.slane %v8847, %v8862
    %v8865 = vunpack.c.l.s4 1966171168
    %v8866 = vunpack.c.0.s8 %v8865
    %v8867 = vlaneseq
    %v8868 = vshrl.u32 %v8867, 7
    %v8869 = vsub.s32 %v8866, %v8868
    %v8870 = vrot.slane %v8854, %v8869
    %v8872 = vunpack.c.l.s4 1966171168
    %v8873 = vunpack.c.0.s8 %v8872
    %v8874 = vlaneseq
    %v8875 = vshrl.u32 %v8874, 7
    %v8876 = vsub.s32 %v8873, %v8875
    %v8877 = vrot.slane %v8855, %v8876
    %v8879 = vunpack.c.l.s4 1966171168
    %v8880 = vunpack.c.0.s8 %v8879
    %v8881 = vlaneseq
    %v8882 = vshrl.u32 %v8881, 7
    %v8883 = vsub.s32 %v8880, %v8882
    %v8884 = vrot.slane %v8856, %v8883
    %v8885 = vcombine.high %v8863, %v8863
    %v8886 = vcombine.high %v8870, %v8870
    %v8887 = vcombine.high %v8877, %v8877
    %v8888 = vcombine.high %v8884, %v8884
    %v8889 = vcombine.high %v8837, %v8837
    %v8891 = vunpack.c.l.s4 1966171168
    %v8892 = vunpack.c.0.s8 %v8891
    %v8893 = vlaneseq
    %v8894 = vshrl.u32 %v8893, 7
    %v8895 = vsub.s32 %v8892, %v8894
    %v8896 = vrot.slane %v8837, %v8895
    %v8898 = vunpack.c.l.s4 1966171168
    %v8899 = vunpack.c.0.s8 %v8898
    %v8900 = vlaneseq
    %v8901 = vshrl.u32 %v8900, 7
    %v8902 = vsub.s32 %v8899, %v8901
    %v8903 = vrot.slane %v8889, %v8902
    %v8904 = vcombine.high %v8896, %v8896
    %v8905 = vcombine.high %v8903, %v8903
    %v8907 = vunpack.c.l.s4 1966171168
    %v8908 = vunpack.c.0.s8 %v8907
    %v8909 = vlaneseq
    %v8910 = vshrl.u32 %v8909, 7
    %v8911 = vsub.s32 %v8908, %v8910
    %v8912 = vrot.slane %v8896, %v8911
    %v8914 = vunpack.c.l.s4 1966171168
    %v8915 = vunpack.c.0.s8 %v8914
    %v8916 = vlaneseq
    %v8917 = vshrl.u32 %v8916, 7
    %v8918 = vsub.s32 %v8915, %v8917
    %v8919 = vrot.slane %v8903, %v8918
    %v8921 = vunpack.c.l.s4 1966171168
    %v8922 = vunpack.c.0.s8 %v8921
    %v8923 = vlaneseq
    %v8924 = vshrl.u32 %v8923, 7
    %v8925 = vsub.s32 %v8922, %v8924
    %v8926 = vrot.slane %v8904, %v8925
    %v8928 = vunpack.c.l.s4 1966171168
    %v8929 = vunpack.c.0.s8 %v8928
    %v8930 = vlaneseq
    %v8931 = vshrl.u32 %v8930, 7
    %v8932 = vsub.s32 %v8929, %v8931
    %v8933 = vrot.slane %v8905, %v8932
    %v8934 = vcombine.high %v8912, %v8912
    %v8935 = vcombine.high %v8919, %v8919
    %v8936 = vcombine.high %v8926, %v8926
    %v8937 = vcombine.high %v8933, %v8933
    %v8938 = vlaneseq
    %v8939 = vshrl.u32 %v8938, 7
    %v8940 = vsub.s32 0, %v8939
    %v8941 = vrot.slane %v8863, %v8940
    %v8942 = vlaneseq
    %v8943 = vshrl.u32 %v8942, 7
    %v8944 = vsub.s32 0, %v8943
    %v8945 = vrot.slane %v8877, %v8944
    %v8946 = vlaneseq
    %v8947 = vshrl.u32 %v8946, 7
    %v8948 = vsub.s32 0, %v8947
    %v8949 = vrot.slane %v8885, %v8948
    %v8950 = vlaneseq
    %v8951 = vshrl.u32 %v8950, 7
    %v8952 = vsub.s32 0, %v8951
    %v8953 = vrot.slane %v8887, %v8952
    %v8954 = vlaneseq
    %v8955 = vshrl.u32 %v8954, 7
    %v8956 = vsub.s32 0, %v8955
    %v8957 = vrot.slane %v8870, %v8956
    %v8958 = vlaneseq
    %v8959 = vshrl.u32 %v8958, 7
    %v8960 = vsub.s32 0, %v8959
    %v8961 = vrot.slane %v8884, %v8960
    %v8962 = vlaneseq
    %v8963 = vshrl.u32 %v8962, 7
    %v8964 = vsub.s32 0, %v8963
    %v8965 = vrot.slane %v8886, %v8964
    %v8966 = vlaneseq
    %v8967 = vshrl.u32 %v8966, 7
    %v8968 = vsub.s32 0, %v8967
    %v8969 = vrot.slane %v8888, %v8968
    %v8970 = vlaneseq
    %v8971 = vshrl.u32 %v8970, 7
    %v8972 = vsub.s32 0, %v8971
    %v8973 = vrot.slane %v8912, %v8972
    %v8974 = vlaneseq
    %v8975 = vshrl.u32 %v8974, 7
    %v8976 = vsub.s32 0, %v8975
    %v8977 = vrot.slane %v8926, %v8976
    %v8978 = vlaneseq
    %v8979 = vshrl.u32 %v8978, 7
    %v8980 = vsub.s32 0, %v8979
    %v8981 = vrot.slane %v8934, %v8980
    %v8982 = vlaneseq
    %v8983 = vshrl.u32 %v8982, 7
    %v8984 = vsub.s32 0, %v8983
    %v8985 = vrot.slane %v8936, %v8984
    %v8986 = vlaneseq
    %v8987 = vshrl.u32 %v8986, 7
    %v8988 = vsub.s32 0, %v8987
    %v8989 = vrot.slane %v8919, %v8988
    %v8990 = vlaneseq
    %v8991 = vshrl.u32 %v8990, 7
    %v8992 = vsub.s32 0, %v8991
    %v8993 = vrot.slane %v8933, %v8992
    %v8994 = vlaneseq
    %v8995 = vshrl.u32 %v8994, 7
    %v8996 = vsub.s32 0, %v8995
    %v8997 = vrot.slane %v8935, %v8996
    %v8998 = vlaneseq
    %v8999 = vshrl.u32 %v8998, 7
    %v9000 = vsub.s32 0, %v8999
    %v9001 = vrot.slane %v8937, %v9000
    %s9002 = scalar_lea.vmem [#allocation2], 800
    %v9003 = vld [vmem:[%s9002] sm:$0xff]
    %v9004 = vld [vmem:[%s9002 + $0x8] sm:$0xff]
    %v9005 = vld [vmem:[%s9002 + $0x10] sm:$0xff]
    %v9006 = vld [vmem:[%s9002 + $0x18] sm:$0xff]
    %s9007 = scalar_lea.vmem [#allocation2], 864
    %v9008 = vld [vmem:[%s9007] sm:$0xff]
    %v9009 = vld [vmem:[%s9007 + $0x8] sm:$0xff]
    %v9010 = vld [vmem:[%s9007 + $0x10] sm:$0xff]
    %v9011 = vld [vmem:[%s9007 + $0x18] sm:$0xff]
    %v9012 = vsel %vm660, %v8836, 0
    %v9014 = vsel %vm660, %v8837, 0
    %9016 = vmatprep.subr.mxu0 0.0
    %9017 = vmatpush1.msra.mxu0 %v9008
    %9018 = vmatprep.subr.mxu0 0.0
    %9019 = vmatpush1.msra.mxu0 %v9009
    %9020 = vmatprep.subr.mxu0 0.0
    %9021 = vmatpush1.msra.mxu0 %v9010
    %9022 = vmatprep.subr.mxu0 0.0
    %9023 = vmatpush1.msra.mxu0 %v9011
    %9024 = vmatprep.subr.mxu0 0.0
    %9025 = vmatpush1.msra.mxu0 0.0
    %9026 = vmatprep.subr.mxu0 0.0
    %9027 = vmatpush1.msra.mxu0 0.0
    %9028 = vmatprep.subr.mxu0 0.0
    %9029 = vmatpush1.msra.mxu0 0.0
    %9030 = vmatprep.subr.mxu0 0.0
    %9031 = vmatpush1.msra.mxu0 0.0
    %9032 = vmatprep.subr.mxu0 0.0
    %9033 = vmatpush1.msra.mxu0 0.0
    %9034 = vmatprep.subr.mxu0 0.0
    %9035 = vmatpush1.msra.mxu0 0.0
    %9036 = vmatprep.subr.mxu0 0.0
    %9037 = vmatpush1.msra.mxu0 0.0
    %9038 = vmatprep.subr.mxu0 0.0
    %9039 = vmatpush1.msra.mxu0 0.0
    %9040 = vmatprep.subr.mxu0 0.0
    %9041 = vmatpush1.msra.mxu0 0.0
    %9042 = vmatprep.subr.mxu0 0.0
    %9043 = vmatpush1.msra.mxu0 0.0
    %9044 = vmatprep.subr.mxu0 0.0
    %9045 = vmatpush1.msra.mxu0 0.0
    %9046 = vmatprep.subr.mxu0 0.0
    %9047 = vmatpush1.msra.mxu0 0.0
    %9048 = vmatprep.subr.mxu0 0.0
    %9049 = vmatpush1.msra.mxu0 0.0
    %9050 = vmatprep.subr.mxu0 0.0
    %9051 = vmatpush1.msra.mxu0 0.0
    %9052 = vmatprep.subr.mxu0 0.0
    %9053 = vmatpush1.msra.mxu0 0.0
    %9054 = vmatprep.subr.mxu0 0.0
    %9055 = vmatpush1.msra.mxu0 0.0
    %9056 = vmatprep.subr.mxu0 0.0
    %9057 = vmatpush1.msra.mxu0 0.0
    %9058 = vmatprep.subr.mxu0 0.0
    %9059 = vmatpush1.msra.mxu0 0.0
    %9060 = vmatprep.subr.mxu0 0.0
    %9061 = vmatpush1.msra.mxu0 0.0
    %9062 = vmatprep.subr.mxu0 0.0
    %9063 = vmatpush1.msra.mxu0 0.0
    %9064 = vmatprep.subr.mxu0 0.0
    %9065 = vmatpush1.msra.mxu0 0.0
    %9066 = vmatprep.subr.mxu0 0.0
    %9067 = vmatpush1.msra.mxu0 0.0
    %9068 = vmatprep.subr.mxu0 0.0
    %9069 = vmatpush1.msra.mxu0 0.0
    %9070 = vmatprep.subr.mxu0 0.0
    %9071 = vmatpush1.msra.mxu0 0.0
    %9072 = vmatprep.subr.mxu0 0.0
    %9073 = vmatpush1.msra.mxu0 0.0
    %9074 = vmatprep.subr.mxu0 0.0
    %9075 = vmatpush1.msra.mxu0 0.0
    %9076 = vmatprep.subr.mxu0 0.0
    %9077 = vmatpush1.msra.mxu0 0.0
    %9078 = vmatprep.subr.mxu0 0.0
    %9079 = vmatpush1.msra.mxu0 0.0
    %9080 = vmatprep.mubr.f32.mxu0 0.0
    %9081 = vmatmul.mubr.f32.gmra.mrb[0].mxu0 %v9012
    %v9082 = vpop.f32.mrb[0].mxu0
    %v9083 = vadd.f32 0.0, %v9082
    %v9084 = vpop.f32.mrb[0].mxu0
    %9085 = vmatprep.mubr.f32.mxu0 0.0
    %9086 = vmatmul.mubr.f32.gmra.mrb[0].mxu0 %v9012
    %v9087 = vpop.f32.mrb[0].mxu0
    %v9088 = vadd.f32 0.0, %v9087
    %v9089 = vpop.f32.mrb[0].mxu0
    %9090 = vmatprep.mubr.f32.mxu0 0.0
    %9091 = vmatmul.mubr.f32.gmra.mrb[0].mxu0 %v9012
    %v9092 = vpop.f32.mrb[0].mxu0
    %v9093 = vadd.f32 0.0, %v9092
    %v9094 = vpop.f32.mrb[0].mxu0
    %9095 = vmatprep.mubr.f32.mxu0 0.0
    %9096 = vmatmul.mubr.f32.gmra.mrb[0].mxu0 %v9012
    %v9097 = vpop.f32.mrb[0].mxu0
    %v9098 = vadd.f32 0.0, %v9097
    %v9099 = vpop.f32.mrb[0].mxu0
    %9100 = vmatprep.mubr.f32.mxu0 0.0
    %9101 = vmatmul.mubr.f32.gmra.mrb[0].mxu0 %v9012
    %v9102 = vpop.f32.mrb[0].mxu0
    %v9103 = vadd.f32 0.0, %v9102
    %v9104 = vpop.f32.mrb[0].mxu0
    %9105 = vmatprep.mubr.f32.mxu0 0.0
    %9106 = vmatmul.mubr.f32.gmra.mrb[0].mxu0 %v9012
    %v9107 = vpop.f32.mrb[0].mxu0
    %v9108 = vadd.f32 0.0, %v9107
    %v9109 = vpop.f32.mrb[0].mxu0
    %9110 = vmatprep.mubr.f32.mxu0 0.0
    %9111 = vmatmul.mubr.f32.gmra.mrb[0].mxu0 %v9012
    %v9112 = vpop.f32.mrb[0].mxu0
    %v9113 = vadd.f32 0.0, %v9112
    %v9114 = vpop.f32.mrb[0].mxu0
    %9115 = vmatprep.mubr.f32.mxu0 0.0
    %9116 = vmatmul.mubr.f32.gmra.mrb[0].mxu0 %v9012
    %v9117 = vpop.f32.mrb[0].mxu0
    %v9118 = vadd.f32 0.0, %v9117
    %v9119 = vpop.f32.mrb[0].mxu0
    %9120 = vmatprep.mubr.f32.mxu0 0.0
    %9121 = vmatmul.mubr.f32.gmra.mrb[0].mxu0 %v9014
    %v9122 = vpop.f32.mrb[0].mxu0
    %v9123 = vadd.f32 0.0, %v9122
    %v9124 = vpop.f32.mrb[0].mxu0
    %9125 = vmatprep.mubr.f32.mxu0 0.0
    %9126 = vmatmul.mubr.f32.gmra.mrb[0].mxu0 %v9014
    %v9127 = vpop.f32.mrb[0].mxu0
    %v9128 = vadd.f32 0.0, %v9127
    %v9129 = vpop.f32.mrb[0].mxu0
    %9130 = vmatprep.mubr.f32.mxu0 0.0
    %9131 = vmatmul.mubr.f32.gmra.mrb[0].mxu0 %v9014
    %v9132 = vpop.f32.mrb[0].mxu0
    %v9133 = vadd.f32 0.0, %v9132
    %v9134 = vpop.f32.mrb[0].mxu0
    %9135 = vmatprep.mubr.f32.mxu0 0.0
    %9136 = vmatmul.mubr.f32.gmra.mrb[0].mxu0 %v9014
    %v9137 = vpop.f32.mrb[0].mxu0
    %v9138 = vadd.f32 0.0, %v9137
    %v9139 = vpop.f32.mrb[0].mxu0
    %9140 = vmatprep.mubr.f32.mxu0 0.0
    %9141 = vmatmul.mubr.f32.gmra.mrb[0].mxu0 %v9014
    %v9142 = vpop.f32.mrb[0].mxu0
    %v9143 = vadd.f32 0.0, %v9142
    %v9144 = vpop.f32.mrb[0].mxu0
    %9145 = vmatprep.mubr.f32.mxu0 0.0
    %9146 = vmatmul.mubr.f32.gmra.mrb[0].mxu0 %v9014
    %v9147 = vpop.f32.mrb[0].mxu0
    %v9148 = vadd.f32 0.0, %v9147
    %v9149 = vpop.f32.mrb[0].mxu0
    %9150 = vmatprep.mubr.f32.mxu0 0.0
    %9151 = vmatmul.mubr.f32.gmra.mrb[0].mxu0 %v9014
    %v9152 = vpop.f32.mrb[0].mxu0
    %v9153 = vadd.f32 0.0, %v9152
    %v9154 = vpop.f32.mrb[0].mxu0
    %9155 = vmatprep.mubr.f32.mxu0 0.0
    %9156 = vmatmul.mubr.f32.gmra.mrb[0].mxu0 %v9014
    %v9157 = vpop.f32.mrb[0].mxu0
    %v9158 = vadd.f32 0.0, %v9157
    %v9159 = vpop.f32.mrb[0].mxu0
    %9160 = vdwg.mxu0
    %v9161 = vsel %vm660, %v8941, 0
    %v9163 = vsel %vm660, %v8945, 0
    %v9165 = vsel %vm660, %v8949, 0
    %v9167 = vsel %vm660, %v8953, 0
    %v9169 = vsel %vm660, %v8957, 0
    %v9171 = vsel %vm660, %v8961, 0
    %v9173 = vsel %vm660, %v8965, 0
    %v9175 = vsel %vm660, %v8969, 0
    %v9177 = vsel %vm660, %v8973, 0
    %v9179 = vsel %vm660, %v8977, 0
    %v9181 = vsel %vm660, %v8981, 0
    %v9183 = vsel %vm660, %v8985, 0
    %v9185 = vsel %vm660, %v8989, 0
    %v9187 = vsel %vm660, %v8993, 0
    %v9189 = vsel %vm660, %v8997, 0
    %v9191 = vsel %vm660, %v9001, 0
    %9193 = vmatprep.subr.mxu0 0.0
    %9194 = vmatpush1.msra.mxu0 %v9003
    %9195 = vmatprep.subr.mxu0 0.0
    %9196 = vmatpush1.msra.mxu0 %v9004
    %9197 = vmatprep.subr.mxu0 0.0
    %9198 = vmatpush1.msra.mxu0 %v9005
    %9199 = vmatprep.subr.mxu0 0.0
    %9200 = vmatpush1.msra.mxu0 %v9006
    %9201 = vmatprep.subr.mxu0 0.0
    %9202 = vmatpush1.msra.mxu0 0.0
    %9203 = vmatprep.subr.mxu0 0.0
    %9204 = vmatpush1.msra.mxu0 0.0
    %9205 = vmatprep.subr.mxu0 0.0
    %9206 = vmatpush1.msra.mxu0 0.0
    %9207 = vmatprep.subr.mxu0 0.0
    %9208 = vmatpush1.msra.mxu0 0.0
    %9209 = vmatprep.subr.mxu0 0.0
    %9210 = vmatpush1.msra.mxu0 0.0
    %9211 = vmatprep.subr.mxu0 0.0
    %9212 = vmatpush1.msra.mxu0 0.0
    %9213 = vmatprep.subr.mxu0 0.0
    %9214 = vmatpush1.msra.mxu0 0.0
    %9215 = vmatprep.subr.mxu0 0.0
    %9216 = vmatpush1.msra.mxu0 0.0
    %9217 = vmatprep.subr.mxu0 0.0
    %9218 = vmatpush1.msra.mxu0 0.0
    %9219 = vmatprep.subr.mxu0 0.0
    %9220 = vmatpush1.msra.mxu0 0.0
    %9221 = vmatprep.subr.mxu0 0.0
    %9222 = vmatpush1.msra.mxu0 0.0
    %9223 = vmatprep.subr.mxu0 0.0
    %9224 = vmatpush1.msra.mxu0 0.0
    %9225 = vmatprep.subr.mxu0 0.0
    %9226 = vmatpush1.msra.mxu0 0.0
    %9227 = vmatprep.subr.mxu0 0.0
    %9228 = vmatpush1.msra.mxu0 0.0
    %9229 = vmatprep.subr.mxu0 0.0
    %9230 = vmatpush1.msra.mxu0 0.0
    %9231 = vmatprep.subr.mxu0 0.0
    %9232 = vmatpush1.msra.mxu0 0.0
    %9233 = vmatprep.subr.mxu0 0.0
    %9234 = vmatpush1.msra.mxu0 0.0
    %9235 = vmatprep.subr.mxu0 0.0
    %9236 = vmatpush1.msra.mxu0 0.0
    %9237 = vmatprep.subr.mxu0 0.0
    %9238 = vmatpush1.msra.mxu0 0.0
    %9239 = vmatprep.subr.mxu0 0.0
    %9240 = vmatpush1.msra.mxu0 0.0
    %9241 = vmatprep.subr.mxu0 0.0
    %9242 = vmatpush1.msra.mxu0 0.0
    %9243 = vmatprep.subr.mxu0 0.0
    %9244 = vmatpush1.msra.mxu0 0.0
    %9245 = vmatprep.subr.mxu0 0.0
    %9246 = vmatpush1.msra.mxu0 0.0
    %9247 = vmatprep.subr.mxu0 0.0
    %9248 = vmatpush1.msra.mxu0 0.0
    %9249 = vmatprep.subr.mxu0 0.0
    %9250 = vmatpush1.msra.mxu0 0.0
    %9251 = vmatprep.subr.mxu0 0.0
    %9252 = vmatpush1.msra.mxu0 0.0
    %9253 = vmatprep.subr.mxu0 0.0
    %9254 = vmatpush1.msra.mxu0 0.0
    %9255 = vmatprep.subr.mxu0 0.0
    %9256 = vmatpush1.msra.mxu0 0.0
    %9257 = vmatprep.mubr.f32.mxu0 0.0
    %9258 = vmatmul.mubr.f32.gmra.mrb[0].mxu0 %v9161
    %v9259 = vpop.f32.mrb[0].mxu0
    %v9260 = vadd.f32 %v9083, %v9259
    %v9261 = vpop.f32.mrb[0].mxu0
    %9262 = vmatprep.mubr.f32.mxu0 0.0
    %9263 = vmatmul.mubr.f32.gmra.mrb[0].mxu0 %v9163
    %v9264 = vpop.f32.mrb[0].mxu0
    %v9265 = vadd.f32 %v9088, %v9264
    %v9266 = vpop.f32.mrb[0].mxu0
    %9267 = vmatprep.mubr.f32.mxu0 0.0
    %9268 = vmatmul.mubr.f32.gmra.mrb[0].mxu0 %v9165
    %v9269 = vpop.f32.mrb[0].mxu0
    %v9270 = vadd.f32 %v9093, %v9269
    %v9271 = vpop.f32.mrb[0].mxu0
    %9272 = vmatprep.mubr.f32.mxu0 0.0
    %9273 = vmatmul.mubr.f32.gmra.mrb[0].mxu0 %v9167
    %v9274 = vpop.f32.mrb[0].mxu0
    %v9275 = vadd.f32 %v9098, %v9274
    %v9276 = vpop.f32.mrb[0].mxu0
    %9277 = vmatprep.mubr.f32.mxu0 0.0
    %9278 = vmatmul.mubr.f32.gmra.mrb[0].mxu0 %v9169
    %v9279 = vpop.f32.mrb[0].mxu0
    %v9280 = vadd.f32 %v9103, %v9279
    %v9281 = vpop.f32.mrb[0].mxu0
    %9282 = vmatprep.mubr.f32.mxu0 0.0
    %9283 = vmatmul.mubr.f32.gmra.mrb[0].mxu0 %v9171
    %v9284 = vpop.f32.mrb[0].mxu0
    %v9285 = vadd.f32 %v9108, %v9284
    %v9286 = vpop.f32.mrb[0].mxu0
    %9287 = vmatprep.mubr.f32.mxu0 0.0
    %9288 = vmatmul.mubr.f32.gmra.mrb[0].mxu0 %v9173
    %v9289 = vpop.f32.mrb[0].mxu0
    %v9290 = vadd.f32 %v9113, %v9289
    %v9291 = vpop.f32.mrb[0].mxu0
    %9292 = vmatprep.mubr.f32.mxu0 0.0
    %9293 = vmatmul.mubr.f32.gmra.mrb[0].mxu0 %v9175
    %v9294 = vpop.f32.mrb[0].mxu0
    %v9295 = vadd.f32 %v9118, %v9294
    %v9296 = vpop.f32.mrb[0].mxu0
    %9297 = vmatprep.mubr.f32.mxu0 0.0
    %9298 = vmatmul.mubr.f32.gmra.mrb[0].mxu0 %v9177
    %v9299 = vpop.f32.mrb[0].mxu0
    %v9300 = vadd.f32 %v9123, %v9299
    %v9301 = vpop.f32.mrb[0].mxu0
    %9302 = vmatprep.mubr.f32.mxu0 0.0
    %9303 = vmatmul.mubr.f32.gmra.mrb[0].mxu0 %v9179
    %v9304 = vpop.f32.mrb[0].mxu0
    %v9305 = vadd.f32 %v9128, %v9304
    %v9306 = vpop.f32.mrb[0].mxu0
    %9307 = vmatprep.mubr.f32.mxu0 0.0
    %9308 = vmatmul.mubr.f32.gmra.mrb[0].mxu0 %v9181
    %v9309 = vpop.f32.mrb[0].mxu0
    %v9310 = vadd.f32 %v9133, %v9309
    %v9311 = vpop.f32.mrb[0].mxu0
    %9312 = vmatprep.mubr.f32.mxu0 0.0
    %9313 = vmatmul.mubr.f32.gmra.mrb[0].mxu0 %v9183
    %v9314 = vpop.f32.mrb[0].mxu0
    %v9315 = vadd.f32 %v9138, %v9314
    %v9316 = vpop.f32.mrb[0].mxu0
    %9317 = vmatprep.mubr.f32.mxu0 0.0
    %9318 = vmatmul.mubr.f32.gmra.mrb[0].mxu0 %v9185
    %v9319 = vpop.f32.mrb[0].mxu0
    %v9320 = vadd.f32 %v9143, %v9319
    %v9321 = vpop.f32.mrb[0].mxu0
    %9322 = vmatprep.mubr.f32.mxu0 0.0
    %9323 = vmatmul.mubr.f32.gmra.mrb[0].mxu0 %v9187
    %v9324 = vpop.f32.mrb[0].mxu0
    %v9325 = vadd.f32 %v9148, %v9324
    %v9326 = vpop.f32.mrb[0].mxu0
    %9327 = vmatprep.mubr.f32.mxu0 0.0
    %9328 = vmatmul.mubr.f32.gmra.mrb[0].mxu0 %v9189
    %v9329 = vpop.f32.mrb[0].mxu0
    %v9330 = vadd.f32 %v9153, %v9329
    %v9331 = vpop.f32.mrb[0].mxu0
    %9332 = vmatprep.mubr.f32.mxu0 0.0
    %9333 = vmatmul.mubr.f32.gmra.mrb[0].mxu0 %v9191
    %v9334 = vpop.f32.mrb[0].mxu0
    %v9335 = vadd.f32 %v9158, %v9334
    %v9336 = vpop.f32.mrb[0].mxu0
    %9337 = vdwg.mxu0
    %s9338 = scalar_lea.vmem %s5, 10
    %v9339 = vld [vmem:[%s9338] sm:$0x3]
    %v9341 = vsel %vm1037, %v9339, 0
    %9343 = vmatprep.subr.mxu0 0.0
    %9344 = vmatpush1.msra.mxu0 %v9341
    %9345 = vmatprep.subr.mxu0 0.0
    %9346 = vmatpush1.msra.mxu0 0.0
    %9347 = vmatprep.subr.mxu0 0.0
    %9348 = vmatpush1.msra.mxu0 0.0
    %9349 = vmatprep.subr.mxu0 0.0
    %9350 = vmatpush1.msra.mxu0 0.0
    %9351 = vmatprep.subr.mxu0 0.0
    %9352 = vmatpush1.msra.mxu0 0.0
    %9353 = vmatprep.subr.mxu0 0.0
    %9354 = vmatpush1.msra.mxu0 0.0
    %9355 = vmatprep.subr.mxu0 0.0
    %9356 = vmatpush1.msra.mxu0 0.0
    %9357 = vmatprep.subr.mxu0 0.0
    %9358 = vmatpush1.msra.mxu0 0.0
    %9359 = vmatprep.subr.mxu0 0.0
    %9360 = vmatpush1.msra.mxu0 0.0
    %9361 = vmatprep.subr.mxu0 0.0
    %9362 = vmatpush1.msra.mxu0 0.0
    %9363 = vmatprep.subr.mxu0 0.0
    %9364 = vmatpush1.msra.mxu0 0.0
    %9365 = vmatprep.subr.mxu0 0.0
    %9366 = vmatpush1.msra.mxu0 0.0
    %9367 = vmatprep.subr.mxu0 0.0
    %9368 = vmatpush1.msra.mxu0 0.0
    %9369 = vmatprep.subr.mxu0 0.0
    %9370 = vmatpush1.msra.mxu0 0.0
    %9371 = vmatprep.subr.mxu0 0.0
    %9372 = vmatpush1.msra.mxu0 0.0
    %9373 = vmatprep.subr.mxu0 0.0
    %9374 = vmatpush1.msra.mxu0 0.0
    %9375 = vmatprep.subr.mxu0 0.0
    %9376 = vmatpush1.msra.mxu0 0.0
    %9377 = vmatprep.subr.mxu0 0.0
    %9378 = vmatpush1.msra.mxu0 0.0
    %9379 = vmatprep.subr.mxu0 0.0
    %9380 = vmatpush1.msra.mxu0 0.0
    %9381 = vmatprep.subr.mxu0 0.0
    %9382 = vmatpush1.msra.mxu0 0.0
    %9383 = vmatprep.subr.mxu0 0.0
    %9384 = vmatpush1.msra.mxu0 0.0
    %9385 = vmatprep.subr.mxu0 0.0
    %9386 = vmatpush1.msra.mxu0 0.0
    %9387 = vmatprep.subr.mxu0 0.0
    %9388 = vmatpush1.msra.mxu0 0.0
    %9389 = vmatprep.subr.mxu0 0.0
    %9390 = vmatpush1.msra.mxu0 0.0
    %9391 = vmatprep.subr.mxu0 0.0
    %9392 = vmatpush1.msra.mxu0 0.0
    %9393 = vmatprep.subr.mxu0 0.0
    %9394 = vmatpush1.msra.mxu0 0.0
    %9395 = vmatprep.subr.mxu0 0.0
    %9396 = vmatpush1.msra.mxu0 0.0
    %9397 = vmatprep.subr.mxu0 0.0
    %9398 = vmatpush1.msra.mxu0 0.0
    %9399 = vmatprep.subr.mxu0 0.0
    %9400 = vmatpush1.msra.mxu0 0.0
    %9401 = vmatprep.subr.mxu0 0.0
    %9402 = vmatpush1.msra.mxu0 0.0
    %9403 = vmatprep.subr.mxu0 0.0
    %9404 = vmatpush1.msra.mxu0 0.0
    %9405 = vmatprep.subr.mxu0 0.0
    %9406 = vmatpush1.msra.mxu0 0.0
    %9407 = vmatprep.mubr.f32.mxu0 0.0
    %9408 = vmatmul.mubr.f32.gmra.mrb[0].mxu0 %v6161
    %v9409 = vpop.f32.mrb[0].mxu0
    %v9410 = vadd.f32 0.0, %v9409
    %v9411 = vpop.f32.mrb[0].mxu0
    %9412 = vmatprep.mubr.f32.mxu0 0.0
    %9413 = vmatmul.mubr.f32.gmra.mrb[0].mxu0 %v6164
    %v9414 = vpop.f32.mrb[0].mxu0
    %v9415 = vadd.f32 0.0, %v9414
    %v9416 = vpop.f32.mrb[0].mxu0
    %9417 = vmatprep.mubr.f32.mxu0 0.0
    %9418 = vmatmul.mubr.f32.gmra.mrb[0].mxu0 %v6167
    %v9419 = vpop.f32.mrb[0].mxu0
    %v9420 = vadd.f32 0.0, %v9419
    %v9421 = vpop.f32.mrb[0].mxu0
    %9422 = vmatprep.mubr.f32.mxu0 0.0
    %9423 = vmatmul.mubr.f32.gmra.mrb[0].mxu0 %v6170
    %v9424 = vpop.f32.mrb[0].mxu0
    %v9425 = vadd.f32 0.0, %v9424
    %v9426 = vpop.f32.mrb[0].mxu0
    %9427 = vmatprep.mubr.f32.mxu0 0.0
    %9428 = vmatmul.mubr.f32.gmra.mrb[0].mxu0 %v6173
    %v9429 = vpop.f32.mrb[0].mxu0
    %v9430 = vadd.f32 0.0, %v9429
    %v9431 = vpop.f32.mrb[0].mxu0
    %9432 = vmatprep.mubr.f32.mxu0 0.0
    %9433 = vmatmul.mubr.f32.gmra.mrb[0].mxu0 %v6176
    %v9434 = vpop.f32.mrb[0].mxu0
    %v9435 = vadd.f32 0.0, %v9434
    %v9436 = vpop.f32.mrb[0].mxu0
    %9437 = vmatprep.mubr.f32.mxu0 0.0
    %9438 = vmatmul.mubr.f32.gmra.mrb[0].mxu0 %v6179
    %v9439 = vpop.f32.mrb[0].mxu0
    %v9440 = vadd.f32 0.0, %v9439
    %v9441 = vpop.f32.mrb[0].mxu0
    %9442 = vmatprep.mubr.f32.mxu0 0.0
    %9443 = vmatmul.mubr.f32.gmra.mrb[0].mxu0 %v6182
    %v9444 = vpop.f32.mrb[0].mxu0
    %v9445 = vadd.f32 0.0, %v9444
    %v9446 = vpop.f32.mrb[0].mxu0
    %9447 = vmatprep.mubr.f32.mxu0 0.0
    %9448 = vmatmul.mubr.f32.gmra.mrb[0].mxu0 %v6185
    %v9449 = vpop.f32.mrb[0].mxu0
    %v9450 = vadd.f32 0.0, %v9449
    %v9451 = vpop.f32.mrb[0].mxu0
    %9452 = vmatprep.mubr.f32.mxu0 0.0
    %9453 = vmatmul.mubr.f32.gmra.mrb[0].mxu0 %v6188
    %v9454 = vpop.f32.mrb[0].mxu0
    %v9455 = vadd.f32 0.0, %v9454
    %v9456 = vpop.f32.mrb[0].mxu0
    %9457 = vmatprep.mubr.f32.mxu0 0.0
    %9458 = vmatmul.mubr.f32.gmra.mrb[0].mxu0 %v6191
    %v9459 = vpop.f32.mrb[0].mxu0
    %v9460 = vadd.f32 0.0, %v9459
    %v9461 = vpop.f32.mrb[0].mxu0
    %9462 = vmatprep.mubr.f32.mxu0 0.0
    %9463 = vmatmul.mubr.f32.gmra.mrb[0].mxu0 %v6194
    %v9464 = vpop.f32.mrb[0].mxu0
    %v9465 = vadd.f32 0.0, %v9464
    %v9466 = vpop.f32.mrb[0].mxu0
    %9467 = vmatprep.mubr.f32.mxu0 0.0
    %9468 = vmatmul.mubr.f32.gmra.mrb[0].mxu0 %v6197
    %v9469 = vpop.f32.mrb[0].mxu0
    %v9470 = vadd.f32 0.0, %v9469
    %v9471 = vpop.f32.mrb[0].mxu0
    %9472 = vmatprep.mubr.f32.mxu0 0.0
    %9473 = vmatmul.mubr.f32.gmra.mrb[0].mxu0 %v6200
    %v9474 = vpop.f32.mrb[0].mxu0
    %v9475 = vadd.f32 0.0, %v9474
    %v9476 = vpop.f32.mrb[0].mxu0
    %9477 = vmatprep.mubr.f32.mxu0 0.0
    %9478 = vmatmul.mubr.f32.gmra.mrb[0].mxu0 %v6203
    %v9479 = vpop.f32.mrb[0].mxu0
    %v9480 = vadd.f32 0.0, %v9479
    %v9481 = vpop.f32.mrb[0].mxu0
    %9482 = vmatprep.mubr.f32.mxu0 0.0
    %9483 = vmatmul.mubr.f32.gmra.mrb[0].mxu0 %v6206
    %v9484 = vpop.f32.mrb[0].mxu0
    %v9485 = vadd.f32 0.0, %v9484
    %v9486 = vpop.f32.mrb[0].mxu0
    %9487 = vdwg.mxu0
    %v9488 = vadd.f32 %v9260, %v9410
    %v9489 = vadd.f32 %v9265, %v9415
    %v9490 = vadd.f32 %v9270, %v9420
    %v9491 = vadd.f32 %v9275, %v9425
    %v9492 = vadd.f32 %v9280, %v9430
    %v9493 = vadd.f32 %v9285, %v9435
    %v9494 = vadd.f32 %v9290, %v9440
    %v9495 = vadd.f32 %v9295, %v9445
    %v9496 = vadd.f32 %v9300, %v9450
    %v9497 = vadd.f32 %v9305, %v9455
    %v9498 = vadd.f32 %v9310, %v9460
    %v9499 = vadd.f32 %v9315, %v9465
    %v9500 = vadd.f32 %v9320, %v9470
    %v9501 = vadd.f32 %v9325, %v9475
    %v9502 = vadd.f32 %v9330, %v9480
    %v9503 = vadd.f32 %v9335, %v9485
    %s9504 = scalar_lea.vmem %s4, 17
    %v9505 = vld [vmem:[%s9504] sm:$0x1]
    %v9507 = vlaneseq
    %v9508 = vshrl.u32 %v9507, 7
    %v9509 = vsub.s32 0, %v9508
    %v9510 = vrot.slane %v9505, %v9509
    %v9512 = vadd.f32 %v9488, %v9510
    %v9513 = vadd.f32 %v9489, %v9510
    %v9514 = vadd.f32 %v9490, %v9510
    %v9515 = vadd.f32 %v9491, %v9510
    %v9516 = vadd.f32 %v9492, %v9510
    %v9517 = vadd.f32 %v9493, %v9510
    %v9518 = vadd.f32 %v9494, %v9510
    %v9519 = vadd.f32 %v9495, %v9510
    %v9520 = vadd.f32 %v9496, %v9510
    %v9521 = vadd.f32 %v9497, %v9510
    %v9522 = vadd.f32 %v9498, %v9510
    %v9523 = vadd.f32 %v9499, %v9510
    %v9524 = vadd.f32 %v9500, %v9510
    %v9525 = vadd.f32 %v9501, %v9510
    %v9526 = vadd.f32 %v9502, %v9510
    %v9527 = vadd.f32 %v9503, %v9510
    %v9528 = vxor.u32 %v9512, 2147483648
    %v9529 = vxor.u32 %v9513, 2147483648
    %v9530 = vxor.u32 %v9514, 2147483648
    %v9531 = vxor.u32 %v9515, 2147483648
    %v9532 = vxor.u32 %v9516, 2147483648
    %v9533 = vxor.u32 %v9517, 2147483648
    %v9534 = vxor.u32 %v9518, 2147483648
    %v9535 = vxor.u32 %v9519, 2147483648
    %v9536 = vxor.u32 %v9520, 2147483648
    %v9537 = vxor.u32 %v9521, 2147483648
    %v9538 = vxor.u32 %v9522, 2147483648
    %v9539 = vxor.u32 %v9523, 2147483648
    %v9540 = vxor.u32 %v9524, 2147483648
    %v9541 = vxor.u32 %v9525, 2147483648
    %v9542 = vxor.u32 %v9526, 2147483648
    %v9543 = vxor.u32 %v9527, 2147483648
    %v9544 = vmul.f32 %v9528, 1.442695
    %v9545 = vpow.pop %v9544
    %v9546 = vmul.f32 %v9529, 1.442695
    %v9547 = vpow.pop %v9546
    %v9548 = vmul.f32 %v9530, 1.442695
    %v9549 = vpow.pop %v9548
    %v9550 = vmul.f32 %v9531, 1.442695
    %v9551 = vpow.pop %v9550
    %v9552 = vmul.f32 %v9532, 1.442695
    %v9553 = vpow.pop %v9552
    %v9554 = vmul.f32 %v9533, 1.442695
    %v9555 = vpow.pop %v9554
    %v9556 = vmul.f32 %v9534, 1.442695
    %v9557 = vpow.pop %v9556
    %v9558 = vmul.f32 %v9535, 1.442695
    %v9559 = vpow.pop %v9558
    %v9560 = vmul.f32 %v9536, 1.442695
    %v9561 = vpow.pop %v9560
    %v9562 = vmul.f32 %v9537, 1.442695
    %v9563 = vpow.pop %v9562
    %v9564 = vmul.f32 %v9538, 1.442695
    %v9565 = vpow.pop %v9564
    %v9566 = vmul.f32 %v9539, 1.442695
    %v9567 = vpow.pop %v9566
    %v9568 = vmul.f32 %v9540, 1.442695
    %v9569 = vpow.pop %v9568
    %v9570 = vmul.f32 %v9541, 1.442695
    %v9571 = vpow.pop %v9570
    %v9572 = vmul.f32 %v9542, 1.442695
    %v9573 = vpow.pop %v9572
    %v9574 = vmul.f32 %v9543, 1.442695
    %v9575 = vpow.pop %v9574
    %v9576 = vadd.f32 %v9545, 1.0
    %v9577 = vadd.f32 %v9547, 1.0
    %v9578 = vadd.f32 %v9549, 1.0
    %v9579 = vadd.f32 %v9551, 1.0
    %v9580 = vadd.f32 %v9553, 1.0
    %v9581 = vadd.f32 %v9555, 1.0
    %v9582 = vadd.f32 %v9557, 1.0
    %v9583 = vadd.f32 %v9559, 1.0
    %v9584 = vadd.f32 %v9561, 1.0
    %v9585 = vadd.f32 %v9563, 1.0
    %v9586 = vadd.f32 %v9565, 1.0
    %v9587 = vadd.f32 %v9567, 1.0
    %v9588 = vadd.f32 %v9569, 1.0
    %v9589 = vadd.f32 %v9571, 1.0
    %v9590 = vadd.f32 %v9573, 1.0
    %v9591 = vadd.f32 %v9575, 1.0
    %v9592 = vrcp.pop %v9576
    %v9593 = vmul.f32 1.0, %v9592
    %v9594 = vrcp.pop %v9577
    %v9595 = vmul.f32 1.0, %v9594
    %v9596 = vrcp.pop %v9578
    %v9597 = vmul.f32 1.0, %v9596
    %v9598 = vrcp.pop %v9579
    %v9599 = vmul.f32 1.0, %v9598
    %v9600 = vrcp.pop %v9580
    %v9601 = vmul.f32 1.0, %v9600
    %v9602 = vrcp.pop %v9581
    %v9603 = vmul.f32 1.0, %v9602
    %v9604 = vrcp.pop %v9582
    %v9605 = vmul.f32 1.0, %v9604
    %v9606 = vrcp.pop %v9583
    %v9607 = vmul.f32 1.0, %v9606
    %v9608 = vrcp.pop %v9584
    %v9609 = vmul.f32 1.0, %v9608
    %v9610 = vrcp.pop %v9585
    %v9611 = vmul.f32 1.0, %v9610
    %v9612 = vrcp.pop %v9586
    %v9613 = vmul.f32 1.0, %v9612
    %v9614 = vrcp.pop %v9587
    %v9615 = vmul.f32 1.0, %v9614
    %v9616 = vrcp.pop %v9588
    %v9617 = vmul.f32 1.0, %v9616
    %v9618 = vrcp.pop %v9589
    %v9619 = vmul.f32 1.0, %v9618
    %v9620 = vrcp.pop %v9590
    %v9621 = vmul.f32 1.0, %v9620
    %v9622 = vrcp.pop %v9591
    %v9623 = vmul.f32 1.0, %v9622
    %v9624 = vmul.f32 %v9512, %v9593
    %v9625 = vmul.f32 %v9513, %v9595
    %v9626 = vmul.f32 %v9514, %v9597
    %v9627 = vmul.f32 %v9515, %v9599
    %v9628 = vmul.f32 %v9516, %v9601
    %v9629 = vmul.f32 %v9517, %v9603
    %v9630 = vmul.f32 %v9518, %v9605
    %v9631 = vmul.f32 %v9519, %v9607
    %v9632 = vmul.f32 %v9520, %v9609
    %v9633 = vmul.f32 %v9521, %v9611
    %v9634 = vmul.f32 %v9522, %v9613
    %v9635 = vmul.f32 %v9523, %v9615
    %v9636 = vmul.f32 %v9524, %v9617
    %v9637 = vmul.f32 %v9525, %v9619
    %v9638 = vmul.f32 %v9526, %v9621
    %v9639 = vmul.f32 %v9527, %v9623
    %s9640 = scalar_lea.vmem [#allocation2], 928
    %v9641 = vld [vmem:[%s9640] sm:$0xff]
    %v9642 = vld [vmem:[%s9640 + $0x8] sm:$0xff]
    %v9643 = vld [vmem:[%s9640 + $0x10] sm:$0xff]
    %v9644 = vld [vmem:[%s9640 + $0x18] sm:$0xff]
    %s9645 = scalar_lea.vmem %s4, 19
    %v9646 = vld [vmem:[%s9645] sm:$0x1]
    %v9648 = vlaneseq
    %v9649 = vshrl.u32 %v9648, 7
    %v9650 = vsub.s32 0, %v9649
    %v9651 = vrot.slane %v9646, %v9650
    %v9654 = vsel %vm660, %v9624, 0
    %v9657 = vsel %vm660, %v9625, 0
    %v9660 = vsel %vm660, %v9626, 0
    %v9663 = vsel %vm660, %v9627, 0
    %v9666 = vsel %vm660, %v9628, 0
    %v9669 = vsel %vm660, %v9629, 0
    %v9672 = vsel %vm660, %v9630, 0
    %v9675 = vsel %vm660, %v9631, 0
    %v9678 = vsel %vm660, %v9632, 0
    %v9681 = vsel %vm660, %v9633, 0
    %v9684 = vsel %vm660, %v9634, 0
    %v9687 = vsel %vm660, %v9635, 0
    %v9690 = vsel %vm660, %v9636, 0
    %v9693 = vsel %vm660, %v9637, 0
    %v9696 = vsel %vm660, %v9638, 0
    %v9699 = vsel %vm660, %v9639, 0
    %9701 = vmatprep.subr.mxu0 0.0
    %9702 = vmatpush1.msra.mxu0 %v9641
    %9703 = vmatprep.subr.mxu0 0.0
    %9704 = vmatpush1.msra.mxu0 %v9642
    %9705 = vmatprep.subr.mxu0 0.0
    %9706 = vmatpush1.msra.mxu0 %v9643
    %9707 = vmatprep.subr.mxu0 0.0
    %9708 = vmatpush1.msra.mxu0 %v9644
    %9709 = vmatprep.subr.mxu0 0.0
    %9710 = vmatpush1.msra.mxu0 0.0
    %9711 = vmatprep.subr.mxu0 0.0
    %9712 = vmatpush1.msra.mxu0 0.0
    %9713 = vmatprep.subr.mxu0 0.0
    %9714 = vmatpush1.msra.mxu0 0.0
    %9715 = vmatprep.subr.mxu0 0.0
    %9716 = vmatpush1.msra.mxu0 0.0
    %9717 = vmatprep.subr.mxu0 0.0
    %9718 = vmatpush1.msra.mxu0 0.0
    %9719 = vmatprep.subr.mxu0 0.0
    %9720 = vmatpush1.msra.mxu0 0.0
    %9721 = vmatprep.subr.mxu0 0.0
    %9722 = vmatpush1.msra.mxu0 0.0
    %9723 = vmatprep.subr.mxu0 0.0
    %9724 = vmatpush1.msra.mxu0 0.0
    %9725 = vmatprep.subr.mxu0 0.0
    %9726 = vmatpush1.msra.mxu0 0.0
    %9727 = vmatprep.subr.mxu0 0.0
    %9728 = vmatpush1.msra.mxu0 0.0
    %9729 = vmatprep.subr.mxu0 0.0
    %9730 = vmatpush1.msra.mxu0 0.0
    %9731 = vmatprep.subr.mxu0 0.0
    %9732 = vmatpush1.msra.mxu0 0.0
    %9733 = vmatprep.subr.mxu0 0.0
    %9734 = vmatpush1.msra.mxu0 0.0
    %9735 = vmatprep.subr.mxu0 0.0
    %9736 = vmatpush1.msra.mxu0 0.0
    %9737 = vmatprep.subr.mxu0 0.0
    %9738 = vmatpush1.msra.mxu0 0.0
    %9739 = vmatprep.subr.mxu0 0.0
    %9740 = vmatpush1.msra.mxu0 0.0
    %9741 = vmatprep.subr.mxu0 0.0
    %9742 = vmatpush1.msra.mxu0 0.0
    %9743 = vmatprep.subr.mxu0 0.0
    %9744 = vmatpush1.msra.mxu0 0.0
    %9745 = vmatprep.subr.mxu0 0.0
    %9746 = vmatpush1.msra.mxu0 0.0
    %9747 = vmatprep.subr.mxu0 0.0
    %9748 = vmatpush1.msra.mxu0 0.0
    %9749 = vmatprep.subr.mxu0 0.0
    %9750 = vmatpush1.msra.mxu0 0.0
    %9751 = vmatprep.subr.mxu0 0.0
    %9752 = vmatpush1.msra.mxu0 0.0
    %9753 = vmatprep.subr.mxu0 0.0
    %9754 = vmatpush1.msra.mxu0 0.0
    %9755 = vmatprep.subr.mxu0 0.0
    %9756 = vmatpush1.msra.mxu0 0.0
    %9757 = vmatprep.subr.mxu0 0.0
    %9758 = vmatpush1.msra.mxu0 0.0
    %9759 = vmatprep.subr.mxu0 0.0
    %9760 = vmatpush1.msra.mxu0 0.0
    %9761 = vmatprep.subr.mxu0 0.0
    %9762 = vmatpush1.msra.mxu0 0.0
    %9763 = vmatprep.subr.mxu0 0.0
    %9764 = vmatpush1.msra.mxu0 0.0
    %9765 = vmatprep.mubr.f32.mxu0 0.0
    %9766 = vmatmul.mubr.f32.gmra.mrb[0].mxu0 %v9654
    %v9767 = vpop.f32.mrb[0].mxu0
    %v9768 = vadd.f32 %v9651, %v9767
    %v9769 = vpop.f32.mrb[0].mxu0
    %9770 = vmatprep.mubr.f32.mxu0 0.0
    %9771 = vmatmul.mubr.f32.gmra.mrb[0].mxu0 %v9657
    %v9772 = vpop.f32.mrb[0].mxu0
    %v9773 = vadd.f32 %v9651, %v9772
    %v9774 = vpop.f32.mrb[0].mxu0
    %9775 = vmatprep.mubr.f32.mxu0 0.0
    %9776 = vmatmul.mubr.f32.gmra.mrb[0].mxu0 %v9660
    %v9777 = vpop.f32.mrb[0].mxu0
    %v9778 = vadd.f32 %v9651, %v9777
    %v9779 = vpop.f32.mrb[0].mxu0
    %9780 = vmatprep.mubr.f32.mxu0 0.0
    %9781 = vmatmul.mubr.f32.gmra.mrb[0].mxu0 %v9663
    %v9782 = vpop.f32.mrb[0].mxu0
    %v9783 = vadd.f32 %v9651, %v9782
    %v9784 = vpop.f32.mrb[0].mxu0
    %9785 = vmatprep.mubr.f32.mxu0 0.0
    %9786 = vmatmul.mubr.f32.gmra.mrb[0].mxu0 %v9666
    %v9787 = vpop.f32.mrb[0].mxu0
    %v9788 = vadd.f32 %v9651, %v9787
    %v9789 = vpop.f32.mrb[0].mxu0
    %9790 = vmatprep.mubr.f32.mxu0 0.0
    %9791 = vmatmul.mubr.f32.gmra.mrb[0].mxu0 %v9669
    %v9792 = vpop.f32.mrb[0].mxu0
    %v9793 = vadd.f32 %v9651, %v9792
    %v9794 = vpop.f32.mrb[0].mxu0
    %9795 = vmatprep.mubr.f32.mxu0 0.0
    %9796 = vmatmul.mubr.f32.gmra.mrb[0].mxu0 %v9672
    %v9797 = vpop.f32.mrb[0].mxu0
    %v9798 = vadd.f32 %v9651, %v9797
    %v9799 = vpop.f32.mrb[0].mxu0
    %9800 = vmatprep.mubr.f32.mxu0 0.0
    %9801 = vmatmul.mubr.f32.gmra.mrb[0].mxu0 %v9675
    %v9802 = vpop.f32.mrb[0].mxu0
    %v9803 = vadd.f32 %v9651, %v9802
    %v9804 = vpop.f32.mrb[0].mxu0
    %9805 = vmatprep.mubr.f32.mxu0 0.0
    %9806 = vmatmul.mubr.f32.gmra.mrb[0].mxu0 %v9678
    %v9807 = vpop.f32.mrb[0].mxu0
    %v9808 = vadd.f32 %v9651, %v9807
    %v9809 = vpop.f32.mrb[0].mxu0
    %9810 = vmatprep.mubr.f32.mxu0 0.0
    %9811 = vmatmul.mubr.f32.gmra.mrb[0].mxu0 %v9681
    %v9812 = vpop.f32.mrb[0].mxu0
    %v9813 = vadd.f32 %v9651, %v9812
    %v9814 = vpop.f32.mrb[0].mxu0
    %9815 = vmatprep.mubr.f32.mxu0 0.0
    %9816 = vmatmul.mubr.f32.gmra.mrb[0].mxu0 %v9684
    %v9817 = vpop.f32.mrb[0].mxu0
    %v9818 = vadd.f32 %v9651, %v9817
    %v9819 = vpop.f32.mrb[0].mxu0
    %9820 = vmatprep.mubr.f32.mxu0 0.0
    %9821 = vmatmul.mubr.f32.gmra.mrb[0].mxu0 %v9687
    %v9822 = vpop.f32.mrb[0].mxu0
    %v9823 = vadd.f32 %v9651, %v9822
    %v9824 = vpop.f32.mrb[0].mxu0
    %9825 = vmatprep.mubr.f32.mxu0 0.0
    %9826 = vmatmul.mubr.f32.gmra.mrb[0].mxu0 %v9690
    %v9827 = vpop.f32.mrb[0].mxu0
    %v9828 = vadd.f32 %v9651, %v9827
    %v9829 = vpop.f32.mrb[0].mxu0
    %9830 = vmatprep.mubr.f32.mxu0 0.0
    %9831 = vmatmul.mubr.f32.gmra.mrb[0].mxu0 %v9693
    %v9832 = vpop.f32.mrb[0].mxu0
    %v9833 = vadd.f32 %v9651, %v9832
    %v9834 = vpop.f32.mrb[0].mxu0
    %9835 = vmatprep.mubr.f32.mxu0 0.0
    %9836 = vmatmul.mubr.f32.gmra.mrb[0].mxu0 %v9696
    %v9837 = vpop.f32.mrb[0].mxu0
    %v9838 = vadd.f32 %v9651, %v9837
    %v9839 = vpop.f32.mrb[0].mxu0
    %9840 = vmatprep.mubr.f32.mxu0 0.0
    %9841 = vmatmul.mubr.f32.gmra.mrb[0].mxu0 %v9699
    %v9842 = vpop.f32.mrb[0].mxu0
    %v9843 = vadd.f32 %v9651, %v9842
    %v9844 = vpop.f32.mrb[0].mxu0
    %9845 = vdwg.mxu0
    %v9846 = vxor.u32 %v9768, 2147483648
    %v9847 = vxor.u32 %v9773, 2147483648
    %v9848 = vxor.u32 %v9778, 2147483648
    %v9849 = vxor.u32 %v9783, 2147483648
    %v9850 = vxor.u32 %v9788, 2147483648
    %v9851 = vxor.u32 %v9793, 2147483648
    %v9852 = vxor.u32 %v9798, 2147483648
    %v9853 = vxor.u32 %v9803, 2147483648
    %v9854 = vxor.u32 %v9808, 2147483648
    %v9855 = vxor.u32 %v9813, 2147483648
    %v9856 = vxor.u32 %v9818, 2147483648
    %v9857 = vxor.u32 %v9823, 2147483648
    %v9858 = vxor.u32 %v9828, 2147483648
    %v9859 = vxor.u32 %v9833, 2147483648
    %v9860 = vxor.u32 %v9838, 2147483648
    %v9861 = vxor.u32 %v9843, 2147483648
    %v9862 = vmul.f32 %v9846, 1.442695
    %v9863 = vpow.pop %v9862
    %v9864 = vmul.f32 %v9847, 1.442695
    %v9865 = vpow.pop %v9864
    %v9866 = vmul.f32 %v9848, 1.442695
    %v9867 = vpow.pop %v9866
    %v9868 = vmul.f32 %v9849, 1.442695
    %v9869 = vpow.pop %v9868
    %v9870 = vmul.f32 %v9850, 1.442695
    %v9871 = vpow.pop %v9870
    %v9872 = vmul.f32 %v9851, 1.442695
    %v9873 = vpow.pop %v9872
    %v9874 = vmul.f32 %v9852, 1.442695
    %v9875 = vpow.pop %v9874
    %v9876 = vmul.f32 %v9853, 1.442695
    %v9877 = vpow.pop %v9876
    %v9878 = vmul.f32 %v9854, 1.442695
    %v9879 = vpow.pop %v9878
    %v9880 = vmul.f32 %v9855, 1.442695
    %v9881 = vpow.pop %v9880
    %v9882 = vmul.f32 %v9856, 1.442695
    %v9883 = vpow.pop %v9882
    %v9884 = vmul.f32 %v9857, 1.442695
    %v9885 = vpow.pop %v9884
    %v9886 = vmul.f32 %v9858, 1.442695
    %v9887 = vpow.pop %v9886
    %v9888 = vmul.f32 %v9859, 1.442695
    %v9889 = vpow.pop %v9888
    %v9890 = vmul.f32 %v9860, 1.442695
    %v9891 = vpow.pop %v9890
    %v9892 = vmul.f32 %v9861, 1.442695
    %v9893 = vpow.pop %v9892
    %v9894 = vadd.f32 %v9863, 1.0
    %v9895 = vadd.f32 %v9865, 1.0
    %v9896 = vadd.f32 %v9867, 1.0
    %v9897 = vadd.f32 %v9869, 1.0
    %v9898 = vadd.f32 %v9871, 1.0
    %v9899 = vadd.f32 %v9873, 1.0
    %v9900 = vadd.f32 %v9875, 1.0
    %v9901 = vadd.f32 %v9877, 1.0
    %v9902 = vadd.f32 %v9879, 1.0
    %v9903 = vadd.f32 %v9881, 1.0
    %v9904 = vadd.f32 %v9883, 1.0
    %v9905 = vadd.f32 %v9885, 1.0
    %v9906 = vadd.f32 %v9887, 1.0
    %v9907 = vadd.f32 %v9889, 1.0
    %v9908 = vadd.f32 %v9891, 1.0
    %v9909 = vadd.f32 %v9893, 1.0
    %v9910 = vrcp.pop %v9894
    %v9911 = vmul.f32 1.0, %v9910
    %v9912 = vrcp.pop %v9895
    %v9913 = vmul.f32 1.0, %v9912
    %v9914 = vrcp.pop %v9896
    %v9915 = vmul.f32 1.0, %v9914
    %v9916 = vrcp.pop %v9897
    %v9917 = vmul.f32 1.0, %v9916
    %v9918 = vrcp.pop %v9898
    %v9919 = vmul.f32 1.0, %v9918
    %v9920 = vrcp.pop %v9899
    %v9921 = vmul.f32 1.0, %v9920
    %v9922 = vrcp.pop %v9900
    %v9923 = vmul.f32 1.0, %v9922
    %v9924 = vrcp.pop %v9901
    %v9925 = vmul.f32 1.0, %v9924
    %v9926 = vrcp.pop %v9902
    %v9927 = vmul.f32 1.0, %v9926
    %v9928 = vrcp.pop %v9903
    %v9929 = vmul.f32 1.0, %v9928
    %v9930 = vrcp.pop %v9904
    %v9931 = vmul.f32 1.0, %v9930
    %v9932 = vrcp.pop %v9905
    %v9933 = vmul.f32 1.0, %v9932
    %v9934 = vrcp.pop %v9906
    %v9935 = vmul.f32 1.0, %v9934
    %v9936 = vrcp.pop %v9907
    %v9937 = vmul.f32 1.0, %v9936
    %v9938 = vrcp.pop %v9908
    %v9939 = vmul.f32 1.0, %v9938
    %v9940 = vrcp.pop %v9909
    %v9941 = vmul.f32 1.0, %v9940
    %v9942 = vmul.f32 %v9768, %v9911
    %v9943 = vmul.f32 %v9773, %v9913
    %v9944 = vmul.f32 %v9778, %v9915
    %v9945 = vmul.f32 %v9783, %v9917
    %v9946 = vmul.f32 %v9788, %v9919
    %v9947 = vmul.f32 %v9793, %v9921
    %v9948 = vmul.f32 %v9798, %v9923
    %v9949 = vmul.f32 %v9803, %v9925
    %v9950 = vmul.f32 %v9808, %v9927
    %v9951 = vmul.f32 %v9813, %v9929
    %v9952 = vmul.f32 %v9818, %v9931
    %v9953 = vmul.f32 %v9823, %v9933
    %v9954 = vmul.f32 %v9828, %v9935
    %v9955 = vmul.f32 %v9833, %v9937
    %v9956 = vmul.f32 %v9838, %v9939
    %v9957 = vmul.f32 %v9843, %v9941
    %s9958 = scalar_lea.vmem %s7, 32
    %v9959 = vld [vmem:[%s9958] sm:$0xff]
    %v9960 = vld [vmem:[%s9958 + $0x8] sm:$0xff]
    %v9961 = vld [vmem:[%s9958 + $0x10] sm:$0xff]
    %v9962 = vld [vmem:[%s9958 + $0x18] sm:$0xff]
    %v9964 = vsel %vm660, %v9942, 0
    %v9967 = vsel %vm660, %v9943, 0
    %v9970 = vsel %vm660, %v9944, 0
    %v9973 = vsel %vm660, %v9945, 0
    %v9976 = vsel %vm660, %v9946, 0
    %v9979 = vsel %vm660, %v9947, 0
    %v9982 = vsel %vm660, %v9948, 0
    %v9985 = vsel %vm660, %v9949, 0
    %v9988 = vsel %vm660, %v9950, 0
    %v9991 = vsel %vm660, %v9951, 0
    %v9994 = vsel %vm660, %v9952, 0
    %v9997 = vsel %vm660, %v9953, 0
    %v10000 = vsel %vm660, %v9954, 0
    %v10003 = vsel %vm660, %v9955, 0
    %v10006 = vsel %vm660, %v9956, 0
    %v10009 = vsel %vm660, %v9957, 0
    %10011 = vmatprep.subr.mxu0 0.0
    %10012 = vmatpush1.msra.mxu0 %v9959
    %10013 = vmatprep.subr.mxu0 0.0
    %10014 = vmatpush1.msra.mxu0 %v9960
    %10015 = vmatprep.subr.mxu0 0.0
    %10016 = vmatpush1.msra.mxu0 %v9961
    %10017 = vmatprep.subr.mxu0 0.0
    %10018 = vmatpush1.msra.mxu0 %v9962
    %10019 = vmatprep.subr.mxu0 0.0
    %10020 = vmatpush1.msra.mxu0 0.0
    %10021 = vmatprep.subr.mxu0 0.0
    %10022 = vmatpush1.msra.mxu0 0.0
    %10023 = vmatprep.subr.mxu0 0.0
    %10024 = vmatpush1.msra.mxu0 0.0
    %10025 = vmatprep.subr.mxu0 0.0
    %10026 = vmatpush1.msra.mxu0 0.0
    %10027 = vmatprep.subr.mxu0 0.0
    %10028 = vmatpush1.msra.mxu0 0.0
    %10029 = vmatprep.subr.mxu0 0.0
    %10030 = vmatpush1.msra.mxu0 0.0
    %10031 = vmatprep.subr.mxu0 0.0
    %10032 = vmatpush1.msra.mxu0 0.0
    %10033 = vmatprep.subr.mxu0 0.0
    %10034 = vmatpush1.msra.mxu0 0.0
    %10035 = vmatprep.subr.mxu0 0.0
    %10036 = vmatpush1.msra.mxu0 0.0
    %10037 = vmatprep.subr.mxu0 0.0
    %10038 = vmatpush1.msra.mxu0 0.0
    %10039 = vmatprep.subr.mxu0 0.0
    %10040 = vmatpush1.msra.mxu0 0.0
    %10041 = vmatprep.subr.mxu0 0.0
    %10042 = vmatpush1.msra.mxu0 0.0
    %10043 = vmatprep.subr.mxu0 0.0
    %10044 = vmatpush1.msra.mxu0 0.0
    %10045 = vmatprep.subr.mxu0 0.0
    %10046 = vmatpush1.msra.mxu0 0.0
    %10047 = vmatprep.subr.mxu0 0.0
    %10048 = vmatpush1.msra.mxu0 0.0
    %10049 = vmatprep.subr.mxu0 0.0
    %10050 = vmatpush1.msra.mxu0 0.0
    %10051 = vmatprep.subr.mxu0 0.0
    %10052 = vmatpush1.msra.mxu0 0.0
    %10053 = vmatprep.subr.mxu0 0.0
    %10054 = vmatpush1.msra.mxu0 0.0
    %10055 = vmatprep.subr.mxu0 0.0
    %10056 = vmatpush1.msra.mxu0 0.0
    %10057 = vmatprep.subr.mxu0 0.0
    %10058 = vmatpush1.msra.mxu0 0.0
    %10059 = vmatprep.subr.mxu0 0.0
    %10060 = vmatpush1.msra.mxu0 0.0
    %10061 = vmatprep.subr.mxu0 0.0
    %10062 = vmatpush1.msra.mxu0 0.0
    %10063 = vmatprep.subr.mxu0 0.0
    %10064 = vmatpush1.msra.mxu0 0.0
    %10065 = vmatprep.subr.mxu0 0.0
    %10066 = vmatpush1.msra.mxu0 0.0
    %10067 = vmatprep.subr.mxu0 0.0
    %10068 = vmatpush1.msra.mxu0 0.0
    %10069 = vmatprep.subr.mxu0 0.0
    %10070 = vmatpush1.msra.mxu0 0.0
    %10071 = vmatprep.subr.mxu0 0.0
    %10072 = vmatpush1.msra.mxu0 0.0
    %10073 = vmatprep.subr.mxu0 0.0
    %10074 = vmatpush1.msra.mxu0 0.0
    %10075 = vmatprep.mubr.f32.mxu0 0.0
    %10076 = vmatmul.mubr.f32.gmra.mrb[0].mxu0 %v9964
    %v10077 = vpop.f32.mrb[0].mxu0
    %v10078 = vadd.f32 0.0, %v10077
    %v10079 = vpop.f32.mrb[0].mxu0
    %10080 = vmatprep.mubr.f32.mxu0 0.0
    %10081 = vmatmul.mubr.f32.gmra.mrb[0].mxu0 %v9967
    %v10082 = vpop.f32.mrb[0].mxu0
    %v10083 = vadd.f32 0.0, %v10082
    %v10084 = vpop.f32.mrb[0].mxu0
    %10085 = vmatprep.mubr.f32.mxu0 0.0
    %10086 = vmatmul.mubr.f32.gmra.mrb[0].mxu0 %v9970
    %v10087 = vpop.f32.mrb[0].mxu0
    %v10088 = vadd.f32 0.0, %v10087
    %v10089 = vpop.f32.mrb[0].mxu0
    %10090 = vmatprep.mubr.f32.mxu0 0.0
    %10091 = vmatmul.mubr.f32.gmra.mrb[0].mxu0 %v9973
    %v10092 = vpop.f32.mrb[0].mxu0
    %v10093 = vadd.f32 0.0, %v10092
    %v10094 = vpop.f32.mrb[0].mxu0
    %10095 = vmatprep.mubr.f32.mxu0 0.0
    %10096 = vmatmul.mubr.f32.gmra.mrb[0].mxu0 %v9976
    %v10097 = vpop.f32.mrb[0].mxu0
    %v10098 = vadd.f32 0.0, %v10097
    %v10099 = vpop.f32.mrb[0].mxu0
    %10100 = vmatprep.mubr.f32.mxu0 0.0
    %10101 = vmatmul.mubr.f32.gmra.mrb[0].mxu0 %v9979
    %v10102 = vpop.f32.mrb[0].mxu0
    %v10103 = vadd.f32 0.0, %v10102
    %v10104 = vpop.f32.mrb[0].mxu0
    %10105 = vmatprep.mubr.f32.mxu0 0.0
    %10106 = vmatmul.mubr.f32.gmra.mrb[0].mxu0 %v9982
    %v10107 = vpop.f32.mrb[0].mxu0
    %v10108 = vadd.f32 0.0, %v10107
    %v10109 = vpop.f32.mrb[0].mxu0
    %10110 = vmatprep.mubr.f32.mxu0 0.0
    %10111 = vmatmul.mubr.f32.gmra.mrb[0].mxu0 %v9985
    %v10112 = vpop.f32.mrb[0].mxu0
    %v10113 = vadd.f32 0.0, %v10112
    %v10114 = vpop.f32.mrb[0].mxu0
    %10115 = vmatprep.mubr.f32.mxu0 0.0
    %10116 = vmatmul.mubr.f32.gmra.mrb[0].mxu0 %v9988
    %v10117 = vpop.f32.mrb[0].mxu0
    %v10118 = vadd.f32 0.0, %v10117
    %v10119 = vpop.f32.mrb[0].mxu0
    %10120 = vmatprep.mubr.f32.mxu0 0.0
    %10121 = vmatmul.mubr.f32.gmra.mrb[0].mxu0 %v9991
    %v10122 = vpop.f32.mrb[0].mxu0
    %v10123 = vadd.f32 0.0, %v10122
    %v10124 = vpop.f32.mrb[0].mxu0
    %10125 = vmatprep.mubr.f32.mxu0 0.0
    %10126 = vmatmul.mubr.f32.gmra.mrb[0].mxu0 %v9994
    %v10127 = vpop.f32.mrb[0].mxu0
    %v10128 = vadd.f32 0.0, %v10127
    %v10129 = vpop.f32.mrb[0].mxu0
    %10130 = vmatprep.mubr.f32.mxu0 0.0
    %10131 = vmatmul.mubr.f32.gmra.mrb[0].mxu0 %v9997
    %v10132 = vpop.f32.mrb[0].mxu0
    %v10133 = vadd.f32 0.0, %v10132
    %v10134 = vpop.f32.mrb[0].mxu0
    %10135 = vmatprep.mubr.f32.mxu0 0.0
    %10136 = vmatmul.mubr.f32.gmra.mrb[0].mxu0 %v10000
    %v10137 = vpop.f32.mrb[0].mxu0
    %v10138 = vadd.f32 0.0, %v10137
    %v10139 = vpop.f32.mrb[0].mxu0
    %10140 = vmatprep.mubr.f32.mxu0 0.0
    %10141 = vmatmul.mubr.f32.gmra.mrb[0].mxu0 %v10003
    %v10142 = vpop.f32.mrb[0].mxu0
    %v10143 = vadd.f32 0.0, %v10142
    %v10144 = vpop.f32.mrb[0].mxu0
    %10145 = vmatprep.mubr.f32.mxu0 0.0
    %10146 = vmatmul.mubr.f32.gmra.mrb[0].mxu0 %v10006
    %v10147 = vpop.f32.mrb[0].mxu0
    %v10148 = vadd.f32 0.0, %v10147
    %v10149 = vpop.f32.mrb[0].mxu0
    %10150 = vmatprep.mubr.f32.mxu0 0.0
    %10151 = vmatmul.mubr.f32.gmra.mrb[0].mxu0 %v10009
    %v10152 = vpop.f32.mrb[0].mxu0
    %v10153 = vadd.f32 0.0, %v10152
    %v10154 = vpop.f32.mrb[0].mxu0
    %10155 = vdwg.mxu0
    %10157 = vset.pattern.permute.xlu0 0
    %10158 = vperm.xlu0 %10157, %v10078
    %v10159 = vpop.permute.xlu0 %10158
    %10162 = vset.pattern.permute.xlu0 0
    %10163 = vperm.xlu0 %10162, %v10083
    %v10164 = vpop.permute.xlu0 %10163
    %10167 = vset.pattern.permute.xlu0 0
    %10168 = vperm.xlu0 %10167, %v10088
    %v10169 = vpop.permute.xlu0 %10168
    %10172 = vset.pattern.permute.xlu0 0
    %10173 = vperm.xlu0 %10172, %v10093
    %v10174 = vpop.permute.xlu0 %10173
    %10177 = vset.pattern.permute.xlu0 0
    %10178 = vperm.xlu0 %10177, %v10098
    %v10179 = vpop.permute.xlu0 %10178
    %10182 = vset.pattern.permute.xlu0 0
    %10183 = vperm.xlu0 %10182, %v10103
    %v10184 = vpop.permute.xlu0 %10183
    %10187 = vset.pattern.permute.xlu0 0
    %10188 = vperm.xlu0 %10187, %v10108
    %v10189 = vpop.permute.xlu0 %10188
    %10192 = vset.pattern.permute.xlu0 0
    %10193 = vperm.xlu0 %10192, %v10113
    %v10194 = vpop.permute.xlu0 %10193
    %10197 = vset.pattern.permute.xlu0 0
    %10198 = vperm.xlu0 %10197, %v10118
    %v10199 = vpop.permute.xlu0 %10198
    %10202 = vset.pattern.permute.xlu0 0
    %10203 = vperm.xlu0 %10202, %v10123
    %v10204 = vpop.permute.xlu0 %10203
    %10207 = vset.pattern.permute.xlu0 0
    %10208 = vperm.xlu0 %10207, %v10128
    %v10209 = vpop.permute.xlu0 %10208
    %10212 = vset.pattern.permute.xlu0 0
    %10213 = vperm.xlu0 %10212, %v10133
    %v10214 = vpop.permute.xlu0 %10213
    %10217 = vset.pattern.permute.xlu0 0
    %10218 = vperm.xlu0 %10217, %v10138
    %v10219 = vpop.permute.xlu0 %10218
    %10222 = vset.pattern.permute.xlu0 0
    %10223 = vperm.xlu0 %10222, %v10143
    %v10224 = vpop.permute.xlu0 %10223
    %10227 = vset.pattern.permute.xlu0 0
    %10228 = vperm.xlu0 %10227, %v10148
    %v10229 = vpop.permute.xlu0 %10228
    %10232 = vset.pattern.permute.xlu0 0
    %10233 = vperm.xlu0 %10232, %v10153
    %v10234 = vpop.permute.xlu0 %10233
    %v10236 = vmul.f32 %v5625, %v10159
    %v10237 = vmul.f32 %v5626, %v10164
    %v10238 = vmul.f32 %v5627, %v10169
    %v10239 = vmul.f32 %v5628, %v10174
    %v10240 = vmul.f32 %v5629, %v10179
    %v10241 = vmul.f32 %v5630, %v10184
    %v10242 = vmul.f32 %v5631, %v10189
    %v10243 = vmul.f32 %v5632, %v10194
    %v10244 = vmul.f32 %v5633, %v10199
    %v10245 = vmul.f32 %v5634, %v10204
    %v10246 = vmul.f32 %v5635, %v10209
    %v10247 = vmul.f32 %v5636, %v10214
    %v10248 = vmul.f32 %v5637, %v10219
    %v10249 = vmul.f32 %v5638, %v10224
    %v10250 = vmul.f32 %v5639, %v10229
    %v10251 = vmul.f32 %v5640, %v10234
    %v10252 = vmul.f32 %v10236, %v1658
    %v10253 = vmul.f32 %v10237, %v1663
    %v10254 = vmul.f32 %v10238, %v1668
    %v10255 = vmul.f32 %v10239, %v1673
    %v10256 = vmul.f32 %v10240, %v1678
    %v10257 = vmul.f32 %v10241, %v1683
    %v10258 = vmul.f32 %v10242, %v1688
    %v10259 = vmul.f32 %v10243, %v1693
    %v10260 = vmul.f32 %v10244, %v1698
    %v10261 = vmul.f32 %v10245, %v1703
    %v10262 = vmul.f32 %v10246, %v1708
    %v10263 = vmul.f32 %v10247, %v1713
    %v10264 = vmul.f32 %v10248, %v1718
    %v10265 = vmul.f32 %v10249, %v1723
    %v10266 = vmul.f32 %v10250, %v1728
    %v10267 = vmul.f32 %v10251, %v1733
    %v10268 = vsel %vm293, %v10252, 0.0
    %v10269 = vrot.slane %v10268, 4
    %v10270 = vadd.f32 %v10268, %v10269
    %v10271 = vrot.slane %v10270, 2
    %v10272 = vadd.f32 %v10270, %v10271
    %v10273 = vrot.slane %v10272, 1
    %v10274 = vadd.f32 %v10272, %v10273
    %v10275 = vsel %vm293, %v10253, 0.0
    %v10276 = vrot.slane %v10275, 4
    %v10277 = vadd.f32 %v10275, %v10276
    %v10278 = vrot.slane %v10277, 2
    %v10279 = vadd.f32 %v10277, %v10278
    %v10280 = vrot.slane %v10279, 1
    %v10281 = vadd.f32 %v10279, %v10280
    %v10282 = vsel %vm293, %v10254, 0.0
    %v10283 = vrot.slane %v10282, 4
    %v10284 = vadd.f32 %v10282, %v10283
    %v10285 = vrot.slane %v10284, 2
    %v10286 = vadd.f32 %v10284, %v10285
    %v10287 = vrot.slane %v10286, 1
    %v10288 = vadd.f32 %v10286, %v10287
    %v10289 = vsel %vm293, %v10255, 0.0
    %v10290 = vrot.slane %v10289, 4
    %v10291 = vadd.f32 %v10289, %v10290
    %v10292 = vrot.slane %v10291, 2
    %v10293 = vadd.f32 %v10291, %v10292
    %v10294 = vrot.slane %v10293, 1
    %v10295 = vadd.f32 %v10293, %v10294
    %v10296 = vsel %vm293, %v10256, 0.0
    %v10297 = vrot.slane %v10296, 4
    %v10298 = vadd.f32 %v10296, %v10297
    %v10299 = vrot.slane %v10298, 2
    %v10300 = vadd.f32 %v10298, %v10299
    %v10301 = vrot.slane %v10300, 1
    %v10302 = vadd.f32 %v10300, %v10301
    %v10303 = vsel %vm293, %v10257, 0.0
    %v10304 = vrot.slane %v10303, 4
    %v10305 = vadd.f32 %v10303, %v10304
    %v10306 = vrot.slane %v10305, 2
    %v10307 = vadd.f32 %v10305, %v10306
    %v10308 = vrot.slane %v10307, 1
    %v10309 = vadd.f32 %v10307, %v10308
    %v10310 = vsel %vm293, %v10258, 0.0
    %v10311 = vrot.slane %v10310, 4
    %v10312 = vadd.f32 %v10310, %v10311
    %v10313 = vrot.slane %v10312, 2
    %v10314 = vadd.f32 %v10312, %v10313
    %v10315 = vrot.slane %v10314, 1
    %v10316 = vadd.f32 %v10314, %v10315
    %v10317 = vsel %vm293, %v10259, 0.0
    %v10318 = vrot.slane %v10317, 4
    %v10319 = vadd.f32 %v10317, %v10318
    %v10320 = vrot.slane %v10319, 2
    %v10321 = vadd.f32 %v10319, %v10320
    %v10322 = vrot.slane %v10321, 1
    %v10323 = vadd.f32 %v10321, %v10322
    %v10324 = vsel %vm293, %v10260, 0.0
    %v10325 = vrot.slane %v10324, 4
    %v10326 = vadd.f32 %v10324, %v10325
    %v10327 = vrot.slane %v10326, 2
    %v10328 = vadd.f32 %v10326, %v10327
    %v10329 = vrot.slane %v10328, 1
    %v10330 = vadd.f32 %v10328, %v10329
    %v10331 = vsel %vm293, %v10261, 0.0
    %v10332 = vrot.slane %v10331, 4
    %v10333 = vadd.f32 %v10331, %v10332
    %v10334 = vrot.slane %v10333, 2
    %v10335 = vadd.f32 %v10333, %v10334
    %v10336 = vrot.slane %v10335, 1
    %v10337 = vadd.f32 %v10335, %v10336
    %v10338 = vsel %vm293, %v10262, 0.0
    %v10339 = vrot.slane %v10338, 4
    %v10340 = vadd.f32 %v10338, %v10339
    %v10341 = vrot.slane %v10340, 2
    %v10342 = vadd.f32 %v10340, %v10341
    %v10343 = vrot.slane %v10342, 1
    %v10344 = vadd.f32 %v10342, %v10343
    %v10345 = vsel %vm293, %v10263, 0.0
    %v10346 = vrot.slane %v10345, 4
    %v10347 = vadd.f32 %v10345, %v10346
    %v10348 = vrot.slane %v10347, 2
    %v10349 = vadd.f32 %v10347, %v10348
    %v10350 = vrot.slane %v10349, 1
    %v10351 = vadd.f32 %v10349, %v10350
    %v10352 = vsel %vm293, %v10264, 0.0
    %v10353 = vrot.slane %v10352, 4
    %v10354 = vadd.f32 %v10352, %v10353
    %v10355 = vrot.slane %v10354, 2
    %v10356 = vadd.f32 %v10354, %v10355
    %v10357 = vrot.slane %v10356, 1
    %v10358 = vadd.f32 %v10356, %v10357
    %v10359 = vsel %vm293, %v10265, 0.0
    %v10360 = vrot.slane %v10359, 4
    %v10361 = vadd.f32 %v10359, %v10360
    %v10362 = vrot.slane %v10361, 2
    %v10363 = vadd.f32 %v10361, %v10362
    %v10364 = vrot.slane %v10363, 1
    %v10365 = vadd.f32 %v10363, %v10364
    %v10366 = vsel %vm293, %v10266, 0.0
    %v10367 = vrot.slane %v10366, 4
    %v10368 = vadd.f32 %v10366, %v10367
    %v10369 = vrot.slane %v10368, 2
    %v10370 = vadd.f32 %v10368, %v10369
    %v10371 = vrot.slane %v10370, 1
    %v10372 = vadd.f32 %v10370, %v10371
    %v10373 = vsel %vm293, %v10267, 0.0
    %v10374 = vrot.slane %v10373, 4
    %v10375 = vadd.f32 %v10373, %v10374
    %v10376 = vrot.slane %v10375, 2
    %v10377 = vadd.f32 %v10375, %v10376
    %v10378 = vrot.slane %v10377, 1
    %v10379 = vadd.f32 %v10377, %v10378
    %v10396 = vsel %vm1889, %v10281, %v10274
    %v10397 = vsel %vm1891, %v10288, %v10396
    %v10398 = vsel %vm1893, %v10295, %v10397
    %v10399 = vsel %vm1895, %v10302, %v10398
    %v10400 = vsel %vm1897, %v10309, %v10399
    %v10401 = vsel %vm1899, %v10316, %v10400
    %v10402 = vsel %vm1901, %v10323, %v10401
    %v10403 = vsel %vm1889, %v10337, %v10330
    %v10404 = vsel %vm1891, %v10344, %v10403
    %v10405 = vsel %vm1893, %v10351, %v10404
    %v10406 = vsel %vm1895, %v10358, %v10405
    %v10407 = vsel %vm1897, %v10365, %v10406
    %v10408 = vsel %vm1899, %v10372, %v10407
    %v10409 = vsel %vm1901, %v10379, %v10408
    %v10412 = vadd.f32 %v5329, %v10402
    %v10413 = vadd.f32 %v5330, %v10409
    %v10414 = vmul.f32 %v10412, %v72
    %v10415 = vmul.f32 %v10413, %v77
    %v10416 = vmul.f32 %v8836, %v72
    %v10417 = vmul.f32 %v8837, %v77
    %s10418 = scalar_lea.vmem [#allocation2], 960
    %v10419 = vld [vmem:[%s10418] sm:$0xff]
    %v10420 = vld [vmem:[%s10418 + $0x8] sm:$0xff]
    %v10421 = vld [vmem:[%s10418 + $0x10] sm:$0xff]
    %v10422 = vld [vmem:[%s10418 + $0x18] sm:$0xff]
    %s10423 = scalar_lea.vmem %s4, 21
    %v10424 = vld [vmem:[%s10423] sm:$0x1]
    %v10426 = vlaneseq
    %v10427 = vshrl.u32 %v10426, 7
    %v10428 = vsub.s32 0, %v10427
    %v10429 = vrot.slane %v10424, %v10428
    %v10432 = vsel %vm660, %v10416, 0
    %v10435 = vsel %vm660, %v10417, 0
    %10437 = vmatprep.subr.mxu0 0.0
    %10438 = vmatpush1.msra.mxu0 %v10419
    %10439 = vmatprep.subr.mxu0 0.0
    %10440 = vmatpush1.msra.mxu0 %v10420
    %10441 = vmatprep.subr.mxu0 0.0
    %10442 = vmatpush1.msra.mxu0 %v10421
    %10443 = vmatprep.subr.mxu0 0.0
    %10444 = vmatpush1.msra.mxu0 %v10422
    %10445 = vmatprep.subr.mxu0 0.0
    %10446 = vmatpush1.msra.mxu0 0.0
    %10447 = vmatprep.subr.mxu0 0.0
    %10448 = vmatpush1.msra.mxu0 0.0
    %10449 = vmatprep.subr.mxu0 0.0
    %10450 = vmatpush1.msra.mxu0 0.0
    %10451 = vmatprep.subr.mxu0 0.0
    %10452 = vmatpush1.msra.mxu0 0.0
    %10453 = vmatprep.subr.mxu0 0.0
    %10454 = vmatpush1.msra.mxu0 0.0
    %10455 = vmatprep.subr.mxu0 0.0
    %10456 = vmatpush1.msra.mxu0 0.0
    %10457 = vmatprep.subr.mxu0 0.0
    %10458 = vmatpush1.msra.mxu0 0.0
    %10459 = vmatprep.subr.mxu0 0.0
    %10460 = vmatpush1.msra.mxu0 0.0
    %10461 = vmatprep.subr.mxu0 0.0
    %10462 = vmatpush1.msra.mxu0 0.0
    %10463 = vmatprep.subr.mxu0 0.0
    %10464 = vmatpush1.msra.mxu0 0.0
    %10465 = vmatprep.subr.mxu0 0.0
    %10466 = vmatpush1.msra.mxu0 0.0
    %10467 = vmatprep.subr.mxu0 0.0
    %10468 = vmatpush1.msra.mxu0 0.0
    %10469 = vmatprep.subr.mxu0 0.0
    %10470 = vmatpush1.msra.mxu0 0.0
    %10471 = vmatprep.subr.mxu0 0.0
    %10472 = vmatpush1.msra.mxu0 0.0
    %10473 = vmatprep.subr.mxu0 0.0
    %10474 = vmatpush1.msra.mxu0 0.0
    %10475 = vmatprep.subr.mxu0 0.0
    %10476 = vmatpush1.msra.mxu0 0.0
    %10477 = vmatprep.subr.mxu0 0.0
    %10478 = vmatpush1.msra.mxu0 0.0
    %10479 = vmatprep.subr.mxu0 0.0
    %10480 = vmatpush1.msra.mxu0 0.0
    %10481 = vmatprep.subr.mxu0 0.0
    %10482 = vmatpush1.msra.mxu0 0.0
    %10483 = vmatprep.subr.mxu0 0.0
    %10484 = vmatpush1.msra.mxu0 0.0
    %10485 = vmatprep.subr.mxu0 0.0
    %10486 = vmatpush1.msra.mxu0 0.0
    %10487 = vmatprep.subr.mxu0 0.0
    %10488 = vmatpush1.msra.mxu0 0.0
    %10489 = vmatprep.subr.mxu0 0.0
    %10490 = vmatpush1.msra.mxu0 0.0
    %10491 = vmatprep.subr.mxu0 0.0
    %10492 = vmatpush1.msra.mxu0 0.0
    %10493 = vmatprep.subr.mxu0 0.0
    %10494 = vmatpush1.msra.mxu0 0.0
    %10495 = vmatprep.subr.mxu0 0.0
    %10496 = vmatpush1.msra.mxu0 0.0
    %10497 = vmatprep.subr.mxu0 0.0
    %10498 = vmatpush1.msra.mxu0 0.0
    %10499 = vmatprep.subr.mxu0 0.0
    %10500 = vmatpush1.msra.mxu0 0.0
    %10501 = vmatprep.mubr.f32.mxu0 0.0
    %10502 = vmatmul.mubr.f32.gmra.mrb[0].mxu0 %v10432
    %v10503 = vpop.f32.mrb[0].mxu0
    %v10504 = vadd.f32 %v10429, %v10503
    %v10505 = vpop.f32.mrb[0].mxu0
    %10506 = vmatprep.mubr.f32.mxu0 0.0
    %10507 = vmatmul.mubr.f32.gmra.mrb[0].mxu0 %v10435
    %v10508 = vpop.f32.mrb[0].mxu0
    %v10509 = vadd.f32 %v10429, %v10508
    %v10510 = vpop.f32.mrb[0].mxu0
    %10511 = vdwg.mxu0
    %v10512 = vmul.f32 %v10504, %v72
    %v10513 = vmul.f32 %v10509, %v77
    %v10514 = vmul.f32 %v10414, %v72
    %v10515 = vmul.f32 %v10415, %v77
    %v10516 = vsel %vm5641, %v51, 0.0
    %v10517 = vrot.slane %v10516, 4
    %v10518 = vadd.f32 %v10516, %v10517
    %v10519 = vrot.slane %v10518, 2
    %v10520 = vadd.f32 %v10518, %v10519
    %v10521 = vrot.slane %v10520, 1
    %v10522 = vadd.f32 %v10520, %v10521
    %v10523 = vsel %vm5641, %v52, 0.0
    %v10524 = vrot.slane %v10523, 4
    %v10525 = vadd.f32 %v10523, %v10524
    %v10526 = vrot.slane %v10525, 2
    %v10527 = vadd.f32 %v10525, %v10526
    %v10528 = vrot.slane %v10527, 1
    %v10529 = vadd.f32 %v10527, %v10528
    %v10530 = vsel %vm293, %v10514, 0.0
    %v10531 = vrot.slane %v10530, 4
    %v10532 = vadd.f32 %v10530, %v10531
    %v10533 = vrot.slane %v10532, 2
    %v10534 = vadd.f32 %v10532, %v10533
    %v10535 = vrot.slane %v10534, 1
    %v10536 = vadd.f32 %v10534, %v10535
    %v10537 = vsel %vm293, %v10515, 0.0
    %v10538 = vrot.slane %v10537, 4
    %v10539 = vadd.f32 %v10537, %v10538
    %v10540 = vrot.slane %v10539, 2
    %v10541 = vadd.f32 %v10539, %v10540
    %v10542 = vrot.slane %v10541, 1
    %v10543 = vadd.f32 %v10541, %v10542
    %10545 = vset.pattern.permute.xlu0 0
    %10546 = vperm.xlu0 %10545, %v10522
    %v10547 = vpop.permute.xlu0 %10546
    %10550 = vset.pattern.permute.xlu0 0
    %10551 = vperm.xlu0 %10550, %v10529
    %v10552 = vpop.permute.xlu0 %10551
    %v10554 = vrcp.pop %v10547
    %v10555 = vmul.f32 %v10536, %v10554
    %v10556 = vrcp.pop %v10552
    %v10557 = vmul.f32 %v10543, %v10556
    %v10558 = vmul.f32 %v10555, %v72
    %v10559 = vmul.f32 %v10557, %v77
    %v10560 = vsub.f32 %v10514, %v10558
    %v10561 = vsub.f32 %v10515, %v10559
    %s10562 = scalar_lea.vmem [#allocation2], 992
    %v10563 = vld [vmem:[%s10562] sm:$0xff]
    %v10564 = vld [vmem:[%s10562 + $0x8] sm:$0xff]
    %v10565 = vld [vmem:[%s10562 + $0x10] sm:$0xff]
    %v10566 = vld [vmem:[%s10562 + $0x18] sm:$0xff]
    %s10567 = scalar_lea.vmem %s4, 22
    %v10568 = vld [vmem:[%s10567] sm:$0x1]
    %v10570 = vlaneseq
    %v10571 = vshrl.u32 %v10570, 7
    %v10572 = vsub.s32 0, %v10571
    %v10573 = vrot.slane %v10568, %v10572
    %v10576 = vsel %vm660, %v10512, 0
    %v10579 = vsel %vm660, %v10513, 0
    %10581 = vmatprep.subr.mxu0 0.0
    %10582 = vmatpush1.msra.mxu0 %v10563
    %10583 = vmatprep.subr.mxu0 0.0
    %10584 = vmatpush1.msra.mxu0 %v10564
    %10585 = vmatprep.subr.mxu0 0.0
    %10586 = vmatpush1.msra.mxu0 %v10565
    %10587 = vmatprep.subr.mxu0 0.0
    %10588 = vmatpush1.msra.mxu0 %v10566
    %10589 = vmatprep.subr.mxu0 0.0
    %10590 = vmatpush1.msra.mxu0 0.0
    %10591 = vmatprep.subr.mxu0 0.0
    %10592 = vmatpush1.msra.mxu0 0.0
    %10593 = vmatprep.subr.mxu0 0.0
    %10594 = vmatpush1.msra.mxu0 0.0
    %10595 = vmatprep.subr.mxu0 0.0
    %10596 = vmatpush1.msra.mxu0 0.0
    %10597 = vmatprep.subr.mxu0 0.0
    %10598 = vmatpush1.msra.mxu0 0.0
    %10599 = vmatprep.subr.mxu0 0.0
    %10600 = vmatpush1.msra.mxu0 0.0
    %10601 = vmatprep.subr.mxu0 0.0
    %10602 = vmatpush1.msra.mxu0 0.0
    %10603 = vmatprep.subr.mxu0 0.0
    %10604 = vmatpush1.msra.mxu0 0.0
    %10605 = vmatprep.subr.mxu0 0.0
    %10606 = vmatpush1.msra.mxu0 0.0
    %10607 = vmatprep.subr.mxu0 0.0
    %10608 = vmatpush1.msra.mxu0 0.0
    %10609 = vmatprep.subr.mxu0 0.0
    %10610 = vmatpush1.msra.mxu0 0.0
    %10611 = vmatprep.subr.mxu0 0.0
    %10612 = vmatpush1.msra.mxu0 0.0
    %10613 = vmatprep.subr.mxu0 0.0
    %10614 = vmatpush1.msra.mxu0 0.0
    %10615 = vmatprep.subr.mxu0 0.0
    %10616 = vmatpush1.msra.mxu0 0.0
    %10617 = vmatprep.subr.mxu0 0.0
    %10618 = vmatpush1.msra.mxu0 0.0
    %10619 = vmatprep.subr.mxu0 0.0
    %10620 = vmatpush1.msra.mxu0 0.0
    %10621 = vmatprep.subr.mxu0 0.0
    %10622 = vmatpush1.msra.mxu0 0.0
    %10623 = vmatprep.subr.mxu0 0.0
    %10624 = vmatpush1.msra.mxu0 0.0
    %10625 = vmatprep.subr.mxu0 0.0
    %10626 = vmatpush1.msra.mxu0 0.0
    %10627 = vmatprep.subr.mxu0 0.0
    %10628 = vmatpush1.msra.mxu0 0.0
    %10629 = vmatprep.subr.mxu0 0.0
    %10630 = vmatpush1.msra.mxu0 0.0
    %10631 = vmatprep.subr.mxu0 0.0
    %10632 = vmatpush1.msra.mxu0 0.0
    %10633 = vmatprep.subr.mxu0 0.0
    %10634 = vmatpush1.msra.mxu0 0.0
    %10635 = vmatprep.subr.mxu0 0.0
    %10636 = vmatpush1.msra.mxu0 0.0
    %10637 = vmatprep.subr.mxu0 0.0
    %10638 = vmatpush1.msra.mxu0 0.0
    %10639 = vmatprep.subr.mxu0 0.0
    %10640 = vmatpush1.msra.mxu0 0.0
    %10641 = vmatprep.subr.mxu0 0.0
    %10642 = vmatpush1.msra.mxu0 0.0
    %10643 = vmatprep.subr.mxu0 0.0
    %10644 = vmatpush1.msra.mxu0 0.0
    %10645 = vmatprep.mubr.f32.mxu0 0.0
    %10646 = vmatmul.mubr.f32.gmra.mrb[0].mxu0 %v10576
    %v10647 = vpop.f32.mrb[0].mxu0
    %v10648 = vadd.f32 %v10573, %v10647
    %v10649 = vpop.f32.mrb[0].mxu0
    %10650 = vmatprep.mubr.f32.mxu0 0.0
    %10651 = vmatmul.mubr.f32.gmra.mrb[0].mxu0 %v10579
    %v10652 = vpop.f32.mrb[0].mxu0
    %v10653 = vadd.f32 %v10573, %v10652
    %v10654 = vpop.f32.mrb[0].mxu0
    %10655 = vdwg.mxu0
    %v10656 = vxor.u32 %v10648, 2147483648
    %v10657 = vxor.u32 %v10653, 2147483648
    %v10658 = vmul.f32 %v10656, 1.442695
    %v10659 = vpow.pop %v10658
    %v10660 = vmul.f32 %v10657, 1.442695
    %v10661 = vpow.pop %v10660
    %v10662 = vadd.f32 %v10659, 1.0
    %v10663 = vadd.f32 %v10661, 1.0
    %v10664 = vrcp.pop %v10662
    %v10665 = vmul.f32 1.0, %v10664
    %v10666 = vrcp.pop %v10663
    %v10667 = vmul.f32 1.0, %v10666
    %v10668 = vmul.f32 %v10648, %v10665
    %v10669 = vmul.f32 %v10653, %v10667
    %v10670 = vld [vmem:[%s8] sm:$0xff]
    %v10671 = vld [vmem:[%s8 + $0x8] sm:$0xff]
    %v10672 = vld [vmem:[%s8 + $0x10] sm:$0xff]
    %v10673 = vld [vmem:[%s8 + $0x18] sm:$0xff]
    %v10674 = vld [vmem:[%s9] sm:$0x1]
    %v10676 = vlaneseq
    %v10677 = vshrl.u32 %v10676, 7
    %v10678 = vsub.s32 0, %v10677
    %v10679 = vrot.slane %v10674, %v10678
    %v10682 = vsel %vm660, %v10668, 0
    %v10685 = vsel %vm660, %v10669, 0
    %10687 = vmatprep.subr.mxu0 0.0
    %10688 = vmatpush1.msra.mxu0 %v10670
    %10689 = vmatprep.subr.mxu0 0.0
    %10690 = vmatpush1.msra.mxu0 %v10671
    %10691 = vmatprep.subr.mxu0 0.0
    %10692 = vmatpush1.msra.mxu0 %v10672
    %10693 = vmatprep.subr.mxu0 0.0
    %10694 = vmatpush1.msra.mxu0 %v10673
    %10695 = vmatprep.subr.mxu0 0.0
    %10696 = vmatpush1.msra.mxu0 0.0
    %10697 = vmatprep.subr.mxu0 0.0
    %10698 = vmatpush1.msra.mxu0 0.0
    %10699 = vmatprep.subr.mxu0 0.0
    %10700 = vmatpush1.msra.mxu0 0.0
    %10701 = vmatprep.subr.mxu0 0.0
    %10702 = vmatpush1.msra.mxu0 0.0
    %10703 = vmatprep.subr.mxu0 0.0
    %10704 = vmatpush1.msra.mxu0 0.0
    %10705 = vmatprep.subr.mxu0 0.0
    %10706 = vmatpush1.msra.mxu0 0.0
    %10707 = vmatprep.subr.mxu0 0.0
    %10708 = vmatpush1.msra.mxu0 0.0
    %10709 = vmatprep.subr.mxu0 0.0
    %10710 = vmatpush1.msra.mxu0 0.0
    %10711 = vmatprep.subr.mxu0 0.0
    %10712 = vmatpush1.msra.mxu0 0.0
    %10713 = vmatprep.subr.mxu0 0.0
    %10714 = vmatpush1.msra.mxu0 0.0
    %10715 = vmatprep.subr.mxu0 0.0
    %10716 = vmatpush1.msra.mxu0 0.0
    %10717 = vmatprep.subr.mxu0 0.0
    %10718 = vmatpush1.msra.mxu0 0.0
    %10719 = vmatprep.subr.mxu0 0.0
    %10720 = vmatpush1.msra.mxu0 0.0
    %10721 = vmatprep.subr.mxu0 0.0
    %10722 = vmatpush1.msra.mxu0 0.0
    %10723 = vmatprep.subr.mxu0 0.0
    %10724 = vmatpush1.msra.mxu0 0.0
    %10725 = vmatprep.subr.mxu0 0.0
    %10726 = vmatpush1.msra.mxu0 0.0
    %10727 = vmatprep.subr.mxu0 0.0
    %10728 = vmatpush1.msra.mxu0 0.0
    %10729 = vmatprep.subr.mxu0 0.0
    %10730 = vmatpush1.msra.mxu0 0.0
    %10731 = vmatprep.subr.mxu0 0.0
    %10732 = vmatpush1.msra.mxu0 0.0
    %10733 = vmatprep.subr.mxu0 0.0
    %10734 = vmatpush1.msra.mxu0 0.0
    %10735 = vmatprep.subr.mxu0 0.0
    %10736 = vmatpush1.msra.mxu0 0.0
    %10737 = vmatprep.subr.mxu0 0.0
    %10738 = vmatpush1.msra.mxu0 0.0
    %10739 = vmatprep.subr.mxu0 0.0
    %10740 = vmatpush1.msra.mxu0 0.0
    %10741 = vmatprep.subr.mxu0 0.0
    %10742 = vmatpush1.msra.mxu0 0.0
    %10743 = vmatprep.subr.mxu0 0.0
    %10744 = vmatpush1.msra.mxu0 0.0
    %10745 = vmatprep.subr.mxu0 0.0
    %10746 = vmatpush1.msra.mxu0 0.0
    %10747 = vmatprep.subr.mxu0 0.0
    %10748 = vmatpush1.msra.mxu0 0.0
    %10749 = vmatprep.subr.mxu0 0.0
    %10750 = vmatpush1.msra.mxu0 0.0
    %10751 = vmatprep.mubr.f32.mxu0 0.0
    %10752 = vmatmul.mubr.f32.gmra.mrb[0].mxu0 %v10682
    %v10753 = vpop.f32.mrb[0].mxu0
    %v10754 = vadd.f32 %v10679, %v10753
    %v10755 = vpop.f32.mrb[0].mxu0
    %10756 = vmatprep.mubr.f32.mxu0 0.0
    %10757 = vmatmul.mubr.f32.gmra.mrb[0].mxu0 %v10685
    %v10758 = vpop.f32.mrb[0].mxu0
    %v10759 = vadd.f32 %v10679, %v10758
    %v10760 = vpop.f32.mrb[0].mxu0
    %10761 = vdwg.mxu0
    %v10762 = vmul.f32 %v10754, %v72
    %v10763 = vmul.f32 %v10759, %v77
    %v10764 = vsel %vm5641, %v10762, 0.0
    %v10765 = vrot.slane %v10764, 4
    %v10766 = vadd.f32 %v10764, %v10765
    %v10767 = vrot.slane %v10766, 2
    %v10768 = vadd.f32 %v10766, %v10767
    %v10769 = vrot.slane %v10768, 1
    %v10770 = vadd.f32 %v10768, %v10769
    %v10771 = vsel %vm5641, %v10763, 0.0
    %v10772 = vrot.slane %v10771, 4
    %v10773 = vadd.f32 %v10771, %v10772
    %v10774 = vrot.slane %v10773, 2
    %v10775 = vadd.f32 %v10773, %v10774
    %v10776 = vrot.slane %v10775, 1
    %v10777 = vadd.f32 %v10775, %v10776
    %v10778 = vmul.f32 %v10770, 0.5
    %v10779 = vmul.f32 %v10777, 0.5
    %v10780 = vmul.f32 %v10778, 1.442695
    %v10781 = vpow.pop %v10780
    %v10782 = vmul.f32 %v10779, 1.442695
    %v10783 = vpow.pop %v10782
    %v10784 = vmul.f32 %v10762, 0.5
    %v10785 = vmul.f32 %v10763, 0.5
    %v10786 = vmul.f32 %v10784, 1.442695
    %v10787 = vpow.pop %v10786
    %v10788 = vmul.f32 %v10785, 1.442695
    %v10789 = vpow.pop %v10788
    %10792 = vrot.lane.b32.xlu0 %v10781, 3
    %v10793 = vpop.permute.xlu0 %10792
    %10794 = vrot.lane.b32.xlu0 %v10783, 3
    %v10795 = vpop.permute.xlu0 %10794
    %10800 = vrot.lane.b32.xlu0 %v10762, 3
    %v10801 = vpop.permute.xlu0 %10800
    %10802 = vrot.lane.b32.xlu0 %v10763, 3
    %v10803 = vpop.permute.xlu0 %10802
    %10808 = vrot.lane.b32.xlu0 %v10787, 3
    %v10809 = vpop.permute.xlu0 %10808
    %10810 = vrot.lane.b32.xlu0 %v10789, 3
    %v10811 = vpop.permute.xlu0 %10810
    %v10814 = vsel %vm293, %v10560, %v10793
    %v10815 = vsel %vm293, %v10561, %v10795
    %vm10816 = vcmask 31744
    %v10817 = vsel %vm10816, %v10814, %v10801
    %v10818 = vsel %vm10816, %v10815, %v10803
    %v10819 = vsel %vm355, %v10817, %v10809
    %v10820 = vsel %vm355, %v10818, %v10811
    %vm10821 = vcmask 64512
    %10822 = vst.msk [vmem:[%s10] sm:$0xff] %vm10821, %v10819
    %10823 = vst.msk [vmem:[%s10 + $0x8] sm:$0xff] %vm10821, %v10820
    // Predicated region
    $region46: #{egnn_encoder_forward.1} parent=1 // pred_check
      _
    $region47: #{egnn_encoder_forward.1} parent=1 // pred_check_branch
      %10825 = sbr.rel (0) target = $region49
    $region48: #{egnn_encoder_forward.1} parent=1 // pred_region
      _
    $region49: #{egnn_encoder_forward.1} parent=1 // pred_fallthru
      _
    // Predicated region
    $region50: #{egnn_encoder_forward.1} parent=1 // pred_check
      _
    $region51: #{egnn_encoder_forward.1} parent=1 // pred_check_branch
      %10827 = sbr.rel (0) target = $region53
    $region52: #{egnn_encoder_forward.1} parent=1 // pred_region
      _
    $region53: #{egnn_encoder_forward.1} parent=1 // pred_fallthru
      _
    %10828 = vsyncpa [#allocation3], 1

</llo_original>
